<compile_context>
chip_gen: v7x
topology: tpu7x:2x2x1
jax: 0.10.0
libtpu: 0.0.40
codegen_flags: <defaults>
</compile_context>

<pallas_src>
import math

import jax
import jax.numpy as jnp
from jax.experimental import pallas as pl
from jax.experimental.pallas import tpu as pltpu

NEIGH = 27   # 3x3x3 periodic images (fixed by the module: torch.zeros(27))
NPAD = 32    # image axis padded 27 -> 32 for clean (8,128) tiling
CPAD = 8     # coordinate dim 3 zero-padded to 8
LANE = 128
EPS = 1e-5   # nn.LayerNorm default eps


def _layernorm(x, gamma, beta):
    mean = jnp.mean(x, axis=-1, keepdims=True)
    var = jnp.mean(jnp.square(x - mean), axis=-1, keepdims=True)
    return (x - mean) * jax.lax.rsqrt(var + EPS) * gamma + beta


def crystal_encoder_kernel(
    x_ref, coords_ref,
    w_pe_ref, b_pe_ref,
    ln1_g_ref, ln1_b_ref,
    wq_ref, bq_ref, wk_ref, bk_ref, wv_ref, bv_ref, wo_ref, bo_ref,
    ln2_g_ref, ln2_b_ref,
    w1_ref, b1_ref, w2_ref, b2_ref,
    out_ref,
):
    BT, D = x_ref.shape                       # crystals per grid step (power of 2), model dim
    npad = coords_ref.shape[0]                # padded image count (32)
    BTN = npad * BT
    mxu_dt = wq_ref.dtype                     # bf16 (default) or f32; accumulation is f32
    f32 = jnp.float32
    inv_sqrt_d = f32(1.0 / math.sqrt(D))

    x = x_ref[...]                                            # (BT, D)
    coords = coords_ref[...].reshape(BTN, coords_ref.shape[2])  # image-major: row = img*BT + b

    # --- position encoding: coord projection (tiny K=8 MXU pass, off critical slot)
    #     + per-crystal atom feature broadcast over the images.
    pe_flat = (jnp.dot(coords.astype(mxu_dt), w_pe_ref[...],
                       preferred_element_type=f32) + b_pe_ref[...])        # (BTN, D)
    atom_flat = (pe_flat.reshape(npad, BT, D) + x[None, :, :]).reshape(BTN, D)

    # --- SublayerConnection[0]: x + self_atten(LayerNorm(x)).
    # Only image 0 survives the pooling mask, so Q / ctx / O-proj are computed for a single
    # row per crystal; K, V and the softmax cover all (padded) images.
    # (Padded batch rows are constant -> LayerNorm gives beta; safe, discarded later.)
    h_flat = _layernorm(atom_flat, ln1_g_ref[...], ln1_b_ref[...])         # (BTN, D) f32
    h_mx = h_flat.astype(mxu_dt)
    k = jnp.dot(h_mx, wk_ref[...], preferred_element_type=f32) + bk_ref[...]   # (BTN, D)
    v = jnp.dot(h_mx, wv_ref[...], preferred_element_type=f32) + bv_ref[...]   # (BTN, D)

    # image-0 rows are the contiguous first BT rows (image-major layout)
    h0 = h_flat[:BT, :]                                                    # (BT, D)
    q = jnp.dot(h0.astype(mxu_dt), wq_ref[...], preferred_element_type=f32) + bq_ref[...]

    # scores[img, b] = q[b] . k[img*BT + b]  (f32 softmax over the image axis)
    k3 = k.reshape(npad, BT, D)
    scores = jnp.sum(q[None, :, :] * k3, axis=-1) * inv_sqrt_d             # (npad, BT)
    img_row = jax.lax.broadcasted_iota(jnp.int32, (npad, BT), 0)
    scores = jnp.where(img_row < NEIGH, scores, -jnp.inf)                  # mask padded images
    scores = scores - jnp.max(scores, axis=0, keepdims=True)
    p = jnp.exp(scores)
    attn = p * pl.reciprocal(jnp.sum(p, axis=0, keepdims=True), approx=False)  # (npad, BT)

    # --- attention context on the MXU: build A^T (BTN, BT) with
    #     A^T[c, r] = attn[c // BT, r] * (c % BT == r)  (block-diagonal per crystal),
    # then contract over the BTN axis.  Only a leading-dim merge reshape is needed.
    att_rows = jnp.broadcast_to(attn[:, None, :], (npad, BT, BT)).reshape(BTN, BT)
    crys = jax.lax.broadcasted_iota(jnp.int32, (BTN, BT), 0) & (BT - 1)    # c % BT (BT is 2^n)
    rsel = jax.lax.broadcasted_iota(jnp.int32, (BTN, BT), 1)
    a_t = jnp.where(crys == rsel, att_rows, 0.0)                           # (BTN, BT)
    ctx = jnp.einsum("cb,cd->bd", a_t.astype(mxu_dt), v.astype(mxu_dt),
                     preferred_element_type=f32)                           # (BT, D)

    attn_out = (jnp.dot(ctx.astype(mxu_dt), wo_ref[...],
                        preferred_element_type=f32) + bo_ref[...])         # (BT, D)

    # pooled = sum over images of (mask * t) == t[:, 0, :]  (contiguous slice)
    pooled = atom_flat[:BT, :] + attn_out                                  # (BT, D)

    # --- SublayerConnection[1]: x + feed_forward(LayerNorm(x))
    h2 = _layernorm(pooled, ln2_g_ref[...], ln2_b_ref[...])
    ff = jnp.maximum(
        jnp.dot(h2.astype(mxu_dt), w1_ref[...], preferred_element_type=f32) + b1_ref[...],
        0.0)
    ff = jnp.dot(ff.astype(mxu_dt), w2_ref[...], preferred_element_type=f32) + b2_ref[...]
    out = pooled + ff                                                      # (BT, D)

    # lane-dense store (out_ref may be the packed (BT*D/128, 128) layout)
    out_ref[...] = out.reshape(out_ref.shape).astype(out_ref.dtype)


def _default_block_b():
    """Per-generation batch tile: 128 on v5e/v6e (128 MiB VMEM, fill MXU rows on the
    small-M matmuls), 32 on v7x (64 MiB VMEM / TC, 2 TCs) and anything unknown."""
    try:
        kind = jax.devices()[0].device_kind.lower()
    except Exception:
        return 32
    if ("v5e" in kind) or ("v5 lite" in kind) or ("v5lite" in kind) or ("v6" in kind):
        return 128
    return 32


def crystal_encoder_layer(x, coords, params, *, block_b=None, mxu_dtype=jnp.bfloat16):
    """x: (B, D) f32; coords: (B, 27, 3) f32; params: see make_params.

    mxu_dtype: operand dtype for the MXU matmuls (f32 accumulation everywhere).
    """
    B, D = x.shape
    Dff = params["w1"].shape[1]
    f32 = jnp.float32

    bt = block_b if block_b is not None else _default_block_b()
    assert bt >= 8 and (bt & (bt - 1)) == 0, "block_b must be a power of two >= 8"
    # Halve the batch tile when B is small so the 'parallel' grid has >= 2 steps
    # (keeps both v7x TensorCores busy instead of a single grid step).
    while bt > 8 and B <= bt:
        bt //= 2
    grid_b = -(-B // bt)
    if grid_b < 2:
        grid_b = 2          # one extra (all-padding) step is cheap; enables the 2nd TC
    B_pad = grid_b * bt

    # --- wrapper-side padding / layout --------------------------------------
    x_p = jnp.zeros((B_pad, D), f32).at[:B].set(x.astype(f32))
    # image axis OUTERMOST: (NPAD, B_pad, CPAD) so image-0 rows are the contiguous
    # first BT rows of every per-step slab (no stride-BT sublane gather in the kernel).
    coords_p = jnp.zeros((NPAD, B_pad, CPAD), f32)
    coords_p = coords_p.at[:NEIGH, :B, :3].set(
        jnp.transpose(coords.astype(f32), (1, 0, 2)))

    # coord projection weight padded (3, D) -> (CPAD, D); matmul weights cast to MXU dtype.
    wd = mxu_dtype
    w_pe = jnp.zeros((CPAD, D), f32).at[:3].set(params["w_pe"]).astype(wd)
    wq = params["wq"].astype(wd)
    wk = params["wk"].astype(wd)
    wv = params["wv"].astype(wd)
    wo = params["wo"].astype(wd)
    w1 = params["w1"].astype(wd)
    w2 = params["w2"].astype(wd)

    weight_ops = [
        w_pe, params["b_pe"],
        params["ln1_g"], params["ln1_b"],
        wq, params["bq"], wk, params["bk"], wv, params["bv"], wo, params["bo"],
        params["ln2_g"], params["ln2_b"],
        w1, params["b1"], w2, params["b2"],
    ]

    # --- output layout: pack into full 128-lane rows only when D itself is not
    #     already lane-dense (D % 128 != 0) and the per-step slab tiles cleanly.
    pack = (D % LANE != 0) and ((bt * D) % (8 * LANE) == 0)
    if pack:
        out_shape = jax.ShapeDtypeStruct((B_pad * D // LANE, LANE), f32)
        out_spec = pl.BlockSpec((bt * D // LANE, LANE), lambda i: (i, 0))
    else:
        out_shape = jax.ShapeDtypeStruct((B_pad, D), f32)
        out_spec = pl.BlockSpec((bt, D), lambda i: (i, 0))

    # --- VMEM budget: weights (+double buffering if requested) + activation slabs + IO.
    slab = NPAD * bt * D * 4
    act_bytes = 7 * slab + NPAD * bt * bt * 4 + 2 * bt * Dff * 4 + 8 * bt * D * 4
    io_bytes = 2 * 4 * (bt * D + NPAD * bt * CPAD + bt * D)
    wbytes = sum(int(a.size) * a.dtype.itemsize for a in weight_ops)

    def _make_call(weight_single_buffered):
        spec_kw = {}
        if weight_single_buffered:
            # Constant-index weights: single-buffer them (default double-buffering only
            # doubles resident VMEM for blocks whose index never changes).
            spec_kw = dict(pipeline_mode=pl.Buffered(1))

        def const(shape):
            return pl.BlockSpec(shape, lambda i, _s=shape: tuple(0 for _ in _s), **spec_kw)

        in_specs = [
            pl.BlockSpec((bt, D), lambda i: (i, 0)),             # x
            pl.BlockSpec((NPAD, bt, CPAD), lambda i: (0, i, 0)),  # coords (image-major)
            const((CPAD, D)), const((1, D)),                     # W_pe, b_pe
            const((1, D)), const((1, D)),                        # ln1 gamma/beta
            const((D, D)), const((1, D)),                        # Wq, bq
            const((D, D)), const((1, D)),                        # Wk, bk
            const((D, D)), const((1, D)),                        # Wv, bv
            const((D, D)), const((1, D)),                        # Wo, bo
            const((1, D)), const((1, D)),                        # ln2 gamma/beta
            const((D, Dff)), const((1, Dff)),                    # W1, b1
            const((Dff, D)), const((1, D)),                      # W2, b2
        ]

        w_eff = wbytes * (1 if weight_single_buffered else 2)
        vmem_limit = int(min(max(w_eff + act_bytes + io_bytes + (4 << 20), 32 << 20),
                             64 << 20))
        return pl.pallas_call(
            crystal_encoder_kernel,
            out_shape=out_shape,
            grid_spec=pltpu.PrefetchScalarGridSpec(
                num_scalar_prefetch=0,
                grid=(grid_b,),
                in_specs=in_specs,
                out_specs=out_spec,
            ),
            compiler_params=pltpu.CompilerParams(
                dimension_semantics=("parallel",),
                vmem_limit_bytes=vmem_limit,
            ),
        )

    args = (x_p, coords_p, *weight_ops)
    try:
        out = jax.block_until_ready(_make_call(True)(*args))
    except Exception:
        # pl.Buffered(1) not supported by this jax/libtpu build; fall back to the
        # default double-buffered weight blocks (correctness unaffected).
        out = jax.block_until_ready(_make_call(False)(*args))

    return out.reshape(B_pad, D)[:B]


def reference_forward(x, coords, params):
    """Pure-JAX f32 reference mirroring the PyTorch semantics (full 27-image attention)."""
    pe = jnp.einsum("bnc,cd->bnd", coords, params["w_pe"]) + params["b_pe"]
    atom_reps = x[:, None, :] + pe                                   # (B, 27, D)

    h = _layernorm(atom_reps, params["ln1_g"], params["ln1_b"])
    q = h @ params["wq"] + params["bq"]
    k = h @ params["wk"] + params["bk"]
    v = h @ params["wv"] + params["bv"]
    scores = jnp.einsum("bqd,bkd->bqk", q, k) / jnp.sqrt(jnp.float32(x.shape[-1]))
    attn = jax.nn.softmax(scores, axis=-1)
    ctx = jnp.einsum("bqk,bkd->bqd", attn, v)
    attn_out = ctx @ params["wo"] + params["bo"]
    t = atom_reps + attn_out                                         # (B, 27, D)

    mask = jnp.zeros((NEIGH, 1), jnp.float32).at[0, 0].set(1.0)
    pooled = jnp.sum(mask[None] * t, axis=1)                         # (B, D)

    h2 = _layernorm(pooled, params["ln2_g"], params["ln2_b"])
    ff = jnp.maximum(h2 @ params["w1"] + params["b1"], 0.0) @ params["w2"] + params["b2"]
    return pooled + ff


def make_params(key, d_model, d_ff):
    ks = jax.random.split(key, 12)
    s = 0.1
    return {
        "w_pe": s * jax.random.normal(ks[0], (3, d_model), jnp.float32),
        "b_pe": s * jax.random.normal(ks[1], (1, d_model), jnp.float32),
        "ln1_g": jnp.ones((1, d_model), jnp.float32),
        "ln1_b": jnp.zeros((1, d_model), jnp.float32),
        "wq": s * jax.random.normal(ks[2], (d_model, d_model), jnp.float32),
        "bq": s * jax.random.normal(ks[3], (1, d_model), jnp.float32),
        "wk": s * jax.random.normal(ks[4], (d_model, d_model), jnp.float32),
        "bk": s * jax.random.normal(ks[5], (1, d_model), jnp.float32),
        "wv": s * jax.random.normal(ks[6], (d_model, d_model), jnp.float32),
        "bv": s * jax.random.normal(ks[7], (1, d_model), jnp.float32),
        "wo": s * jax.random.normal(ks[8], (d_model, d_model), jnp.float32),
        "bo": jnp.zeros((1, d_model), jnp.float32),
        "ln2_g": jnp.ones((1, d_model), jnp.float32),
        "ln2_b": jnp.zeros((1, d_model), jnp.float32),
        "w1": s * jax.random.normal(ks[9], (d_model, d_ff), jnp.float32),
        "b1": s * jax.random.normal(ks[10], (1, d_ff), jnp.float32),
        "w2": s * jax.random.normal(ks[11], (d_ff, d_model), jnp.float32),
        "b2": jnp.zeros((1, d_model), jnp.float32),
    }


if __name__ == "__main__":
    B, D, DFF = 2, 32, 64

    key = jax.random.PRNGKey(0)
    kx, kc, kp = jax.random.split(key, 3)

    x = jax.random.normal(kx, (B, D), jnp.float32)                # atom feature per crystal
    coords = jax.random.normal(kc, (B, NEIGH, 3), jnp.float32)    # 27 periodic-image coords
    params = make_params(kp, D, DFF)

    ref = reference_forward(x, coords, params)

    # f32 MXU path: tight parity with the f32 reference.
    out_f32 = crystal_encoder_layer(x, coords, params, mxu_dtype=jnp.float32)
    out_f32 = jax.block_until_ready(out_f32)
    assert out_f32.shape == (B, D)
    err32 = float(jnp.max(jnp.abs(out_f32 - ref)))
    assert jnp.allclose(out_f32, ref, atol=2e-3, rtol=2e-3), \
        f"f32 kernel/reference mismatch (max abs err={err32})"

    # Default bf16-MXU path (f32 accumulation): looser tolerance from bf16 operand rounding.
    out_bf16 = crystal_encoder_layer(x, coords, params)
    out_bf16 = jax.block_until_ready(out_bf16)
    assert out_bf16.shape == (B, D)
    errbf = float(jnp.max(jnp.abs(out_bf16 - ref)))
    assert jnp.allclose(out_bf16, ref, atol=5e-2, rtol=5e-2), \
        f"bf16 kernel/reference mismatch (max abs err={errbf})"

    print("KERNEL_OK")
</pallas_src>

<mosaic_0001>
module attributes {stable_mosaic.version = 11 : i64} {
  func.func @crystal_encoder_kernel(%arg0: i32, %arg1: memref<8x32xf32, #tpu.memory_space<vmem>>, %arg2: memref<32x8x8xf32, #tpu.memory_space<vmem>>, %arg3: memref<8x32xf32, #tpu.memory_space<vmem>>, %arg4: memref<1x32xf32, #tpu.memory_space<vmem>>, %arg5: memref<1x32xf32, #tpu.memory_space<vmem>>, %arg6: memref<1x32xf32, #tpu.memory_space<vmem>>, %arg7: memref<32x32xf32, #tpu.memory_space<vmem>>, %arg8: memref<1x32xf32, #tpu.memory_space<vmem>>, %arg9: memref<32x32xf32, #tpu.memory_space<vmem>>, %arg10: memref<1x32xf32, #tpu.memory_space<vmem>>, %arg11: memref<32x32xf32, #tpu.memory_space<vmem>>, %arg12: memref<1x32xf32, #tpu.memory_space<vmem>>, %arg13: memref<32x32xf32, #tpu.memory_space<vmem>>, %arg14: memref<1x32xf32, #tpu.memory_space<vmem>>, %arg15: memref<1x32xf32, #tpu.memory_space<vmem>>, %arg16: memref<1x32xf32, #tpu.memory_space<vmem>>, %arg17: memref<32x64xf32, #tpu.memory_space<vmem>>, %arg18: memref<1x64xf32, #tpu.memory_space<vmem>>, %arg19: memref<64x32xf32, #tpu.memory_space<vmem>>, %arg20: memref<1x32xf32, #tpu.memory_space<vmem>>, %arg21: memref<8x32xf32, #tpu.memory_space<vmem>>) attributes {dimension_semantics = [#tpu.dimension_semantics<parallel>], iteration_bounds = array<i64: 2>, scalar_prefetch = 0 : i64, scratch_operands = 0 : i64, tpu.core_type = #tpu.core_type<tc>, window_params = [{transform_indices = @transform_0, window_bounds = array<i64: 8, 32>}, {transform_indices = @transform_1, window_bounds = array<i64: 32, 8, 8>}, {pipeline_mode = #tpu.pipeline_mode<synchronous>, transform_indices = @transform_2, window_bounds = array<i64: 8, 32>}, {pipeline_mode = #tpu.pipeline_mode<synchronous>, transform_indices = @transform_3, window_bounds = array<i64: 1, 32>}, {pipeline_mode = #tpu.pipeline_mode<synchronous>, transform_indices = @transform_4, window_bounds = array<i64: 1, 32>}, {pipeline_mode = #tpu.pipeline_mode<synchronous>, transform_indices = @transform_5, window_bounds = array<i64: 1, 32>}, {pipeline_mode = #tpu.pipeline_mode<synchronous>, transform_indices = @transform_6, window_bounds = array<i64: 32, 32>}, {pipeline_mode = #tpu.pipeline_mode<synchronous>, transform_indices = @transform_7, window_bounds = array<i64: 1, 32>}, {pipeline_mode = #tpu.pipeline_mode<synchronous>, transform_indices = @transform_8, window_bounds = array<i64: 32, 32>}, {pipeline_mode = #tpu.pipeline_mode<synchronous>, transform_indices = @transform_9, window_bounds = array<i64: 1, 32>}, {pipeline_mode = #tpu.pipeline_mode<synchronous>, transform_indices = @transform_10, window_bounds = array<i64: 32, 32>}, {pipeline_mode = #tpu.pipeline_mode<synchronous>, transform_indices = @transform_11, window_bounds = array<i64: 1, 32>}, {pipeline_mode = #tpu.pipeline_mode<synchronous>, transform_indices = @transform_12, window_bounds = array<i64: 32, 32>}, {pipeline_mode = #tpu.pipeline_mode<synchronous>, transform_indices = @transform_13, window_bounds = array<i64: 1, 32>}, {pipeline_mode = #tpu.pipeline_mode<synchronous>, transform_indices = @transform_14, window_bounds = array<i64: 1, 32>}, {pipeline_mode = #tpu.pipeline_mode<synchronous>, transform_indices = @transform_15, window_bounds = array<i64: 1, 32>}, {pipeline_mode = #tpu.pipeline_mode<synchronous>, transform_indices = @transform_16, window_bounds = array<i64: 32, 64>}, {pipeline_mode = #tpu.pipeline_mode<synchronous>, transform_indices = @transform_17, window_bounds = array<i64: 1, 64>}, {pipeline_mode = #tpu.pipeline_mode<synchronous>, transform_indices = @transform_18, window_bounds = array<i64: 64, 32>}, {pipeline_mode = #tpu.pipeline_mode<synchronous>, transform_indices = @transform_19, window_bounds = array<i64: 1, 32>}, {transform_indices = @transform_20, window_bounds = array<i64: 8, 32>}]} {
    %c0 = arith.constant 0 : index
    %c0_0 = arith.constant 0 : index
    %0 = vector.load %arg1[%c0, %c0_0] : memref<8x32xf32, #tpu.memory_space<vmem>>, vector<8x32xf32>
    %c0_1 = arith.constant 0 : index
    %c0_2 = arith.constant 0 : index
    %c0_3 = arith.constant 0 : index
    %1 = vector.load %arg2[%c0_1, %c0_2, %c0_3] : memref<32x8x8xf32, #tpu.memory_space<vmem>>, vector<32x8x8xf32>
    %2 = vector.shape_cast %1 : vector<32x8x8xf32> to vector<256x8xf32>
    %c0_4 = arith.constant 0 : index
    %c0_5 = arith.constant 0 : index
    %3 = vector.load %arg3[%c0_4, %c0_5] : memref<8x32xf32, #tpu.memory_space<vmem>>, vector<8x32xf32>
    %cst = arith.constant dense<0.000000e+00> : vector<256x32xf32>
    %4 = tpu.matmul %2, %3, %cst {dimension_numbers = #tpu.dot_dimension_numbers<[1], [0], [0], [1], [0, 0, 1, 1], [], []>} : vector<256x8xf32>, vector<8x32xf32>, vector<256x32xf32> -> vector<256x32xf32>
    %c0_6 = arith.constant 0 : index
    %c0_7 = arith.constant 0 : index
    %5 = vector.load %arg4[%c0_6, %c0_7] : memref<1x32xf32, #tpu.memory_space<vmem>>, vector<1x32xf32>
    %6 = vector.broadcast %5 : vector<1x32xf32> to vector<256x32xf32>
    %7 = arith.addf %4, %6 : vector<256x32xf32>
    %8 = vector.shape_cast %7 : vector<256x32xf32> to vector<32x8x32xf32>
    %9 = vector.shape_cast %0 : vector<8x32xf32> to vector<1x8x32xf32>
    %10 = vector.broadcast %9 : vector<1x8x32xf32> to vector<32x8x32xf32>
    %11 = arith.addf %8, %10 : vector<32x8x32xf32>
    %12 = vector.shape_cast %11 : vector<32x8x32xf32> to vector<256x32xf32>
    %c0_8 = arith.constant 0 : index
    %c0_9 = arith.constant 0 : index
    %13 = vector.load %arg5[%c0_8, %c0_9] : memref<1x32xf32, #tpu.memory_space<vmem>>, vector<1x32xf32>
    %c0_10 = arith.constant 0 : index
    %c0_11 = arith.constant 0 : index
    %14 = vector.load %arg6[%c0_10, %c0_11] : memref<1x32xf32, #tpu.memory_space<vmem>>, vector<1x32xf32>
    %cst_12 = arith.constant dense<0.000000e+00> : vector<256xf32>
    %15 = vector.multi_reduction <add>, %12, %cst_12 [1] : vector<256x32xf32> to vector<256xf32>
    %16 = vector.shape_cast %15 : vector<256xf32> to vector<256x1xf32>
    %cst_13 = arith.constant 3.200000e+01 : f32
    %17 = vector.broadcast %cst_13 : f32 to vector<256x1xf32>
    %18 = arith.divf %16, %17 : vector<256x1xf32>
    %19 = vector.broadcast %18 : vector<256x1xf32> to vector<256x32xf32>
    %20 = arith.subf %12, %19 : vector<256x32xf32>
    %21 = arith.mulf %20, %20 : vector<256x32xf32>
    %cst_14 = arith.constant dense<0.000000e+00> : vector<256xf32>
    %22 = vector.multi_reduction <add>, %21, %cst_14 [1] : vector<256x32xf32> to vector<256xf32>
    %23 = vector.shape_cast %22 : vector<256xf32> to vector<256x1xf32>
    %cst_15 = arith.constant 3.200000e+01 : f32
    %24 = vector.broadcast %cst_15 : f32 to vector<256x1xf32>
    %25 = arith.divf %23, %24 : vector<256x1xf32>
    %26 = vector.broadcast %18 : vector<256x1xf32> to vector<256x32xf32>
    %27 = arith.subf %12, %26 : vector<256x32xf32>
    %cst_16 = arith.constant 9.99999974E-6 : f32
    %28 = vector.broadcast %cst_16 : f32 to vector<256x1xf32>
    %29 = arith.addf %25, %28 : vector<256x1xf32>
    %30 = math.rsqrt %29 : vector<256x1xf32>
    %31 = vector.broadcast %30 : vector<256x1xf32> to vector<256x32xf32>
    %32 = arith.mulf %27, %31 : vector<256x32xf32>
    %33 = vector.broadcast %13 : vector<1x32xf32> to vector<256x32xf32>
    %34 = arith.mulf %32, %33 : vector<256x32xf32>
    %35 = vector.broadcast %14 : vector<1x32xf32> to vector<256x32xf32>
    %36 = arith.addf %34, %35 : vector<256x32xf32>
    %c0_17 = arith.constant 0 : index
    %c0_18 = arith.constant 0 : index
    %37 = vector.load %arg9[%c0_17, %c0_18] : memref<32x32xf32, #tpu.memory_space<vmem>>, vector<32x32xf32>
    %cst_19 = arith.constant dense<0.000000e+00> : vector<256x32xf32>
    %38 = tpu.matmul %36, %37, %cst_19 {dimension_numbers = #tpu.dot_dimension_numbers<[1], [0], [0], [1], [0, 0, 1, 1], [], []>} : vector<256x32xf32>, vector<32x32xf32>, vector<256x32xf32> -> vector<256x32xf32>
    %c0_20 = arith.constant 0 : index
    %c0_21 = arith.constant 0 : index
    %39 = vector.load %arg10[%c0_20, %c0_21] : memref<1x32xf32, #tpu.memory_space<vmem>>, vector<1x32xf32>
    %40 = vector.broadcast %39 : vector<1x32xf32> to vector<256x32xf32>
    %41 = arith.addf %38, %40 : vector<256x32xf32>
    %c0_22 = arith.constant 0 : index
    %c0_23 = arith.constant 0 : index
    %42 = vector.load %arg11[%c0_22, %c0_23] : memref<32x32xf32, #tpu.memory_space<vmem>>, vector<32x32xf32>
    %cst_24 = arith.constant dense<0.000000e+00> : vector<256x32xf32>
    %43 = tpu.matmul %36, %42, %cst_24 {dimension_numbers = #tpu.dot_dimension_numbers<[1], [0], [0], [1], [0, 0, 1, 1], [], []>} : vector<256x32xf32>, vector<32x32xf32>, vector<256x32xf32> -> vector<256x32xf32>
    %c0_25 = arith.constant 0 : index
    %c0_26 = arith.constant 0 : index
    %44 = vector.load %arg12[%c0_25, %c0_26] : memref<1x32xf32, #tpu.memory_space<vmem>>, vector<1x32xf32>
    %45 = vector.broadcast %44 : vector<1x32xf32> to vector<256x32xf32>
    %46 = arith.addf %43, %45 : vector<256x32xf32>
    %47 = vector.extract_strided_slice %36 {offsets = [0, 0], sizes = [8, 32], strides = [1, 1]} : vector<256x32xf32> to vector<8x32xf32>
    %c0_27 = arith.constant 0 : index
    %c0_28 = arith.constant 0 : index
    %48 = vector.load %arg7[%c0_27, %c0_28] : memref<32x32xf32, #tpu.memory_space<vmem>>, vector<32x32xf32>
    %cst_29 = arith.constant dense<0.000000e+00> : vector<8x32xf32>
    %49 = tpu.matmul %47, %48, %cst_29 {dimension_numbers = #tpu.dot_dimension_numbers<[1], [0], [0], [1], [0, 0, 1, 1], [], []>} : vector<8x32xf32>, vector<32x32xf32>, vector<8x32xf32> -> vector<8x32xf32>
    %c0_30 = arith.constant 0 : index
    %c0_31 = arith.constant 0 : index
    %50 = vector.load %arg8[%c0_30, %c0_31] : memref<1x32xf32, #tpu.memory_space<vmem>>, vector<1x32xf32>
    %51 = vector.broadcast %50 : vector<1x32xf32> to vector<8x32xf32>
    %52 = arith.addf %49, %51 : vector<8x32xf32>
    %53 = vector.shape_cast %41 : vector<256x32xf32> to vector<32x8x32xf32>
    %54 = vector.shape_cast %52 : vector<8x32xf32> to vector<1x8x32xf32>
    %55 = vector.broadcast %54 : vector<1x8x32xf32> to vector<32x8x32xf32>
    %56 = arith.mulf %55, %53 : vector<32x8x32xf32>
    %cst_32 = arith.constant dense<0.000000e+00> : vector<32x8xf32>
    %57 = vector.multi_reduction <add>, %56, %cst_32 [2] : vector<32x8x32xf32> to vector<32x8xf32>
    %cst_33 = arith.constant 0.176776692 : f32
    %58 = vector.broadcast %cst_33 : f32 to vector<32x8xf32>
    %59 = arith.mulf %57, %58 : vector<32x8xf32>
    %60 = tpu.iota {dimensions = array<i32: 0>} : vector<32x8xi32>
    %c27_i32 = arith.constant 27 : i32
    %61 = vector.broadcast %c27_i32 : i32 to vector<32x8xi32>
    %62 = arith.cmpi slt, %60, %61 : vector<32x8xi32>
    %cst_34 = arith.constant 0xFF800000 : f32
    %63 = vector.broadcast %cst_34 : f32 to vector<32x8xf32>
    %64 = arith.select %62, %59, %63 : vector<32x8xi1>, vector<32x8xf32>
    %cst_35 = arith.constant dense<0xFF800000> : vector<8xf32>
    %65 = vector.multi_reduction <maximumf>, %64, %cst_35 [0] : vector<32x8xf32> to vector<8xf32>
    %66 = vector.shape_cast %65 : vector<8xf32> to vector<1x8xf32>
    %67 = vector.broadcast %66 : vector<1x8xf32> to vector<32x8xf32>
    %68 = arith.subf %64, %67 : vector<32x8xf32>
    %69 = math.exp %68 : vector<32x8xf32>
    %cst_36 = arith.constant dense<0.000000e+00> : vector<8xf32>
    %70 = vector.multi_reduction <add>, %69, %cst_36 [0] : vector<32x8xf32> to vector<8xf32>
    %71 = vector.shape_cast %70 : vector<8xf32> to vector<1x8xf32>
    %72 = tpu.reciprocal %71 : vector<1x8xf32> -> vector<1x8xf32>
    %73 = vector.broadcast %72 : vector<1x8xf32> to vector<32x8xf32>
    %74 = arith.mulf %69, %73 : vector<32x8xf32>
    %75 = vector.shape_cast %74 : vector<32x8xf32> to vector<32x1x8xf32>
    %76 = vector.shape_cast %75 : vector<32x1x8xf32> to vector<32x1x8xf32>
    %77 = vector.broadcast %76 : vector<32x1x8xf32> to vector<32x8x8xf32>
    %78 = vector.shape_cast %77 : vector<32x8x8xf32> to vector<256x8xf32>
    %79 = tpu.iota {dimensions = array<i32: 0>} : vector<256x8xi32>
    %c7_i32 = arith.constant 7 : i32
    %80 = vector.broadcast %c7_i32 : i32 to vector<256x8xi32>
    %81 = arith.andi %79, %80 : vector<256x8xi32>
    %82 = tpu.iota {dimensions = array<i32: 1>} : vector<256x8xi32>
    %83 = arith.cmpi eq, %81, %82 : vector<256x8xi32>
    %cst_37 = arith.constant 0.000000e+00 : f32
    %84 = vector.broadcast %cst_37 : f32 to vector<256x8xf32>
    %85 = arith.select %83, %78, %84 : vector<256x8xi1>, vector<256x8xf32>
    "tpu.trace_start"() <{level = 10 : i32, message = "cb,cd->bd"}> : () -> ()
    %cst_38 = arith.constant dense<0.000000e+00> : vector<8x32xf32>
    %86 = tpu.matmul %85, %46, %cst_38 {dimension_numbers = #tpu.dot_dimension_numbers<[0], [0], [1], [1], [0, 1, 1, 1], [], []>} : vector<256x8xf32>, vector<256x32xf32>, vector<8x32xf32> -> vector<8x32xf32>
    "tpu.trace_stop"() : () -> ()
    %c0_39 = arith.constant 0 : index
    %c0_40 = arith.constant 0 : index
    %87 = vector.load %arg13[%c0_39, %c0_40] : memref<32x32xf32, #tpu.memory_space<vmem>>, vector<32x32xf32>
    %cst_41 = arith.constant dense<0.000000e+00> : vector<8x32xf32>
    %88 = tpu.matmul %86, %87, %cst_41 {dimension_numbers = #tpu.dot_dimension_numbers<[1], [0], [0], [1], [0, 0, 1, 1], [], []>} : vector<8x32xf32>, vector<32x32xf32>, vector<8x32xf32> -> vector<8x32xf32>
    %c0_42 = arith.constant 0 : index
    %c0_43 = arith.constant 0 : index
    %89 = vector.load %arg14[%c0_42, %c0_43] : memref<1x32xf32, #tpu.memory_space<vmem>>, vector<1x32xf32>
    %90 = vector.broadcast %89 : vector<1x32xf32> to vector<8x32xf32>
    %91 = arith.addf %88, %90 : vector<8x32xf32>
    %92 = vector.extract_strided_slice %12 {offsets = [0, 0], sizes = [8, 32], strides = [1, 1]} : vector<256x32xf32> to vector<8x32xf32>
    %93 = arith.addf %92, %91 : vector<8x32xf32>
    %c0_44 = arith.constant 0 : index
    %c0_45 = arith.constant 0 : index
    %94 = vector.load %arg15[%c0_44, %c0_45] : memref<1x32xf32, #tpu.memory_space<vmem>>, vector<1x32xf32>
    %c0_46 = arith.constant 0 : index
    %c0_47 = arith.constant 0 : index
    %95 = vector.load %arg16[%c0_46, %c0_47] : memref<1x32xf32, #tpu.memory_space<vmem>>, vector<1x32xf32>
    %cst_48 = arith.constant dense<0.000000e+00> : vector<8xf32>
    %96 = vector.multi_reduction <add>, %93, %cst_48 [1] : vector<8x32xf32> to vector<8xf32>
    %97 = vector.shape_cast %96 : vector<8xf32> to vector<8x1xf32>
    %cst_49 = arith.constant 3.200000e+01 : f32
    %98 = vector.broadcast %cst_49 : f32 to vector<8x1xf32>
    %99 = arith.divf %97, %98 : vector<8x1xf32>
    %100 = vector.broadcast %99 : vector<8x1xf32> to vector<8x32xf32>
    %101 = arith.subf %93, %100 : vector<8x32xf32>
    %102 = arith.mulf %101, %101 : vector<8x32xf32>
    %cst_50 = arith.constant dense<0.000000e+00> : vector<8xf32>
    %103 = vector.multi_reduction <add>, %102, %cst_50 [1] : vector<8x32xf32> to vector<8xf32>
    %104 = vector.shape_cast %103 : vector<8xf32> to vector<8x1xf32>
    %cst_51 = arith.constant 3.200000e+01 : f32
    %105 = vector.broadcast %cst_51 : f32 to vector<8x1xf32>
    %106 = arith.divf %104, %105 : vector<8x1xf32>
    %107 = vector.broadcast %99 : vector<8x1xf32> to vector<8x32xf32>
    %108 = arith.subf %93, %107 : vector<8x32xf32>
    %cst_52 = arith.constant 9.99999974E-6 : f32
    %109 = vector.broadcast %cst_52 : f32 to vector<8x1xf32>
    %110 = arith.addf %106, %109 : vector<8x1xf32>
    %111 = math.rsqrt %110 : vector<8x1xf32>
    %112 = vector.broadcast %111 : vector<8x1xf32> to vector<8x32xf32>
    %113 = arith.mulf %108, %112 : vector<8x32xf32>
    %114 = vector.broadcast %94 : vector<1x32xf32> to vector<8x32xf32>
    %115 = arith.mulf %113, %114 : vector<8x32xf32>
    %116 = vector.broadcast %95 : vector<1x32xf32> to vector<8x32xf32>
    %117 = arith.addf %115, %116 : vector<8x32xf32>
    %c0_53 = arith.constant 0 : index
    %c0_54 = arith.constant 0 : index
    %118 = vector.load %arg17[%c0_53, %c0_54] : memref<32x64xf32, #tpu.memory_space<vmem>>, vector<32x64xf32>
    %cst_55 = arith.constant dense<0.000000e+00> : vector<8x64xf32>
    %119 = tpu.matmul %117, %118, %cst_55 {dimension_numbers = #tpu.dot_dimension_numbers<[1], [0], [0], [1], [0, 0, 1, 1], [], []>} : vector<8x32xf32>, vector<32x64xf32>, vector<8x64xf32> -> vector<8x64xf32>
    %c0_56 = arith.constant 0 : index
    %c0_57 = arith.constant 0 : index
    %120 = vector.load %arg18[%c0_56, %c0_57] : memref<1x64xf32, #tpu.memory_space<vmem>>, vector<1x64xf32>
    %121 = vector.broadcast %120 : vector<1x64xf32> to vector<8x64xf32>
    %122 = arith.addf %119, %121 : vector<8x64xf32>
    %cst_58 = arith.constant 0.000000e+00 : f32
    %123 = vector.broadcast %cst_58 : f32 to vector<8x64xf32>
    %124 = arith.maximumf %122, %123 : vector<8x64xf32>
    %c0_59 = arith.constant 0 : index
    %c0_60 = arith.constant 0 : index
    %125 = vector.load %arg19[%c0_59, %c0_60] : memref<64x32xf32, #tpu.memory_space<vmem>>, vector<64x32xf32>
    %cst_61 = arith.constant dense<0.000000e+00> : vector<8x32xf32>
    %126 = tpu.matmul %124, %125, %cst_61 {dimension_numbers = #tpu.dot_dimension_numbers<[1], [0], [0], [1], [0, 0, 1, 1], [], []>} : vector<8x64xf32>, vector<64x32xf32>, vector<8x32xf32> -> vector<8x32xf32>
    %c0_62 = arith.constant 0 : index
    %c0_63 = arith.constant 0 : index
    %127 = vector.load %arg20[%c0_62, %c0_63] : memref<1x32xf32, #tpu.memory_space<vmem>>, vector<1x32xf32>
    %128 = vector.broadcast %127 : vector<1x32xf32> to vector<8x32xf32>
    %129 = arith.addf %126, %128 : vector<8x32xf32>
    %130 = arith.addf %93, %129 : vector<8x32xf32>
    %c0_64 = arith.constant 0 : index
    %c0_65 = arith.constant 0 : index
    %131 = vector.load %arg21[%c0_64, %c0_65] : memref<8x32xf32, #tpu.memory_space<vmem>>, vector<8x32xf32>
    tpu.vector_store %arg21[%c0_64, %c0_65], %130 {strides = array<i32>} : memref<8x32xf32, #tpu.memory_space<vmem>>, vector<8x32xf32>,
    return
  }
  func.func @transform_0(%arg0: i32) -> (i32, i32) {
    %c0_i32 = arith.constant 0 : i32
    %c0_i32_0 = arith.constant 0 : i32
    return %arg0, %c0_i32 : i32, i32
  }
  func.func @transform_1(%arg0: i32) -> (i32, i32, i32) {
    %c0_i32 = arith.constant 0 : i32
    %c0_i32_0 = arith.constant 0 : i32
    %c0_i32_1 = arith.constant 0 : i32
    return %c0_i32, %arg0, %c0_i32_0 : i32, i32, i32
  }
  func.func @transform_2(%arg0: i32) -> (i32, i32) {
    %c0_i32 = arith.constant 0 : i32
    %c0_i32_0 = arith.constant 0 : i32
    %c0_i32_1 = arith.constant 0 : i32
    return %c0_i32, %c0_i32_0 : i32, i32
  }
  func.func @transform_3(%arg0: i32) -> (i32, i32) {
    %c0_i32 = arith.constant 0 : i32
    %c0_i32_0 = arith.constant 0 : i32
    %c0_i32_1 = arith.constant 0 : i32
    return %c0_i32, %c0_i32_0 : i32, i32
  }
  func.func @transform_4(%arg0: i32) -> (i32, i32) {
    %c0_i32 = arith.constant 0 : i32
    %c0_i32_0 = arith.constant 0 : i32
    %c0_i32_1 = arith.constant 0 : i32
    return %c0_i32, %c0_i32_0 : i32, i32
  }
  func.func @transform_5(%arg0: i32) -> (i32, i32) {
    %c0_i32 = arith.constant 0 : i32
    %c0_i32_0 = arith.constant 0 : i32
    %c0_i32_1 = arith.constant 0 : i32
    return %c0_i32, %c0_i32_0 : i32, i32
  }
  func.func @transform_6(%arg0: i32) -> (i32, i32) {
    %c0_i32 = arith.constant 0 : i32
    %c0_i32_0 = arith.constant 0 : i32
    %c0_i32_1 = arith.constant 0 : i32
    return %c0_i32, %c0_i32_0 : i32, i32
  }
  func.func @transform_7(%arg0: i32) -> (i32, i32) {
    %c0_i32 = arith.constant 0 : i32
    %c0_i32_0 = arith.constant 0 : i32
    %c0_i32_1 = arith.constant 0 : i32
    return %c0_i32, %c0_i32_0 : i32, i32
  }
  func.func @transform_8(%arg0: i32) -> (i32, i32) {
    %c0_i32 = arith.constant 0 : i32
    %c0_i32_0 = arith.constant 0 : i32
    %c0_i32_1 = arith.constant 0 : i32
    return %c0_i32, %c0_i32_0 : i32, i32
  }
  func.func @transform_9(%arg0: i32) -> (i32, i32) {
    %c0_i32 = arith.constant 0 : i32
    %c0_i32_0 = arith.constant 0 : i32
    %c0_i32_1 = arith.constant 0 : i32
    return %c0_i32, %c0_i32_0 : i32, i32
  }
  func.func @transform_10(%arg0: i32) -> (i32, i32) {
    %c0_i32 = arith.constant 0 : i32
    %c0_i32_0 = arith.constant 0 : i32
    %c0_i32_1 = arith.constant 0 : i32
    return %c0_i32, %c0_i32_0 : i32, i32
  }
  func.func @transform_11(%arg0: i32) -> (i32, i32) {
    %c0_i32 = arith.constant 0 : i32
    %c0_i32_0 = arith.constant 0 : i32
    %c0_i32_1 = arith.constant 0 : i32
    return %c0_i32, %c0_i32_0 : i32, i32
  }
  func.func @transform_12(%arg0: i32) -> (i32, i32) {
    %c0_i32 = arith.constant 0 : i32
    %c0_i32_0 = arith.constant 0 : i32
    %c0_i32_1 = arith.constant 0 : i32
    return %c0_i32, %c0_i32_0 : i32, i32
  }
  func.func @transform_13(%arg0: i32) -> (i32, i32) {
    %c0_i32 = arith.constant 0 : i32
    %c0_i32_0 = arith.constant 0 : i32
    %c0_i32_1 = arith.constant 0 : i32
    return %c0_i32, %c0_i32_0 : i32, i32
  }
  func.func @transform_14(%arg0: i32) -> (i32, i32) {
    %c0_i32 = arith.constant 0 : i32
    %c0_i32_0 = arith.constant 0 : i32
    %c0_i32_1 = arith.constant 0 : i32
    return %c0_i32, %c0_i32_0 : i32, i32
  }
  func.func @transform_15(%arg0: i32) -> (i32, i32) {
    %c0_i32 = arith.constant 0 : i32
    %c0_i32_0 = arith.constant 0 : i32
    %c0_i32_1 = arith.constant 0 : i32
    return %c0_i32, %c0_i32_0 : i32, i32
  }
  func.func @transform_16(%arg0: i32) -> (i32, i32) {
    %c0_i32 = arith.constant 0 : i32
    %c0_i32_0 = arith.constant 0 : i32
    %c0_i32_1 = arith.constant 0 : i32
    return %c0_i32, %c0_i32_0 : i32, i32
  }
  func.func @transform_17(%arg0: i32) -> (i32, i32) {
    %c0_i32 = arith.constant 0 : i32
    %c0_i32_0 = arith.constant 0 : i32
    %c0_i32_1 = arith.constant 0 : i32
    return %c0_i32, %c0_i32_0 : i32, i32
  }
  func.func @transform_18(%arg0: i32) -> (i32, i32) {
    %c0_i32 = arith.constant 0 : i32
    %c0_i32_0 = arith.constant 0 : i32
    %c0_i32_1 = arith.constant 0 : i32
    return %c0_i32, %c0_i32_0 : i32, i32
  }
  func.func @transform_19(%arg0: i32) -> (i32, i32) {
    %c0_i32 = arith.constant 0 : i32
    %c0_i32_0 = arith.constant 0 : i32
    %c0_i32_1 = arith.constant 0 : i32
    return %c0_i32, %c0_i32_0 : i32, i32
  }
  func.func @transform_20(%arg0: i32) -> (i32, i32) {
    %c0_i32 = arith.constant 0 : i32
    %c0_i32_0 = arith.constant 0 : i32
    return %arg0, %c0_i32 : i32, i32
  }
}

module attributes {stable_mosaic.version = 11 : i64} {
  func.func @crystal_encoder_kernel(%arg0: i32, %arg1: memref<8x32xf32, #tpu.memory_space<vmem>>, %arg2: memref<32x8x8xf32, #tpu.memory_space<vmem>>, %arg3: memref<8x32xf32, #tpu.memory_space<vmem>>, %arg4: memref<1x32xf32, #tpu.memory_space<vmem>>, %arg5: memref<1x32xf32, #tpu.memory_space<vmem>>, %arg6: memref<1x32xf32, #tpu.memory_space<vmem>>, %arg7: memref<32x32xf32, #tpu.memory_space<vmem>>, %arg8: memref<1x32xf32, #tpu.memory_space<vmem>>, %arg9: memref<32x32xf32, #tpu.memory_space<vmem>>, %arg10: memref<1x32xf32, #tpu.memory_space<vmem>>, %arg11: memref<32x32xf32, #tpu.memory_space<vmem>>, %arg12: memref<1x32xf32, #tpu.memory_space<vmem>>, %arg13: memref<32x32xf32, #tpu.memory_space<vmem>>, %arg14: memref<1x32xf32, #tpu.memory_space<vmem>>, %arg15: memref<1x32xf32, #tpu.memory_space<vmem>>, %arg16: memref<1x32xf32, #tpu.memory_space<vmem>>, %arg17: memref<32x64xf32, #tpu.memory_space<vmem>>, %arg18: memref<1x64xf32, #tpu.memory_space<vmem>>, %arg19: memref<64x32xf32, #tpu.memory_space<vmem>>, %arg20: memref<1x32xf32, #tpu.memory_space<vmem>>, %arg21: memref<8x32xf32, #tpu.memory_space<vmem>>) attributes {dimension_semantics = [#tpu.dimension_semantics<parallel>], iteration_bounds = array<i64: 2>, scalar_prefetch = 0 : i64, scratch_operands = 0 : i64, tpu.core_type = #tpu.core_type<tc>, window_params = [{transform_indices = @transform_0, window_bounds = array<i64: 8, 32>}, {transform_indices = @transform_1, window_bounds = array<i64: 32, 8, 8>}, {pipeline_mode = #tpu.pipeline_mode<synchronous>, transform_indices = @transform_2, window_bounds = array<i64: 8, 32>}, {pipeline_mode = #tpu.pipeline_mode<synchronous>, transform_indices = @transform_3, window_bounds = array<i64: 1, 32>}, {pipeline_mode = #tpu.pipeline_mode<synchronous>, transform_indices = @transform_4, window_bounds = array<i64: 1, 32>}, {pipeline_mode = #tpu.pipeline_mode<synchronous>, transform_indices = @transform_5, window_bounds = array<i64: 1, 32>}, {pipeline_mode = #tpu.pipeline_mode<synchronous>, transform_indices = @transform_6, window_bounds = array<i64: 32, 32>}, {pipeline_mode = #tpu.pipeline_mode<synchronous>, transform_indices = @transform_7, window_bounds = array<i64: 1, 32>}, {pipeline_mode = #tpu.pipeline_mode<synchronous>, transform_indices = @transform_8, window_bounds = array<i64: 32, 32>}, {pipeline_mode = #tpu.pipeline_mode<synchronous>, transform_indices = @transform_9, window_bounds = array<i64: 1, 32>}, {pipeline_mode = #tpu.pipeline_mode<synchronous>, transform_indices = @transform_10, window_bounds = array<i64: 32, 32>}, {pipeline_mode = #tpu.pipeline_mode<synchronous>, transform_indices = @transform_11, window_bounds = array<i64: 1, 32>}, {pipeline_mode = #tpu.pipeline_mode<synchronous>, transform_indices = @transform_12, window_bounds = array<i64: 32, 32>}, {pipeline_mode = #tpu.pipeline_mode<synchronous>, transform_indices = @transform_13, window_bounds = array<i64: 1, 32>}, {pipeline_mode = #tpu.pipeline_mode<synchronous>, transform_indices = @transform_14, window_bounds = array<i64: 1, 32>}, {pipeline_mode = #tpu.pipeline_mode<synchronous>, transform_indices = @transform_15, window_bounds = array<i64: 1, 32>}, {pipeline_mode = #tpu.pipeline_mode<synchronous>, transform_indices = @transform_16, window_bounds = array<i64: 32, 64>}, {pipeline_mode = #tpu.pipeline_mode<synchronous>, transform_indices = @transform_17, window_bounds = array<i64: 1, 64>}, {pipeline_mode = #tpu.pipeline_mode<synchronous>, transform_indices = @transform_18, window_bounds = array<i64: 64, 32>}, {pipeline_mode = #tpu.pipeline_mode<synchronous>, transform_indices = @transform_19, window_bounds = array<i64: 1, 32>}, {transform_indices = @transform_20, window_bounds = array<i64: 8, 32>}]} {
    %c0 = arith.constant 0 : index
    %c0_0 = arith.constant 0 : index
    %0 = vector.load %arg1[%c0, %c0_0] : memref<8x32xf32, #tpu.memory_space<vmem>>, vector<8x32xf32>
    %c0_1 = arith.constant 0 : index
    %c0_2 = arith.constant 0 : index
    %c0_3 = arith.constant 0 : index
    %1 = vector.load %arg2[%c0_1, %c0_2, %c0_3] : memref<32x8x8xf32, #tpu.memory_space<vmem>>, vector<32x8x8xf32>
    %2 = vector.shape_cast %1 : vector<32x8x8xf32> to vector<256x8xf32>
    %c0_4 = arith.constant 0 : index
    %c0_5 = arith.constant 0 : index
    %3 = vector.load %arg3[%c0_4, %c0_5] : memref<8x32xf32, #tpu.memory_space<vmem>>, vector<8x32xf32>
    %cst = arith.constant dense<0.000000e+00> : vector<256x32xf32>
    %4 = tpu.matmul %2, %3, %cst {dimension_numbers = #tpu.dot_dimension_numbers<[1], [0], [0], [1], [0, 0, 1, 1], [], []>} : vector<256x8xf32>, vector<8x32xf32>, vector<256x32xf32> -> vector<256x32xf32>
    %c0_6 = arith.constant 0 : index
    %c0_7 = arith.constant 0 : index
    %5 = vector.load %arg4[%c0_6, %c0_7] : memref<1x32xf32, #tpu.memory_space<vmem>>, vector<1x32xf32>
    %6 = vector.broadcast %5 : vector<1x32xf32> to vector<256x32xf32>
    %7 = arith.addf %4, %6 : vector<256x32xf32>
    %8 = vector.shape_cast %7 : vector<256x32xf32> to vector<32x8x32xf32>
    %9 = vector.shape_cast %0 : vector<8x32xf32> to vector<1x8x32xf32>
    %10 = vector.broadcast %9 : vector<1x8x32xf32> to vector<32x8x32xf32>
    %11 = arith.addf %8, %10 : vector<32x8x32xf32>
    %12 = vector.shape_cast %11 : vector<32x8x32xf32> to vector<256x32xf32>
    %c0_8 = arith.constant 0 : index
    %c0_9 = arith.constant 0 : index
    %13 = vector.load %arg5[%c0_8, %c0_9] : memref<1x32xf32, #tpu.memory_space<vmem>>, vector<1x32xf32>
    %c0_10 = arith.constant 0 : index
    %c0_11 = arith.constant 0 : index
    %14 = vector.load %arg6[%c0_10, %c0_11] : memref<1x32xf32, #tpu.memory_space<vmem>>, vector<1x32xf32>
    %cst_12 = arith.constant dense<0.000000e+00> : vector<256xf32>
    %15 = vector.multi_reduction <add>, %12, %cst_12 [1] : vector<256x32xf32> to vector<256xf32>
    %16 = vector.shape_cast %15 : vector<256xf32> to vector<256x1xf32>
    %cst_13 = arith.constant 3.200000e+01 : f32
    %17 = vector.broadcast %cst_13 : f32 to vector<256x1xf32>
    %18 = arith.divf %16, %17 : vector<256x1xf32>
    %19 = vector.broadcast %18 : vector<256x1xf32> to vector<256x32xf32>
    %20 = arith.subf %12, %19 : vector<256x32xf32>
    %21 = arith.mulf %20, %20 : vector<256x32xf32>
    %cst_14 = arith.constant dense<0.000000e+00> : vector<256xf32>
    %22 = vector.multi_reduction <add>, %21, %cst_14 [1] : vector<256x32xf32> to vector<256xf32>
    %23 = vector.shape_cast %22 : vector<256xf32> to vector<256x1xf32>
    %cst_15 = arith.constant 3.200000e+01 : f32
    %24 = vector.broadcast %cst_15 : f32 to vector<256x1xf32>
    %25 = arith.divf %23, %24 : vector<256x1xf32>
    %26 = vector.broadcast %18 : vector<256x1xf32> to vector<256x32xf32>
    %27 = arith.subf %12, %26 : vector<256x32xf32>
    %cst_16 = arith.constant 9.99999974E-6 : f32
    %28 = vector.broadcast %cst_16 : f32 to vector<256x1xf32>
    %29 = arith.addf %25, %28 : vector<256x1xf32>
    %30 = math.rsqrt %29 : vector<256x1xf32>
    %31 = vector.broadcast %30 : vector<256x1xf32> to vector<256x32xf32>
    %32 = arith.mulf %27, %31 : vector<256x32xf32>
    %33 = vector.broadcast %13 : vector<1x32xf32> to vector<256x32xf32>
    %34 = arith.mulf %32, %33 : vector<256x32xf32>
    %35 = vector.broadcast %14 : vector<1x32xf32> to vector<256x32xf32>
    %36 = arith.addf %34, %35 : vector<256x32xf32>
    %c0_17 = arith.constant 0 : index
    %c0_18 = arith.constant 0 : index
    %37 = vector.load %arg9[%c0_17, %c0_18] : memref<32x32xf32, #tpu.memory_space<vmem>>, vector<32x32xf32>
    %cst_19 = arith.constant dense<0.000000e+00> : vector<256x32xf32>
    %38 = tpu.matmul %36, %37, %cst_19 {dimension_numbers = #tpu.dot_dimension_numbers<[1], [0], [0], [1], [0, 0, 1, 1], [], []>} : vector<256x32xf32>, vector<32x32xf32>, vector<256x32xf32> -> vector<256x32xf32>
    %c0_20 = arith.constant 0 : index
    %c0_21 = arith.constant 0 : index
    %39 = vector.load %arg10[%c0_20, %c0_21] : memref<1x32xf32, #tpu.memory_space<vmem>>, vector<1x32xf32>
    %40 = vector.broadcast %39 : vector<1x32xf32> to vector<256x32xf32>
    %41 = arith.addf %38, %40 : vector<256x32xf32>
    %c0_22 = arith.constant 0 : index
    %c0_23 = arith.constant 0 : index
    %42 = vector.load %arg11[%c0_22, %c0_23] : memref<32x32xf32, #tpu.memory_space<vmem>>, vector<32x32xf32>
    %cst_24 = arith.constant dense<0.000000e+00> : vector<256x32xf32>
    %43 = tpu.matmul %36, %42, %cst_24 {dimension_numbers = #tpu.dot_dimension_numbers<[1], [0], [0], [1], [0, 0, 1, 1], [], []>} : vector<256x32xf32>, vector<32x32xf32>, vector<256x32xf32> -> vector<256x32xf32>
    %c0_25 = arith.constant 0 : index
    %c0_26 = arith.constant 0 : index
    %44 = vector.load %arg12[%c0_25, %c0_26] : memref<1x32xf32, #tpu.memory_space<vmem>>, vector<1x32xf32>
    %45 = vector.broadcast %44 : vector<1x32xf32> to vector<256x32xf32>
    %46 = arith.addf %43, %45 : vector<256x32xf32>
    %47 = vector.extract_strided_slice %36 {offsets = [0, 0], sizes = [8, 32], strides = [1, 1]} : vector<256x32xf32> to vector<8x32xf32>
    %c0_27 = arith.constant 0 : index
    %c0_28 = arith.constant 0 : index
    %48 = vector.load %arg7[%c0_27, %c0_28] : memref<32x32xf32, #tpu.memory_space<vmem>>, vector<32x32xf32>
    %cst_29 = arith.constant dense<0.000000e+00> : vector<8x32xf32>
    %49 = tpu.matmul %47, %48, %cst_29 {dimension_numbers = #tpu.dot_dimension_numbers<[1], [0], [0], [1], [0, 0, 1, 1], [], []>} : vector<8x32xf32>, vector<32x32xf32>, vector<8x32xf32> -> vector<8x32xf32>
    %c0_30 = arith.constant 0 : index
    %c0_31 = arith.constant 0 : index
    %50 = vector.load %arg8[%c0_30, %c0_31] : memref<1x32xf32, #tpu.memory_space<vmem>>, vector<1x32xf32>
    %51 = vector.broadcast %50 : vector<1x32xf32> to vector<8x32xf32>
    %52 = arith.addf %49, %51 : vector<8x32xf32>
    %53 = vector.shape_cast %41 : vector<256x32xf32> to vector<32x8x32xf32>
    %54 = vector.shape_cast %52 : vector<8x32xf32> to vector<1x8x32xf32>
    %55 = vector.broadcast %54 : vector<1x8x32xf32> to vector<32x8x32xf32>
    %56 = arith.mulf %55, %53 : vector<32x8x32xf32>
    %cst_32 = arith.constant dense<0.000000e+00> : vector<32x8xf32>
    %57 = vector.multi_reduction <add>, %56, %cst_32 [2] : vector<32x8x32xf32> to vector<32x8xf32>
    %cst_33 = arith.constant 0.176776692 : f32
    %58 = vector.broadcast %cst_33 : f32 to vector<32x8xf32>
    %59 = arith.mulf %57, %58 : vector<32x8xf32>
    %60 = tpu.iota {dimensions = array<i32: 0>} : vector<32x8xi32>
    %c27_i32 = arith.constant 27 : i32
    %61 = vector.broadcast %c27_i32 : i32 to vector<32x8xi32>
    %62 = arith.cmpi slt, %60, %61 : vector<32x8xi32>
    %cst_34 = arith.constant 0xFF800000 : f32
    %63 = vector.broadcast %cst_34 : f32 to vector<32x8xf32>
    %64 = arith.select %62, %59, %63 : vector<32x8xi1>, vector<32x8xf32>
    %cst_35 = arith.constant dense<0xFF800000> : vector<8xf32>
    %65 = vector.multi_reduction <maximumf>, %64, %cst_35 [0] : vector<32x8xf32> to vector<8xf32>
    %66 = vector.shape_cast %65 : vector<8xf32> to vector<1x8xf32>
    %67 = vector.broadcast %66 : vector<1x8xf32> to vector<32x8xf32>
    %68 = arith.subf %64, %67 : vector<32x8xf32>
    %69 = math.exp %68 : vector<32x8xf32>
    %cst_36 = arith.constant dense<0.000000e+00> : vector<8xf32>
    %70 = vector.multi_reduction <add>, %69, %cst_36 [0] : vector<32x8xf32> to vector<8xf32>
    %71 = vector.shape_cast %70 : vector<8xf32> to vector<1x8xf32>
    %72 = tpu.reciprocal %71 : vector<1x8xf32> -> vector<1x8xf32>
    %73 = vector.broadcast %72 : vector<1x8xf32> to vector<32x8xf32>
    %74 = arith.mulf %69, %73 : vector<32x8xf32>
    %75 = vector.shape_cast %74 : vector<32x8xf32> to vector<32x1x8xf32>
    %76 = vector.shape_cast %75 : vector<32x1x8xf32> to vector<32x1x8xf32>
    %77 = vector.broadcast %76 : vector<32x1x8xf32> to vector<32x8x8xf32>
    %78 = vector.shape_cast %77 : vector<32x8x8xf32> to vector<256x8xf32>
    %79 = tpu.iota {dimensions = array<i32: 0>} : vector<256x8xi32>
    %c7_i32 = arith.constant 7 : i32
    %80 = vector.broadcast %c7_i32 : i32 to vector<256x8xi32>
    %81 = arith.andi %79, %80 : vector<256x8xi32>
    %82 = tpu.iota {dimensions = array<i32: 1>} : vector<256x8xi32>
    %83 = arith.cmpi eq, %81, %82 : vector<256x8xi32>
    %cst_37 = arith.constant 0.000000e+00 : f32
    %84 = vector.broadcast %cst_37 : f32 to vector<256x8xf32>
    %85 = arith.select %83, %78, %84 : vector<256x8xi1>, vector<256x8xf32>
    "tpu.trace_start"() <{level = 10 : i32, message = "cb,cd->bd"}> : () -> ()
    %cst_38 = arith.constant dense<0.000000e+00> : vector<8x32xf32>
    %86 = tpu.matmul %85, %46, %cst_38 {dimension_numbers = #tpu.dot_dimension_numbers<[0], [0], [1], [1], [0, 1, 1, 1], [], []>} : vector<256x8xf32>, vector<256x32xf32>, vector<8x32xf32> -> vector<8x32xf32>
    "tpu.trace_stop"() : () -> ()
    %c0_39 = arith.constant 0 : index
    %c0_40 = arith.constant 0 : index
    %87 = vector.load %arg13[%c0_39, %c0_40] : memref<32x32xf32, #tpu.memory_space<vmem>>, vector<32x32xf32>
    %cst_41 = arith.constant dense<0.000000e+00> : vector<8x32xf32>
    %88 = tpu.matmul %86, %87, %cst_41 {dimension_numbers = #tpu.dot_dimension_numbers<[1], [0], [0], [1], [0, 0, 1, 1], [], []>} : vector<8x32xf32>, vector<32x32xf32>, vector<8x32xf32> -> vector<8x32xf32>
    %c0_42 = arith.constant 0 : index
    %c0_43 = arith.constant 0 : index
    %89 = vector.load %arg14[%c0_42, %c0_43] : memref<1x32xf32, #tpu.memory_space<vmem>>, vector<1x32xf32>
    %90 = vector.broadcast %89 : vector<1x32xf32> to vector<8x32xf32>
    %91 = arith.addf %88, %90 : vector<8x32xf32>
    %92 = vector.extract_strided_slice %12 {offsets = [0, 0], sizes = [8, 32], strides = [1, 1]} : vector<256x32xf32> to vector<8x32xf32>
    %93 = arith.addf %92, %91 : vector<8x32xf32>
    %c0_44 = arith.constant 0 : index
    %c0_45 = arith.constant 0 : index
    %94 = vector.load %arg15[%c0_44, %c0_45] : memref<1x32xf32, #tpu.memory_space<vmem>>, vector<1x32xf32>
    %c0_46 = arith.constant 0 : index
    %c0_47 = arith.constant 0 : index
    %95 = vector.load %arg16[%c0_46, %c0_47] : memref<1x32xf32, #tpu.memory_space<vmem>>, vector<1x32xf32>
    %cst_48 = arith.constant dense<0.000000e+00> : vector<8xf32>
    %96 = vector.multi_reduction <add>, %93, %cst_48 [1] : vector<8x32xf32> to vector<8xf32>
    %97 = vector.shape_cast %96 : vector<8xf32> to vector<8x1xf32>
    %cst_49 = arith.constant 3.200000e+01 : f32
    %98 = vector.broadcast %cst_49 : f32 to vector<8x1xf32>
    %99 = arith.divf %97, %98 : vector<8x1xf32>
    %100 = vector.broadcast %99 : vector<8x1xf32> to vector<8x32xf32>
    %101 = arith.subf %93, %100 : vector<8x32xf32>
    %102 = arith.mulf %101, %101 : vector<8x32xf32>
    %cst_50 = arith.constant dense<0.000000e+00> : vector<8xf32>
    %103 = vector.multi_reduction <add>, %102, %cst_50 [1] : vector<8x32xf32> to vector<8xf32>
    %104 = vector.shape_cast %103 : vector<8xf32> to vector<8x1xf32>
    %cst_51 = arith.constant 3.200000e+01 : f32
    %105 = vector.broadcast %cst_51 : f32 to vector<8x1xf32>
    %106 = arith.divf %104, %105 : vector<8x1xf32>
    %107 = vector.broadcast %99 : vector<8x1xf32> to vector<8x32xf32>
    %108 = arith.subf %93, %107 : vector<8x32xf32>
    %cst_52 = arith.constant 9.99999974E-6 : f32
    %109 = vector.broadcast %cst_52 : f32 to vector<8x1xf32>
    %110 = arith.addf %106, %109 : vector<8x1xf32>
    %111 = math.rsqrt %110 : vector<8x1xf32>
    %112 = vector.broadcast %111 : vector<8x1xf32> to vector<8x32xf32>
    %113 = arith.mulf %108, %112 : vector<8x32xf32>
    %114 = vector.broadcast %94 : vector<1x32xf32> to vector<8x32xf32>
    %115 = arith.mulf %113, %114 : vector<8x32xf32>
    %116 = vector.broadcast %95 : vector<1x32xf32> to vector<8x32xf32>
    %117 = arith.addf %115, %116 : vector<8x32xf32>
    %c0_53 = arith.constant 0 : index
    %c0_54 = arith.constant 0 : index
    %118 = vector.load %arg17[%c0_53, %c0_54] : memref<32x64xf32, #tpu.memory_space<vmem>>, vector<32x64xf32>
    %cst_55 = arith.constant dense<0.000000e+00> : vector<8x64xf32>
    %119 = tpu.matmul %117, %118, %cst_55 {dimension_numbers = #tpu.dot_dimension_numbers<[1], [0], [0], [1], [0, 0, 1, 1], [], []>} : vector<8x32xf32>, vector<32x64xf32>, vector<8x64xf32> -> vector<8x64xf32>
    %c0_56 = arith.constant 0 : index
    %c0_57 = arith.constant 0 : index
    %120 = vector.load %arg18[%c0_56, %c0_57] : memref<1x64xf32, #tpu.memory_space<vmem>>, vector<1x64xf32>
    %121 = vector.broadcast %120 : vector<1x64xf32> to vector<8x64xf32>
    %122 = arith.addf %119, %121 : vector<8x64xf32>
    %cst_58 = arith.constant 0.000000e+00 : f32
    %123 = vector.broadcast %cst_58 : f32 to vector<8x64xf32>
    %124 = arith.maximumf %122, %123 : vector<8x64xf32>
    %c0_59 = arith.constant 0 : index
    %c0_60 = arith.constant 0 : index
    %125 = vector.load %arg19[%c0_59, %c0_60] : memref<64x32xf32, #tpu.memory_space<vmem>>, vector<64x32xf32>
    %cst_61 = arith.constant dense<0.000000e+00> : vector<8x32xf32>
    %126 = tpu.matmul %124, %125, %cst_61 {dimension_numbers = #tpu.dot_dimension_numbers<[1], [0], [0], [1], [0, 0, 1, 1], [], []>} : vector<8x64xf32>, vector<64x32xf32>, vector<8x32xf32> -> vector<8x32xf32>
    %c0_62 = arith.constant 0 : index
    %c0_63 = arith.constant 0 : index
    %127 = vector.load %arg20[%c0_62, %c0_63] : memref<1x32xf32, #tpu.memory_space<vmem>>, vector<1x32xf32>
    %128 = vector.broadcast %127 : vector<1x32xf32> to vector<8x32xf32>
    %129 = arith.addf %126, %128 : vector<8x32xf32>
    %130 = arith.addf %93, %129 : vector<8x32xf32>
    %c0_64 = arith.constant 0 : index
    %c0_65 = arith.constant 0 : index
    %131 = vector.load %arg21[%c0_64, %c0_65] : memref<8x32xf32, #tpu.memory_space<vmem>>, vector<8x32xf32>
    tpu.vector_store %arg21[%c0_64, %c0_65], %130 {strides = array<i32>} : memref<8x32xf32, #tpu.memory_space<vmem>>, vector<8x32xf32>,
    return
  }
  func.func @transform_0(%arg0: i32) -> (i32, i32) {
    %c0_i32 = arith.constant 0 : i32
    %c0_i32_0 = arith.constant 0 : i32
    return %arg0, %c0_i32 : i32, i32
  }
  func.func @transform_1(%arg0: i32) -> (i32, i32, i32) {
    %c0_i32 = arith.constant 0 : i32
    %c0_i32_0 = arith.constant 0 : i32
    %c0_i32_1 = arith.constant 0 : i32
    return %c0_i32, %arg0, %c0_i32_0 : i32, i32, i32
  }
  func.func @transform_2(%arg0: i32) -> (i32, i32) {
    %c0_i32 = arith.constant 0 : i32
    %c0_i32_0 = arith.constant 0 : i32
    %c0_i32_1 = arith.constant 0 : i32
    return %c0_i32, %c0_i32_0 : i32, i32
  }
  func.func @transform_3(%arg0: i32) -> (i32, i32) {
    %c0_i32 = arith.constant 0 : i32
    %c0_i32_0 = arith.constant 0 : i32
    %c0_i32_1 = arith.constant 0 : i32
    return %c0_i32, %c0_i32_0 : i32, i32
  }
  func.func @transform_4(%arg0: i32) -> (i32, i32) {
    %c0_i32 = arith.constant 0 : i32
    %c0_i32_0 = arith.constant 0 : i32
    %c0_i32_1 = arith.constant 0 : i32
    return %c0_i32, %c0_i32_0 : i32, i32
  }
  func.func @transform_5(%arg0: i32) -> (i32, i32) {
    %c0_i32 = arith.constant 0 : i32
    %c0_i32_0 = arith.constant 0 : i32
    %c0_i32_1 = arith.constant 0 : i32
    return %c0_i32, %c0_i32_0 : i32, i32
  }
  func.func @transform_6(%arg0: i32) -> (i32, i32) {
    %c0_i32 = arith.constant 0 : i32
    %c0_i32_0 = arith.constant 0 : i32
    %c0_i32_1 = arith.constant 0 : i32
    return %c0_i32, %c0_i32_0 : i32, i32
  }
  func.func @transform_7(%arg0: i32) -> (i32, i32) {
    %c0_i32 = arith.constant 0 : i32
    %c0_i32_0 = arith.constant 0 : i32
    %c0_i32_1 = arith.constant 0 : i32
    return %c0_i32, %c0_i32_0 : i32, i32
  }
  func.func @transform_8(%arg0: i32) -> (i32, i32) {
    %c0_i32 = arith.constant 0 : i32
    %c0_i32_0 = arith.constant 0 : i32
    %c0_i32_1 = arith.constant 0 : i32
    return %c0_i32, %c0_i32_0 : i32, i32
  }
  func.func @transform_9(%arg0: i32) -> (i32, i32) {
    %c0_i32 = arith.constant 0 : i32
    %c0_i32_0 = arith.constant 0 : i32
    %c0_i32_1 = arith.constant 0 : i32
    return %c0_i32, %c0_i32_0 : i32, i32
  }
  func.func @transform_10(%arg0: i32) -> (i32, i32) {
    %c0_i32 = arith.constant 0 : i32
    %c0_i32_0 = arith.constant 0 : i32
    %c0_i32_1 = arith.constant 0 : i32
    return %c0_i32, %c0_i32_0 : i32, i32
  }
  func.func @transform_11(%arg0: i32) -> (i32, i32) {
    %c0_i32 = arith.constant 0 : i32
    %c0_i32_0 = arith.constant 0 : i32
    %c0_i32_1 = arith.constant 0 : i32
    return %c0_i32, %c0_i32_0 : i32, i32
  }
  func.func @transform_12(%arg0: i32) -> (i32, i32) {
    %c0_i32 = arith.constant 0 : i32
    %c0_i32_0 = arith.constant 0 : i32
    %c0_i32_1 = arith.constant 0 : i32
    return %c0_i32, %c0_i32_0 : i32, i32
  }
  func.func @transform_13(%arg0: i32) -> (i32, i32) {
    %c0_i32 = arith.constant 0 : i32
    %c0_i32_0 = arith.constant 0 : i32
    %c0_i32_1 = arith.constant 0 : i32
    return %c0_i32, %c0_i32_0 : i32, i32
  }
  func.func @transform_14(%arg0: i32) -> (i32, i32) {
    %c0_i32 = arith.constant 0 : i32
    %c0_i32_0 = arith.constant 0 : i32
    %c0_i32_1 = arith.constant 0 : i32
    return %c0_i32, %c0_i32_0 : i32, i32
  }
  func.func @transform_15(%arg0: i32) -> (i32, i32) {
    %c0_i32 = arith.constant 0 : i32
    %c0_i32_0 = arith.constant 0 : i32
    %c0_i32_1 = arith.constant 0 : i32
    return %c0_i32, %c0_i32_0 : i32, i32
  }
  func.func @transform_16(%arg0: i32) -> (i32, i32) {
    %c0_i32 = arith.constant 0 : i32
    %c0_i32_0 = arith.constant 0 : i32
    %c0_i32_1 = arith.constant 0 : i32
    return %c0_i32, %c0_i32_0 : i32, i32
  }
  func.func @transform_17(%arg0: i32) -> (i32, i32) {
    %c0_i32 = arith.constant 0 : i32
    %c0_i32_0 = arith.constant 0 : i32
    %c0_i32_1 = arith.constant 0 : i32
    return %c0_i32, %c0_i32_0 : i32, i32
  }
  func.func @transform_18(%arg0: i32) -> (i32, i32) {
    %c0_i32 = arith.constant 0 : i32
    %c0_i32_0 = arith.constant 0 : i32
    %c0_i32_1 = arith.constant 0 : i32
    return %c0_i32, %c0_i32_0 : i32, i32
  }
  func.func @transform_19(%arg0: i32) -> (i32, i32) {
    %c0_i32 = arith.constant 0 : i32
    %c0_i32_0 = arith.constant 0 : i32
    %c0_i32_1 = arith.constant 0 : i32
    return %c0_i32, %c0_i32_0 : i32, i32
  }
  func.func @transform_20(%arg0: i32) -> (i32, i32) {
    %c0_i32 = arith.constant 0 : i32
    %c0_i32_0 = arith.constant 0 : i32
    return %arg0, %c0_i32 : i32, i32
  }
}

</mosaic_0001>

<llo_original>
// kernel: tpu_custom_call.1
$region0: #{tpu_custom_call.1}
  #allocation0 [shape = 'u32[]', space=smem, size = 0x4, offset = 0x4, fixed_abs, tag = 'smem constant byte address 0x4 - core index']
  #allocation1 [shape = 'u32[144,128]{1,0:T(1,128)}', space=vmem, size = 0x12000, scoped, tag = 'internal scratch']
  %s0 = inlined_call_operand.vmem [shape: f32[16,32], index: 0, kind: input, shape index: {}]
  %s1 = inlined_call_operand.vmem [shape: f32[32,16,8], index: 1, kind: input, shape index: {}]
  %s2 = inlined_call_operand.vmem [shape: f32[8,32], index: 2, kind: input, shape index: {}]
  %s3 = inlined_call_operand.vmem [shape: f32[1,32], index: 3, kind: input, shape index: {}]
  %s4 = inlined_call_operand.vmem [shape: f32[1,32], index: 4, kind: input, shape index: {}]
  %s5 = inlined_call_operand.vmem [shape: f32[1,32], index: 5, kind: input, shape index: {}]
  %s6 = inlined_call_operand.vmem [shape: f32[32,32], index: 6, kind: input, shape index: {}]
  %s7 = inlined_call_operand.vmem [shape: f32[1,32], index: 7, kind: input, shape index: {}]
  %s8 = inlined_call_operand.vmem [shape: f32[32,32], index: 8, kind: input, shape index: {}]
  %s9 = inlined_call_operand.vmem [shape: f32[1,32], index: 9, kind: input, shape index: {}]
  %s10 = inlined_call_operand.vmem [shape: f32[32,32], index: 10, kind: input, shape index: {}]
  %s11 = inlined_call_operand.vmem [shape: f32[1,32], index: 11, kind: input, shape index: {}]
  %s12 = inlined_call_operand.vmem [shape: f32[32,32], index: 12, kind: input, shape index: {}]
  %s13 = inlined_call_operand.vmem [shape: f32[1,32], index: 13, kind: input, shape index: {}]
  %s14 = inlined_call_operand.vmem [shape: f32[1,32], index: 14, kind: input, shape index: {}]
  %s15 = inlined_call_operand.vmem [shape: f32[1,32], index: 15, kind: input, shape index: {}]
  %s16 = inlined_call_operand.vmem [shape: f32[32,64], index: 16, kind: input, shape index: {}]
  %s17 = inlined_call_operand.vmem [shape: f32[1,64], index: 17, kind: input, shape index: {}]
  %s18 = inlined_call_operand.vmem [shape: f32[64,32], index: 18, kind: input, shape index: {}]
  %s19 = inlined_call_operand.vmem [shape: f32[1,32], index: 19, kind: input, shape index: {}]
  %s20 = inlined_call_operand.hbm [shape: f32[16,32], index: 20, kind: output, shape index: {}]
  %s21 = sld [smem:[#allocation0]]
  $region151: #{tpu_custom_call.1} parent=0
    _
  %s23 = ssub.s32 1, %s21
  %s24 = scalar_select 0, %s23, %s21
  $region1: #{tpu_custom_call.1} parent=0
    #allocation2 [shape = 'u8[262144]{0}', space=vmem, size = 0x40000, scoped, tag = 'input window, operand 1']
    #allocation3 [shape = 'u8[8192]{0}', space=vmem, size = 0x2000, scoped, tag = 'output window, operand 0']
    #allocation4 [shape = 's32[2]{0}', space=sflag, size = 0x8, scoped, tag = 'scoped memory for tpu_custom_call.1']
    %25 = vsyncpa [#allocation4], 0
    %s26 = scalar_lea.sflag [#allocation4], 1
    %27 = vsyncpa %s26, 0
    loop: start=0, step=1, limit=4
    $region2: #{tpu_custom_call.1} parent=1 // loop_pre_header
      _
    $region3: #{tpu_custom_call.1} parent=1 // loop_header
      %s29 = sphi 0, %s33
      %p30 = scmp.ge.s32.totalorder %s29, 4
      %s39 = sphi 0, %s41
      %s42 = sphi 0, %s39
      %s43 = sphi 0, %s42
      %s59 = sphi 0, %s43
      %s65 = sphi 0, %s67
      %s68 = sphi 0, %s65
      %s69 = sphi 0, %s68
      %s85 = sphi 0, %s69
      %s89 = sphi 0, %s89
      %s91 = sphi 0, %s89
      %s92 = sphi 0, %s91
      %s106 = sphi 0, %s92
      %s110 = sphi 0, %s110
      %s112 = sphi 0, %s110
      %s113 = sphi 0, %s112
      %s127 = sphi 0, %s113
      %s131 = sphi 0, %s131
      %s133 = sphi 0, %s131
      %s134 = sphi 0, %s133
      %s148 = sphi 0, %s134
      %s152 = sphi 0, %s152
      %s154 = sphi 0, %s152
      %s155 = sphi 0, %s154
      %s169 = sphi 0, %s155
      %s173 = sphi 0, %s173
      %s175 = sphi 0, %s173
      %s176 = sphi 0, %s175
      %s190 = sphi 0, %s176
      %s194 = sphi 0, %s194
      %s196 = sphi 0, %s194
      %s197 = sphi 0, %s196
      %s211 = sphi 0, %s197
      %s215 = sphi 0, %s215
      %s217 = sphi 0, %s215
      %s218 = sphi 0, %s217
      %s232 = sphi 0, %s218
      %s236 = sphi 0, %s236
      %s238 = sphi 0, %s236
      %s239 = sphi 0, %s238
      %s253 = sphi 0, %s239
      %s257 = sphi 0, %s257
      %s259 = sphi 0, %s257
      %s260 = sphi 0, %s259
      %s274 = sphi 0, %s260
      %s278 = sphi 0, %s278
      %s280 = sphi 0, %s278
      %s281 = sphi 0, %s280
      %s295 = sphi 0, %s281
      %s299 = sphi 0, %s299
      %s301 = sphi 0, %s299
      %s302 = sphi 0, %s301
      %s316 = sphi 0, %s302
      %s320 = sphi 0, %s320
      %s322 = sphi 0, %s320
      %s323 = sphi 0, %s322
      %s337 = sphi 0, %s323
      %s341 = sphi 0, %s341
      %s343 = sphi 0, %s341
      %s344 = sphi 0, %s343
      %s358 = sphi 0, %s344
      %s362 = sphi 0, %s362
      %s364 = sphi 0, %s362
      %s365 = sphi 0, %s364
      %s379 = sphi 0, %s365
      %s383 = sphi 0, %s383
      %s385 = sphi 0, %s383
      %s386 = sphi 0, %s385
      %s400 = sphi 0, %s386
      %s404 = sphi 0, %s404
      %s406 = sphi 0, %s404
      %s407 = sphi 0, %s406
      %s421 = sphi 0, %s407
      %s425 = sphi 0, %s425
      %s427 = sphi 0, %s425
      %s428 = sphi 0, %s427
      %s442 = sphi 0, %s428
      %s446 = sphi 0, %s446
      %s448 = sphi 0, %s446
      %s449 = sphi 0, %s448
      %s463 = sphi 0, %s449
      %s469 = sphi 0, %s471
      %s472 = sphi 0, %s469
      %s473 = sphi 0, %s472
      %s489 = sphi 0, %s473
    $region4: #{tpu_custom_call.1} parent=1 // loop_header_branch
      %32 = sbr.rel (%p30) target = $region8
    $region5: #{tpu_custom_call.1} parent=1 // loop_body
      %s34 = ssub.s32 %s29, 1
      %s35 = ssub.s32 %s29, 2
      %s36 = sadd.s32 %s29, 1
      %s37 = ssub.s32 %s29, %s36
      %p38 = scmp.eq.s32.totalorder %s37, 0
      %s40 = sadd.s32 %s39, 1
      %s41 = scalar_select %p38, %s39, %s40
      %p44 = pneg %p38
      %p45 = scmp.eq.s32.totalorder %s29, 1
      %p46 = por %p44, %p45
      %p47 = scmp.ne.s32.totalorder %s39, %s42
      %p48 = scmp.eq.s32.totalorder %s29, 0
      %p49 = por %p47, %p48
      %p50 = scmp.ne.s32.totalorder %s39, %s42
      %p51 = scmp.eq.s32.totalorder %s34, 1
      %p52 = por %p50, %p51
      %p53 = scmp.ne.s32.totalorder %s42, %s43
      %p54 = scmp.eq.s32.totalorder %s34, 0
      %p55 = por %p53, %p54
      %p56 = scmp.ne.s32.totalorder %s42, %s43
      %p57 = scmp.eq.s32.totalorder %s35, 1
      %p58 = por %p56, %p57
      %p60 = scmp.ne.s32.totalorder %s43, %s59
      %p61 = scmp.eq.s32.totalorder %s35, 0
      %p62 = por %p60, %p61
      %s63 = ssub.s32 %s29, %s36
      %p64 = scmp.eq.s32.totalorder %s63, 0
      %s66 = sadd.s32 %s65, 1
      %s67 = scalar_select %p64, %s65, %s66
      %p70 = pneg %p64
      %p71 = scmp.eq.s32.totalorder %s29, 1
      %p72 = por %p70, %p71
      %p73 = scmp.ne.s32.totalorder %s65, %s68
      %p74 = scmp.eq.s32.totalorder %s29, 0
      %p75 = por %p73, %p74
      %p76 = scmp.ne.s32.totalorder %s65, %s68
      %p77 = scmp.eq.s32.totalorder %s34, 1
      %p78 = por %p76, %p77
      %p79 = scmp.ne.s32.totalorder %s68, %s69
      %p80 = scmp.eq.s32.totalorder %s34, 0
      %p81 = por %p79, %p80
      %p82 = scmp.ne.s32.totalorder %s68, %s69
      %p83 = scmp.eq.s32.totalorder %s35, 1
      %p84 = por %p82, %p83
      %p86 = scmp.ne.s32.totalorder %s69, %s85
      %p87 = scmp.eq.s32.totalorder %s35, 0
      %p88 = por %p86, %p87
      %s90 = sadd.s32 %s89, 1
      %p93 = scmp.eq.s32.totalorder %s29, 1
      %p94 = scmp.ne.s32.totalorder %s89, %s91
      %p95 = scmp.eq.s32.totalorder %s29, 0
      %p96 = por %p94, %p95
      %p97 = scmp.ne.s32.totalorder %s89, %s91
      %p98 = scmp.eq.s32.totalorder %s34, 1
      %p99 = por %p97, %p98
      %p100 = scmp.ne.s32.totalorder %s91, %s92
      %p101 = scmp.eq.s32.totalorder %s34, 0
      %p102 = por %p100, %p101
      %p103 = scmp.ne.s32.totalorder %s91, %s92
      %p104 = scmp.eq.s32.totalorder %s35, 1
      %p105 = por %p103, %p104
      %p107 = scmp.ne.s32.totalorder %s92, %s106
      %p108 = scmp.eq.s32.totalorder %s35, 0
      %p109 = por %p107, %p108
      %s111 = sadd.s32 %s110, 1
      %p114 = scmp.eq.s32.totalorder %s29, 1
      %p115 = scmp.ne.s32.totalorder %s110, %s112
      %p116 = scmp.eq.s32.totalorder %s29, 0
      %p117 = por %p115, %p116
      %p118 = scmp.ne.s32.totalorder %s110, %s112
      %p119 = scmp.eq.s32.totalorder %s34, 1
      %p120 = por %p118, %p119
      %p121 = scmp.ne.s32.totalorder %s112, %s113
      %p122 = scmp.eq.s32.totalorder %s34, 0
      %p123 = por %p121, %p122
      %p124 = scmp.ne.s32.totalorder %s112, %s113
      %p125 = scmp.eq.s32.totalorder %s35, 1
      %p126 = por %p124, %p125
      %p128 = scmp.ne.s32.totalorder %s113, %s127
      %p129 = scmp.eq.s32.totalorder %s35, 0
      %p130 = por %p128, %p129
      %s132 = sadd.s32 %s131, 1
      %p135 = scmp.eq.s32.totalorder %s29, 1
      %p136 = scmp.ne.s32.totalorder %s131, %s133
      %p137 = scmp.eq.s32.totalorder %s29, 0
      %p138 = por %p136, %p137
      %p139 = scmp.ne.s32.totalorder %s131, %s133
      %p140 = scmp.eq.s32.totalorder %s34, 1
      %p141 = por %p139, %p140
      %p142 = scmp.ne.s32.totalorder %s133, %s134
      %p143 = scmp.eq.s32.totalorder %s34, 0
      %p144 = por %p142, %p143
      %p145 = scmp.ne.s32.totalorder %s133, %s134
      %p146 = scmp.eq.s32.totalorder %s35, 1
      %p147 = por %p145, %p146
      %p149 = scmp.ne.s32.totalorder %s134, %s148
      %p150 = scmp.eq.s32.totalorder %s35, 0
      %p151 = por %p149, %p150
      %s153 = sadd.s32 %s152, 1
      %p156 = scmp.eq.s32.totalorder %s29, 1
      %p157 = scmp.ne.s32.totalorder %s152, %s154
      %p158 = scmp.eq.s32.totalorder %s29, 0
      %p159 = por %p157, %p158
      %p160 = scmp.ne.s32.totalorder %s152, %s154
      %p161 = scmp.eq.s32.totalorder %s34, 1
      %p162 = por %p160, %p161
      %p163 = scmp.ne.s32.totalorder %s154, %s155
      %p164 = scmp.eq.s32.totalorder %s34, 0
      %p165 = por %p163, %p164
      %p166 = scmp.ne.s32.totalorder %s154, %s155
      %p167 = scmp.eq.s32.totalorder %s35, 1
      %p168 = por %p166, %p167
      %p170 = scmp.ne.s32.totalorder %s155, %s169
      %p171 = scmp.eq.s32.totalorder %s35, 0
      %p172 = por %p170, %p171
      %s174 = sadd.s32 %s173, 1
      %p177 = scmp.eq.s32.totalorder %s29, 1
      %p178 = scmp.ne.s32.totalorder %s173, %s175
      %p179 = scmp.eq.s32.totalorder %s29, 0
      %p180 = por %p178, %p179
      %p181 = scmp.ne.s32.totalorder %s173, %s175
      %p182 = scmp.eq.s32.totalorder %s34, 1
      %p183 = por %p181, %p182
      %p184 = scmp.ne.s32.totalorder %s175, %s176
      %p185 = scmp.eq.s32.totalorder %s34, 0
      %p186 = por %p184, %p185
      %p187 = scmp.ne.s32.totalorder %s175, %s176
      %p188 = scmp.eq.s32.totalorder %s35, 1
      %p189 = por %p187, %p188
      %p191 = scmp.ne.s32.totalorder %s176, %s190
      %p192 = scmp.eq.s32.totalorder %s35, 0
      %p193 = por %p191, %p192
      %s195 = sadd.s32 %s194, 1
      %p198 = scmp.eq.s32.totalorder %s29, 1
      %p199 = scmp.ne.s32.totalorder %s194, %s196
      %p200 = scmp.eq.s32.totalorder %s29, 0
      %p201 = por %p199, %p200
      %p202 = scmp.ne.s32.totalorder %s194, %s196
      %p203 = scmp.eq.s32.totalorder %s34, 1
      %p204 = por %p202, %p203
      %p205 = scmp.ne.s32.totalorder %s196, %s197
      %p206 = scmp.eq.s32.totalorder %s34, 0
      %p207 = por %p205, %p206
      %p208 = scmp.ne.s32.totalorder %s196, %s197
      %p209 = scmp.eq.s32.totalorder %s35, 1
      %p210 = por %p208, %p209
      %p212 = scmp.ne.s32.totalorder %s197, %s211
      %p213 = scmp.eq.s32.totalorder %s35, 0
      %p214 = por %p212, %p213
      %s216 = sadd.s32 %s215, 1
      %p219 = scmp.eq.s32.totalorder %s29, 1
      %p220 = scmp.ne.s32.totalorder %s215, %s217
      %p221 = scmp.eq.s32.totalorder %s29, 0
      %p222 = por %p220, %p221
      %p223 = scmp.ne.s32.totalorder %s215, %s217
      %p224 = scmp.eq.s32.totalorder %s34, 1
      %p225 = por %p223, %p224
      %p226 = scmp.ne.s32.totalorder %s217, %s218
      %p227 = scmp.eq.s32.totalorder %s34, 0
      %p228 = por %p226, %p227
      %p229 = scmp.ne.s32.totalorder %s217, %s218
      %p230 = scmp.eq.s32.totalorder %s35, 1
      %p231 = por %p229, %p230
      %p233 = scmp.ne.s32.totalorder %s218, %s232
      %p234 = scmp.eq.s32.totalorder %s35, 0
      %p235 = por %p233, %p234
      %s237 = sadd.s32 %s236, 1
      %p240 = scmp.eq.s32.totalorder %s29, 1
      %p241 = scmp.ne.s32.totalorder %s236, %s238
      %p242 = scmp.eq.s32.totalorder %s29, 0
      %p243 = por %p241, %p242
      %p244 = scmp.ne.s32.totalorder %s236, %s238
      %p245 = scmp.eq.s32.totalorder %s34, 1
      %p246 = por %p244, %p245
      %p247 = scmp.ne.s32.totalorder %s238, %s239
      %p248 = scmp.eq.s32.totalorder %s34, 0
      %p249 = por %p247, %p248
      %p250 = scmp.ne.s32.totalorder %s238, %s239
      %p251 = scmp.eq.s32.totalorder %s35, 1
      %p252 = por %p250, %p251
      %p254 = scmp.ne.s32.totalorder %s239, %s253
      %p255 = scmp.eq.s32.totalorder %s35, 0
      %p256 = por %p254, %p255
      %s258 = sadd.s32 %s257, 1
      %p261 = scmp.eq.s32.totalorder %s29, 1
      %p262 = scmp.ne.s32.totalorder %s257, %s259
      %p263 = scmp.eq.s32.totalorder %s29, 0
      %p264 = por %p262, %p263
      %p265 = scmp.ne.s32.totalorder %s257, %s259
      %p266 = scmp.eq.s32.totalorder %s34, 1
      %p267 = por %p265, %p266
      %p268 = scmp.ne.s32.totalorder %s259, %s260
      %p269 = scmp.eq.s32.totalorder %s34, 0
      %p270 = por %p268, %p269
      %p271 = scmp.ne.s32.totalorder %s259, %s260
      %p272 = scmp.eq.s32.totalorder %s35, 1
      %p273 = por %p271, %p272
      %p275 = scmp.ne.s32.totalorder %s260, %s274
      %p276 = scmp.eq.s32.totalorder %s35, 0
      %p277 = por %p275, %p276
      %s279 = sadd.s32 %s278, 1
      %p282 = scmp.eq.s32.totalorder %s29, 1
      %p283 = scmp.ne.s32.totalorder %s278, %s280
      %p284 = scmp.eq.s32.totalorder %s29, 0
      %p285 = por %p283, %p284
      %p286 = scmp.ne.s32.totalorder %s278, %s280
      %p287 = scmp.eq.s32.totalorder %s34, 1
      %p288 = por %p286, %p287
      %p289 = scmp.ne.s32.totalorder %s280, %s281
      %p290 = scmp.eq.s32.totalorder %s34, 0
      %p291 = por %p289, %p290
      %p292 = scmp.ne.s32.totalorder %s280, %s281
      %p293 = scmp.eq.s32.totalorder %s35, 1
      %p294 = por %p292, %p293
      %p296 = scmp.ne.s32.totalorder %s281, %s295
      %p297 = scmp.eq.s32.totalorder %s35, 0
      %p298 = por %p296, %p297
      %s300 = sadd.s32 %s299, 1
      %p303 = scmp.eq.s32.totalorder %s29, 1
      %p304 = scmp.ne.s32.totalorder %s299, %s301
      %p305 = scmp.eq.s32.totalorder %s29, 0
      %p306 = por %p304, %p305
      %p307 = scmp.ne.s32.totalorder %s299, %s301
      %p308 = scmp.eq.s32.totalorder %s34, 1
      %p309 = por %p307, %p308
      %p310 = scmp.ne.s32.totalorder %s301, %s302
      %p311 = scmp.eq.s32.totalorder %s34, 0
      %p312 = por %p310, %p311
      %p313 = scmp.ne.s32.totalorder %s301, %s302
      %p314 = scmp.eq.s32.totalorder %s35, 1
      %p315 = por %p313, %p314
      %p317 = scmp.ne.s32.totalorder %s302, %s316
      %p318 = scmp.eq.s32.totalorder %s35, 0
      %p319 = por %p317, %p318
      %s321 = sadd.s32 %s320, 1
      %p324 = scmp.eq.s32.totalorder %s29, 1
      %p325 = scmp.ne.s32.totalorder %s320, %s322
      %p326 = scmp.eq.s32.totalorder %s29, 0
      %p327 = por %p325, %p326
      %p328 = scmp.ne.s32.totalorder %s320, %s322
      %p329 = scmp.eq.s32.totalorder %s34, 1
      %p330 = por %p328, %p329
      %p331 = scmp.ne.s32.totalorder %s322, %s323
      %p332 = scmp.eq.s32.totalorder %s34, 0
      %p333 = por %p331, %p332
      %p334 = scmp.ne.s32.totalorder %s322, %s323
      %p335 = scmp.eq.s32.totalorder %s35, 1
      %p336 = por %p334, %p335
      %p338 = scmp.ne.s32.totalorder %s323, %s337
      %p339 = scmp.eq.s32.totalorder %s35, 0
      %p340 = por %p338, %p339
      %s342 = sadd.s32 %s341, 1
      %p345 = scmp.eq.s32.totalorder %s29, 1
      %p346 = scmp.ne.s32.totalorder %s341, %s343
      %p347 = scmp.eq.s32.totalorder %s29, 0
      %p348 = por %p346, %p347
      %p349 = scmp.ne.s32.totalorder %s341, %s343
      %p350 = scmp.eq.s32.totalorder %s34, 1
      %p351 = por %p349, %p350
      %p352 = scmp.ne.s32.totalorder %s343, %s344
      %p353 = scmp.eq.s32.totalorder %s34, 0
      %p354 = por %p352, %p353
      %p355 = scmp.ne.s32.totalorder %s343, %s344
      %p356 = scmp.eq.s32.totalorder %s35, 1
      %p357 = por %p355, %p356
      %p359 = scmp.ne.s32.totalorder %s344, %s358
      %p360 = scmp.eq.s32.totalorder %s35, 0
      %p361 = por %p359, %p360
      %s363 = sadd.s32 %s362, 1
      %p366 = scmp.eq.s32.totalorder %s29, 1
      %p367 = scmp.ne.s32.totalorder %s362, %s364
      %p368 = scmp.eq.s32.totalorder %s29, 0
      %p369 = por %p367, %p368
      %p370 = scmp.ne.s32.totalorder %s362, %s364
      %p371 = scmp.eq.s32.totalorder %s34, 1
      %p372 = por %p370, %p371
      %p373 = scmp.ne.s32.totalorder %s364, %s365
      %p374 = scmp.eq.s32.totalorder %s34, 0
      %p375 = por %p373, %p374
      %p376 = scmp.ne.s32.totalorder %s364, %s365
      %p377 = scmp.eq.s32.totalorder %s35, 1
      %p378 = por %p376, %p377
      %p380 = scmp.ne.s32.totalorder %s365, %s379
      %p381 = scmp.eq.s32.totalorder %s35, 0
      %p382 = por %p380, %p381
      %s384 = sadd.s32 %s383, 1
      %p387 = scmp.eq.s32.totalorder %s29, 1
      %p388 = scmp.ne.s32.totalorder %s383, %s385
      %p389 = scmp.eq.s32.totalorder %s29, 0
      %p390 = por %p388, %p389
      %p391 = scmp.ne.s32.totalorder %s383, %s385
      %p392 = scmp.eq.s32.totalorder %s34, 1
      %p393 = por %p391, %p392
      %p394 = scmp.ne.s32.totalorder %s385, %s386
      %p395 = scmp.eq.s32.totalorder %s34, 0
      %p396 = por %p394, %p395
      %p397 = scmp.ne.s32.totalorder %s385, %s386
      %p398 = scmp.eq.s32.totalorder %s35, 1
      %p399 = por %p397, %p398
      %p401 = scmp.ne.s32.totalorder %s386, %s400
      %p402 = scmp.eq.s32.totalorder %s35, 0
      %p403 = por %p401, %p402
      %s405 = sadd.s32 %s404, 1
      %p408 = scmp.eq.s32.totalorder %s29, 1
      %p409 = scmp.ne.s32.totalorder %s404, %s406
      %p410 = scmp.eq.s32.totalorder %s29, 0
      %p411 = por %p409, %p410
      %p412 = scmp.ne.s32.totalorder %s404, %s406
      %p413 = scmp.eq.s32.totalorder %s34, 1
      %p414 = por %p412, %p413
      %p415 = scmp.ne.s32.totalorder %s406, %s407
      %p416 = scmp.eq.s32.totalorder %s34, 0
      %p417 = por %p415, %p416
      %p418 = scmp.ne.s32.totalorder %s406, %s407
      %p419 = scmp.eq.s32.totalorder %s35, 1
      %p420 = por %p418, %p419
      %p422 = scmp.ne.s32.totalorder %s407, %s421
      %p423 = scmp.eq.s32.totalorder %s35, 0
      %p424 = por %p422, %p423
      %s426 = sadd.s32 %s425, 1
      %p429 = scmp.eq.s32.totalorder %s29, 1
      %p430 = scmp.ne.s32.totalorder %s425, %s427
      %p431 = scmp.eq.s32.totalorder %s29, 0
      %p432 = por %p430, %p431
      %p433 = scmp.ne.s32.totalorder %s425, %s427
      %p434 = scmp.eq.s32.totalorder %s34, 1
      %p435 = por %p433, %p434
      %p436 = scmp.ne.s32.totalorder %s427, %s428
      %p437 = scmp.eq.s32.totalorder %s34, 0
      %p438 = por %p436, %p437
      %p439 = scmp.ne.s32.totalorder %s427, %s428
      %p440 = scmp.eq.s32.totalorder %s35, 1
      %p441 = por %p439, %p440
      %p443 = scmp.ne.s32.totalorder %s428, %s442
      %p444 = scmp.eq.s32.totalorder %s35, 0
      %p445 = por %p443, %p444
      %s447 = sadd.s32 %s446, 1
      %p450 = scmp.eq.s32.totalorder %s29, 1
      %p451 = scmp.ne.s32.totalorder %s446, %s448
      %p452 = scmp.eq.s32.totalorder %s29, 0
      %p453 = por %p451, %p452
      %p454 = scmp.ne.s32.totalorder %s446, %s448
      %p455 = scmp.eq.s32.totalorder %s34, 1
      %p456 = por %p454, %p455
      %p457 = scmp.ne.s32.totalorder %s448, %s449
      %p458 = scmp.eq.s32.totalorder %s34, 0
      %p459 = por %p457, %p458
      %p460 = scmp.ne.s32.totalorder %s448, %s449
      %p461 = scmp.eq.s32.totalorder %s35, 1
      %p462 = por %p460, %p461
      %p464 = scmp.ne.s32.totalorder %s449, %s463
      %p465 = scmp.eq.s32.totalorder %s35, 0
      %p466 = por %p464, %p465
      %s467 = ssub.s32 %s29, %s36
      %p468 = scmp.eq.s32.totalorder %s467, 0
      %s470 = sadd.s32 %s469, 1
      %s471 = scalar_select %p468, %s469, %s470
      %p474 = pneg %p468
      %p475 = scmp.eq.s32.totalorder %s29, 1
      %p476 = por %p474, %p475
      %p477 = scmp.ne.s32.totalorder %s469, %s472
      %p478 = scmp.eq.s32.totalorder %s29, 0
      %p479 = por %p477, %p478
      %p480 = scmp.ne.s32.totalorder %s469, %s472
      %p481 = scmp.eq.s32.totalorder %s34, 1
      %p482 = por %p480, %p481
      %p483 = scmp.ne.s32.totalorder %s472, %s473
      %p484 = scmp.eq.s32.totalorder %s34, 0
      %p485 = por %p483, %p484
      %p486 = scmp.ne.s32.totalorder %s472, %s473
      %p487 = scmp.eq.s32.totalorder %s35, 1
      %p488 = por %p486, %p487
      %p490 = scmp.ne.s32.totalorder %s473, %s489
      %p491 = scmp.eq.s32.totalorder %s35, 0
      %p492 = por %p490, %p491
      %p493 = scmp.le.s32.totalorder 1, %s29
      %p494 = scmp.lt.s32.totalorder %s29, 3
      %p495 = pnand %p493, %p494
      %p496 = pneg %p495
      // Predicated region
      $region9: #{tpu_custom_call.1} parent=5 // pred_check
        _
      $region10: #{tpu_custom_call.1} parent=5 // pred_check_branch
        %498 = sbr.rel (%p495) target = $region12
      $region11: #{tpu_custom_call.1} parent=5 // pred_region
        %s499 = ssub.s32 %s29, 1
        // Predicated region
        $region13: #{tpu_custom_call.1} parent=11 // pred_check
          %p500 = pneg %p102
        $region14: #{tpu_custom_call.1} parent=11 // pred_check_branch
          %502 = sbr.rel (%p500) target = $region16
        $region15: #{tpu_custom_call.1} parent=11 // pred_region
          _
        $region16: #{tpu_custom_call.1} parent=11 // pred_fallthru
          _
        // Predicated region
        $region17: #{tpu_custom_call.1} parent=11 // pred_check
          %p503 = pneg %p123
        $region18: #{tpu_custom_call.1} parent=11 // pred_check_branch
          %505 = sbr.rel (%p503) target = $region20
        $region19: #{tpu_custom_call.1} parent=11 // pred_region
          _
        $region20: #{tpu_custom_call.1} parent=11 // pred_fallthru
          _
        // Predicated region
        $region21: #{tpu_custom_call.1} parent=11 // pred_check
          %p506 = pneg %p144
        $region22: #{tpu_custom_call.1} parent=11 // pred_check_branch
          %508 = sbr.rel (%p506) target = $region24
        $region23: #{tpu_custom_call.1} parent=11 // pred_region
          _
        $region24: #{tpu_custom_call.1} parent=11 // pred_fallthru
          _
        // Predicated region
        $region25: #{tpu_custom_call.1} parent=11 // pred_check
          %p509 = pneg %p165
        $region26: #{tpu_custom_call.1} parent=11 // pred_check_branch
          %511 = sbr.rel (%p509) target = $region28
        $region27: #{tpu_custom_call.1} parent=11 // pred_region
          _
        $region28: #{tpu_custom_call.1} parent=11 // pred_fallthru
          _
        // Predicated region
        $region29: #{tpu_custom_call.1} parent=11 // pred_check
          %p512 = pneg %p186
        $region30: #{tpu_custom_call.1} parent=11 // pred_check_branch
          %514 = sbr.rel (%p512) target = $region32
        $region31: #{tpu_custom_call.1} parent=11 // pred_region
          _
        $region32: #{tpu_custom_call.1} parent=11 // pred_fallthru
          _
        // Predicated region
        $region33: #{tpu_custom_call.1} parent=11 // pred_check
          %p515 = pneg %p207
        $region34: #{tpu_custom_call.1} parent=11 // pred_check_branch
          %517 = sbr.rel (%p515) target = $region36
        $region35: #{tpu_custom_call.1} parent=11 // pred_region
          _
        $region36: #{tpu_custom_call.1} parent=11 // pred_fallthru
          _
        // Predicated region
        $region37: #{tpu_custom_call.1} parent=11 // pred_check
          %p518 = pneg %p228
        $region38: #{tpu_custom_call.1} parent=11 // pred_check_branch
          %520 = sbr.rel (%p518) target = $region40
        $region39: #{tpu_custom_call.1} parent=11 // pred_region
          _
        $region40: #{tpu_custom_call.1} parent=11 // pred_fallthru
          _
        // Predicated region
        $region41: #{tpu_custom_call.1} parent=11 // pred_check
          %p521 = pneg %p249
        $region42: #{tpu_custom_call.1} parent=11 // pred_check_branch
          %523 = sbr.rel (%p521) target = $region44
        $region43: #{tpu_custom_call.1} parent=11 // pred_region
          _
        $region44: #{tpu_custom_call.1} parent=11 // pred_fallthru
          _
        // Predicated region
        $region45: #{tpu_custom_call.1} parent=11 // pred_check
          %p524 = pneg %p270
        $region46: #{tpu_custom_call.1} parent=11 // pred_check_branch
          %526 = sbr.rel (%p524) target = $region48
        $region47: #{tpu_custom_call.1} parent=11 // pred_region
          _
        $region48: #{tpu_custom_call.1} parent=11 // pred_fallthru
          _
        // Predicated region
        $region49: #{tpu_custom_call.1} parent=11 // pred_check
          %p527 = pneg %p291
        $region50: #{tpu_custom_call.1} parent=11 // pred_check_branch
          %529 = sbr.rel (%p527) target = $region52
        $region51: #{tpu_custom_call.1} parent=11 // pred_region
          _
        $region52: #{tpu_custom_call.1} parent=11 // pred_fallthru
          _
        // Predicated region
        $region53: #{tpu_custom_call.1} parent=11 // pred_check
          %p530 = pneg %p312
        $region54: #{tpu_custom_call.1} parent=11 // pred_check_branch
          %532 = sbr.rel (%p530) target = $region56
        $region55: #{tpu_custom_call.1} parent=11 // pred_region
          _
        $region56: #{tpu_custom_call.1} parent=11 // pred_fallthru
          _
        // Predicated region
        $region57: #{tpu_custom_call.1} parent=11 // pred_check
          %p533 = pneg %p333
        $region58: #{tpu_custom_call.1} parent=11 // pred_check_branch
          %535 = sbr.rel (%p533) target = $region60
        $region59: #{tpu_custom_call.1} parent=11 // pred_region
          _
        $region60: #{tpu_custom_call.1} parent=11 // pred_fallthru
          _
        // Predicated region
        $region61: #{tpu_custom_call.1} parent=11 // pred_check
          %p536 = pneg %p354
        $region62: #{tpu_custom_call.1} parent=11 // pred_check_branch
          %538 = sbr.rel (%p536) target = $region64
        $region63: #{tpu_custom_call.1} parent=11 // pred_region
          _
        $region64: #{tpu_custom_call.1} parent=11 // pred_fallthru
          _
        // Predicated region
        $region65: #{tpu_custom_call.1} parent=11 // pred_check
          %p539 = pneg %p375
        $region66: #{tpu_custom_call.1} parent=11 // pred_check_branch
          %541 = sbr.rel (%p539) target = $region68
        $region67: #{tpu_custom_call.1} parent=11 // pred_region
          _
        $region68: #{tpu_custom_call.1} parent=11 // pred_fallthru
          _
        // Predicated region
        $region69: #{tpu_custom_call.1} parent=11 // pred_check
          %p542 = pneg %p396
        $region70: #{tpu_custom_call.1} parent=11 // pred_check_branch
          %544 = sbr.rel (%p542) target = $region72
        $region71: #{tpu_custom_call.1} parent=11 // pred_region
          _
        $region72: #{tpu_custom_call.1} parent=11 // pred_fallthru
          _
        // Predicated region
        $region73: #{tpu_custom_call.1} parent=11 // pred_check
          %p545 = pneg %p417
        $region74: #{tpu_custom_call.1} parent=11 // pred_check_branch
          %547 = sbr.rel (%p545) target = $region76
        $region75: #{tpu_custom_call.1} parent=11 // pred_region
          _
        $region76: #{tpu_custom_call.1} parent=11 // pred_fallthru
          _
        // Predicated region
        $region77: #{tpu_custom_call.1} parent=11 // pred_check
          %p548 = pneg %p438
        $region78: #{tpu_custom_call.1} parent=11 // pred_check_branch
          %550 = sbr.rel (%p548) target = $region80
        $region79: #{tpu_custom_call.1} parent=11 // pred_region
          _
        $region80: #{tpu_custom_call.1} parent=11 // pred_fallthru
          _
        // Predicated region
        $region81: #{tpu_custom_call.1} parent=11 // pred_check
          %p551 = pneg %p459
        $region82: #{tpu_custom_call.1} parent=11 // pred_check_branch
          %553 = sbr.rel (%p551) target = $region84
        $region83: #{tpu_custom_call.1} parent=11 // pred_region
          _
        $region84: #{tpu_custom_call.1} parent=11 // pred_fallthru
          _
      $region12: #{tpu_custom_call.1} parent=5 // pred_fallthru
        _
      %p554 = scmp.lt.s32.totalorder %s29, 2
      // Predicated region
      $region85: #{tpu_custom_call.1} parent=5 // pred_check
        %p555 = pneg %p554
      $region86: #{tpu_custom_call.1} parent=5 // pred_check_branch
        %557 = sbr.rel (%p555) target = $region88
      $region87: #{tpu_custom_call.1} parent=5 // pred_region
        // Predicated region
        $region89: #{tpu_custom_call.1} parent=87 // pred_check
          %p558 = pneg %p49
        $region90: #{tpu_custom_call.1} parent=87 // pred_check_branch
          %560 = sbr.rel (%p558) target = $region92
        $region91: #{tpu_custom_call.1} parent=87 // pred_region
          %p561 = scmp.lt.s32.totalorder %s29, 1
          %s562 = scalar_select %p561, %s29, 1
          %s563 = smul.addr %s562, 8
          %s564 = scalar_lea.vmem %s0, %s563
        $region92: #{tpu_custom_call.1} parent=87 // pred_fallthru
          _
        // Predicated region
        $region93: #{tpu_custom_call.1} parent=87 // pred_check
          %p565 = pneg %p75
        $region94: #{tpu_custom_call.1} parent=87 // pred_check_branch
          %567 = sbr.rel (%p565) target = $region96
        $region95: #{tpu_custom_call.1} parent=87 // pred_region
          %s568 = sand.u32 %s65, 1
          %s569 = sand.u32 %s65, 1
          %s570 = smul.addr %s569, 256
          %s571 = scalar_lea.vmem [#allocation2], %s570
          %s572 = smul.addr %s29, 8
          %s573 = scalar_lea.vmem %s1, %s572
          // Predicated region
          $region97: #{tpu_custom_call.1} parent=95 // pred_check
            _
          $region98: #{tpu_custom_call.1} parent=95 // pred_check_branch
            %575 = sbr.rel (0) target = $region100
          $region99: #{tpu_custom_call.1} parent=95 // pred_region
            // Predicated region
            $region101: #{tpu_custom_call.1} parent=99 // pred_check
              _
            $region102: #{tpu_custom_call.1} parent=99 // pred_check_branch
              %577 = sbr.rel (0) target = $region104
            $region103: #{tpu_custom_call.1} parent=99 // pred_region
              // Predicated region
              $region116: #{tpu_custom_call.1} parent=103 // pred_check
                _
              $region117: #{tpu_custom_call.1} parent=103 // pred_check_branch
                %654 = sbr.rel (0) target = $region119
              $region118: #{tpu_custom_call.1} parent=103 // pred_region
                loop: start=0, step=1, limit=1
                $region120: #{tpu_custom_call.1} parent=118 // loop_pre_header
                  _
                $region121: #{tpu_custom_call.1} parent=118 // loop_header
                  %s656 = sphi 0, %s660
                  %p657 = scmp.ge.s32.totalorder %s656, 1
                  %s661 = sphi %s573, %s573
                  %s662 = sphi %s571, %s571
                $region122: #{tpu_custom_call.1} parent=118 // loop_header_branch
                  %659 = sbr.rel (%p657) target = $region126
                $region123: #{tpu_custom_call.1} parent=118 // loop_body
                  %v663 = vld [vmem:[%s661] sm:$0xff]
                  %664 = vst [vmem:[%s662] sm:$0xff] %v663
                  %v665 = vld [vmem:[%s661 + $0x10] sm:$0xff]
                  %666 = vst [vmem:[%s662 + $0x8] sm:$0xff] %v665
                  %v667 = vld [vmem:[%s661 + $0x20] sm:$0xff]
                  %668 = vst [vmem:[%s662 + $0x10] sm:$0xff] %v667
                  %v669 = vld [vmem:[%s661 + $0x30] sm:$0xff]
                  %670 = vst [vmem:[%s662 + $0x18] sm:$0xff] %v669
                  %v671 = vld [vmem:[%s661 + $0x40] sm:$0xff]
                  %672 = vst [vmem:[%s662 + $0x20] sm:$0xff] %v671
                  %v673 = vld [vmem:[%s661 + $0x50] sm:$0xff]
                  %674 = vst [vmem:[%s662 + $0x28] sm:$0xff] %v673
                  %v675 = vld [vmem:[%s661 + $0x60] sm:$0xff]
                  %676 = vst [vmem:[%s662 + $0x30] sm:$0xff] %v675
                  %v677 = vld [vmem:[%s661 + $0x70] sm:$0xff]
                  %678 = vst [vmem:[%s662 + $0x38] sm:$0xff] %v677
                  %v679 = vld [vmem:[%s661 + $0x80] sm:$0xff]
                  %680 = vst [vmem:[%s662 + $0x40] sm:$0xff] %v679
                  %v681 = vld [vmem:[%s661 + $0x90] sm:$0xff]
                  %682 = vst [vmem:[%s662 + $0x48] sm:$0xff] %v681
                  %v683 = vld [vmem:[%s661 + $0xa0] sm:$0xff]
                  %684 = vst [vmem:[%s662 + $0x50] sm:$0xff] %v683
                  %v685 = vld [vmem:[%s661 + $0xb0] sm:$0xff]
                  %686 = vst [vmem:[%s662 + $0x58] sm:$0xff] %v685
                  %v687 = vld [vmem:[%s661 + $0xc0] sm:$0xff]
                  %688 = vst [vmem:[%s662 + $0x60] sm:$0xff] %v687
                  %v689 = vld [vmem:[%s661 + $0xd0] sm:$0xff]
                  %690 = vst [vmem:[%s662 + $0x68] sm:$0xff] %v689
                  %v691 = vld [vmem:[%s661 + $0xe0] sm:$0xff]
                  %692 = vst [vmem:[%s662 + $0x70] sm:$0xff] %v691
                  %v693 = vld [vmem:[%s661 + $0xf0] sm:$0xff]
                  %694 = vst [vmem:[%s662 + $0x78] sm:$0xff] %v693
                  %v695 = vld [vmem:[%s661 + $0x100] sm:$0xff]
                  %696 = vst [vmem:[%s662 + $0x80] sm:$0xff] %v695
                  %v697 = vld [vmem:[%s661 + $0x110] sm:$0xff]
                  %698 = vst [vmem:[%s662 + $0x88] sm:$0xff] %v697
                  %v699 = vld [vmem:[%s661 + $0x120] sm:$0xff]
                  %700 = vst [vmem:[%s662 + $0x90] sm:$0xff] %v699
                  %v701 = vld [vmem:[%s661 + $0x130] sm:$0xff]
                  %702 = vst [vmem:[%s662 + $0x98] sm:$0xff] %v701
                  %v703 = vld [vmem:[%s661 + $0x140] sm:$0xff]
                  %704 = vst [vmem:[%s662 + $0xa0] sm:$0xff] %v703
                  %v705 = vld [vmem:[%s661 + $0x150] sm:$0xff]
                  %706 = vst [vmem:[%s662 + $0xa8] sm:$0xff] %v705
                  %v707 = vld [vmem:[%s661 + $0x160] sm:$0xff]
                  %708 = vst [vmem:[%s662 + $0xb0] sm:$0xff] %v707
                  %v709 = vld [vmem:[%s661 + $0x170] sm:$0xff]
                  %710 = vst [vmem:[%s662 + $0xb8] sm:$0xff] %v709
                  %v711 = vld [vmem:[%s661 + $0x180] sm:$0xff]
                  %712 = vst [vmem:[%s662 + $0xc0] sm:$0xff] %v711
                  %v713 = vld [vmem:[%s661 + $0x190] sm:$0xff]
                  %714 = vst [vmem:[%s662 + $0xc8] sm:$0xff] %v713
                  %v715 = vld [vmem:[%s661 + $0x1a0] sm:$0xff]
                  %716 = vst [vmem:[%s662 + $0xd0] sm:$0xff] %v715
                  %v717 = vld [vmem:[%s661 + $0x1b0] sm:$0xff]
                  %718 = vst [vmem:[%s662 + $0xd8] sm:$0xff] %v717
                  %v719 = vld [vmem:[%s661 + $0x1c0] sm:$0xff]
                  %720 = vst [vmem:[%s662 + $0xe0] sm:$0xff] %v719
                  %v721 = vld [vmem:[%s661 + $0x1d0] sm:$0xff]
                  %722 = vst [vmem:[%s662 + $0xe8] sm:$0xff] %v721
                  %v723 = vld [vmem:[%s661 + $0x1e0] sm:$0xff]
                  %724 = vst [vmem:[%s662 + $0xf0] sm:$0xff] %v723
                  %v725 = vld [vmem:[%s661 + $0x1f0] sm:$0xff]
                  %726 = vst [vmem:[%s662 + $0xf8] sm:$0xff] %v725
                $region124: #{tpu_custom_call.1} parent=118 // loop_footer
                  %s660 = sadd.s32 1, %s656
                $region125: #{tpu_custom_call.1} parent=118 // loop_footer_branch
                  %655 = sbr.rel target = $region121
                $region126: #{tpu_custom_call.1} parent=118 // loop_exit
                  _
              $region119: #{tpu_custom_call.1} parent=103 // pred_fallthru
                _
              // Predicated region
              $region127: #{tpu_custom_call.1} parent=103 // pred_check
                _
              $region128: #{tpu_custom_call.1} parent=103 // pred_check_branch
                %728 = sbr.rel target = $region130
              $region129: #{tpu_custom_call.1} parent=103 // pred_region
                _
              $region130: #{tpu_custom_call.1} parent=103 // pred_fallthru
                _
            $region104: #{tpu_custom_call.1} parent=99 // pred_fallthru
              _
            // Predicated region
            $region105: #{tpu_custom_call.1} parent=99 // pred_check
              _
            $region106: #{tpu_custom_call.1} parent=99 // pred_check_branch
              %579 = sbr.rel target = $region108
            $region107: #{tpu_custom_call.1} parent=99 // pred_region
              loop: start=0, step=1, limit=1
              $region109: #{tpu_custom_call.1} parent=107 // loop_pre_header
                _
              $region110: #{tpu_custom_call.1} parent=107 // loop_header
                %s582 = sphi 0, %s586
                %p583 = scmp.ge.s32.totalorder %s582, 1
                %s587 = sphi %s573, %s573
                %s588 = sphi %s571, %s571
              $region111: #{tpu_custom_call.1} parent=107 // loop_header_branch
                %585 = sbr.rel (%p583) target = $region115
              $region112: #{tpu_custom_call.1} parent=107 // loop_body
                %v589 = vld [vmem:[%s587] sm:$0xff]
                %590 = vst [vmem:[%s588] sm:$0xff] %v589
                %v591 = vld [vmem:[%s587 + $0x10] sm:$0xff]
                %592 = vst [vmem:[%s588 + $0x8] sm:$0xff] %v591
                %v593 = vld [vmem:[%s587 + $0x20] sm:$0xff]
                %594 = vst [vmem:[%s588 + $0x10] sm:$0xff] %v593
                %v595 = vld [vmem:[%s587 + $0x30] sm:$0xff]
                %596 = vst [vmem:[%s588 + $0x18] sm:$0xff] %v595
                %v597 = vld [vmem:[%s587 + $0x40] sm:$0xff]
                %598 = vst [vmem:[%s588 + $0x20] sm:$0xff] %v597
                %v599 = vld [vmem:[%s587 + $0x50] sm:$0xff]
                %600 = vst [vmem:[%s588 + $0x28] sm:$0xff] %v599
                %v601 = vld [vmem:[%s587 + $0x60] sm:$0xff]
                %602 = vst [vmem:[%s588 + $0x30] sm:$0xff] %v601
                %v603 = vld [vmem:[%s587 + $0x70] sm:$0xff]
                %604 = vst [vmem:[%s588 + $0x38] sm:$0xff] %v603
                %v605 = vld [vmem:[%s587 + $0x80] sm:$0xff]
                %606 = vst [vmem:[%s588 + $0x40] sm:$0xff] %v605
                %v607 = vld [vmem:[%s587 + $0x90] sm:$0xff]
                %608 = vst [vmem:[%s588 + $0x48] sm:$0xff] %v607
                %v609 = vld [vmem:[%s587 + $0xa0] sm:$0xff]
                %610 = vst [vmem:[%s588 + $0x50] sm:$0xff] %v609
                %v611 = vld [vmem:[%s587 + $0xb0] sm:$0xff]
                %612 = vst [vmem:[%s588 + $0x58] sm:$0xff] %v611
                %v613 = vld [vmem:[%s587 + $0xc0] sm:$0xff]
                %614 = vst [vmem:[%s588 + $0x60] sm:$0xff] %v613
                %v615 = vld [vmem:[%s587 + $0xd0] sm:$0xff]
                %616 = vst [vmem:[%s588 + $0x68] sm:$0xff] %v615
                %v617 = vld [vmem:[%s587 + $0xe0] sm:$0xff]
                %618 = vst [vmem:[%s588 + $0x70] sm:$0xff] %v617
                %v619 = vld [vmem:[%s587 + $0xf0] sm:$0xff]
                %620 = vst [vmem:[%s588 + $0x78] sm:$0xff] %v619
                %v621 = vld [vmem:[%s587 + $0x100] sm:$0xff]
                %622 = vst [vmem:[%s588 + $0x80] sm:$0xff] %v621
                %v623 = vld [vmem:[%s587 + $0x110] sm:$0xff]
                %624 = vst [vmem:[%s588 + $0x88] sm:$0xff] %v623
                %v625 = vld [vmem:[%s587 + $0x120] sm:$0xff]
                %626 = vst [vmem:[%s588 + $0x90] sm:$0xff] %v625
                %v627 = vld [vmem:[%s587 + $0x130] sm:$0xff]
                %628 = vst [vmem:[%s588 + $0x98] sm:$0xff] %v627
                %v629 = vld [vmem:[%s587 + $0x140] sm:$0xff]
                %630 = vst [vmem:[%s588 + $0xa0] sm:$0xff] %v629
                %v631 = vld [vmem:[%s587 + $0x150] sm:$0xff]
                %632 = vst [vmem:[%s588 + $0xa8] sm:$0xff] %v631
                %v633 = vld [vmem:[%s587 + $0x160] sm:$0xff]
                %634 = vst [vmem:[%s588 + $0xb0] sm:$0xff] %v633
                %v635 = vld [vmem:[%s587 + $0x170] sm:$0xff]
                %636 = vst [vmem:[%s588 + $0xb8] sm:$0xff] %v635
                %v637 = vld [vmem:[%s587 + $0x180] sm:$0xff]
                %638 = vst [vmem:[%s588 + $0xc0] sm:$0xff] %v637
                %v639 = vld [vmem:[%s587 + $0x190] sm:$0xff]
                %640 = vst [vmem:[%s588 + $0xc8] sm:$0xff] %v639
                %v641 = vld [vmem:[%s587 + $0x1a0] sm:$0xff]
                %642 = vst [vmem:[%s588 + $0xd0] sm:$0xff] %v641
                %v643 = vld [vmem:[%s587 + $0x1b0] sm:$0xff]
                %644 = vst [vmem:[%s588 + $0xd8] sm:$0xff] %v643
                %v645 = vld [vmem:[%s587 + $0x1c0] sm:$0xff]
                %646 = vst [vmem:[%s588 + $0xe0] sm:$0xff] %v645
                %v647 = vld [vmem:[%s587 + $0x1d0] sm:$0xff]
                %648 = vst [vmem:[%s588 + $0xe8] sm:$0xff] %v647
                %v649 = vld [vmem:[%s587 + $0x1e0] sm:$0xff]
                %650 = vst [vmem:[%s588 + $0xf0] sm:$0xff] %v649
                %v651 = vld [vmem:[%s587 + $0x1f0] sm:$0xff]
                %652 = vst [vmem:[%s588 + $0xf8] sm:$0xff] %v651
              $region113: #{tpu_custom_call.1} parent=107 // loop_footer
                %s586 = sadd.s32 1, %s582
              $region114: #{tpu_custom_call.1} parent=107 // loop_footer_branch
                %581 = sbr.rel target = $region110
              $region115: #{tpu_custom_call.1} parent=107 // loop_exit
                _
            $region108: #{tpu_custom_call.1} parent=99 // pred_fallthru
              _
          $region100: #{tpu_custom_call.1} parent=95 // pred_fallthru
            _
          %729 = vnop
        $region96: #{tpu_custom_call.1} parent=87 // pred_fallthru
          _
      $region88: #{tpu_custom_call.1} parent=5 // pred_fallthru
        _
      %p730 = scmp.le.s32.totalorder 1, %s29
      %p731 = scmp.lt.s32.totalorder %s29, 3
      %p732 = pnand %p730, %p731
      %p733 = pneg %p732
      // Predicated region
      $region131: #{tpu_custom_call.1} parent=5 // pred_check
        _
      $region132: #{tpu_custom_call.1} parent=5 // pred_check_branch
        %735 = sbr.rel (%p732) target = $region134
      $region133: #{tpu_custom_call.1} parent=5 // pred_region
        %s736 = ssub.s32 %s29, 1
        %s737 = sand.u32 %s68, 1
        %s738 = sand.u32 %s68, 1
        %s739 = smul.addr %s738, 256
        %s740 = scalar_lea.vmem [#allocation2], %s739
        // Predicated region
        $region135: #{tpu_custom_call.1} parent=133 // pred_check
          %p741 = pneg %p81
        $region136: #{tpu_custom_call.1} parent=133 // pred_check_branch
          %743 = sbr.rel (%p741) target = $region138
        $region137: #{tpu_custom_call.1} parent=133 // pred_region
          _
        $region138: #{tpu_custom_call.1} parent=133 // pred_fallthru
          _
        %p744 = scmp.lt.s32.totalorder %s34, 1
        %s745 = scalar_select %p744, %s34, 1
        %s746 = smul.addr %s745, 8
        %s747 = scalar_lea.vmem %s0, %s746
        %p748 = pneg %p55
        %p749 = pneg %p52
        %s750 = sand.u32 %s68, 1
        %s751 = sand.u32 %s68, 1
        %s752 = smul.addr %s751, 256
        %s753 = scalar_lea.vmem [#allocation2], %s752
        %p754 = pneg %p81
        %p755 = pneg %p78
        %p756 = pneg %p102
        %p757 = pneg %p99
        %p758 = pneg %p123
        %p759 = pneg %p120
        %p760 = pneg %p144
        %p761 = pneg %p141
        %p762 = pneg %p165
        %p763 = pneg %p162
        %p764 = pneg %p186
        %p765 = pneg %p183
        %p766 = pneg %p207
        %p767 = pneg %p204
        %p768 = pneg %p228
        %p769 = pneg %p225
        %p770 = pneg %p249
        %p771 = pneg %p246
        %p772 = pneg %p270
        %p773 = pneg %p267
        %p774 = pneg %p291
        %p775 = pneg %p288
        %p776 = pneg %p312
        %p777 = pneg %p309
        %p778 = pneg %p333
        %p779 = pneg %p330
        %p780 = pneg %p354
        %p781 = pneg %p351
        %p782 = pneg %p375
        %p783 = pneg %p372
        %p784 = pneg %p396
        %p785 = pneg %p393
        %p786 = pneg %p417
        %p787 = pneg %p414
        %p788 = pneg %p438
        %p789 = pneg %p435
        %p790 = pneg %p459
        %p791 = pneg %p456
        %p792 = pneg %p485
        %p793 = pneg %p482
        %s794 = sand.u32 %s472, 1
        %s795 = scalar_lea.sflag [#allocation4], %s794
        %s796 = sand.u32 %s472, 1
        %s797 = smul.addr %s796, 8
        %s798 = scalar_lea.vmem [#allocation3], %s797
        %p799 = scmp.lt.s32.totalorder %s34, 1
        %s800 = scalar_select %p799, %s34, 1
        %s801 = smul.addr %s800, 8
        %s802 = scalar_lea.vmem %s0, %s801
        %v803 = vld [vmem:[%s802] sm:$0xff]
        %v804 = vld [vmem:[%s740] sm:$0xff]
        %v805 = vld [vmem:[%s740 + $0x8] sm:$0xff]
        %v806 = vld [vmem:[%s740 + $0x10] sm:$0xff]
        %v807 = vld [vmem:[%s740 + $0x18] sm:$0xff]
        %v808 = vld [vmem:[%s740 + $0x20] sm:$0xff]
        %v809 = vld [vmem:[%s740 + $0x28] sm:$0xff]
        %v810 = vld [vmem:[%s740 + $0x30] sm:$0xff]
        %v811 = vld [vmem:[%s740 + $0x38] sm:$0xff]
        %v812 = vld [vmem:[%s740 + $0x40] sm:$0xff]
        %v813 = vld [vmem:[%s740 + $0x48] sm:$0xff]
        %v814 = vld [vmem:[%s740 + $0x50] sm:$0xff]
        %v815 = vld [vmem:[%s740 + $0x58] sm:$0xff]
        %v816 = vld [vmem:[%s740 + $0x60] sm:$0xff]
        %v817 = vld [vmem:[%s740 + $0x68] sm:$0xff]
        %v818 = vld [vmem:[%s740 + $0x70] sm:$0xff]
        %v819 = vld [vmem:[%s740 + $0x78] sm:$0xff]
        %v820 = vld [vmem:[%s740 + $0x80] sm:$0xff]
        %v821 = vld [vmem:[%s740 + $0x88] sm:$0xff]
        %v822 = vld [vmem:[%s740 + $0x90] sm:$0xff]
        %v823 = vld [vmem:[%s740 + $0x98] sm:$0xff]
        %v824 = vld [vmem:[%s740 + $0xa0] sm:$0xff]
        %v825 = vld [vmem:[%s740 + $0xa8] sm:$0xff]
        %v826 = vld [vmem:[%s740 + $0xb0] sm:$0xff]
        %v827 = vld [vmem:[%s740 + $0xb8] sm:$0xff]
        %v828 = vld [vmem:[%s740 + $0xc0] sm:$0xff]
        %v829 = vld [vmem:[%s740 + $0xc8] sm:$0xff]
        %v830 = vld [vmem:[%s740 + $0xd0] sm:$0xff]
        %v831 = vld [vmem:[%s740 + $0xd8] sm:$0xff]
        %v832 = vld [vmem:[%s740 + $0xe0] sm:$0xff]
        %v833 = vld [vmem:[%s740 + $0xe8] sm:$0xff]
        %v834 = vld [vmem:[%s740 + $0xf0] sm:$0xff]
        %v835 = vld [vmem:[%s740 + $0xf8] sm:$0xff]
        %v836 = vld [vmem:[%s2] sm:$0xff]
        %v837 = vld [vmem:[%s3] sm:$0x1]
        %v839 = vlaneseq
        %v840 = vshrl.u32 %v839, 7
        %v841 = vsub.s32 0, %v840
        %v842 = vrot.slane %v837, %v841
        %vm844 = vcmask 64512
        %v846 = vsel %vm844, %v804, 0
        %v849 = vsel %vm844, %v805, 0
        %v852 = vsel %vm844, %v806, 0
        %v855 = vsel %vm844, %v807, 0
        %v858 = vsel %vm844, %v808, 0
        %v861 = vsel %vm844, %v809, 0
        %v864 = vsel %vm844, %v810, 0
        %v867 = vsel %vm844, %v811, 0
        %v870 = vsel %vm844, %v812, 0
        %v873 = vsel %vm844, %v813, 0
        %v876 = vsel %vm844, %v814, 0
        %v879 = vsel %vm844, %v815, 0
        %v882 = vsel %vm844, %v816, 0
        %v885 = vsel %vm844, %v817, 0
        %v888 = vsel %vm844, %v818, 0
        %v891 = vsel %vm844, %v819, 0
        %v894 = vsel %vm844, %v820, 0
        %v897 = vsel %vm844, %v821, 0
        %v900 = vsel %vm844, %v822, 0
        %v903 = vsel %vm844, %v823, 0
        %v906 = vsel %vm844, %v824, 0
        %v909 = vsel %vm844, %v825, 0
        %v912 = vsel %vm844, %v826, 0
        %v915 = vsel %vm844, %v827, 0
        %v918 = vsel %vm844, %v828, 0
        %v921 = vsel %vm844, %v829, 0
        %v924 = vsel %vm844, %v830, 0
        %v927 = vsel %vm844, %v831, 0
        %v930 = vsel %vm844, %v832, 0
        %v933 = vsel %vm844, %v833, 0
        %v936 = vsel %vm844, %v834, 0
        %v939 = vsel %vm844, %v835, 0
        %941 = vmatprep.subr.mxu0 0.0
        %942 = vmatpush1.msra.mxu0 %v836
        %943 = vmatprep.subr.mxu0 0.0
        %944 = vmatpush1.msra.mxu0 0.0
        %945 = vmatprep.subr.mxu0 0.0
        %946 = vmatpush1.msra.mxu0 0.0
        %947 = vmatprep.subr.mxu0 0.0
        %948 = vmatpush1.msra.mxu0 0.0
        %949 = vmatprep.subr.mxu0 0.0
        %950 = vmatpush1.msra.mxu0 0.0
        %951 = vmatprep.subr.mxu0 0.0
        %952 = vmatpush1.msra.mxu0 0.0
        %953 = vmatprep.subr.mxu0 0.0
        %954 = vmatpush1.msra.mxu0 0.0
        %955 = vmatprep.subr.mxu0 0.0
        %956 = vmatpush1.msra.mxu0 0.0
        %957 = vmatprep.subr.mxu0 0.0
        %958 = vmatpush1.msra.mxu0 0.0
        %959 = vmatprep.subr.mxu0 0.0
        %960 = vmatpush1.msra.mxu0 0.0
        %961 = vmatprep.subr.mxu0 0.0
        %962 = vmatpush1.msra.mxu0 0.0
        %963 = vmatprep.subr.mxu0 0.0
        %964 = vmatpush1.msra.mxu0 0.0
        %965 = vmatprep.subr.mxu0 0.0
        %966 = vmatpush1.msra.mxu0 0.0
        %967 = vmatprep.subr.mxu0 0.0
        %968 = vmatpush1.msra.mxu0 0.0
        %969 = vmatprep.subr.mxu0 0.0
        %970 = vmatpush1.msra.mxu0 0.0
        %971 = vmatprep.subr.mxu0 0.0
        %972 = vmatpush1.msra.mxu0 0.0
        %973 = vmatprep.subr.mxu0 0.0
        %974 = vmatpush1.msra.mxu0 0.0
        %975 = vmatprep.subr.mxu0 0.0
        %976 = vmatpush1.msra.mxu0 0.0
        %977 = vmatprep.subr.mxu0 0.0
        %978 = vmatpush1.msra.mxu0 0.0
        %979 = vmatprep.subr.mxu0 0.0
        %980 = vmatpush1.msra.mxu0 0.0
        %981 = vmatprep.subr.mxu0 0.0
        %982 = vmatpush1.msra.mxu0 0.0
        %983 = vmatprep.subr.mxu0 0.0
        %984 = vmatpush1.msra.mxu0 0.0
        %985 = vmatprep.subr.mxu0 0.0
        %986 = vmatpush1.msra.mxu0 0.0
        %987 = vmatprep.subr.mxu0 0.0
        %988 = vmatpush1.msra.mxu0 0.0
        %989 = vmatprep.subr.mxu0 0.0
        %990 = vmatpush1.msra.mxu0 0.0
        %991 = vmatprep.subr.mxu0 0.0
        %992 = vmatpush1.msra.mxu0 0.0
        %993 = vmatprep.subr.mxu0 0.0
        %994 = vmatpush1.msra.mxu0 0.0
        %995 = vmatprep.subr.mxu0 0.0
        %996 = vmatpush1.msra.mxu0 0.0
        %997 = vmatprep.subr.mxu0 0.0
        %998 = vmatpush1.msra.mxu0 0.0
        %999 = vmatprep.subr.mxu0 0.0
        %1000 = vmatpush1.msra.mxu0 0.0
        %1001 = vmatprep.subr.mxu0 0.0
        %1002 = vmatpush1.msra.mxu0 0.0
        %1003 = vmatprep.subr.mxu0 0.0
        %1004 = vmatpush1.msra.mxu0 0.0
        %1005 = vmatprep.mubr.f32.mxu0 0.0
        %1006 = vmatmul.mubr.f32.gmra.mrb[0].mxu0 %v846
        %v1007 = vpop.f32.mrb[0].mxu0
        %v1008 = vadd.f32 %v842, %v1007
        %v1009 = vpop.f32.mrb[0].mxu0
        %1010 = vmatprep.mubr.f32.mxu0 0.0
        %1011 = vmatmul.mubr.f32.gmra.mrb[0].mxu0 %v849
        %v1012 = vpop.f32.mrb[0].mxu0
        %v1013 = vadd.f32 %v842, %v1012
        %v1014 = vpop.f32.mrb[0].mxu0
        %1015 = vmatprep.mubr.f32.mxu0 0.0
        %1016 = vmatmul.mubr.f32.gmra.mrb[0].mxu0 %v852
        %v1017 = vpop.f32.mrb[0].mxu0
        %v1018 = vadd.f32 %v842, %v1017
        %v1019 = vpop.f32.mrb[0].mxu0
        %1020 = vmatprep.mubr.f32.mxu0 0.0
        %1021 = vmatmul.mubr.f32.gmra.mrb[0].mxu0 %v855
        %v1022 = vpop.f32.mrb[0].mxu0
        %v1023 = vadd.f32 %v842, %v1022
        %v1024 = vpop.f32.mrb[0].mxu0
        %1025 = vmatprep.mubr.f32.mxu0 0.0
        %1026 = vmatmul.mubr.f32.gmra.mrb[0].mxu0 %v858
        %v1027 = vpop.f32.mrb[0].mxu0
        %v1028 = vadd.f32 %v842, %v1027
        %v1029 = vpop.f32.mrb[0].mxu0
        %1030 = vmatprep.mubr.f32.mxu0 0.0
        %1031 = vmatmul.mubr.f32.gmra.mrb[0].mxu0 %v861
        %v1032 = vpop.f32.mrb[0].mxu0
        %v1033 = vadd.f32 %v842, %v1032
        %v1034 = vpop.f32.mrb[0].mxu0
        %1035 = vmatprep.mubr.f32.mxu0 0.0
        %1036 = vmatmul.mubr.f32.gmra.mrb[0].mxu0 %v864
        %v1037 = vpop.f32.mrb[0].mxu0
        %v1038 = vadd.f32 %v842, %v1037
        %v1039 = vpop.f32.mrb[0].mxu0
        %1040 = vmatprep.mubr.f32.mxu0 0.0
        %1041 = vmatmul.mubr.f32.gmra.mrb[0].mxu0 %v867
        %v1042 = vpop.f32.mrb[0].mxu0
        %v1043 = vadd.f32 %v842, %v1042
        %v1044 = vpop.f32.mrb[0].mxu0
        %1045 = vmatprep.mubr.f32.mxu0 0.0
        %1046 = vmatmul.mubr.f32.gmra.mrb[0].mxu0 %v870
        %v1047 = vpop.f32.mrb[0].mxu0
        %v1048 = vadd.f32 %v842, %v1047
        %v1049 = vpop.f32.mrb[0].mxu0
        %1050 = vmatprep.mubr.f32.mxu0 0.0
        %1051 = vmatmul.mubr.f32.gmra.mrb[0].mxu0 %v873
        %v1052 = vpop.f32.mrb[0].mxu0
        %v1053 = vadd.f32 %v842, %v1052
        %v1054 = vpop.f32.mrb[0].mxu0
        %1055 = vmatprep.mubr.f32.mxu0 0.0
        %1056 = vmatmul.mubr.f32.gmra.mrb[0].mxu0 %v876
        %v1057 = vpop.f32.mrb[0].mxu0
        %v1058 = vadd.f32 %v842, %v1057
        %v1059 = vpop.f32.mrb[0].mxu0
        %1060 = vmatprep.mubr.f32.mxu0 0.0
        %1061 = vmatmul.mubr.f32.gmra.mrb[0].mxu0 %v879
        %v1062 = vpop.f32.mrb[0].mxu0
        %v1063 = vadd.f32 %v842, %v1062
        %v1064 = vpop.f32.mrb[0].mxu0
        %1065 = vmatprep.mubr.f32.mxu0 0.0
        %1066 = vmatmul.mubr.f32.gmra.mrb[0].mxu0 %v882
        %v1067 = vpop.f32.mrb[0].mxu0
        %v1068 = vadd.f32 %v842, %v1067
        %v1069 = vpop.f32.mrb[0].mxu0
        %1070 = vmatprep.mubr.f32.mxu0 0.0
        %1071 = vmatmul.mubr.f32.gmra.mrb[0].mxu0 %v885
        %v1072 = vpop.f32.mrb[0].mxu0
        %v1073 = vadd.f32 %v842, %v1072
        %v1074 = vpop.f32.mrb[0].mxu0
        %1075 = vmatprep.mubr.f32.mxu0 0.0
        %1076 = vmatmul.mubr.f32.gmra.mrb[0].mxu0 %v888
        %v1077 = vpop.f32.mrb[0].mxu0
        %v1078 = vadd.f32 %v842, %v1077
        %v1079 = vpop.f32.mrb[0].mxu0
        %1080 = vmatprep.mubr.f32.mxu0 0.0
        %1081 = vmatmul.mubr.f32.gmra.mrb[0].mxu0 %v891
        %v1082 = vpop.f32.mrb[0].mxu0
        %v1083 = vadd.f32 %v842, %v1082
        %v1084 = vpop.f32.mrb[0].mxu0
        %1085 = vmatprep.mubr.f32.mxu0 0.0
        %1086 = vmatmul.mubr.f32.gmra.mrb[0].mxu0 %v894
        %v1087 = vpop.f32.mrb[0].mxu0
        %v1088 = vadd.f32 %v842, %v1087
        %v1089 = vpop.f32.mrb[0].mxu0
        %1090 = vmatprep.mubr.f32.mxu0 0.0
        %1091 = vmatmul.mubr.f32.gmra.mrb[0].mxu0 %v897
        %v1092 = vpop.f32.mrb[0].mxu0
        %v1093 = vadd.f32 %v842, %v1092
        %v1094 = vpop.f32.mrb[0].mxu0
        %1095 = vmatprep.mubr.f32.mxu0 0.0
        %1096 = vmatmul.mubr.f32.gmra.mrb[0].mxu0 %v900
        %v1097 = vpop.f32.mrb[0].mxu0
        %v1098 = vadd.f32 %v842, %v1097
        %v1099 = vpop.f32.mrb[0].mxu0
        %1100 = vmatprep.mubr.f32.mxu0 0.0
        %1101 = vmatmul.mubr.f32.gmra.mrb[0].mxu0 %v903
        %v1102 = vpop.f32.mrb[0].mxu0
        %v1103 = vadd.f32 %v842, %v1102
        %v1104 = vpop.f32.mrb[0].mxu0
        %1105 = vmatprep.mubr.f32.mxu0 0.0
        %1106 = vmatmul.mubr.f32.gmra.mrb[0].mxu0 %v906
        %v1107 = vpop.f32.mrb[0].mxu0
        %v1108 = vadd.f32 %v842, %v1107
        %v1109 = vpop.f32.mrb[0].mxu0
        %1110 = vmatprep.mubr.f32.mxu0 0.0
        %1111 = vmatmul.mubr.f32.gmra.mrb[0].mxu0 %v909
        %v1112 = vpop.f32.mrb[0].mxu0
        %v1113 = vadd.f32 %v842, %v1112
        %v1114 = vpop.f32.mrb[0].mxu0
        %1115 = vmatprep.mubr.f32.mxu0 0.0
        %1116 = vmatmul.mubr.f32.gmra.mrb[0].mxu0 %v912
        %v1117 = vpop.f32.mrb[0].mxu0
        %v1118 = vadd.f32 %v842, %v1117
        %v1119 = vpop.f32.mrb[0].mxu0
        %1120 = vmatprep.mubr.f32.mxu0 0.0
        %1121 = vmatmul.mubr.f32.gmra.mrb[0].mxu0 %v915
        %v1122 = vpop.f32.mrb[0].mxu0
        %v1123 = vadd.f32 %v842, %v1122
        %v1124 = vpop.f32.mrb[0].mxu0
        %1125 = vmatprep.mubr.f32.mxu0 0.0
        %1126 = vmatmul.mubr.f32.gmra.mrb[0].mxu0 %v918
        %v1127 = vpop.f32.mrb[0].mxu0
        %v1128 = vadd.f32 %v842, %v1127
        %v1129 = vpop.f32.mrb[0].mxu0
        %1130 = vmatprep.mubr.f32.mxu0 0.0
        %1131 = vmatmul.mubr.f32.gmra.mrb[0].mxu0 %v921
        %v1132 = vpop.f32.mrb[0].mxu0
        %v1133 = vadd.f32 %v842, %v1132
        %v1134 = vpop.f32.mrb[0].mxu0
        %1135 = vmatprep.mubr.f32.mxu0 0.0
        %1136 = vmatmul.mubr.f32.gmra.mrb[0].mxu0 %v924
        %v1137 = vpop.f32.mrb[0].mxu0
        %v1138 = vadd.f32 %v842, %v1137
        %v1139 = vpop.f32.mrb[0].mxu0
        %1140 = vmatprep.mubr.f32.mxu0 0.0
        %1141 = vmatmul.mubr.f32.gmra.mrb[0].mxu0 %v927
        %v1142 = vpop.f32.mrb[0].mxu0
        %v1143 = vadd.f32 %v842, %v1142
        %v1144 = vpop.f32.mrb[0].mxu0
        %1145 = vmatprep.mubr.f32.mxu0 0.0
        %1146 = vmatmul.mubr.f32.gmra.mrb[0].mxu0 %v930
        %v1147 = vpop.f32.mrb[0].mxu0
        %v1148 = vadd.f32 %v842, %v1147
        %v1149 = vpop.f32.mrb[0].mxu0
        %1150 = vmatprep.mubr.f32.mxu0 0.0
        %1151 = vmatmul.mubr.f32.gmra.mrb[0].mxu0 %v933
        %v1152 = vpop.f32.mrb[0].mxu0
        %v1153 = vadd.f32 %v842, %v1152
        %v1154 = vpop.f32.mrb[0].mxu0
        %1155 = vmatprep.mubr.f32.mxu0 0.0
        %1156 = vmatmul.mubr.f32.gmra.mrb[0].mxu0 %v936
        %v1157 = vpop.f32.mrb[0].mxu0
        %v1158 = vadd.f32 %v842, %v1157
        %v1159 = vpop.f32.mrb[0].mxu0
        %1160 = vmatprep.mubr.f32.mxu0 0.0
        %1161 = vmatmul.mubr.f32.gmra.mrb[0].mxu0 %v939
        %v1162 = vpop.f32.mrb[0].mxu0
        %v1163 = vadd.f32 %v842, %v1162
        %v1164 = vpop.f32.mrb[0].mxu0
        %1165 = vdwg.mxu0
        %v1166 = vadd.f32 %v1008, %v803
        %v1167 = vadd.f32 %v1013, %v803
        %v1168 = vadd.f32 %v1018, %v803
        %v1169 = vadd.f32 %v1023, %v803
        %v1170 = vadd.f32 %v1028, %v803
        %v1171 = vadd.f32 %v1033, %v803
        %v1172 = vadd.f32 %v1038, %v803
        %v1173 = vadd.f32 %v1043, %v803
        %v1174 = vadd.f32 %v1048, %v803
        %v1175 = vadd.f32 %v1053, %v803
        %v1176 = vadd.f32 %v1058, %v803
        %v1177 = vadd.f32 %v1063, %v803
        %v1178 = vadd.f32 %v1068, %v803
        %v1179 = vadd.f32 %v1073, %v803
        %v1180 = vadd.f32 %v1078, %v803
        %v1181 = vadd.f32 %v1083, %v803
        %v1182 = vadd.f32 %v1088, %v803
        %v1183 = vadd.f32 %v1093, %v803
        %v1184 = vadd.f32 %v1098, %v803
        %v1185 = vadd.f32 %v1103, %v803
        %v1186 = vadd.f32 %v1108, %v803
        %v1187 = vadd.f32 %v1113, %v803
        %v1188 = vadd.f32 %v1118, %v803
        %v1189 = vadd.f32 %v1123, %v803
        %v1190 = vadd.f32 %v1128, %v803
        %v1191 = vadd.f32 %v1133, %v803
        %v1192 = vadd.f32 %v1138, %v803
        %v1193 = vadd.f32 %v1143, %v803
        %v1194 = vadd.f32 %v1148, %v803
        %v1195 = vadd.f32 %v1153, %v803
        %v1196 = vadd.f32 %v1158, %v803
        %v1197 = vadd.f32 %v1163, %v803
        %v1198 = vld [vmem:[%s4] sm:$0x1]
        %v1199 = vld [vmem:[%s5] sm:$0x1]
        %vm1200 = vcmask 261120
        %v1201 = vsel %vm1200, %v1166, 0.0
        %1202 = vadd.xlane.f32.xlu0 %v1201
        %v1203 = vpop.xlane.xlu0 %1202
        %v1204 = vsel %vm1200, %v1167, 0.0
        %1205 = vadd.xlane.f32.xlu0 %v1204
        %v1206 = vpop.xlane.xlu0 %1205
        %v1207 = vsel %vm1200, %v1168, 0.0
        %1208 = vadd.xlane.f32.xlu0 %v1207
        %v1209 = vpop.xlane.xlu0 %1208
        %v1210 = vsel %vm1200, %v1169, 0.0
        %1211 = vadd.xlane.f32.xlu0 %v1210
        %v1212 = vpop.xlane.xlu0 %1211
        %v1213 = vsel %vm1200, %v1170, 0.0
        %1214 = vadd.xlane.f32.xlu0 %v1213
        %v1215 = vpop.xlane.xlu0 %1214
        %v1216 = vsel %vm1200, %v1171, 0.0
        %1217 = vadd.xlane.f32.xlu0 %v1216
        %v1218 = vpop.xlane.xlu0 %1217
        %v1219 = vsel %vm1200, %v1172, 0.0
        %1220 = vadd.xlane.f32.xlu0 %v1219
        %v1221 = vpop.xlane.xlu0 %1220
        %v1222 = vsel %vm1200, %v1173, 0.0
        %1223 = vadd.xlane.f32.xlu0 %v1222
        %v1224 = vpop.xlane.xlu0 %1223
        %v1225 = vsel %vm1200, %v1174, 0.0
        %1226 = vadd.xlane.f32.xlu0 %v1225
        %v1227 = vpop.xlane.xlu0 %1226
        %v1228 = vsel %vm1200, %v1175, 0.0
        %1229 = vadd.xlane.f32.xlu0 %v1228
        %v1230 = vpop.xlane.xlu0 %1229
        %v1231 = vsel %vm1200, %v1176, 0.0
        %1232 = vadd.xlane.f32.xlu0 %v1231
        %v1233 = vpop.xlane.xlu0 %1232
        %v1234 = vsel %vm1200, %v1177, 0.0
        %1235 = vadd.xlane.f32.xlu0 %v1234
        %v1236 = vpop.xlane.xlu0 %1235
        %v1237 = vsel %vm1200, %v1178, 0.0
        %1238 = vadd.xlane.f32.xlu0 %v1237
        %v1239 = vpop.xlane.xlu0 %1238
        %v1240 = vsel %vm1200, %v1179, 0.0
        %1241 = vadd.xlane.f32.xlu0 %v1240
        %v1242 = vpop.xlane.xlu0 %1241
        %v1243 = vsel %vm1200, %v1180, 0.0
        %1244 = vadd.xlane.f32.xlu0 %v1243
        %v1245 = vpop.xlane.xlu0 %1244
        %v1246 = vsel %vm1200, %v1181, 0.0
        %1247 = vadd.xlane.f32.xlu0 %v1246
        %v1248 = vpop.xlane.xlu0 %1247
        %v1249 = vsel %vm1200, %v1182, 0.0
        %1250 = vadd.xlane.f32.xlu0 %v1249
        %v1251 = vpop.xlane.xlu0 %1250
        %v1252 = vsel %vm1200, %v1183, 0.0
        %1253 = vadd.xlane.f32.xlu0 %v1252
        %v1254 = vpop.xlane.xlu0 %1253
        %v1255 = vsel %vm1200, %v1184, 0.0
        %1256 = vadd.xlane.f32.xlu0 %v1255
        %v1257 = vpop.xlane.xlu0 %1256
        %v1258 = vsel %vm1200, %v1185, 0.0
        %1259 = vadd.xlane.f32.xlu0 %v1258
        %v1260 = vpop.xlane.xlu0 %1259
        %v1261 = vsel %vm1200, %v1186, 0.0
        %1262 = vadd.xlane.f32.xlu0 %v1261
        %v1263 = vpop.xlane.xlu0 %1262
        %v1264 = vsel %vm1200, %v1187, 0.0
        %1265 = vadd.xlane.f32.xlu0 %v1264
        %v1266 = vpop.xlane.xlu0 %1265
        %v1267 = vsel %vm1200, %v1188, 0.0
        %1268 = vadd.xlane.f32.xlu0 %v1267
        %v1269 = vpop.xlane.xlu0 %1268
        %v1270 = vsel %vm1200, %v1189, 0.0
        %1271 = vadd.xlane.f32.xlu0 %v1270
        %v1272 = vpop.xlane.xlu0 %1271
        %v1273 = vsel %vm1200, %v1190, 0.0
        %1274 = vadd.xlane.f32.xlu0 %v1273
        %v1275 = vpop.xlane.xlu0 %1274
        %v1276 = vsel %vm1200, %v1191, 0.0
        %1277 = vadd.xlane.f32.xlu0 %v1276
        %v1278 = vpop.xlane.xlu0 %1277
        %v1279 = vsel %vm1200, %v1192, 0.0
        %1280 = vadd.xlane.f32.xlu0 %v1279
        %v1281 = vpop.xlane.xlu0 %1280
        %v1282 = vsel %vm1200, %v1193, 0.0
        %1283 = vadd.xlane.f32.xlu0 %v1282
        %v1284 = vpop.xlane.xlu0 %1283
        %v1285 = vsel %vm1200, %v1194, 0.0
        %1286 = vadd.xlane.f32.xlu0 %v1285
        %v1287 = vpop.xlane.xlu0 %1286
        %v1288 = vsel %vm1200, %v1195, 0.0
        %1289 = vadd.xlane.f32.xlu0 %v1288
        %v1290 = vpop.xlane.xlu0 %1289
        %v1291 = vsel %vm1200, %v1196, 0.0
        %1292 = vadd.xlane.f32.xlu0 %v1291
        %v1293 = vpop.xlane.xlu0 %1292
        %v1294 = vsel %vm1200, %v1197, 0.0
        %1295 = vadd.xlane.f32.xlu0 %v1294
        %v1296 = vpop.xlane.xlu0 %1295
        %v1297 = vrcp.pop 32.0
        %v1298 = vmul.f32 %v1203, %v1297
        %v1299 = vmul.f32 %v1206, %v1297
        %v1300 = vmul.f32 %v1209, %v1297
        %v1301 = vmul.f32 %v1212, %v1297
        %v1302 = vmul.f32 %v1215, %v1297
        %v1303 = vmul.f32 %v1218, %v1297
        %v1304 = vmul.f32 %v1221, %v1297
        %v1305 = vmul.f32 %v1224, %v1297
        %v1306 = vmul.f32 %v1227, %v1297
        %v1307 = vmul.f32 %v1230, %v1297
        %v1308 = vmul.f32 %v1233, %v1297
        %v1309 = vmul.f32 %v1236, %v1297
        %v1310 = vmul.f32 %v1239, %v1297
        %v1311 = vmul.f32 %v1242, %v1297
        %v1312 = vmul.f32 %v1245, %v1297
        %v1313 = vmul.f32 %v1248, %v1297
        %v1314 = vmul.f32 %v1251, %v1297
        %v1315 = vmul.f32 %v1254, %v1297
        %v1316 = vmul.f32 %v1257, %v1297
        %v1317 = vmul.f32 %v1260, %v1297
        %v1318 = vmul.f32 %v1263, %v1297
        %v1319 = vmul.f32 %v1266, %v1297
        %v1320 = vmul.f32 %v1269, %v1297
        %v1321 = vmul.f32 %v1272, %v1297
        %v1322 = vmul.f32 %v1275, %v1297
        %v1323 = vmul.f32 %v1278, %v1297
        %v1324 = vmul.f32 %v1281, %v1297
        %v1325 = vmul.f32 %v1284, %v1297
        %v1326 = vmul.f32 %v1287, %v1297
        %v1327 = vmul.f32 %v1290, %v1297
        %v1328 = vmul.f32 %v1293, %v1297
        %v1329 = vmul.f32 %v1296, %v1297
        %v1330 = vsub.f32 %v1166, %v1298
        %v1331 = vsub.f32 %v1167, %v1299
        %v1332 = vsub.f32 %v1168, %v1300
        %v1333 = vsub.f32 %v1169, %v1301
        %v1334 = vsub.f32 %v1170, %v1302
        %v1335 = vsub.f32 %v1171, %v1303
        %v1336 = vsub.f32 %v1172, %v1304
        %v1337 = vsub.f32 %v1173, %v1305
        %v1338 = vsub.f32 %v1174, %v1306
        %v1339 = vsub.f32 %v1175, %v1307
        %v1340 = vsub.f32 %v1176, %v1308
        %v1341 = vsub.f32 %v1177, %v1309
        %v1342 = vsub.f32 %v1178, %v1310
        %v1343 = vsub.f32 %v1179, %v1311
        %v1344 = vsub.f32 %v1180, %v1312
        %v1345 = vsub.f32 %v1181, %v1313
        %v1346 = vsub.f32 %v1182, %v1314
        %v1347 = vsub.f32 %v1183, %v1315
        %v1348 = vsub.f32 %v1184, %v1316
        %v1349 = vsub.f32 %v1185, %v1317
        %v1350 = vsub.f32 %v1186, %v1318
        %v1351 = vsub.f32 %v1187, %v1319
        %v1352 = vsub.f32 %v1188, %v1320
        %v1353 = vsub.f32 %v1189, %v1321
        %v1354 = vsub.f32 %v1190, %v1322
        %v1355 = vsub.f32 %v1191, %v1323
        %v1356 = vsub.f32 %v1192, %v1324
        %v1357 = vsub.f32 %v1193, %v1325
        %v1358 = vsub.f32 %v1194, %v1326
        %v1359 = vsub.f32 %v1195, %v1327
        %v1360 = vsub.f32 %v1196, %v1328
        %v1361 = vsub.f32 %v1197, %v1329
        %v1362 = vmul.f32 %v1330, %v1330
        %v1363 = vmul.f32 %v1331, %v1331
        %v1364 = vmul.f32 %v1332, %v1332
        %v1365 = vmul.f32 %v1333, %v1333
        %v1366 = vmul.f32 %v1334, %v1334
        %v1367 = vmul.f32 %v1335, %v1335
        %v1368 = vmul.f32 %v1336, %v1336
        %v1369 = vmul.f32 %v1337, %v1337
        %v1370 = vmul.f32 %v1338, %v1338
        %v1371 = vmul.f32 %v1339, %v1339
        %v1372 = vmul.f32 %v1340, %v1340
        %v1373 = vmul.f32 %v1341, %v1341
        %v1374 = vmul.f32 %v1342, %v1342
        %v1375 = vmul.f32 %v1343, %v1343
        %v1376 = vmul.f32 %v1344, %v1344
        %v1377 = vmul.f32 %v1345, %v1345
        %v1378 = vmul.f32 %v1346, %v1346
        %v1379 = vmul.f32 %v1347, %v1347
        %v1380 = vmul.f32 %v1348, %v1348
        %v1381 = vmul.f32 %v1349, %v1349
        %v1382 = vmul.f32 %v1350, %v1350
        %v1383 = vmul.f32 %v1351, %v1351
        %v1384 = vmul.f32 %v1352, %v1352
        %v1385 = vmul.f32 %v1353, %v1353
        %v1386 = vmul.f32 %v1354, %v1354
        %v1387 = vmul.f32 %v1355, %v1355
        %v1388 = vmul.f32 %v1356, %v1356
        %v1389 = vmul.f32 %v1357, %v1357
        %v1390 = vmul.f32 %v1358, %v1358
        %v1391 = vmul.f32 %v1359, %v1359
        %v1392 = vmul.f32 %v1360, %v1360
        %v1393 = vmul.f32 %v1361, %v1361
        %v1394 = vsel %vm1200, %v1362, 0.0
        %1395 = vadd.xlane.f32.xlu0 %v1394
        %v1396 = vpop.xlane.xlu0 %1395
        %v1397 = vsel %vm1200, %v1363, 0.0
        %1398 = vadd.xlane.f32.xlu0 %v1397
        %v1399 = vpop.xlane.xlu0 %1398
        %v1400 = vsel %vm1200, %v1364, 0.0
        %1401 = vadd.xlane.f32.xlu0 %v1400
        %v1402 = vpop.xlane.xlu0 %1401
        %v1403 = vsel %vm1200, %v1365, 0.0
        %1404 = vadd.xlane.f32.xlu0 %v1403
        %v1405 = vpop.xlane.xlu0 %1404
        %v1406 = vsel %vm1200, %v1366, 0.0
        %1407 = vadd.xlane.f32.xlu0 %v1406
        %v1408 = vpop.xlane.xlu0 %1407
        %v1409 = vsel %vm1200, %v1367, 0.0
        %1410 = vadd.xlane.f32.xlu0 %v1409
        %v1411 = vpop.xlane.xlu0 %1410
        %v1412 = vsel %vm1200, %v1368, 0.0
        %1413 = vadd.xlane.f32.xlu0 %v1412
        %v1414 = vpop.xlane.xlu0 %1413
        %v1415 = vsel %vm1200, %v1369, 0.0
        %1416 = vadd.xlane.f32.xlu0 %v1415
        %v1417 = vpop.xlane.xlu0 %1416
        %v1418 = vsel %vm1200, %v1370, 0.0
        %1419 = vadd.xlane.f32.xlu0 %v1418
        %v1420 = vpop.xlane.xlu0 %1419
        %v1421 = vsel %vm1200, %v1371, 0.0
        %1422 = vadd.xlane.f32.xlu0 %v1421
        %v1423 = vpop.xlane.xlu0 %1422
        %v1424 = vsel %vm1200, %v1372, 0.0
        %1425 = vadd.xlane.f32.xlu0 %v1424
        %v1426 = vpop.xlane.xlu0 %1425
        %v1427 = vsel %vm1200, %v1373, 0.0
        %1428 = vadd.xlane.f32.xlu0 %v1427
        %v1429 = vpop.xlane.xlu0 %1428
        %v1430 = vsel %vm1200, %v1374, 0.0
        %1431 = vadd.xlane.f32.xlu0 %v1430
        %v1432 = vpop.xlane.xlu0 %1431
        %v1433 = vsel %vm1200, %v1375, 0.0
        %1434 = vadd.xlane.f32.xlu0 %v1433
        %v1435 = vpop.xlane.xlu0 %1434
        %v1436 = vsel %vm1200, %v1376, 0.0
        %1437 = vadd.xlane.f32.xlu0 %v1436
        %v1438 = vpop.xlane.xlu0 %1437
        %v1439 = vsel %vm1200, %v1377, 0.0
        %1440 = vadd.xlane.f32.xlu0 %v1439
        %v1441 = vpop.xlane.xlu0 %1440
        %v1442 = vsel %vm1200, %v1378, 0.0
        %1443 = vadd.xlane.f32.xlu0 %v1442
        %v1444 = vpop.xlane.xlu0 %1443
        %v1445 = vsel %vm1200, %v1379, 0.0
        %1446 = vadd.xlane.f32.xlu0 %v1445
        %v1447 = vpop.xlane.xlu0 %1446
        %v1448 = vsel %vm1200, %v1380, 0.0
        %1449 = vadd.xlane.f32.xlu0 %v1448
        %v1450 = vpop.xlane.xlu0 %1449
        %v1451 = vsel %vm1200, %v1381, 0.0
        %1452 = vadd.xlane.f32.xlu0 %v1451
        %v1453 = vpop.xlane.xlu0 %1452
        %v1454 = vsel %vm1200, %v1382, 0.0
        %1455 = vadd.xlane.f32.xlu0 %v1454
        %v1456 = vpop.xlane.xlu0 %1455
        %v1457 = vsel %vm1200, %v1383, 0.0
        %1458 = vadd.xlane.f32.xlu0 %v1457
        %v1459 = vpop.xlane.xlu0 %1458
        %v1460 = vsel %vm1200, %v1384, 0.0
        %1461 = vadd.xlane.f32.xlu0 %v1460
        %v1462 = vpop.xlane.xlu0 %1461
        %v1463 = vsel %vm1200, %v1385, 0.0
        %1464 = vadd.xlane.f32.xlu0 %v1463
        %v1465 = vpop.xlane.xlu0 %1464
        %v1466 = vsel %vm1200, %v1386, 0.0
        %1467 = vadd.xlane.f32.xlu0 %v1466
        %v1468 = vpop.xlane.xlu0 %1467
        %v1469 = vsel %vm1200, %v1387, 0.0
        %1470 = vadd.xlane.f32.xlu0 %v1469
        %v1471 = vpop.xlane.xlu0 %1470
        %v1472 = vsel %vm1200, %v1388, 0.0
        %1473 = vadd.xlane.f32.xlu0 %v1472
        %v1474 = vpop.xlane.xlu0 %1473
        %v1475 = vsel %vm1200, %v1389, 0.0
        %1476 = vadd.xlane.f32.xlu0 %v1475
        %v1477 = vpop.xlane.xlu0 %1476
        %v1478 = vsel %vm1200, %v1390, 0.0
        %1479 = vadd.xlane.f32.xlu0 %v1478
        %v1480 = vpop.xlane.xlu0 %1479
        %v1481 = vsel %vm1200, %v1391, 0.0
        %1482 = vadd.xlane.f32.xlu0 %v1481
        %v1483 = vpop.xlane.xlu0 %1482
        %v1484 = vsel %vm1200, %v1392, 0.0
        %1485 = vadd.xlane.f32.xlu0 %v1484
        %v1486 = vpop.xlane.xlu0 %1485
        %v1487 = vsel %vm1200, %v1393, 0.0
        %1488 = vadd.xlane.f32.xlu0 %v1487
        %v1489 = vpop.xlane.xlu0 %1488
        %v1490 = vmul.f32 %v1396, %v1297
        %v1491 = vmul.f32 %v1399, %v1297
        %v1492 = vmul.f32 %v1402, %v1297
        %v1493 = vmul.f32 %v1405, %v1297
        %v1494 = vmul.f32 %v1408, %v1297
        %v1495 = vmul.f32 %v1411, %v1297
        %v1496 = vmul.f32 %v1414, %v1297
        %v1497 = vmul.f32 %v1417, %v1297
        %v1498 = vmul.f32 %v1420, %v1297
        %v1499 = vmul.f32 %v1423, %v1297
        %v1500 = vmul.f32 %v1426, %v1297
        %v1501 = vmul.f32 %v1429, %v1297
        %v1502 = vmul.f32 %v1432, %v1297
        %v1503 = vmul.f32 %v1435, %v1297
        %v1504 = vmul.f32 %v1438, %v1297
        %v1505 = vmul.f32 %v1441, %v1297
        %v1506 = vmul.f32 %v1444, %v1297
        %v1507 = vmul.f32 %v1447, %v1297
        %v1508 = vmul.f32 %v1450, %v1297
        %v1509 = vmul.f32 %v1453, %v1297
        %v1510 = vmul.f32 %v1456, %v1297
        %v1511 = vmul.f32 %v1459, %v1297
        %v1512 = vmul.f32 %v1462, %v1297
        %v1513 = vmul.f32 %v1465, %v1297
        %v1514 = vmul.f32 %v1468, %v1297
        %v1515 = vmul.f32 %v1471, %v1297
        %v1516 = vmul.f32 %v1474, %v1297
        %v1517 = vmul.f32 %v1477, %v1297
        %v1518 = vmul.f32 %v1480, %v1297
        %v1519 = vmul.f32 %v1483, %v1297
        %v1520 = vmul.f32 %v1486, %v1297
        %v1521 = vmul.f32 %v1489, %v1297
        %v1522 = vadd.f32 %v1490, 1e-05
        %v1523 = vadd.f32 %v1491, 1e-05
        %v1524 = vadd.f32 %v1492, 1e-05
        %v1525 = vadd.f32 %v1493, 1e-05
        %v1526 = vadd.f32 %v1494, 1e-05
        %v1527 = vadd.f32 %v1495, 1e-05
        %v1528 = vadd.f32 %v1496, 1e-05
        %v1529 = vadd.f32 %v1497, 1e-05
        %v1530 = vadd.f32 %v1498, 1e-05
        %v1531 = vadd.f32 %v1499, 1e-05
        %v1532 = vadd.f32 %v1500, 1e-05
        %v1533 = vadd.f32 %v1501, 1e-05
        %v1534 = vadd.f32 %v1502, 1e-05
        %v1535 = vadd.f32 %v1503, 1e-05
        %v1536 = vadd.f32 %v1504, 1e-05
        %v1537 = vadd.f32 %v1505, 1e-05
        %v1538 = vadd.f32 %v1506, 1e-05
        %v1539 = vadd.f32 %v1507, 1e-05
        %v1540 = vadd.f32 %v1508, 1e-05
        %v1541 = vadd.f32 %v1509, 1e-05
        %v1542 = vadd.f32 %v1510, 1e-05
        %v1543 = vadd.f32 %v1511, 1e-05
        %v1544 = vadd.f32 %v1512, 1e-05
        %v1545 = vadd.f32 %v1513, 1e-05
        %v1546 = vadd.f32 %v1514, 1e-05
        %v1547 = vadd.f32 %v1515, 1e-05
        %v1548 = vadd.f32 %v1516, 1e-05
        %v1549 = vadd.f32 %v1517, 1e-05
        %v1550 = vadd.f32 %v1518, 1e-05
        %v1551 = vadd.f32 %v1519, 1e-05
        %v1552 = vadd.f32 %v1520, 1e-05
        %v1553 = vadd.f32 %v1521, 1e-05
        %v1554 = vrsqrt.pop %v1522
        %v1555 = vrsqrt.pop %v1523
        %v1556 = vrsqrt.pop %v1524
        %v1557 = vrsqrt.pop %v1525
        %v1558 = vrsqrt.pop %v1526
        %v1559 = vrsqrt.pop %v1527
        %v1560 = vrsqrt.pop %v1528
        %v1561 = vrsqrt.pop %v1529
        %v1562 = vrsqrt.pop %v1530
        %v1563 = vrsqrt.pop %v1531
        %v1564 = vrsqrt.pop %v1532
        %v1565 = vrsqrt.pop %v1533
        %v1566 = vrsqrt.pop %v1534
        %v1567 = vrsqrt.pop %v1535
        %v1568 = vrsqrt.pop %v1536
        %v1569 = vrsqrt.pop %v1537
        %v1570 = vrsqrt.pop %v1538
        %v1571 = vrsqrt.pop %v1539
        %v1572 = vrsqrt.pop %v1540
        %v1573 = vrsqrt.pop %v1541
        %v1574 = vrsqrt.pop %v1542
        %v1575 = vrsqrt.pop %v1543
        %v1576 = vrsqrt.pop %v1544
        %v1577 = vrsqrt.pop %v1545
        %v1578 = vrsqrt.pop %v1546
        %v1579 = vrsqrt.pop %v1547
        %v1580 = vrsqrt.pop %v1548
        %v1581 = vrsqrt.pop %v1549
        %v1582 = vrsqrt.pop %v1550
        %v1583 = vrsqrt.pop %v1551
        %v1584 = vrsqrt.pop %v1552
        %v1585 = vrsqrt.pop %v1553
        %v1586 = vmul.f32 %v1330, %v1554
        %v1587 = vmul.f32 %v1331, %v1555
        %v1588 = vmul.f32 %v1332, %v1556
        %v1589 = vmul.f32 %v1333, %v1557
        %v1590 = vmul.f32 %v1334, %v1558
        %v1591 = vmul.f32 %v1335, %v1559
        %v1592 = vmul.f32 %v1336, %v1560
        %v1593 = vmul.f32 %v1337, %v1561
        %v1594 = vmul.f32 %v1338, %v1562
        %v1595 = vmul.f32 %v1339, %v1563
        %v1596 = vmul.f32 %v1340, %v1564
        %v1597 = vmul.f32 %v1341, %v1565
        %v1598 = vmul.f32 %v1342, %v1566
        %v1599 = vmul.f32 %v1343, %v1567
        %v1600 = vmul.f32 %v1344, %v1568
        %v1601 = vmul.f32 %v1345, %v1569
        %v1602 = vmul.f32 %v1346, %v1570
        %v1603 = vmul.f32 %v1347, %v1571
        %v1604 = vmul.f32 %v1348, %v1572
        %v1605 = vmul.f32 %v1349, %v1573
        %v1606 = vmul.f32 %v1350, %v1574
        %v1607 = vmul.f32 %v1351, %v1575
        %v1608 = vmul.f32 %v1352, %v1576
        %v1609 = vmul.f32 %v1353, %v1577
        %v1610 = vmul.f32 %v1354, %v1578
        %v1611 = vmul.f32 %v1355, %v1579
        %v1612 = vmul.f32 %v1356, %v1580
        %v1613 = vmul.f32 %v1357, %v1581
        %v1614 = vmul.f32 %v1358, %v1582
        %v1615 = vmul.f32 %v1359, %v1583
        %v1616 = vmul.f32 %v1360, %v1584
        %v1617 = vmul.f32 %v1361, %v1585
        %v1619 = vlaneseq
        %v1620 = vshrl.u32 %v1619, 7
        %v1621 = vsub.s32 0, %v1620
        %v1622 = vrot.slane %v1198, %v1621
        %v1624 = vmul.f32 %v1586, %v1622
        %v1625 = vmul.f32 %v1587, %v1622
        %v1626 = vmul.f32 %v1588, %v1622
        %v1627 = vmul.f32 %v1589, %v1622
        %v1628 = vmul.f32 %v1590, %v1622
        %v1629 = vmul.f32 %v1591, %v1622
        %v1630 = vmul.f32 %v1592, %v1622
        %v1631 = vmul.f32 %v1593, %v1622
        %v1632 = vmul.f32 %v1594, %v1622
        %v1633 = vmul.f32 %v1595, %v1622
        %v1634 = vmul.f32 %v1596, %v1622
        %v1635 = vmul.f32 %v1597, %v1622
        %v1636 = vmul.f32 %v1598, %v1622
        %v1637 = vmul.f32 %v1599, %v1622
        %v1638 = vmul.f32 %v1600, %v1622
        %v1639 = vmul.f32 %v1601, %v1622
        %v1640 = vmul.f32 %v1602, %v1622
        %v1641 = vmul.f32 %v1603, %v1622
        %v1642 = vmul.f32 %v1604, %v1622
        %v1643 = vmul.f32 %v1605, %v1622
        %v1644 = vmul.f32 %v1606, %v1622
        %v1645 = vmul.f32 %v1607, %v1622
        %v1646 = vmul.f32 %v1608, %v1622
        %v1647 = vmul.f32 %v1609, %v1622
        %v1648 = vmul.f32 %v1610, %v1622
        %v1649 = vmul.f32 %v1611, %v1622
        %v1650 = vmul.f32 %v1612, %v1622
        %v1651 = vmul.f32 %v1613, %v1622
        %v1652 = vmul.f32 %v1614, %v1622
        %v1653 = vmul.f32 %v1615, %v1622
        %v1654 = vmul.f32 %v1616, %v1622
        %v1655 = vmul.f32 %v1617, %v1622
        %v1657 = vlaneseq
        %v1658 = vshrl.u32 %v1657, 7
        %v1659 = vsub.s32 0, %v1658
        %v1660 = vrot.slane %v1199, %v1659
        %v1662 = vadd.f32 %v1624, %v1660
        %v1663 = vadd.f32 %v1625, %v1660
        %v1664 = vadd.f32 %v1626, %v1660
        %v1665 = vadd.f32 %v1627, %v1660
        %v1666 = vadd.f32 %v1628, %v1660
        %v1667 = vadd.f32 %v1629, %v1660
        %v1668 = vadd.f32 %v1630, %v1660
        %v1669 = vadd.f32 %v1631, %v1660
        %v1670 = vadd.f32 %v1632, %v1660
        %v1671 = vadd.f32 %v1633, %v1660
        %v1672 = vadd.f32 %v1634, %v1660
        %v1673 = vadd.f32 %v1635, %v1660
        %v1674 = vadd.f32 %v1636, %v1660
        %v1675 = vadd.f32 %v1637, %v1660
        %v1676 = vadd.f32 %v1638, %v1660
        %v1677 = vadd.f32 %v1639, %v1660
        %v1678 = vadd.f32 %v1640, %v1660
        %v1679 = vadd.f32 %v1641, %v1660
        %v1680 = vadd.f32 %v1642, %v1660
        %v1681 = vadd.f32 %v1643, %v1660
        %v1682 = vadd.f32 %v1644, %v1660
        %v1683 = vadd.f32 %v1645, %v1660
        %v1684 = vadd.f32 %v1646, %v1660
        %v1685 = vadd.f32 %v1647, %v1660
        %v1686 = vadd.f32 %v1648, %v1660
        %v1687 = vadd.f32 %v1649, %v1660
        %v1688 = vadd.f32 %v1650, %v1660
        %v1689 = vadd.f32 %v1651, %v1660
        %v1690 = vadd.f32 %v1652, %v1660
        %v1691 = vadd.f32 %v1653, %v1660
        %v1692 = vadd.f32 %v1654, %v1660
        %v1693 = vadd.f32 %v1655, %v1660
        %v1694 = vld [vmem:[%s8] sm:$0xff]
        %v1695 = vld [vmem:[%s8 + $0x8] sm:$0xff]
        %v1696 = vld [vmem:[%s8 + $0x10] sm:$0xff]
        %v1697 = vld [vmem:[%s8 + $0x18] sm:$0xff]
        %v1698 = vld [vmem:[%s9] sm:$0x1]
        %v1700 = vlaneseq
        %v1701 = vshrl.u32 %v1700, 7
        %v1702 = vsub.s32 0, %v1701
        %v1703 = vrot.slane %v1698, %v1702
        %v1706 = vsel %vm1200, %v1662, 0
        %v1709 = vsel %vm1200, %v1663, 0
        %v1712 = vsel %vm1200, %v1664, 0
        %v1715 = vsel %vm1200, %v1665, 0
        %v1718 = vsel %vm1200, %v1666, 0
        %v1721 = vsel %vm1200, %v1667, 0
        %v1724 = vsel %vm1200, %v1668, 0
        %v1727 = vsel %vm1200, %v1669, 0
        %v1730 = vsel %vm1200, %v1670, 0
        %v1733 = vsel %vm1200, %v1671, 0
        %v1736 = vsel %vm1200, %v1672, 0
        %v1739 = vsel %vm1200, %v1673, 0
        %v1742 = vsel %vm1200, %v1674, 0
        %v1745 = vsel %vm1200, %v1675, 0
        %v1748 = vsel %vm1200, %v1676, 0
        %v1751 = vsel %vm1200, %v1677, 0
        %v1754 = vsel %vm1200, %v1678, 0
        %v1757 = vsel %vm1200, %v1679, 0
        %v1760 = vsel %vm1200, %v1680, 0
        %v1763 = vsel %vm1200, %v1681, 0
        %v1766 = vsel %vm1200, %v1682, 0
        %v1769 = vsel %vm1200, %v1683, 0
        %v1772 = vsel %vm1200, %v1684, 0
        %v1775 = vsel %vm1200, %v1685, 0
        %v1778 = vsel %vm1200, %v1686, 0
        %v1781 = vsel %vm1200, %v1687, 0
        %v1784 = vsel %vm1200, %v1688, 0
        %v1787 = vsel %vm1200, %v1689, 0
        %v1790 = vsel %vm1200, %v1690, 0
        %v1793 = vsel %vm1200, %v1691, 0
        %v1796 = vsel %vm1200, %v1692, 0
        %v1799 = vsel %vm1200, %v1693, 0
        %1801 = vmatprep.subr.mxu0 0.0
        %1802 = vmatpush1.msra.mxu0 %v1694
        %1803 = vmatprep.subr.mxu0 0.0
        %1804 = vmatpush1.msra.mxu0 %v1695
        %1805 = vmatprep.subr.mxu0 0.0
        %1806 = vmatpush1.msra.mxu0 %v1696
        %1807 = vmatprep.subr.mxu0 0.0
        %1808 = vmatpush1.msra.mxu0 %v1697
        %1809 = vmatprep.subr.mxu0 0.0
        %1810 = vmatpush1.msra.mxu0 0.0
        %1811 = vmatprep.subr.mxu0 0.0
        %1812 = vmatpush1.msra.mxu0 0.0
        %1813 = vmatprep.subr.mxu0 0.0
        %1814 = vmatpush1.msra.mxu0 0.0
        %1815 = vmatprep.subr.mxu0 0.0
        %1816 = vmatpush1.msra.mxu0 0.0
        %1817 = vmatprep.subr.mxu0 0.0
        %1818 = vmatpush1.msra.mxu0 0.0
        %1819 = vmatprep.subr.mxu0 0.0
        %1820 = vmatpush1.msra.mxu0 0.0
        %1821 = vmatprep.subr.mxu0 0.0
        %1822 = vmatpush1.msra.mxu0 0.0
        %1823 = vmatprep.subr.mxu0 0.0
        %1824 = vmatpush1.msra.mxu0 0.0
        %1825 = vmatprep.subr.mxu0 0.0
        %1826 = vmatpush1.msra.mxu0 0.0
        %1827 = vmatprep.subr.mxu0 0.0
        %1828 = vmatpush1.msra.mxu0 0.0
        %1829 = vmatprep.subr.mxu0 0.0
        %1830 = vmatpush1.msra.mxu0 0.0
        %1831 = vmatprep.subr.mxu0 0.0
        %1832 = vmatpush1.msra.mxu0 0.0
        %1833 = vmatprep.subr.mxu0 0.0
        %1834 = vmatpush1.msra.mxu0 0.0
        %1835 = vmatprep.subr.mxu0 0.0
        %1836 = vmatpush1.msra.mxu0 0.0
        %1837 = vmatprep.subr.mxu0 0.0
        %1838 = vmatpush1.msra.mxu0 0.0
        %1839 = vmatprep.subr.mxu0 0.0
        %1840 = vmatpush1.msra.mxu0 0.0
        %1841 = vmatprep.subr.mxu0 0.0
        %1842 = vmatpush1.msra.mxu0 0.0
        %1843 = vmatprep.subr.mxu0 0.0
        %1844 = vmatpush1.msra.mxu0 0.0
        %1845 = vmatprep.subr.mxu0 0.0
        %1846 = vmatpush1.msra.mxu0 0.0
        %1847 = vmatprep.subr.mxu0 0.0
        %1848 = vmatpush1.msra.mxu0 0.0
        %1849 = vmatprep.subr.mxu0 0.0
        %1850 = vmatpush1.msra.mxu0 0.0
        %1851 = vmatprep.subr.mxu0 0.0
        %1852 = vmatpush1.msra.mxu0 0.0
        %1853 = vmatprep.subr.mxu0 0.0
        %1854 = vmatpush1.msra.mxu0 0.0
        %1855 = vmatprep.subr.mxu0 0.0
        %1856 = vmatpush1.msra.mxu0 0.0
        %1857 = vmatprep.subr.mxu0 0.0
        %1858 = vmatpush1.msra.mxu0 0.0
        %1859 = vmatprep.subr.mxu0 0.0
        %1860 = vmatpush1.msra.mxu0 0.0
        %1861 = vmatprep.subr.mxu0 0.0
        %1862 = vmatpush1.msra.mxu0 0.0
        %1863 = vmatprep.subr.mxu0 0.0
        %1864 = vmatpush1.msra.mxu0 0.0
        %1865 = vmatprep.mubr.f32.mxu0 0.0
        %1866 = vmatmul.mubr.f32.gmra.mrb[0].mxu0 %v1706
        %v1867 = vpop.f32.mrb[0].mxu0
        %v1868 = vadd.f32 %v1703, %v1867
        %v1869 = vpop.f32.mrb[0].mxu0
        %1870 = vmatprep.mubr.f32.mxu0 0.0
        %1871 = vmatmul.mubr.f32.gmra.mrb[0].mxu0 %v1709
        %v1872 = vpop.f32.mrb[0].mxu0
        %v1873 = vadd.f32 %v1703, %v1872
        %v1874 = vpop.f32.mrb[0].mxu0
        %1875 = vmatprep.mubr.f32.mxu0 0.0
        %1876 = vmatmul.mubr.f32.gmra.mrb[0].mxu0 %v1712
        %v1877 = vpop.f32.mrb[0].mxu0
        %v1878 = vadd.f32 %v1703, %v1877
        %v1879 = vpop.f32.mrb[0].mxu0
        %1880 = vmatprep.mubr.f32.mxu0 0.0
        %1881 = vmatmul.mubr.f32.gmra.mrb[0].mxu0 %v1715
        %v1882 = vpop.f32.mrb[0].mxu0
        %v1883 = vadd.f32 %v1703, %v1882
        %v1884 = vpop.f32.mrb[0].mxu0
        %1885 = vmatprep.mubr.f32.mxu0 0.0
        %1886 = vmatmul.mubr.f32.gmra.mrb[0].mxu0 %v1718
        %v1887 = vpop.f32.mrb[0].mxu0
        %v1888 = vadd.f32 %v1703, %v1887
        %v1889 = vpop.f32.mrb[0].mxu0
        %1890 = vmatprep.mubr.f32.mxu0 0.0
        %1891 = vmatmul.mubr.f32.gmra.mrb[0].mxu0 %v1721
        %v1892 = vpop.f32.mrb[0].mxu0
        %v1893 = vadd.f32 %v1703, %v1892
        %v1894 = vpop.f32.mrb[0].mxu0
        %1895 = vmatprep.mubr.f32.mxu0 0.0
        %1896 = vmatmul.mubr.f32.gmra.mrb[0].mxu0 %v1724
        %v1897 = vpop.f32.mrb[0].mxu0
        %v1898 = vadd.f32 %v1703, %v1897
        %v1899 = vpop.f32.mrb[0].mxu0
        %1900 = vmatprep.mubr.f32.mxu0 0.0
        %1901 = vmatmul.mubr.f32.gmra.mrb[0].mxu0 %v1727
        %v1902 = vpop.f32.mrb[0].mxu0
        %v1903 = vadd.f32 %v1703, %v1902
        %v1904 = vpop.f32.mrb[0].mxu0
        %1905 = vmatprep.mubr.f32.mxu0 0.0
        %1906 = vmatmul.mubr.f32.gmra.mrb[0].mxu0 %v1730
        %v1907 = vpop.f32.mrb[0].mxu0
        %v1908 = vadd.f32 %v1703, %v1907
        %v1909 = vpop.f32.mrb[0].mxu0
        %1910 = vmatprep.mubr.f32.mxu0 0.0
        %1911 = vmatmul.mubr.f32.gmra.mrb[0].mxu0 %v1733
        %v1912 = vpop.f32.mrb[0].mxu0
        %v1913 = vadd.f32 %v1703, %v1912
        %v1914 = vpop.f32.mrb[0].mxu0
        %1915 = vmatprep.mubr.f32.mxu0 0.0
        %1916 = vmatmul.mubr.f32.gmra.mrb[0].mxu0 %v1736
        %v1917 = vpop.f32.mrb[0].mxu0
        %v1918 = vadd.f32 %v1703, %v1917
        %v1919 = vpop.f32.mrb[0].mxu0
        %1920 = vmatprep.mubr.f32.mxu0 0.0
        %1921 = vmatmul.mubr.f32.gmra.mrb[0].mxu0 %v1739
        %v1922 = vpop.f32.mrb[0].mxu0
        %v1923 = vadd.f32 %v1703, %v1922
        %v1924 = vpop.f32.mrb[0].mxu0
        %1925 = vmatprep.mubr.f32.mxu0 0.0
        %1926 = vmatmul.mubr.f32.gmra.mrb[0].mxu0 %v1742
        %v1927 = vpop.f32.mrb[0].mxu0
        %v1928 = vadd.f32 %v1703, %v1927
        %v1929 = vpop.f32.mrb[0].mxu0
        %1930 = vmatprep.mubr.f32.mxu0 0.0
        %1931 = vmatmul.mubr.f32.gmra.mrb[0].mxu0 %v1745
        %v1932 = vpop.f32.mrb[0].mxu0
        %v1933 = vadd.f32 %v1703, %v1932
        %v1934 = vpop.f32.mrb[0].mxu0
        %1935 = vmatprep.mubr.f32.mxu0 0.0
        %1936 = vmatmul.mubr.f32.gmra.mrb[0].mxu0 %v1748
        %v1937 = vpop.f32.mrb[0].mxu0
        %v1938 = vadd.f32 %v1703, %v1937
        %v1939 = vpop.f32.mrb[0].mxu0
        %1940 = vmatprep.mubr.f32.mxu0 0.0
        %1941 = vmatmul.mubr.f32.gmra.mrb[0].mxu0 %v1751
        %v1942 = vpop.f32.mrb[0].mxu0
        %v1943 = vadd.f32 %v1703, %v1942
        %v1944 = vpop.f32.mrb[0].mxu0
        %1945 = vmatprep.mubr.f32.mxu0 0.0
        %1946 = vmatmul.mubr.f32.gmra.mrb[0].mxu0 %v1754
        %v1947 = vpop.f32.mrb[0].mxu0
        %v1948 = vadd.f32 %v1703, %v1947
        %v1949 = vpop.f32.mrb[0].mxu0
        %1950 = vmatprep.mubr.f32.mxu0 0.0
        %1951 = vmatmul.mubr.f32.gmra.mrb[0].mxu0 %v1757
        %v1952 = vpop.f32.mrb[0].mxu0
        %v1953 = vadd.f32 %v1703, %v1952
        %v1954 = vpop.f32.mrb[0].mxu0
        %1955 = vmatprep.mubr.f32.mxu0 0.0
        %1956 = vmatmul.mubr.f32.gmra.mrb[0].mxu0 %v1760
        %v1957 = vpop.f32.mrb[0].mxu0
        %v1958 = vadd.f32 %v1703, %v1957
        %v1959 = vpop.f32.mrb[0].mxu0
        %1960 = vmatprep.mubr.f32.mxu0 0.0
        %1961 = vmatmul.mubr.f32.gmra.mrb[0].mxu0 %v1763
        %v1962 = vpop.f32.mrb[0].mxu0
        %v1963 = vadd.f32 %v1703, %v1962
        %v1964 = vpop.f32.mrb[0].mxu0
        %1965 = vmatprep.mubr.f32.mxu0 0.0
        %1966 = vmatmul.mubr.f32.gmra.mrb[0].mxu0 %v1766
        %v1967 = vpop.f32.mrb[0].mxu0
        %v1968 = vadd.f32 %v1703, %v1967
        %v1969 = vpop.f32.mrb[0].mxu0
        %1970 = vmatprep.mubr.f32.mxu0 0.0
        %1971 = vmatmul.mubr.f32.gmra.mrb[0].mxu0 %v1769
        %v1972 = vpop.f32.mrb[0].mxu0
        %v1973 = vadd.f32 %v1703, %v1972
        %v1974 = vpop.f32.mrb[0].mxu0
        %1975 = vmatprep.mubr.f32.mxu0 0.0
        %1976 = vmatmul.mubr.f32.gmra.mrb[0].mxu0 %v1772
        %v1977 = vpop.f32.mrb[0].mxu0
        %v1978 = vadd.f32 %v1703, %v1977
        %v1979 = vpop.f32.mrb[0].mxu0
        %1980 = vmatprep.mubr.f32.mxu0 0.0
        %1981 = vmatmul.mubr.f32.gmra.mrb[0].mxu0 %v1775
        %v1982 = vpop.f32.mrb[0].mxu0
        %v1983 = vadd.f32 %v1703, %v1982
        %v1984 = vpop.f32.mrb[0].mxu0
        %1985 = vmatprep.mubr.f32.mxu0 0.0
        %1986 = vmatmul.mubr.f32.gmra.mrb[0].mxu0 %v1778
        %v1987 = vpop.f32.mrb[0].mxu0
        %v1988 = vadd.f32 %v1703, %v1987
        %v1989 = vpop.f32.mrb[0].mxu0
        %1990 = vmatprep.mubr.f32.mxu0 0.0
        %1991 = vmatmul.mubr.f32.gmra.mrb[0].mxu0 %v1781
        %v1992 = vpop.f32.mrb[0].mxu0
        %v1993 = vadd.f32 %v1703, %v1992
        %v1994 = vpop.f32.mrb[0].mxu0
        %1995 = vmatprep.mubr.f32.mxu0 0.0
        %1996 = vmatmul.mubr.f32.gmra.mrb[0].mxu0 %v1784
        %v1997 = vpop.f32.mrb[0].mxu0
        %v1998 = vadd.f32 %v1703, %v1997
        %v1999 = vpop.f32.mrb[0].mxu0
        %2000 = vmatprep.mubr.f32.mxu0 0.0
        %2001 = vmatmul.mubr.f32.gmra.mrb[0].mxu0 %v1787
        %v2002 = vpop.f32.mrb[0].mxu0
        %v2003 = vadd.f32 %v1703, %v2002
        %v2004 = vpop.f32.mrb[0].mxu0
        %2005 = vmatprep.mubr.f32.mxu0 0.0
        %2006 = vmatmul.mubr.f32.gmra.mrb[0].mxu0 %v1790
        %v2007 = vpop.f32.mrb[0].mxu0
        %v2008 = vadd.f32 %v1703, %v2007
        %v2009 = vpop.f32.mrb[0].mxu0
        %2010 = vmatprep.mubr.f32.mxu0 0.0
        %2011 = vmatmul.mubr.f32.gmra.mrb[0].mxu0 %v1793
        %v2012 = vpop.f32.mrb[0].mxu0
        %v2013 = vadd.f32 %v1703, %v2012
        %v2014 = vpop.f32.mrb[0].mxu0
        %2015 = vmatprep.mubr.f32.mxu0 0.0
        %2016 = vmatmul.mubr.f32.gmra.mrb[0].mxu0 %v1796
        %v2017 = vpop.f32.mrb[0].mxu0
        %v2018 = vadd.f32 %v1703, %v2017
        %v2019 = vpop.f32.mrb[0].mxu0
        %2020 = vmatprep.mubr.f32.mxu0 0.0
        %2021 = vmatmul.mubr.f32.gmra.mrb[0].mxu0 %v1799
        %v2022 = vpop.f32.mrb[0].mxu0
        %v2023 = vadd.f32 %v1703, %v2022
        %v2024 = vpop.f32.mrb[0].mxu0
        %2025 = vdwg.mxu0
        %v2026 = vld [vmem:[%s10] sm:$0xff]
        %v2027 = vld [vmem:[%s10 + $0x8] sm:$0xff]
        %v2028 = vld [vmem:[%s10 + $0x10] sm:$0xff]
        %v2029 = vld [vmem:[%s10 + $0x18] sm:$0xff]
        %v2030 = vld [vmem:[%s11] sm:$0x1]
        %v2032 = vlaneseq
        %v2033 = vshrl.u32 %v2032, 7
        %v2034 = vsub.s32 0, %v2033
        %v2035 = vrot.slane %v2030, %v2034
        %2037 = vmatprep.subr.mxu0 0.0
        %2038 = vmatpush1.msra.mxu0 %v2026
        %2039 = vmatprep.subr.mxu0 0.0
        %2040 = vmatpush1.msra.mxu0 %v2027
        %2041 = vmatprep.subr.mxu0 0.0
        %2042 = vmatpush1.msra.mxu0 %v2028
        %2043 = vmatprep.subr.mxu0 0.0
        %2044 = vmatpush1.msra.mxu0 %v2029
        %2045 = vmatprep.subr.mxu0 0.0
        %2046 = vmatpush1.msra.mxu0 0.0
        %2047 = vmatprep.subr.mxu0 0.0
        %2048 = vmatpush1.msra.mxu0 0.0
        %2049 = vmatprep.subr.mxu0 0.0
        %2050 = vmatpush1.msra.mxu0 0.0
        %2051 = vmatprep.subr.mxu0 0.0
        %2052 = vmatpush1.msra.mxu0 0.0
        %2053 = vmatprep.subr.mxu0 0.0
        %2054 = vmatpush1.msra.mxu0 0.0
        %2055 = vmatprep.subr.mxu0 0.0
        %2056 = vmatpush1.msra.mxu0 0.0
        %2057 = vmatprep.subr.mxu0 0.0
        %2058 = vmatpush1.msra.mxu0 0.0
        %2059 = vmatprep.subr.mxu0 0.0
        %2060 = vmatpush1.msra.mxu0 0.0
        %2061 = vmatprep.subr.mxu0 0.0
        %2062 = vmatpush1.msra.mxu0 0.0
        %2063 = vmatprep.subr.mxu0 0.0
        %2064 = vmatpush1.msra.mxu0 0.0
        %2065 = vmatprep.subr.mxu0 0.0
        %2066 = vmatpush1.msra.mxu0 0.0
        %2067 = vmatprep.subr.mxu0 0.0
        %2068 = vmatpush1.msra.mxu0 0.0
        %2069 = vmatprep.subr.mxu0 0.0
        %2070 = vmatpush1.msra.mxu0 0.0
        %2071 = vmatprep.subr.mxu0 0.0
        %2072 = vmatpush1.msra.mxu0 0.0
        %2073 = vmatprep.subr.mxu0 0.0
        %2074 = vmatpush1.msra.mxu0 0.0
        %2075 = vmatprep.subr.mxu0 0.0
        %2076 = vmatpush1.msra.mxu0 0.0
        %2077 = vmatprep.subr.mxu0 0.0
        %2078 = vmatpush1.msra.mxu0 0.0
        %2079 = vmatprep.subr.mxu0 0.0
        %2080 = vmatpush1.msra.mxu0 0.0
        %2081 = vmatprep.subr.mxu0 0.0
        %2082 = vmatpush1.msra.mxu0 0.0
        %2083 = vmatprep.subr.mxu0 0.0
        %2084 = vmatpush1.msra.mxu0 0.0
        %2085 = vmatprep.subr.mxu0 0.0
        %2086 = vmatpush1.msra.mxu0 0.0
        %2087 = vmatprep.subr.mxu0 0.0
        %2088 = vmatpush1.msra.mxu0 0.0
        %2089 = vmatprep.subr.mxu0 0.0
        %2090 = vmatpush1.msra.mxu0 0.0
        %2091 = vmatprep.subr.mxu0 0.0
        %2092 = vmatpush1.msra.mxu0 0.0
        %2093 = vmatprep.subr.mxu0 0.0
        %2094 = vmatpush1.msra.mxu0 0.0
        %2095 = vmatprep.subr.mxu0 0.0
        %2096 = vmatpush1.msra.mxu0 0.0
        %2097 = vmatprep.subr.mxu0 0.0
        %2098 = vmatpush1.msra.mxu0 0.0
        %2099 = vmatprep.subr.mxu0 0.0
        %2100 = vmatpush1.msra.mxu0 0.0
        %2101 = vmatprep.mubr.f32.mxu0 0.0
        %2102 = vmatmul.mubr.f32.gmra.mrb[0].mxu0 %v1706
        %v2103 = vpop.f32.mrb[0].mxu0
        %v2104 = vadd.f32 %v2035, %v2103
        %v2105 = vpop.f32.mrb[0].mxu0
        %2106 = vmatprep.mubr.f32.mxu0 0.0
        %2107 = vmatmul.mubr.f32.gmra.mrb[0].mxu0 %v1709
        %v2108 = vpop.f32.mrb[0].mxu0
        %v2109 = vadd.f32 %v2035, %v2108
        %v2110 = vpop.f32.mrb[0].mxu0
        %2111 = vmatprep.mubr.f32.mxu0 0.0
        %2112 = vmatmul.mubr.f32.gmra.mrb[0].mxu0 %v1712
        %v2113 = vpop.f32.mrb[0].mxu0
        %v2114 = vadd.f32 %v2035, %v2113
        %v2115 = vpop.f32.mrb[0].mxu0
        %2116 = vmatprep.mubr.f32.mxu0 0.0
        %2117 = vmatmul.mubr.f32.gmra.mrb[0].mxu0 %v1715
        %v2118 = vpop.f32.mrb[0].mxu0
        %v2119 = vadd.f32 %v2035, %v2118
        %v2120 = vpop.f32.mrb[0].mxu0
        %2121 = vmatprep.mubr.f32.mxu0 0.0
        %2122 = vmatmul.mubr.f32.gmra.mrb[0].mxu0 %v1718
        %v2123 = vpop.f32.mrb[0].mxu0
        %v2124 = vadd.f32 %v2035, %v2123
        %v2125 = vpop.f32.mrb[0].mxu0
        %2126 = vmatprep.mubr.f32.mxu0 0.0
        %2127 = vmatmul.mubr.f32.gmra.mrb[0].mxu0 %v1721
        %v2128 = vpop.f32.mrb[0].mxu0
        %v2129 = vadd.f32 %v2035, %v2128
        %v2130 = vpop.f32.mrb[0].mxu0
        %2131 = vmatprep.mubr.f32.mxu0 0.0
        %2132 = vmatmul.mubr.f32.gmra.mrb[0].mxu0 %v1724
        %v2133 = vpop.f32.mrb[0].mxu0
        %v2134 = vadd.f32 %v2035, %v2133
        %v2135 = vpop.f32.mrb[0].mxu0
        %2136 = vmatprep.mubr.f32.mxu0 0.0
        %2137 = vmatmul.mubr.f32.gmra.mrb[0].mxu0 %v1727
        %v2138 = vpop.f32.mrb[0].mxu0
        %v2139 = vadd.f32 %v2035, %v2138
        %v2140 = vpop.f32.mrb[0].mxu0
        %2141 = vmatprep.mubr.f32.mxu0 0.0
        %2142 = vmatmul.mubr.f32.gmra.mrb[0].mxu0 %v1730
        %v2143 = vpop.f32.mrb[0].mxu0
        %v2144 = vadd.f32 %v2035, %v2143
        %v2145 = vpop.f32.mrb[0].mxu0
        %2146 = vmatprep.mubr.f32.mxu0 0.0
        %2147 = vmatmul.mubr.f32.gmra.mrb[0].mxu0 %v1733
        %v2148 = vpop.f32.mrb[0].mxu0
        %v2149 = vadd.f32 %v2035, %v2148
        %v2150 = vpop.f32.mrb[0].mxu0
        %2151 = vmatprep.mubr.f32.mxu0 0.0
        %2152 = vmatmul.mubr.f32.gmra.mrb[0].mxu0 %v1736
        %v2153 = vpop.f32.mrb[0].mxu0
        %v2154 = vadd.f32 %v2035, %v2153
        %v2155 = vpop.f32.mrb[0].mxu0
        %2156 = vmatprep.mubr.f32.mxu0 0.0
        %2157 = vmatmul.mubr.f32.gmra.mrb[0].mxu0 %v1739
        %v2158 = vpop.f32.mrb[0].mxu0
        %v2159 = vadd.f32 %v2035, %v2158
        %v2160 = vpop.f32.mrb[0].mxu0
        %2161 = vmatprep.mubr.f32.mxu0 0.0
        %2162 = vmatmul.mubr.f32.gmra.mrb[0].mxu0 %v1742
        %v2163 = vpop.f32.mrb[0].mxu0
        %v2164 = vadd.f32 %v2035, %v2163
        %v2165 = vpop.f32.mrb[0].mxu0
        %2166 = vmatprep.mubr.f32.mxu0 0.0
        %2167 = vmatmul.mubr.f32.gmra.mrb[0].mxu0 %v1745
        %v2168 = vpop.f32.mrb[0].mxu0
        %v2169 = vadd.f32 %v2035, %v2168
        %v2170 = vpop.f32.mrb[0].mxu0
        %2171 = vmatprep.mubr.f32.mxu0 0.0
        %2172 = vmatmul.mubr.f32.gmra.mrb[0].mxu0 %v1748
        %v2173 = vpop.f32.mrb[0].mxu0
        %v2174 = vadd.f32 %v2035, %v2173
        %v2175 = vpop.f32.mrb[0].mxu0
        %2176 = vmatprep.mubr.f32.mxu0 0.0
        %2177 = vmatmul.mubr.f32.gmra.mrb[0].mxu0 %v1751
        %v2178 = vpop.f32.mrb[0].mxu0
        %v2179 = vadd.f32 %v2035, %v2178
        %v2180 = vpop.f32.mrb[0].mxu0
        %2181 = vmatprep.mubr.f32.mxu0 0.0
        %2182 = vmatmul.mubr.f32.gmra.mrb[0].mxu0 %v1754
        %v2183 = vpop.f32.mrb[0].mxu0
        %v2184 = vadd.f32 %v2035, %v2183
        %v2185 = vpop.f32.mrb[0].mxu0
        %2186 = vmatprep.mubr.f32.mxu0 0.0
        %2187 = vmatmul.mubr.f32.gmra.mrb[0].mxu0 %v1757
        %v2188 = vpop.f32.mrb[0].mxu0
        %v2189 = vadd.f32 %v2035, %v2188
        %v2190 = vpop.f32.mrb[0].mxu0
        %2191 = vmatprep.mubr.f32.mxu0 0.0
        %2192 = vmatmul.mubr.f32.gmra.mrb[0].mxu0 %v1760
        %v2193 = vpop.f32.mrb[0].mxu0
        %v2194 = vadd.f32 %v2035, %v2193
        %v2195 = vpop.f32.mrb[0].mxu0
        %2196 = vmatprep.mubr.f32.mxu0 0.0
        %2197 = vmatmul.mubr.f32.gmra.mrb[0].mxu0 %v1763
        %v2198 = vpop.f32.mrb[0].mxu0
        %v2199 = vadd.f32 %v2035, %v2198
        %v2200 = vpop.f32.mrb[0].mxu0
        %2201 = vmatprep.mubr.f32.mxu0 0.0
        %2202 = vmatmul.mubr.f32.gmra.mrb[0].mxu0 %v1766
        %v2203 = vpop.f32.mrb[0].mxu0
        %v2204 = vadd.f32 %v2035, %v2203
        %v2205 = vpop.f32.mrb[0].mxu0
        %2206 = vmatprep.mubr.f32.mxu0 0.0
        %2207 = vmatmul.mubr.f32.gmra.mrb[0].mxu0 %v1769
        %v2208 = vpop.f32.mrb[0].mxu0
        %v2209 = vadd.f32 %v2035, %v2208
        %v2210 = vpop.f32.mrb[0].mxu0
        %2211 = vmatprep.mubr.f32.mxu0 0.0
        %2212 = vmatmul.mubr.f32.gmra.mrb[0].mxu0 %v1772
        %v2213 = vpop.f32.mrb[0].mxu0
        %v2214 = vadd.f32 %v2035, %v2213
        %v2215 = vpop.f32.mrb[0].mxu0
        %2216 = vmatprep.mubr.f32.mxu0 0.0
        %2217 = vmatmul.mubr.f32.gmra.mrb[0].mxu0 %v1775
        %v2218 = vpop.f32.mrb[0].mxu0
        %v2219 = vadd.f32 %v2035, %v2218
        %v2220 = vpop.f32.mrb[0].mxu0
        %2221 = vmatprep.mubr.f32.mxu0 0.0
        %2222 = vmatmul.mubr.f32.gmra.mrb[0].mxu0 %v1778
        %v2223 = vpop.f32.mrb[0].mxu0
        %v2224 = vadd.f32 %v2035, %v2223
        %v2225 = vpop.f32.mrb[0].mxu0
        %2226 = vmatprep.mubr.f32.mxu0 0.0
        %2227 = vmatmul.mubr.f32.gmra.mrb[0].mxu0 %v1781
        %v2228 = vpop.f32.mrb[0].mxu0
        %v2229 = vadd.f32 %v2035, %v2228
        %v2230 = vpop.f32.mrb[0].mxu0
        %2231 = vmatprep.mubr.f32.mxu0 0.0
        %2232 = vmatmul.mubr.f32.gmra.mrb[0].mxu0 %v1784
        %v2233 = vpop.f32.mrb[0].mxu0
        %v2234 = vadd.f32 %v2035, %v2233
        %v2235 = vpop.f32.mrb[0].mxu0
        %2236 = vmatprep.mubr.f32.mxu0 0.0
        %2237 = vmatmul.mubr.f32.gmra.mrb[0].mxu0 %v1787
        %v2238 = vpop.f32.mrb[0].mxu0
        %v2239 = vadd.f32 %v2035, %v2238
        %v2240 = vpop.f32.mrb[0].mxu0
        %2241 = vmatprep.mubr.f32.mxu0 0.0
        %2242 = vmatmul.mubr.f32.gmra.mrb[0].mxu0 %v1790
        %v2243 = vpop.f32.mrb[0].mxu0
        %v2244 = vadd.f32 %v2035, %v2243
        %v2245 = vpop.f32.mrb[0].mxu0
        %2246 = vmatprep.mubr.f32.mxu0 0.0
        %2247 = vmatmul.mubr.f32.gmra.mrb[0].mxu0 %v1793
        %v2248 = vpop.f32.mrb[0].mxu0
        %v2249 = vadd.f32 %v2035, %v2248
        %v2250 = vpop.f32.mrb[0].mxu0
        %2251 = vmatprep.mubr.f32.mxu0 0.0
        %2252 = vmatmul.mubr.f32.gmra.mrb[0].mxu0 %v1796
        %v2253 = vpop.f32.mrb[0].mxu0
        %v2254 = vadd.f32 %v2035, %v2253
        %v2255 = vpop.f32.mrb[0].mxu0
        %2256 = vmatprep.mubr.f32.mxu0 0.0
        %2257 = vmatmul.mubr.f32.gmra.mrb[0].mxu0 %v1799
        %v2258 = vpop.f32.mrb[0].mxu0
        %v2259 = vadd.f32 %v2035, %v2258
        %v2260 = vpop.f32.mrb[0].mxu0
        %2261 = vdwg.mxu0
        %v2262 = vld [vmem:[%s6] sm:$0xff]
        %v2263 = vld [vmem:[%s6 + $0x8] sm:$0xff]
        %v2264 = vld [vmem:[%s6 + $0x10] sm:$0xff]
        %v2265 = vld [vmem:[%s6 + $0x18] sm:$0xff]
        %v2266 = vld [vmem:[%s7] sm:$0x1]
        %v2268 = vlaneseq
        %v2269 = vshrl.u32 %v2268, 7
        %v2270 = vsub.s32 0, %v2269
        %v2271 = vrot.slane %v2266, %v2270
        %2273 = vmatprep.subr.mxu0 0.0
        %2274 = vmatpush1.msra.mxu0 %v2262
        %2275 = vmatprep.subr.mxu0 0.0
        %2276 = vmatpush1.msra.mxu0 %v2263
        %2277 = vmatprep.subr.mxu0 0.0
        %2278 = vmatpush1.msra.mxu0 %v2264
        %2279 = vmatprep.subr.mxu0 0.0
        %2280 = vmatpush1.msra.mxu0 %v2265
        %2281 = vmatprep.subr.mxu0 0.0
        %2282 = vmatpush1.msra.mxu0 0.0
        %2283 = vmatprep.subr.mxu0 0.0
        %2284 = vmatpush1.msra.mxu0 0.0
        %2285 = vmatprep.subr.mxu0 0.0
        %2286 = vmatpush1.msra.mxu0 0.0
        %2287 = vmatprep.subr.mxu0 0.0
        %2288 = vmatpush1.msra.mxu0 0.0
        %2289 = vmatprep.subr.mxu0 0.0
        %2290 = vmatpush1.msra.mxu0 0.0
        %2291 = vmatprep.subr.mxu0 0.0
        %2292 = vmatpush1.msra.mxu0 0.0
        %2293 = vmatprep.subr.mxu0 0.0
        %2294 = vmatpush1.msra.mxu0 0.0
        %2295 = vmatprep.subr.mxu0 0.0
        %2296 = vmatpush1.msra.mxu0 0.0
        %2297 = vmatprep.subr.mxu0 0.0
        %2298 = vmatpush1.msra.mxu0 0.0
        %2299 = vmatprep.subr.mxu0 0.0
        %2300 = vmatpush1.msra.mxu0 0.0
        %2301 = vmatprep.subr.mxu0 0.0
        %2302 = vmatpush1.msra.mxu0 0.0
        %2303 = vmatprep.subr.mxu0 0.0
        %2304 = vmatpush1.msra.mxu0 0.0
        %2305 = vmatprep.subr.mxu0 0.0
        %2306 = vmatpush1.msra.mxu0 0.0
        %2307 = vmatprep.subr.mxu0 0.0
        %2308 = vmatpush1.msra.mxu0 0.0
        %2309 = vmatprep.subr.mxu0 0.0
        %2310 = vmatpush1.msra.mxu0 0.0
        %2311 = vmatprep.subr.mxu0 0.0
        %2312 = vmatpush1.msra.mxu0 0.0
        %2313 = vmatprep.subr.mxu0 0.0
        %2314 = vmatpush1.msra.mxu0 0.0
        %2315 = vmatprep.subr.mxu0 0.0
        %2316 = vmatpush1.msra.mxu0 0.0
        %2317 = vmatprep.subr.mxu0 0.0
        %2318 = vmatpush1.msra.mxu0 0.0
        %2319 = vmatprep.subr.mxu0 0.0
        %2320 = vmatpush1.msra.mxu0 0.0
        %2321 = vmatprep.subr.mxu0 0.0
        %2322 = vmatpush1.msra.mxu0 0.0
        %2323 = vmatprep.subr.mxu0 0.0
        %2324 = vmatpush1.msra.mxu0 0.0
        %2325 = vmatprep.subr.mxu0 0.0
        %2326 = vmatpush1.msra.mxu0 0.0
        %2327 = vmatprep.subr.mxu0 0.0
        %2328 = vmatpush1.msra.mxu0 0.0
        %2329 = vmatprep.subr.mxu0 0.0
        %2330 = vmatpush1.msra.mxu0 0.0
        %2331 = vmatprep.subr.mxu0 0.0
        %2332 = vmatpush1.msra.mxu0 0.0
        %2333 = vmatprep.subr.mxu0 0.0
        %2334 = vmatpush1.msra.mxu0 0.0
        %2335 = vmatprep.subr.mxu0 0.0
        %2336 = vmatpush1.msra.mxu0 0.0
        %2337 = vmatprep.mubr.f32.mxu0 0.0
        %2338 = vmatmul.mubr.f32.gmra.mrb[0].mxu0 %v1706
        %v2339 = vpop.f32.mrb[0].mxu0
        %v2340 = vadd.f32 %v2271, %v2339
        %v2341 = vpop.f32.mrb[0].mxu0
        %2342 = vdwg.mxu0
        %v2343 = vmul.f32 %v2340, %v1868
        %v2344 = vmul.f32 %v2340, %v1873
        %v2345 = vmul.f32 %v2340, %v1878
        %v2346 = vmul.f32 %v2340, %v1883
        %v2347 = vmul.f32 %v2340, %v1888
        %v2348 = vmul.f32 %v2340, %v1893
        %v2349 = vmul.f32 %v2340, %v1898
        %v2350 = vmul.f32 %v2340, %v1903
        %v2351 = vmul.f32 %v2340, %v1908
        %v2352 = vmul.f32 %v2340, %v1913
        %v2353 = vmul.f32 %v2340, %v1918
        %v2354 = vmul.f32 %v2340, %v1923
        %v2355 = vmul.f32 %v2340, %v1928
        %v2356 = vmul.f32 %v2340, %v1933
        %v2357 = vmul.f32 %v2340, %v1938
        %v2358 = vmul.f32 %v2340, %v1943
        %v2359 = vmul.f32 %v2340, %v1948
        %v2360 = vmul.f32 %v2340, %v1953
        %v2361 = vmul.f32 %v2340, %v1958
        %v2362 = vmul.f32 %v2340, %v1963
        %v2363 = vmul.f32 %v2340, %v1968
        %v2364 = vmul.f32 %v2340, %v1973
        %v2365 = vmul.f32 %v2340, %v1978
        %v2366 = vmul.f32 %v2340, %v1983
        %v2367 = vmul.f32 %v2340, %v1988
        %v2368 = vmul.f32 %v2340, %v1993
        %v2369 = vmul.f32 %v2340, %v1998
        %v2370 = vmul.f32 %v2340, %v2003
        %v2371 = vmul.f32 %v2340, %v2008
        %v2372 = vmul.f32 %v2340, %v2013
        %v2373 = vmul.f32 %v2340, %v2018
        %v2374 = vmul.f32 %v2340, %v2023
        %v2375 = vsel %vm1200, %v2343, 0.0
        %2376 = vadd.xlane.f32.xlu0 %v2375
        %v2377 = vpop.xlane.xlu0 %2376
        %v2378 = vsel %vm1200, %v2344, 0.0
        %2379 = vadd.xlane.f32.xlu0 %v2378
        %v2380 = vpop.xlane.xlu0 %2379
        %v2381 = vsel %vm1200, %v2345, 0.0
        %2382 = vadd.xlane.f32.xlu0 %v2381
        %v2383 = vpop.xlane.xlu0 %2382
        %v2384 = vsel %vm1200, %v2346, 0.0
        %2385 = vadd.xlane.f32.xlu0 %v2384
        %v2386 = vpop.xlane.xlu0 %2385
        %v2387 = vsel %vm1200, %v2347, 0.0
        %2388 = vadd.xlane.f32.xlu0 %v2387
        %v2389 = vpop.xlane.xlu0 %2388
        %v2390 = vsel %vm1200, %v2348, 0.0
        %2391 = vadd.xlane.f32.xlu0 %v2390
        %v2392 = vpop.xlane.xlu0 %2391
        %v2393 = vsel %vm1200, %v2349, 0.0
        %2394 = vadd.xlane.f32.xlu0 %v2393
        %v2395 = vpop.xlane.xlu0 %2394
        %v2396 = vsel %vm1200, %v2350, 0.0
        %2397 = vadd.xlane.f32.xlu0 %v2396
        %v2398 = vpop.xlane.xlu0 %2397
        %v2399 = vsel %vm1200, %v2351, 0.0
        %2400 = vadd.xlane.f32.xlu0 %v2399
        %v2401 = vpop.xlane.xlu0 %2400
        %v2402 = vsel %vm1200, %v2352, 0.0
        %2403 = vadd.xlane.f32.xlu0 %v2402
        %v2404 = vpop.xlane.xlu0 %2403
        %v2405 = vsel %vm1200, %v2353, 0.0
        %2406 = vadd.xlane.f32.xlu0 %v2405
        %v2407 = vpop.xlane.xlu0 %2406
        %v2408 = vsel %vm1200, %v2354, 0.0
        %2409 = vadd.xlane.f32.xlu0 %v2408
        %v2410 = vpop.xlane.xlu0 %2409
        %v2411 = vsel %vm1200, %v2355, 0.0
        %2412 = vadd.xlane.f32.xlu0 %v2411
        %v2413 = vpop.xlane.xlu0 %2412
        %v2414 = vsel %vm1200, %v2356, 0.0
        %2415 = vadd.xlane.f32.xlu0 %v2414
        %v2416 = vpop.xlane.xlu0 %2415
        %v2417 = vsel %vm1200, %v2357, 0.0
        %2418 = vadd.xlane.f32.xlu0 %v2417
        %v2419 = vpop.xlane.xlu0 %2418
        %v2420 = vsel %vm1200, %v2358, 0.0
        %2421 = vadd.xlane.f32.xlu0 %v2420
        %v2422 = vpop.xlane.xlu0 %2421
        %v2423 = vsel %vm1200, %v2359, 0.0
        %2424 = vadd.xlane.f32.xlu0 %v2423
        %v2425 = vpop.xlane.xlu0 %2424
        %v2426 = vsel %vm1200, %v2360, 0.0
        %2427 = vadd.xlane.f32.xlu0 %v2426
        %v2428 = vpop.xlane.xlu0 %2427
        %v2429 = vsel %vm1200, %v2361, 0.0
        %2430 = vadd.xlane.f32.xlu0 %v2429
        %v2431 = vpop.xlane.xlu0 %2430
        %v2432 = vsel %vm1200, %v2362, 0.0
        %2433 = vadd.xlane.f32.xlu0 %v2432
        %v2434 = vpop.xlane.xlu0 %2433
        %v2435 = vsel %vm1200, %v2363, 0.0
        %2436 = vadd.xlane.f32.xlu0 %v2435
        %v2437 = vpop.xlane.xlu0 %2436
        %v2438 = vsel %vm1200, %v2364, 0.0
        %2439 = vadd.xlane.f32.xlu0 %v2438
        %v2440 = vpop.xlane.xlu0 %2439
        %v2441 = vsel %vm1200, %v2365, 0.0
        %2442 = vadd.xlane.f32.xlu0 %v2441
        %v2443 = vpop.xlane.xlu0 %2442
        %v2444 = vsel %vm1200, %v2366, 0.0
        %2445 = vadd.xlane.f32.xlu0 %v2444
        %v2446 = vpop.xlane.xlu0 %2445
        %v2447 = vsel %vm1200, %v2367, 0.0
        %2448 = vadd.xlane.f32.xlu0 %v2447
        %v2449 = vpop.xlane.xlu0 %2448
        %v2450 = vsel %vm1200, %v2368, 0.0
        %2451 = vadd.xlane.f32.xlu0 %v2450
        %v2452 = vpop.xlane.xlu0 %2451
        %v2453 = vsel %vm1200, %v2369, 0.0
        %2454 = vadd.xlane.f32.xlu0 %v2453
        %v2455 = vpop.xlane.xlu0 %2454
        %v2456 = vsel %vm1200, %v2370, 0.0
        %2457 = vadd.xlane.f32.xlu0 %v2456
        %v2458 = vpop.xlane.xlu0 %2457
        %v2459 = vsel %vm1200, %v2371, 0.0
        %2460 = vadd.xlane.f32.xlu0 %v2459
        %v2461 = vpop.xlane.xlu0 %2460
        %v2462 = vsel %vm1200, %v2372, 0.0
        %2463 = vadd.xlane.f32.xlu0 %v2462
        %v2464 = vpop.xlane.xlu0 %2463
        %v2465 = vsel %vm1200, %v2373, 0.0
        %2466 = vadd.xlane.f32.xlu0 %v2465
        %v2467 = vpop.xlane.xlu0 %2466
        %v2468 = vsel %vm1200, %v2374, 0.0
        %2469 = vadd.xlane.f32.xlu0 %v2468
        %v2470 = vpop.xlane.xlu0 %2469
        %v2471 = vmul.f32 %v2377, 0.17677669
        %v2472 = vmul.f32 %v2380, 0.17677669
        %v2473 = vmul.f32 %v2383, 0.17677669
        %v2474 = vmul.f32 %v2386, 0.17677669
        %v2475 = vmul.f32 %v2389, 0.17677669
        %v2476 = vmul.f32 %v2392, 0.17677669
        %v2477 = vmul.f32 %v2395, 0.17677669
        %v2478 = vmul.f32 %v2398, 0.17677669
        %v2479 = vmul.f32 %v2401, 0.17677669
        %v2480 = vmul.f32 %v2404, 0.17677669
        %v2481 = vmul.f32 %v2407, 0.17677669
        %v2482 = vmul.f32 %v2410, 0.17677669
        %v2483 = vmul.f32 %v2413, 0.17677669
        %v2484 = vmul.f32 %v2416, 0.17677669
        %v2485 = vmul.f32 %v2419, 0.17677669
        %v2486 = vmul.f32 %v2422, 0.17677669
        %v2487 = vmul.f32 %v2425, 0.17677669
        %v2488 = vmul.f32 %v2428, 0.17677669
        %v2489 = vmul.f32 %v2431, 0.17677669
        %v2490 = vmul.f32 %v2434, 0.17677669
        %v2491 = vmul.f32 %v2437, 0.17677669
        %v2492 = vmul.f32 %v2440, 0.17677669
        %v2493 = vmul.f32 %v2443, 0.17677669
        %v2494 = vmul.f32 %v2446, 0.17677669
        %v2495 = vmul.f32 %v2449, 0.17677669
        %v2496 = vmul.f32 %v2452, 0.17677669
        %v2497 = vmul.f32 %v2455, 0.17677669
        %v2498 = vmul.f32 %v2458, 0.17677669
        %v2499 = vmul.f32 %v2461, 0.17677669
        %v2500 = vmul.f32 %v2464, 0.17677669
        %v2501 = vmul.f32 %v2467, 0.17677669
        %v2502 = vmul.f32 %v2470, 0.17677669
        %v2503 = vlaneseq
        %v2504 = vshrl.u32 %v2503, 7
        %v2505 = vadd.s32 %v2504, 8
        %v2506 = vadd.s32 %v2504, 16
        %v2507 = vadd.s32 %v2504, 24
        %vm2508 = vcmp.lt.s32.totalorder %v2504, 27
        %vm2509 = vcmp.lt.s32.totalorder %v2505, 27
        %vm2510 = vcmp.lt.s32.totalorder %v2506, 27
        %vm2511 = vcmp.lt.s32.totalorder %v2507, 27
        %v2544 = vlaneseq
        %v2545 = vand.u32 %v2544, 127
        %v2546 = vlaneseq
        %v2547 = vshrl.u32 %v2546, 7
        %v2548 = vsub.s32 %v2545, %v2547
        %v2549 = vrot.slane %v2471, %v2548
        %v2550 = vlaneseq
        %v2551 = vshrl.u32 %v2550, 7
        %v2552 = vsub.s32 %v2545, %v2551
        %v2553 = vrot.slane %v2472, %v2552
        %v2554 = vlaneseq
        %v2555 = vshrl.u32 %v2554, 7
        %v2556 = vsub.s32 %v2545, %v2555
        %v2557 = vrot.slane %v2473, %v2556
        %v2558 = vlaneseq
        %v2559 = vshrl.u32 %v2558, 7
        %v2560 = vsub.s32 %v2545, %v2559
        %v2561 = vrot.slane %v2474, %v2560
        %v2562 = vlaneseq
        %v2563 = vshrl.u32 %v2562, 7
        %v2564 = vsub.s32 %v2545, %v2563
        %v2565 = vrot.slane %v2475, %v2564
        %v2566 = vlaneseq
        %v2567 = vshrl.u32 %v2566, 7
        %v2568 = vsub.s32 %v2545, %v2567
        %v2569 = vrot.slane %v2476, %v2568
        %v2570 = vlaneseq
        %v2571 = vshrl.u32 %v2570, 7
        %v2572 = vsub.s32 %v2545, %v2571
        %v2573 = vrot.slane %v2477, %v2572
        %v2574 = vlaneseq
        %v2575 = vshrl.u32 %v2574, 7
        %v2576 = vsub.s32 %v2545, %v2575
        %v2577 = vrot.slane %v2478, %v2576
        %v2578 = vlaneseq
        %v2579 = vshrl.u32 %v2578, 7
        %v2580 = vsub.s32 %v2545, %v2579
        %v2581 = vrot.slane %v2479, %v2580
        %v2582 = vlaneseq
        %v2583 = vshrl.u32 %v2582, 7
        %v2584 = vsub.s32 %v2545, %v2583
        %v2585 = vrot.slane %v2480, %v2584
        %v2586 = vlaneseq
        %v2587 = vshrl.u32 %v2586, 7
        %v2588 = vsub.s32 %v2545, %v2587
        %v2589 = vrot.slane %v2481, %v2588
        %v2590 = vlaneseq
        %v2591 = vshrl.u32 %v2590, 7
        %v2592 = vsub.s32 %v2545, %v2591
        %v2593 = vrot.slane %v2482, %v2592
        %v2594 = vlaneseq
        %v2595 = vshrl.u32 %v2594, 7
        %v2596 = vsub.s32 %v2545, %v2595
        %v2597 = vrot.slane %v2483, %v2596
        %v2598 = vlaneseq
        %v2599 = vshrl.u32 %v2598, 7
        %v2600 = vsub.s32 %v2545, %v2599
        %v2601 = vrot.slane %v2484, %v2600
        %v2602 = vlaneseq
        %v2603 = vshrl.u32 %v2602, 7
        %v2604 = vsub.s32 %v2545, %v2603
        %v2605 = vrot.slane %v2485, %v2604
        %v2606 = vlaneseq
        %v2607 = vshrl.u32 %v2606, 7
        %v2608 = vsub.s32 %v2545, %v2607
        %v2609 = vrot.slane %v2486, %v2608
        %v2610 = vlaneseq
        %v2611 = vshrl.u32 %v2610, 7
        %v2612 = vsub.s32 %v2545, %v2611
        %v2613 = vrot.slane %v2487, %v2612
        %v2614 = vlaneseq
        %v2615 = vshrl.u32 %v2614, 7
        %v2616 = vsub.s32 %v2545, %v2615
        %v2617 = vrot.slane %v2488, %v2616
        %v2618 = vlaneseq
        %v2619 = vshrl.u32 %v2618, 7
        %v2620 = vsub.s32 %v2545, %v2619
        %v2621 = vrot.slane %v2489, %v2620
        %v2622 = vlaneseq
        %v2623 = vshrl.u32 %v2622, 7
        %v2624 = vsub.s32 %v2545, %v2623
        %v2625 = vrot.slane %v2490, %v2624
        %v2626 = vlaneseq
        %v2627 = vshrl.u32 %v2626, 7
        %v2628 = vsub.s32 %v2545, %v2627
        %v2629 = vrot.slane %v2491, %v2628
        %v2630 = vlaneseq
        %v2631 = vshrl.u32 %v2630, 7
        %v2632 = vsub.s32 %v2545, %v2631
        %v2633 = vrot.slane %v2492, %v2632
        %v2634 = vlaneseq
        %v2635 = vshrl.u32 %v2634, 7
        %v2636 = vsub.s32 %v2545, %v2635
        %v2637 = vrot.slane %v2493, %v2636
        %v2638 = vlaneseq
        %v2639 = vshrl.u32 %v2638, 7
        %v2640 = vsub.s32 %v2545, %v2639
        %v2641 = vrot.slane %v2494, %v2640
        %v2642 = vlaneseq
        %v2643 = vshrl.u32 %v2642, 7
        %v2644 = vsub.s32 %v2545, %v2643
        %v2645 = vrot.slane %v2495, %v2644
        %v2646 = vlaneseq
        %v2647 = vshrl.u32 %v2646, 7
        %v2648 = vsub.s32 %v2545, %v2647
        %v2649 = vrot.slane %v2496, %v2648
        %v2650 = vlaneseq
        %v2651 = vshrl.u32 %v2650, 7
        %v2652 = vsub.s32 %v2545, %v2651
        %v2653 = vrot.slane %v2497, %v2652
        %v2654 = vlaneseq
        %v2655 = vshrl.u32 %v2654, 7
        %v2656 = vsub.s32 %v2545, %v2655
        %v2657 = vrot.slane %v2498, %v2656
        %v2658 = vlaneseq
        %v2659 = vshrl.u32 %v2658, 7
        %v2660 = vsub.s32 %v2545, %v2659
        %v2661 = vrot.slane %v2499, %v2660
        %v2662 = vlaneseq
        %v2663 = vshrl.u32 %v2662, 7
        %v2664 = vsub.s32 %v2545, %v2663
        %v2665 = vrot.slane %v2500, %v2664
        %v2666 = vlaneseq
        %v2667 = vshrl.u32 %v2666, 7
        %v2668 = vsub.s32 %v2545, %v2667
        %v2669 = vrot.slane %v2501, %v2668
        %v2670 = vlaneseq
        %v2671 = vshrl.u32 %v2670, 7
        %v2672 = vsub.s32 %v2545, %v2671
        %v2673 = vrot.slane %v2502, %v2672
        %vm2674 = vcmask 1041409
        %v2675 = vsel %vm2674, %v2553, %v2549
        %vm2676 = vcmask 1042434
        %v2677 = vsel %vm2676, %v2557, %v2675
        %vm2678 = vcmask 1043459
        %v2679 = vsel %vm2678, %v2561, %v2677
        %vm2680 = vcmask 1044484
        %v2681 = vsel %vm2680, %v2565, %v2679
        %vm2682 = vcmask 1045509
        %v2683 = vsel %vm2682, %v2569, %v2681
        %vm2684 = vcmask 1046534
        %v2685 = vsel %vm2684, %v2573, %v2683
        %vm2686 = vcmask 1047559
        %v2687 = vsel %vm2686, %v2577, %v2685
        %v2688 = vsel %vm2674, %v2585, %v2581
        %v2689 = vsel %vm2676, %v2589, %v2688
        %v2690 = vsel %vm2678, %v2593, %v2689
        %v2691 = vsel %vm2680, %v2597, %v2690
        %v2692 = vsel %vm2682, %v2601, %v2691
        %v2693 = vsel %vm2684, %v2605, %v2692
        %v2694 = vsel %vm2686, %v2609, %v2693
        %v2695 = vsel %vm2674, %v2617, %v2613
        %v2696 = vsel %vm2676, %v2621, %v2695
        %v2697 = vsel %vm2678, %v2625, %v2696
        %v2698 = vsel %vm2680, %v2629, %v2697
        %v2699 = vsel %vm2682, %v2633, %v2698
        %v2700 = vsel %vm2684, %v2637, %v2699
        %v2701 = vsel %vm2686, %v2641, %v2700
        %v2702 = vsel %vm2674, %v2649, %v2645
        %v2703 = vsel %vm2676, %v2653, %v2702
        %v2704 = vsel %vm2678, %v2657, %v2703
        %v2705 = vsel %vm2680, %v2661, %v2704
        %v2706 = vsel %vm2682, %v2665, %v2705
        %v2707 = vsel %vm2684, %v2669, %v2706
        %v2708 = vsel %vm2686, %v2673, %v2707
        %v2713 = vsel %vm2508, %v2687, -inf
        %v2714 = vsel %vm2509, %v2694, -inf
        %v2715 = vsel %vm2510, %v2701, -inf
        %v2716 = vsel %vm2511, %v2708, -inf
        %v2717 = vsel %vm844, %v2713, -inf
        %v2718 = vsel %vm844, %v2714, -inf
        %v2719 = vsel %vm844, %v2715, -inf
        %v2720 = vsel %vm844, %v2716, -inf
        %v2721 = vmax.f32 %v2717, %v2718
        %v2722 = vmax.f32 %v2719, %v2720
        %v2723 = vmax.f32 %v2721, %v2722
        %v2724 = vrot.slane %v2723, 4
        %v2725 = vmax.f32 %v2723, %v2724
        %v2726 = vrot.slane %v2725, 2
        %v2727 = vmax.f32 %v2725, %v2726
        %v2728 = vrot.slane %v2727, 1
        %v2729 = vmax.f32 %v2727, %v2728
        %v2730 = vsub.f32 %v2713, %v2729
        %v2731 = vsub.f32 %v2714, %v2729
        %v2732 = vsub.f32 %v2715, %v2729
        %v2733 = vsub.f32 %v2716, %v2729
        %v2734 = vmul.f32 %v2730, 1.442695
        %v2735 = vpow.pop %v2734
        %v2736 = vmul.f32 %v2731, 1.442695
        %v2737 = vpow.pop %v2736
        %v2738 = vmul.f32 %v2732, 1.442695
        %v2739 = vpow.pop %v2738
        %v2740 = vmul.f32 %v2733, 1.442695
        %v2741 = vpow.pop %v2740
        %v2742 = vsel %vm844, %v2735, 0.0
        %v2743 = vsel %vm844, %v2737, 0.0
        %v2744 = vadd.f32 %v2742, %v2743
        %v2745 = vsel %vm844, %v2739, 0.0
        %v2746 = vadd.f32 %v2744, %v2745
        %v2747 = vsel %vm844, %v2741, 0.0
        %v2748 = vadd.f32 %v2746, %v2747
        %v2749 = vrot.slane %v2748, 4
        %v2750 = vadd.f32 %v2748, %v2749
        %v2751 = vrot.slane %v2750, 2
        %v2752 = vadd.f32 %v2750, %v2751
        %v2753 = vrot.slane %v2752, 1
        %v2754 = vadd.f32 %v2752, %v2753
        %v2755 = vrcp.pop %v2754
        %v2756 = vmul.f32 %v2735, %v2755
        %v2757 = vmul.f32 %v2737, %v2755
        %v2758 = vmul.f32 %v2739, %v2755
        %v2759 = vmul.f32 %v2741, %v2755
        %v2764 = vcombine.high %v2756, %v2756
        %v2766 = vunpack.c.l.s4 1966171168
        %v2767 = vunpack.c.0.s8 %v2766
        %v2768 = vlaneseq
        %v2769 = vshrl.u32 %v2768, 7
        %v2770 = vsub.s32 %v2767, %v2769
        %v2771 = vrot.slane %v2756, %v2770
        %v2773 = vunpack.c.l.s4 1966171168
        %v2774 = vunpack.c.0.s8 %v2773
        %v2775 = vlaneseq
        %v2776 = vshrl.u32 %v2775, 7
        %v2777 = vsub.s32 %v2774, %v2776
        %v2778 = vrot.slane %v2764, %v2777
        %v2779 = vcombine.high %v2771, %v2771
        %v2780 = vcombine.high %v2778, %v2778
        %v2782 = vunpack.c.l.s4 1966171168
        %v2783 = vunpack.c.0.s8 %v2782
        %v2784 = vlaneseq
        %v2785 = vshrl.u32 %v2784, 7
        %v2786 = vsub.s32 %v2783, %v2785
        %v2787 = vrot.slane %v2771, %v2786
        %v2789 = vunpack.c.l.s4 1966171168
        %v2790 = vunpack.c.0.s8 %v2789
        %v2791 = vlaneseq
        %v2792 = vshrl.u32 %v2791, 7
        %v2793 = vsub.s32 %v2790, %v2792
        %v2794 = vrot.slane %v2778, %v2793
        %v2796 = vunpack.c.l.s4 1966171168
        %v2797 = vunpack.c.0.s8 %v2796
        %v2798 = vlaneseq
        %v2799 = vshrl.u32 %v2798, 7
        %v2800 = vsub.s32 %v2797, %v2799
        %v2801 = vrot.slane %v2779, %v2800
        %v2803 = vunpack.c.l.s4 1966171168
        %v2804 = vunpack.c.0.s8 %v2803
        %v2805 = vlaneseq
        %v2806 = vshrl.u32 %v2805, 7
        %v2807 = vsub.s32 %v2804, %v2806
        %v2808 = vrot.slane %v2780, %v2807
        %v2809 = vcombine.high %v2787, %v2787
        %v2810 = vcombine.high %v2794, %v2794
        %v2811 = vcombine.high %v2801, %v2801
        %v2812 = vcombine.high %v2808, %v2808
        %v2813 = vcombine.high %v2757, %v2757
        %v2815 = vunpack.c.l.s4 1966171168
        %v2816 = vunpack.c.0.s8 %v2815
        %v2817 = vlaneseq
        %v2818 = vshrl.u32 %v2817, 7
        %v2819 = vsub.s32 %v2816, %v2818
        %v2820 = vrot.slane %v2757, %v2819
        %v2822 = vunpack.c.l.s4 1966171168
        %v2823 = vunpack.c.0.s8 %v2822
        %v2824 = vlaneseq
        %v2825 = vshrl.u32 %v2824, 7
        %v2826 = vsub.s32 %v2823, %v2825
        %v2827 = vrot.slane %v2813, %v2826
        %v2828 = vcombine.high %v2820, %v2820
        %v2829 = vcombine.high %v2827, %v2827
        %v2831 = vunpack.c.l.s4 1966171168
        %v2832 = vunpack.c.0.s8 %v2831
        %v2833 = vlaneseq
        %v2834 = vshrl.u32 %v2833, 7
        %v2835 = vsub.s32 %v2832, %v2834
        %v2836 = vrot.slane %v2820, %v2835
        %v2838 = vunpack.c.l.s4 1966171168
        %v2839 = vunpack.c.0.s8 %v2838
        %v2840 = vlaneseq
        %v2841 = vshrl.u32 %v2840, 7
        %v2842 = vsub.s32 %v2839, %v2841
        %v2843 = vrot.slane %v2827, %v2842
        %v2845 = vunpack.c.l.s4 1966171168
        %v2846 = vunpack.c.0.s8 %v2845
        %v2847 = vlaneseq
        %v2848 = vshrl.u32 %v2847, 7
        %v2849 = vsub.s32 %v2846, %v2848
        %v2850 = vrot.slane %v2828, %v2849
        %v2852 = vunpack.c.l.s4 1966171168
        %v2853 = vunpack.c.0.s8 %v2852
        %v2854 = vlaneseq
        %v2855 = vshrl.u32 %v2854, 7
        %v2856 = vsub.s32 %v2853, %v2855
        %v2857 = vrot.slane %v2829, %v2856
        %v2858 = vcombine.high %v2836, %v2836
        %v2859 = vcombine.high %v2843, %v2843
        %v2860 = vcombine.high %v2850, %v2850
        %v2861 = vcombine.high %v2857, %v2857
        %v2862 = vcombine.high %v2758, %v2758
        %v2864 = vunpack.c.l.s4 1966171168
        %v2865 = vunpack.c.0.s8 %v2864
        %v2866 = vlaneseq
        %v2867 = vshrl.u32 %v2866, 7
        %v2868 = vsub.s32 %v2865, %v2867
        %v2869 = vrot.slane %v2758, %v2868
        %v2871 = vunpack.c.l.s4 1966171168
        %v2872 = vunpack.c.0.s8 %v2871
        %v2873 = vlaneseq
        %v2874 = vshrl.u32 %v2873, 7
        %v2875 = vsub.s32 %v2872, %v2874
        %v2876 = vrot.slane %v2862, %v2875
        %v2877 = vcombine.high %v2869, %v2869
        %v2878 = vcombine.high %v2876, %v2876
        %v2880 = vunpack.c.l.s4 1966171168
        %v2881 = vunpack.c.0.s8 %v2880
        %v2882 = vlaneseq
        %v2883 = vshrl.u32 %v2882, 7
        %v2884 = vsub.s32 %v2881, %v2883
        %v2885 = vrot.slane %v2869, %v2884
        %v2887 = vunpack.c.l.s4 1966171168
        %v2888 = vunpack.c.0.s8 %v2887
        %v2889 = vlaneseq
        %v2890 = vshrl.u32 %v2889, 7
        %v2891 = vsub.s32 %v2888, %v2890
        %v2892 = vrot.slane %v2876, %v2891
        %v2894 = vunpack.c.l.s4 1966171168
        %v2895 = vunpack.c.0.s8 %v2894
        %v2896 = vlaneseq
        %v2897 = vshrl.u32 %v2896, 7
        %v2898 = vsub.s32 %v2895, %v2897
        %v2899 = vrot.slane %v2877, %v2898
        %v2901 = vunpack.c.l.s4 1966171168
        %v2902 = vunpack.c.0.s8 %v2901
        %v2903 = vlaneseq
        %v2904 = vshrl.u32 %v2903, 7
        %v2905 = vsub.s32 %v2902, %v2904
        %v2906 = vrot.slane %v2878, %v2905
        %v2907 = vcombine.high %v2885, %v2885
        %v2908 = vcombine.high %v2892, %v2892
        %v2909 = vcombine.high %v2899, %v2899
        %v2910 = vcombine.high %v2906, %v2906
        %v2911 = vcombine.high %v2759, %v2759
        %v2913 = vunpack.c.l.s4 1966171168
        %v2914 = vunpack.c.0.s8 %v2913
        %v2915 = vlaneseq
        %v2916 = vshrl.u32 %v2915, 7
        %v2917 = vsub.s32 %v2914, %v2916
        %v2918 = vrot.slane %v2759, %v2917
        %v2920 = vunpack.c.l.s4 1966171168
        %v2921 = vunpack.c.0.s8 %v2920
        %v2922 = vlaneseq
        %v2923 = vshrl.u32 %v2922, 7
        %v2924 = vsub.s32 %v2921, %v2923
        %v2925 = vrot.slane %v2911, %v2924
        %v2926 = vcombine.high %v2918, %v2918
        %v2927 = vcombine.high %v2925, %v2925
        %v2929 = vunpack.c.l.s4 1966171168
        %v2930 = vunpack.c.0.s8 %v2929
        %v2931 = vlaneseq
        %v2932 = vshrl.u32 %v2931, 7
        %v2933 = vsub.s32 %v2930, %v2932
        %v2934 = vrot.slane %v2918, %v2933
        %v2936 = vunpack.c.l.s4 1966171168
        %v2937 = vunpack.c.0.s8 %v2936
        %v2938 = vlaneseq
        %v2939 = vshrl.u32 %v2938, 7
        %v2940 = vsub.s32 %v2937, %v2939
        %v2941 = vrot.slane %v2925, %v2940
        %v2943 = vunpack.c.l.s4 1966171168
        %v2944 = vunpack.c.0.s8 %v2943
        %v2945 = vlaneseq
        %v2946 = vshrl.u32 %v2945, 7
        %v2947 = vsub.s32 %v2944, %v2946
        %v2948 = vrot.slane %v2926, %v2947
        %v2950 = vunpack.c.l.s4 1966171168
        %v2951 = vunpack.c.0.s8 %v2950
        %v2952 = vlaneseq
        %v2953 = vshrl.u32 %v2952, 7
        %v2954 = vsub.s32 %v2951, %v2953
        %v2955 = vrot.slane %v2927, %v2954
        %v2956 = vcombine.high %v2934, %v2934
        %v2957 = vcombine.high %v2941, %v2941
        %v2958 = vcombine.high %v2948, %v2948
        %v2959 = vcombine.high %v2955, %v2955
        %v2960 = vlaneseq
        %v2961 = vshrl.u32 %v2960, 7
        %v2962 = vsub.s32 0, %v2961
        %v2963 = vrot.slane %v2787, %v2962
        %v2964 = vlaneseq
        %v2965 = vshrl.u32 %v2964, 7
        %v2966 = vsub.s32 0, %v2965
        %v2967 = vrot.slane %v2801, %v2966
        %v2968 = vlaneseq
        %v2969 = vshrl.u32 %v2968, 7
        %v2970 = vsub.s32 0, %v2969
        %v2971 = vrot.slane %v2809, %v2970
        %v2972 = vlaneseq
        %v2973 = vshrl.u32 %v2972, 7
        %v2974 = vsub.s32 0, %v2973
        %v2975 = vrot.slane %v2811, %v2974
        %v2976 = vlaneseq
        %v2977 = vshrl.u32 %v2976, 7
        %v2978 = vsub.s32 0, %v2977
        %v2979 = vrot.slane %v2794, %v2978
        %v2980 = vlaneseq
        %v2981 = vshrl.u32 %v2980, 7
        %v2982 = vsub.s32 0, %v2981
        %v2983 = vrot.slane %v2808, %v2982
        %v2984 = vlaneseq
        %v2985 = vshrl.u32 %v2984, 7
        %v2986 = vsub.s32 0, %v2985
        %v2987 = vrot.slane %v2810, %v2986
        %v2988 = vlaneseq
        %v2989 = vshrl.u32 %v2988, 7
        %v2990 = vsub.s32 0, %v2989
        %v2991 = vrot.slane %v2812, %v2990
        %v2992 = vlaneseq
        %v2993 = vshrl.u32 %v2992, 7
        %v2994 = vsub.s32 0, %v2993
        %v2995 = vrot.slane %v2836, %v2994
        %v2996 = vlaneseq
        %v2997 = vshrl.u32 %v2996, 7
        %v2998 = vsub.s32 0, %v2997
        %v2999 = vrot.slane %v2850, %v2998
        %v3000 = vlaneseq
        %v3001 = vshrl.u32 %v3000, 7
        %v3002 = vsub.s32 0, %v3001
        %v3003 = vrot.slane %v2858, %v3002
        %v3004 = vlaneseq
        %v3005 = vshrl.u32 %v3004, 7
        %v3006 = vsub.s32 0, %v3005
        %v3007 = vrot.slane %v2860, %v3006
        %v3008 = vlaneseq
        %v3009 = vshrl.u32 %v3008, 7
        %v3010 = vsub.s32 0, %v3009
        %v3011 = vrot.slane %v2843, %v3010
        %v3012 = vlaneseq
        %v3013 = vshrl.u32 %v3012, 7
        %v3014 = vsub.s32 0, %v3013
        %v3015 = vrot.slane %v2857, %v3014
        %v3016 = vlaneseq
        %v3017 = vshrl.u32 %v3016, 7
        %v3018 = vsub.s32 0, %v3017
        %v3019 = vrot.slane %v2859, %v3018
        %v3020 = vlaneseq
        %v3021 = vshrl.u32 %v3020, 7
        %v3022 = vsub.s32 0, %v3021
        %v3023 = vrot.slane %v2861, %v3022
        %v3024 = vlaneseq
        %v3025 = vshrl.u32 %v3024, 7
        %v3026 = vsub.s32 0, %v3025
        %v3027 = vrot.slane %v2885, %v3026
        %v3028 = vlaneseq
        %v3029 = vshrl.u32 %v3028, 7
        %v3030 = vsub.s32 0, %v3029
        %v3031 = vrot.slane %v2899, %v3030
        %v3032 = vlaneseq
        %v3033 = vshrl.u32 %v3032, 7
        %v3034 = vsub.s32 0, %v3033
        %v3035 = vrot.slane %v2907, %v3034
        %v3036 = vlaneseq
        %v3037 = vshrl.u32 %v3036, 7
        %v3038 = vsub.s32 0, %v3037
        %v3039 = vrot.slane %v2909, %v3038
        %v3040 = vlaneseq
        %v3041 = vshrl.u32 %v3040, 7
        %v3042 = vsub.s32 0, %v3041
        %v3043 = vrot.slane %v2892, %v3042
        %v3044 = vlaneseq
        %v3045 = vshrl.u32 %v3044, 7
        %v3046 = vsub.s32 0, %v3045
        %v3047 = vrot.slane %v2906, %v3046
        %v3048 = vlaneseq
        %v3049 = vshrl.u32 %v3048, 7
        %v3050 = vsub.s32 0, %v3049
        %v3051 = vrot.slane %v2908, %v3050
        %v3052 = vlaneseq
        %v3053 = vshrl.u32 %v3052, 7
        %v3054 = vsub.s32 0, %v3053
        %v3055 = vrot.slane %v2910, %v3054
        %v3056 = vlaneseq
        %v3057 = vshrl.u32 %v3056, 7
        %v3058 = vsub.s32 0, %v3057
        %v3059 = vrot.slane %v2934, %v3058
        %v3060 = vlaneseq
        %v3061 = vshrl.u32 %v3060, 7
        %v3062 = vsub.s32 0, %v3061
        %v3063 = vrot.slane %v2948, %v3062
        %v3064 = vlaneseq
        %v3065 = vshrl.u32 %v3064, 7
        %v3066 = vsub.s32 0, %v3065
        %v3067 = vrot.slane %v2956, %v3066
        %v3068 = vlaneseq
        %v3069 = vshrl.u32 %v3068, 7
        %v3070 = vsub.s32 0, %v3069
        %v3071 = vrot.slane %v2958, %v3070
        %v3072 = vlaneseq
        %v3073 = vshrl.u32 %v3072, 7
        %v3074 = vsub.s32 0, %v3073
        %v3075 = vrot.slane %v2941, %v3074
        %v3076 = vlaneseq
        %v3077 = vshrl.u32 %v3076, 7
        %v3078 = vsub.s32 0, %v3077
        %v3079 = vrot.slane %v2955, %v3078
        %v3080 = vlaneseq
        %v3081 = vshrl.u32 %v3080, 7
        %v3082 = vsub.s32 0, %v3081
        %v3083 = vrot.slane %v2957, %v3082
        %v3084 = vlaneseq
        %v3085 = vshrl.u32 %v3084, 7
        %v3086 = vsub.s32 0, %v3085
        %v3087 = vrot.slane %v2959, %v3086
        %v3120 = vadd.s32 %v2504, 32
        %v3121 = vadd.s32 %v2504, 40
        %v3122 = vadd.s32 %v2504, 48
        %v3123 = vadd.s32 %v2504, 56
        %v3124 = vadd.s32 %v2504, 64
        %v3125 = vadd.s32 %v2504, 72
        %v3126 = vadd.s32 %v2504, 80
        %v3127 = vadd.s32 %v2504, 88
        %v3128 = vadd.s32 %v2504, 96
        %v3129 = vadd.s32 %v2504, 104
        %v3130 = vadd.s32 %v2504, 112
        %v3131 = vadd.s32 %v2504, 120
        %v3132 = vadd.s32 %v2504, 128
        %v3133 = vadd.s32 %v2504, 136
        %v3134 = vadd.s32 %v2504, 144
        %v3135 = vadd.s32 %v2504, 152
        %v3136 = vadd.s32 %v2504, 160
        %v3137 = vadd.s32 %v2504, 168
        %v3138 = vadd.s32 %v2504, 176
        %v3139 = vadd.s32 %v2504, 184
        %v3140 = vadd.s32 %v2504, 192
        %v3141 = vadd.s32 %v2504, 200
        %v3142 = vadd.s32 %v2504, 208
        %v3143 = vadd.s32 %v2504, 216
        %v3144 = vadd.s32 %v2504, 224
        %v3145 = vadd.s32 %v2504, 232
        %v3146 = vadd.s32 %v2504, 240
        %v3147 = vadd.s32 %v2504, 248
        %v3148 = vand.u32 %v2504, 7
        %v3149 = vand.u32 %v2505, 7
        %v3150 = vand.u32 %v2506, 7
        %v3151 = vand.u32 %v2507, 7
        %v3152 = vand.u32 %v3120, 7
        %v3153 = vand.u32 %v3121, 7
        %v3154 = vand.u32 %v3122, 7
        %v3155 = vand.u32 %v3123, 7
        %v3156 = vand.u32 %v3124, 7
        %v3157 = vand.u32 %v3125, 7
        %v3158 = vand.u32 %v3126, 7
        %v3159 = vand.u32 %v3127, 7
        %v3160 = vand.u32 %v3128, 7
        %v3161 = vand.u32 %v3129, 7
        %v3162 = vand.u32 %v3130, 7
        %v3163 = vand.u32 %v3131, 7
        %v3164 = vand.u32 %v3132, 7
        %v3165 = vand.u32 %v3133, 7
        %v3166 = vand.u32 %v3134, 7
        %v3167 = vand.u32 %v3135, 7
        %v3168 = vand.u32 %v3136, 7
        %v3169 = vand.u32 %v3137, 7
        %v3170 = vand.u32 %v3138, 7
        %v3171 = vand.u32 %v3139, 7
        %v3172 = vand.u32 %v3140, 7
        %v3173 = vand.u32 %v3141, 7
        %v3174 = vand.u32 %v3142, 7
        %v3175 = vand.u32 %v3143, 7
        %v3176 = vand.u32 %v3144, 7
        %v3177 = vand.u32 %v3145, 7
        %v3178 = vand.u32 %v3146, 7
        %v3179 = vand.u32 %v3147, 7
        %vm3180 = vcmp.eq.s32.totalorder %v3148, %v2545
        %vm3181 = vcmp.eq.s32.totalorder %v3149, %v2545
        %vm3182 = vcmp.eq.s32.totalorder %v3150, %v2545
        %vm3183 = vcmp.eq.s32.totalorder %v3151, %v2545
        %vm3184 = vcmp.eq.s32.totalorder %v3152, %v2545
        %vm3185 = vcmp.eq.s32.totalorder %v3153, %v2545
        %vm3186 = vcmp.eq.s32.totalorder %v3154, %v2545
        %vm3187 = vcmp.eq.s32.totalorder %v3155, %v2545
        %vm3188 = vcmp.eq.s32.totalorder %v3156, %v2545
        %vm3189 = vcmp.eq.s32.totalorder %v3157, %v2545
        %vm3190 = vcmp.eq.s32.totalorder %v3158, %v2545
        %vm3191 = vcmp.eq.s32.totalorder %v3159, %v2545
        %vm3192 = vcmp.eq.s32.totalorder %v3160, %v2545
        %vm3193 = vcmp.eq.s32.totalorder %v3161, %v2545
        %vm3194 = vcmp.eq.s32.totalorder %v3162, %v2545
        %vm3195 = vcmp.eq.s32.totalorder %v3163, %v2545
        %vm3196 = vcmp.eq.s32.totalorder %v3164, %v2545
        %vm3197 = vcmp.eq.s32.totalorder %v3165, %v2545
        %vm3198 = vcmp.eq.s32.totalorder %v3166, %v2545
        %vm3199 = vcmp.eq.s32.totalorder %v3167, %v2545
        %vm3200 = vcmp.eq.s32.totalorder %v3168, %v2545
        %vm3201 = vcmp.eq.s32.totalorder %v3169, %v2545
        %vm3202 = vcmp.eq.s32.totalorder %v3170, %v2545
        %vm3203 = vcmp.eq.s32.totalorder %v3171, %v2545
        %vm3204 = vcmp.eq.s32.totalorder %v3172, %v2545
        %vm3205 = vcmp.eq.s32.totalorder %v3173, %v2545
        %vm3206 = vcmp.eq.s32.totalorder %v3174, %v2545
        %vm3207 = vcmp.eq.s32.totalorder %v3175, %v2545
        %vm3208 = vcmp.eq.s32.totalorder %v3176, %v2545
        %vm3209 = vcmp.eq.s32.totalorder %v3177, %v2545
        %vm3210 = vcmp.eq.s32.totalorder %v3178, %v2545
        %vm3211 = vcmp.eq.s32.totalorder %v3179, %v2545
        %v3212 = vsel %vm3180, %v2963, 0.0
        %v3213 = vsel %vm3181, %v2967, 0.0
        %v3214 = vsel %vm3182, %v2971, 0.0
        %v3215 = vsel %vm3183, %v2975, 0.0
        %v3216 = vsel %vm3184, %v2979, 0.0
        %v3217 = vsel %vm3185, %v2983, 0.0
        %v3218 = vsel %vm3186, %v2987, 0.0
        %v3219 = vsel %vm3187, %v2991, 0.0
        %v3220 = vsel %vm3188, %v2995, 0.0
        %v3221 = vsel %vm3189, %v2999, 0.0
        %v3222 = vsel %vm3190, %v3003, 0.0
        %v3223 = vsel %vm3191, %v3007, 0.0
        %v3224 = vsel %vm3192, %v3011, 0.0
        %v3225 = vsel %vm3193, %v3015, 0.0
        %v3226 = vsel %vm3194, %v3019, 0.0
        %v3227 = vsel %vm3195, %v3023, 0.0
        %v3228 = vsel %vm3196, %v3027, 0.0
        %v3229 = vsel %vm3197, %v3031, 0.0
        %v3230 = vsel %vm3198, %v3035, 0.0
        %v3231 = vsel %vm3199, %v3039, 0.0
        %v3232 = vsel %vm3200, %v3043, 0.0
        %v3233 = vsel %vm3201, %v3047, 0.0
        %v3234 = vsel %vm3202, %v3051, 0.0
        %v3235 = vsel %vm3203, %v3055, 0.0
        %v3236 = vsel %vm3204, %v3059, 0.0
        %v3237 = vsel %vm3205, %v3063, 0.0
        %v3238 = vsel %vm3206, %v3067, 0.0
        %v3239 = vsel %vm3207, %v3071, 0.0
        %v3240 = vsel %vm3208, %v3075, 0.0
        %v3241 = vsel %vm3209, %v3079, 0.0
        %v3242 = vsel %vm3210, %v3083, 0.0
        %v3243 = vsel %vm3211, %v3087, 0.0
        %3244 = vxpose.xlu0.b32.start [1/16] %v3212, 128
        %3245 = vxpose.xlu0.b32.cont [2/16] %v3213, 128
        %3246 = vxpose.xlu0.b32.cont [3/16] %v3214, 128
        %3247 = vxpose.xlu0.b32.cont [4/16] %v3215, 128
        %3248 = vxpose.xlu0.b32.cont [5/16] %v3216, 128
        %3249 = vxpose.xlu0.b32.cont [6/16] %v3217, 128
        %3250 = vxpose.xlu0.b32.cont [7/16] %v3218, 128
        %3251 = vxpose.xlu0.b32.cont [8/16] %v3219, 128
        %3252 = vxpose.xlu0.b32.cont [9/16] %v3220, 128
        %3253 = vxpose.xlu0.b32.cont [10/16] %v3221, 128
        %3254 = vxpose.xlu0.b32.cont [11/16] %v3222, 128
        %3255 = vxpose.xlu0.b32.cont [12/16] %v3223, 128
        %3256 = vxpose.xlu0.b32.cont [13/16] %v3224, 128
        %3257 = vxpose.xlu0.b32.cont [14/16] %v3225, 128
        %3258 = vxpose.xlu0.b32.cont [15/16] %v3226, 128
        %3259 = vxpose.xlu0.b32.end [16/16] %v3227, 128
        %v3260 = vpop.trf.xlu0
        %v3261 = vpop.trf.xlu0
        %v3262 = vpop.trf.xlu0
        %v3263 = vpop.trf.xlu0
        %v3264 = vpop.trf.xlu0
        %v3265 = vpop.trf.xlu0
        %v3266 = vpop.trf.xlu0
        %v3267 = vpop.trf.xlu0
        %v3268 = vpop.trf.xlu0
        %v3269 = vpop.trf.xlu0
        %v3270 = vpop.trf.xlu0
        %v3271 = vpop.trf.xlu0
        %v3272 = vpop.trf.xlu0
        %v3273 = vpop.trf.xlu0
        %v3274 = vpop.trf.xlu0
        %v3275 = vpop.trf.xlu0
        %3276 = vxpose.xlu0.b32.start [1/16] %v3228, 128
        %3277 = vxpose.xlu0.b32.cont [2/16] %v3229, 128
        %3278 = vxpose.xlu0.b32.cont [3/16] %v3230, 128
        %3279 = vxpose.xlu0.b32.cont [4/16] %v3231, 128
        %3280 = vxpose.xlu0.b32.cont [5/16] %v3232, 128
        %3281 = vxpose.xlu0.b32.cont [6/16] %v3233, 128
        %3282 = vxpose.xlu0.b32.cont [7/16] %v3234, 128
        %3283 = vxpose.xlu0.b32.cont [8/16] %v3235, 128
        %3284 = vxpose.xlu0.b32.cont [9/16] %v3236, 128
        %3285 = vxpose.xlu0.b32.cont [10/16] %v3237, 128
        %3286 = vxpose.xlu0.b32.cont [11/16] %v3238, 128
        %3287 = vxpose.xlu0.b32.cont [12/16] %v3239, 128
        %3288 = vxpose.xlu0.b32.cont [13/16] %v3240, 128
        %3289 = vxpose.xlu0.b32.cont [14/16] %v3241, 128
        %3290 = vxpose.xlu0.b32.cont [15/16] %v3242, 128
        %3291 = vxpose.xlu0.b32.end [16/16] %v3243, 128
        %v3292 = vpop.trf.xlu0
        %v3293 = vpop.trf.xlu0
        %v3294 = vpop.trf.xlu0
        %v3295 = vpop.trf.xlu0
        %v3296 = vpop.trf.xlu0
        %v3297 = vpop.trf.xlu0
        %v3298 = vpop.trf.xlu0
        %v3299 = vpop.trf.xlu0
        %v3300 = vpop.trf.xlu0
        %v3301 = vpop.trf.xlu0
        %v3302 = vpop.trf.xlu0
        %v3303 = vpop.trf.xlu0
        %v3304 = vpop.trf.xlu0
        %v3305 = vpop.trf.xlu0
        %v3306 = vpop.trf.xlu0
        %v3307 = vpop.trf.xlu0
        %3308 = vmatprep.subr.mxu0 0.0
        %3309 = vmatpush1.msra.mxu0 %v2104
        %3310 = vmatprep.subr.mxu0 0.0
        %3311 = vmatpush1.msra.mxu0 %v2109
        %3312 = vmatprep.subr.mxu0 0.0
        %3313 = vmatpush1.msra.mxu0 %v2114
        %3314 = vmatprep.subr.mxu0 0.0
        %3315 = vmatpush1.msra.mxu0 %v2119
        %3316 = vmatprep.subr.mxu0 0.0
        %3317 = vmatpush1.msra.mxu0 %v2124
        %3318 = vmatprep.subr.mxu0 0.0
        %3319 = vmatpush1.msra.mxu0 %v2129
        %3320 = vmatprep.subr.mxu0 0.0
        %3321 = vmatpush1.msra.mxu0 %v2134
        %3322 = vmatprep.subr.mxu0 0.0
        %3323 = vmatpush1.msra.mxu0 %v2139
        %3324 = vmatprep.subr.mxu0 0.0
        %3325 = vmatpush1.msra.mxu0 %v2144
        %3326 = vmatprep.subr.mxu0 0.0
        %3327 = vmatpush1.msra.mxu0 %v2149
        %3328 = vmatprep.subr.mxu0 0.0
        %3329 = vmatpush1.msra.mxu0 %v2154
        %3330 = vmatprep.subr.mxu0 0.0
        %3331 = vmatpush1.msra.mxu0 %v2159
        %3332 = vmatprep.subr.mxu0 0.0
        %3333 = vmatpush1.msra.mxu0 %v2164
        %3334 = vmatprep.subr.mxu0 0.0
        %3335 = vmatpush1.msra.mxu0 %v2169
        %3336 = vmatprep.subr.mxu0 0.0
        %3337 = vmatpush1.msra.mxu0 %v2174
        %3338 = vmatprep.subr.mxu0 0.0
        %3339 = vmatpush1.msra.mxu0 %v2179
        %3340 = vmatprep.subr.mxu0 0.0
        %3341 = vmatpush1.msra.mxu0 %v2184
        %3342 = vmatprep.subr.mxu0 0.0
        %3343 = vmatpush1.msra.mxu0 %v2189
        %3344 = vmatprep.subr.mxu0 0.0
        %3345 = vmatpush1.msra.mxu0 %v2194
        %3346 = vmatprep.subr.mxu0 0.0
        %3347 = vmatpush1.msra.mxu0 %v2199
        %3348 = vmatprep.subr.mxu0 0.0
        %3349 = vmatpush1.msra.mxu0 %v2204
        %3350 = vmatprep.subr.mxu0 0.0
        %3351 = vmatpush1.msra.mxu0 %v2209
        %3352 = vmatprep.subr.mxu0 0.0
        %3353 = vmatpush1.msra.mxu0 %v2214
        %3354 = vmatprep.subr.mxu0 0.0
        %3355 = vmatpush1.msra.mxu0 %v2219
        %3356 = vmatprep.subr.mxu0 0.0
        %3357 = vmatpush1.msra.mxu0 %v2224
        %3358 = vmatprep.subr.mxu0 0.0
        %3359 = vmatpush1.msra.mxu0 %v2229
        %3360 = vmatprep.subr.mxu0 0.0
        %3361 = vmatpush1.msra.mxu0 %v2234
        %3362 = vmatprep.subr.mxu0 0.0
        %3363 = vmatpush1.msra.mxu0 %v2239
        %3364 = vmatprep.subr.mxu0 0.0
        %3365 = vmatpush1.msra.mxu0 %v2244
        %3366 = vmatprep.subr.mxu0 0.0
        %3367 = vmatpush1.msra.mxu0 %v2249
        %3368 = vmatprep.subr.mxu0 0.0
        %3369 = vmatpush1.msra.mxu0 %v2254
        %3370 = vmatprep.subr.mxu0 0.0
        %3371 = vmatpush1.msra.mxu0 %v2259
        %3372 = vmatprep.mubr.f32.mxu0 %v3292
        %3373 = vmatmul.mubr.f32.gmra.mrb[0].mxu0 %v3260
        %v3374 = vpop.f32.mrb[0].mxu0
        %v3375 = vadd.f32 0.0, %v3374
        %v3376 = vpop.f32.mrb[0].mxu0
        %3377 = vdwg.mxu0
        %v3378 = vld [vmem:[%s12] sm:$0xff]
        %v3379 = vld [vmem:[%s12 + $0x8] sm:$0xff]
        %v3380 = vld [vmem:[%s12 + $0x10] sm:$0xff]
        %v3381 = vld [vmem:[%s12 + $0x18] sm:$0xff]
        %v3382 = vld [vmem:[%s13] sm:$0x1]
        %v3384 = vlaneseq
        %v3385 = vshrl.u32 %v3384, 7
        %v3386 = vsub.s32 0, %v3385
        %v3387 = vrot.slane %v3382, %v3386
        %v3390 = vsel %vm1200, %v3375, 0
        %3392 = vmatprep.subr.mxu0 0.0
        %3393 = vmatpush1.msra.mxu0 %v3378
        %3394 = vmatprep.subr.mxu0 0.0
        %3395 = vmatpush1.msra.mxu0 %v3379
        %3396 = vmatprep.subr.mxu0 0.0
        %3397 = vmatpush1.msra.mxu0 %v3380
        %3398 = vmatprep.subr.mxu0 0.0
        %3399 = vmatpush1.msra.mxu0 %v3381
        %3400 = vmatprep.subr.mxu0 0.0
        %3401 = vmatpush1.msra.mxu0 0.0
        %3402 = vmatprep.subr.mxu0 0.0
        %3403 = vmatpush1.msra.mxu0 0.0
        %3404 = vmatprep.subr.mxu0 0.0
        %3405 = vmatpush1.msra.mxu0 0.0
        %3406 = vmatprep.subr.mxu0 0.0
        %3407 = vmatpush1.msra.mxu0 0.0
        %3408 = vmatprep.subr.mxu0 0.0
        %3409 = vmatpush1.msra.mxu0 0.0
        %3410 = vmatprep.subr.mxu0 0.0
        %3411 = vmatpush1.msra.mxu0 0.0
        %3412 = vmatprep.subr.mxu0 0.0
        %3413 = vmatpush1.msra.mxu0 0.0
        %3414 = vmatprep.subr.mxu0 0.0
        %3415 = vmatpush1.msra.mxu0 0.0
        %3416 = vmatprep.subr.mxu0 0.0
        %3417 = vmatpush1.msra.mxu0 0.0
        %3418 = vmatprep.subr.mxu0 0.0
        %3419 = vmatpush1.msra.mxu0 0.0
        %3420 = vmatprep.subr.mxu0 0.0
        %3421 = vmatpush1.msra.mxu0 0.0
        %3422 = vmatprep.subr.mxu0 0.0
        %3423 = vmatpush1.msra.mxu0 0.0
        %3424 = vmatprep.subr.mxu0 0.0
        %3425 = vmatpush1.msra.mxu0 0.0
        %3426 = vmatprep.subr.mxu0 0.0
        %3427 = vmatpush1.msra.mxu0 0.0
        %3428 = vmatprep.subr.mxu0 0.0
        %3429 = vmatpush1.msra.mxu0 0.0
        %3430 = vmatprep.subr.mxu0 0.0
        %3431 = vmatpush1.msra.mxu0 0.0
        %3432 = vmatprep.subr.mxu0 0.0
        %3433 = vmatpush1.msra.mxu0 0.0
        %3434 = vmatprep.subr.mxu0 0.0
        %3435 = vmatpush1.msra.mxu0 0.0
        %3436 = vmatprep.subr.mxu0 0.0
        %3437 = vmatpush1.msra.mxu0 0.0
        %3438 = vmatprep.subr.mxu0 0.0
        %3439 = vmatpush1.msra.mxu0 0.0
        %3440 = vmatprep.subr.mxu0 0.0
        %3441 = vmatpush1.msra.mxu0 0.0
        %3442 = vmatprep.subr.mxu0 0.0
        %3443 = vmatpush1.msra.mxu0 0.0
        %3444 = vmatprep.subr.mxu0 0.0
        %3445 = vmatpush1.msra.mxu0 0.0
        %3446 = vmatprep.subr.mxu0 0.0
        %3447 = vmatpush1.msra.mxu0 0.0
        %3448 = vmatprep.subr.mxu0 0.0
        %3449 = vmatpush1.msra.mxu0 0.0
        %3450 = vmatprep.subr.mxu0 0.0
        %3451 = vmatpush1.msra.mxu0 0.0
        %3452 = vmatprep.subr.mxu0 0.0
        %3453 = vmatpush1.msra.mxu0 0.0
        %3454 = vmatprep.subr.mxu0 0.0
        %3455 = vmatpush1.msra.mxu0 0.0
        %3456 = vmatprep.mubr.f32.mxu0 0.0
        %3457 = vmatmul.mubr.f32.gmra.mrb[0].mxu0 %v3390
        %v3458 = vpop.f32.mrb[0].mxu0
        %v3459 = vadd.f32 %v3387, %v3458
        %v3460 = vpop.f32.mrb[0].mxu0
        %3461 = vdwg.mxu0
        %v3462 = vadd.f32 %v1166, %v3459
        %v3463 = vld [vmem:[%s14] sm:$0x1]
        %v3464 = vld [vmem:[%s15] sm:$0x1]
        %v3465 = vsel %vm1200, %v3462, 0.0
        %3466 = vadd.xlane.f32.xlu0 %v3465
        %v3467 = vpop.xlane.xlu0 %3466
        %v3468 = vmul.f32 %v3467, %v1297
        %v3469 = vsub.f32 %v3462, %v3468
        %v3470 = vmul.f32 %v3469, %v3469
        %v3471 = vsel %vm1200, %v3470, 0.0
        %3472 = vadd.xlane.f32.xlu0 %v3471
        %v3473 = vpop.xlane.xlu0 %3472
        %v3474 = vmul.f32 %v3473, %v1297
        %v3475 = vadd.f32 %v3474, 1e-05
        %v3476 = vrsqrt.pop %v3475
        %v3477 = vmul.f32 %v3469, %v3476
        %v3479 = vlaneseq
        %v3480 = vshrl.u32 %v3479, 7
        %v3481 = vsub.s32 0, %v3480
        %v3482 = vrot.slane %v3463, %v3481
        %v3484 = vmul.f32 %v3477, %v3482
        %v3486 = vlaneseq
        %v3487 = vshrl.u32 %v3486, 7
        %v3488 = vsub.s32 0, %v3487
        %v3489 = vrot.slane %v3464, %v3488
        %v3491 = vadd.f32 %v3484, %v3489
        %v3492 = vld [vmem:[%s16] sm:$0xff]
        %v3493 = vld [vmem:[%s16 + $0x8] sm:$0xff]
        %v3494 = vld [vmem:[%s16 + $0x10] sm:$0xff]
        %v3495 = vld [vmem:[%s16 + $0x18] sm:$0xff]
        %v3496 = vld [vmem:[%s17] sm:$0x1]
        %v3498 = vlaneseq
        %v3499 = vshrl.u32 %v3498, 7
        %v3500 = vsub.s32 0, %v3499
        %v3501 = vrot.slane %v3496, %v3500
        %v3504 = vsel %vm1200, %v3491, 0
        %3506 = vmatprep.subr.mxu0 0.0
        %3507 = vmatpush1.msra.mxu0 %v3492
        %3508 = vmatprep.subr.mxu0 0.0
        %3509 = vmatpush1.msra.mxu0 %v3493
        %3510 = vmatprep.subr.mxu0 0.0
        %3511 = vmatpush1.msra.mxu0 %v3494
        %3512 = vmatprep.subr.mxu0 0.0
        %3513 = vmatpush1.msra.mxu0 %v3495
        %3514 = vmatprep.subr.mxu0 0.0
        %3515 = vmatpush1.msra.mxu0 0.0
        %3516 = vmatprep.subr.mxu0 0.0
        %3517 = vmatpush1.msra.mxu0 0.0
        %3518 = vmatprep.subr.mxu0 0.0
        %3519 = vmatpush1.msra.mxu0 0.0
        %3520 = vmatprep.subr.mxu0 0.0
        %3521 = vmatpush1.msra.mxu0 0.0
        %3522 = vmatprep.subr.mxu0 0.0
        %3523 = vmatpush1.msra.mxu0 0.0
        %3524 = vmatprep.subr.mxu0 0.0
        %3525 = vmatpush1.msra.mxu0 0.0
        %3526 = vmatprep.subr.mxu0 0.0
        %3527 = vmatpush1.msra.mxu0 0.0
        %3528 = vmatprep.subr.mxu0 0.0
        %3529 = vmatpush1.msra.mxu0 0.0
        %3530 = vmatprep.subr.mxu0 0.0
        %3531 = vmatpush1.msra.mxu0 0.0
        %3532 = vmatprep.subr.mxu0 0.0
        %3533 = vmatpush1.msra.mxu0 0.0
        %3534 = vmatprep.subr.mxu0 0.0
        %3535 = vmatpush1.msra.mxu0 0.0
        %3536 = vmatprep.subr.mxu0 0.0
        %3537 = vmatpush1.msra.mxu0 0.0
        %3538 = vmatprep.subr.mxu0 0.0
        %3539 = vmatpush1.msra.mxu0 0.0
        %3540 = vmatprep.subr.mxu0 0.0
        %3541 = vmatpush1.msra.mxu0 0.0
        %3542 = vmatprep.subr.mxu0 0.0
        %3543 = vmatpush1.msra.mxu0 0.0
        %3544 = vmatprep.subr.mxu0 0.0
        %3545 = vmatpush1.msra.mxu0 0.0
        %3546 = vmatprep.subr.mxu0 0.0
        %3547 = vmatpush1.msra.mxu0 0.0
        %3548 = vmatprep.subr.mxu0 0.0
        %3549 = vmatpush1.msra.mxu0 0.0
        %3550 = vmatprep.subr.mxu0 0.0
        %3551 = vmatpush1.msra.mxu0 0.0
        %3552 = vmatprep.subr.mxu0 0.0
        %3553 = vmatpush1.msra.mxu0 0.0
        %3554 = vmatprep.subr.mxu0 0.0
        %3555 = vmatpush1.msra.mxu0 0.0
        %3556 = vmatprep.subr.mxu0 0.0
        %3557 = vmatpush1.msra.mxu0 0.0
        %3558 = vmatprep.subr.mxu0 0.0
        %3559 = vmatpush1.msra.mxu0 0.0
        %3560 = vmatprep.subr.mxu0 0.0
        %3561 = vmatpush1.msra.mxu0 0.0
        %3562 = vmatprep.subr.mxu0 0.0
        %3563 = vmatpush1.msra.mxu0 0.0
        %3564 = vmatprep.subr.mxu0 0.0
        %3565 = vmatpush1.msra.mxu0 0.0
        %3566 = vmatprep.subr.mxu0 0.0
        %3567 = vmatpush1.msra.mxu0 0.0
        %3568 = vmatprep.subr.mxu0 0.0
        %3569 = vmatpush1.msra.mxu0 0.0
        %3570 = vmatprep.mubr.f32.mxu0 0.0
        %3571 = vmatmul.mubr.f32.gmra.mrb[0].mxu0 %v3504
        %v3572 = vpop.f32.mrb[0].mxu0
        %v3573 = vadd.f32 %v3501, %v3572
        %v3574 = vpop.f32.mrb[0].mxu0
        %3575 = vdwg.mxu0
        %v3576 = vmax.f32 %v3573, 0.0
        %v3577 = vld [vmem:[%s18] sm:$0xff]
        %v3578 = vld [vmem:[%s18 + $0x8] sm:$0xff]
        %v3579 = vld [vmem:[%s18 + $0x10] sm:$0xff]
        %v3580 = vld [vmem:[%s18 + $0x18] sm:$0xff]
        %v3581 = vld [vmem:[%s18 + $0x20] sm:$0xff]
        %v3582 = vld [vmem:[%s18 + $0x28] sm:$0xff]
        %v3583 = vld [vmem:[%s18 + $0x30] sm:$0xff]
        %v3584 = vld [vmem:[%s18 + $0x38] sm:$0xff]
        %v3585 = vld [vmem:[%s19] sm:$0x1]
        %v3587 = vlaneseq
        %v3588 = vshrl.u32 %v3587, 7
        %v3589 = vsub.s32 0, %v3588
        %v3590 = vrot.slane %v3585, %v3589
        %vm3592 = vcmask 523264
        %v3594 = vsel %vm3592, %v3576, 0
        %3596 = vmatprep.subr.mxu0 0.0
        %3597 = vmatpush1.msra.mxu0 %v3577
        %3598 = vmatprep.subr.mxu0 0.0
        %3599 = vmatpush1.msra.mxu0 %v3578
        %3600 = vmatprep.subr.mxu0 0.0
        %3601 = vmatpush1.msra.mxu0 %v3579
        %3602 = vmatprep.subr.mxu0 0.0
        %3603 = vmatpush1.msra.mxu0 %v3580
        %3604 = vmatprep.subr.mxu0 0.0
        %3605 = vmatpush1.msra.mxu0 %v3581
        %3606 = vmatprep.subr.mxu0 0.0
        %3607 = vmatpush1.msra.mxu0 %v3582
        %3608 = vmatprep.subr.mxu0 0.0
        %3609 = vmatpush1.msra.mxu0 %v3583
        %3610 = vmatprep.subr.mxu0 0.0
        %3611 = vmatpush1.msra.mxu0 %v3584
        %3612 = vmatprep.subr.mxu0 0.0
        %3613 = vmatpush1.msra.mxu0 0.0
        %3614 = vmatprep.subr.mxu0 0.0
        %3615 = vmatpush1.msra.mxu0 0.0
        %3616 = vmatprep.subr.mxu0 0.0
        %3617 = vmatpush1.msra.mxu0 0.0
        %3618 = vmatprep.subr.mxu0 0.0
        %3619 = vmatpush1.msra.mxu0 0.0
        %3620 = vmatprep.subr.mxu0 0.0
        %3621 = vmatpush1.msra.mxu0 0.0
        %3622 = vmatprep.subr.mxu0 0.0
        %3623 = vmatpush1.msra.mxu0 0.0
        %3624 = vmatprep.subr.mxu0 0.0
        %3625 = vmatpush1.msra.mxu0 0.0
        %3626 = vmatprep.subr.mxu0 0.0
        %3627 = vmatpush1.msra.mxu0 0.0
        %3628 = vmatprep.subr.mxu0 0.0
        %3629 = vmatpush1.msra.mxu0 0.0
        %3630 = vmatprep.subr.mxu0 0.0
        %3631 = vmatpush1.msra.mxu0 0.0
        %3632 = vmatprep.subr.mxu0 0.0
        %3633 = vmatpush1.msra.mxu0 0.0
        %3634 = vmatprep.subr.mxu0 0.0
        %3635 = vmatpush1.msra.mxu0 0.0
        %3636 = vmatprep.subr.mxu0 0.0
        %3637 = vmatpush1.msra.mxu0 0.0
        %3638 = vmatprep.subr.mxu0 0.0
        %3639 = vmatpush1.msra.mxu0 0.0
        %3640 = vmatprep.subr.mxu0 0.0
        %3641 = vmatpush1.msra.mxu0 0.0
        %3642 = vmatprep.subr.mxu0 0.0
        %3643 = vmatpush1.msra.mxu0 0.0
        %3644 = vmatprep.subr.mxu0 0.0
        %3645 = vmatpush1.msra.mxu0 0.0
        %3646 = vmatprep.subr.mxu0 0.0
        %3647 = vmatpush1.msra.mxu0 0.0
        %3648 = vmatprep.subr.mxu0 0.0
        %3649 = vmatpush1.msra.mxu0 0.0
        %3650 = vmatprep.subr.mxu0 0.0
        %3651 = vmatpush1.msra.mxu0 0.0
        %3652 = vmatprep.subr.mxu0 0.0
        %3653 = vmatpush1.msra.mxu0 0.0
        %3654 = vmatprep.subr.mxu0 0.0
        %3655 = vmatpush1.msra.mxu0 0.0
        %3656 = vmatprep.subr.mxu0 0.0
        %3657 = vmatpush1.msra.mxu0 0.0
        %3658 = vmatprep.subr.mxu0 0.0
        %3659 = vmatpush1.msra.mxu0 0.0
        %3660 = vmatprep.mubr.f32.mxu0 0.0
        %3661 = vmatmul.mubr.f32.gmra.mrb[0].mxu0 %v3594
        %v3662 = vpop.f32.mrb[0].mxu0
        %v3663 = vadd.f32 %v3590, %v3662
        %v3664 = vpop.f32.mrb[0].mxu0
        %3665 = vdwg.mxu0
        %v3666 = vadd.f32 %v3462, %v3663
        %3667 = vst.msk [vmem:[%s798] sm:$0xff] %vm1200, %v3666
        %s3668 = sand.u32 %s472, 1
        %s3669 = scalar_lea.sflag [#allocation4], %s3668
        %s3670 = sand.u32 %s472, 1
        %s3671 = smul.addr %s3670, 8
        %s3672 = scalar_lea.vmem [#allocation3], %s3671
        // Predicated region
        $region139: #{tpu_custom_call.1} parent=133 // pred_check
          %p3673 = pneg %p482
        $region140: #{tpu_custom_call.1} parent=133 // pred_check_branch
          %3675 = sbr.rel (%p3673) target = $region142
        $region141: #{tpu_custom_call.1} parent=133 // pred_region
          %s3677 = ssub.s32 128, 128
          %3678 = vsyncadd %s3669, %s3677
          %s3679 = smul.addr %s34, 128
          %s3680 = scalar_lea.hbm %s20, %s3679
          %s3682 = sshll.u32 %s3672, 4
          %s3683 = int_to_ptr.vmem [resolvable:$true] %s3682
          %3685 = dma.vmem_to_hbm [thread:$0]  %s3683, 128, %s3680, %s3669
        $region142: #{tpu_custom_call.1} parent=133 // pred_fallthru
          _
      $region134: #{tpu_custom_call.1} parent=5 // pred_fallthru
        _
      %p3686 = scmp.le.s32.totalorder 2, %s29
      // Predicated region
      $region143: #{tpu_custom_call.1} parent=5 // pred_check
        %p3687 = pneg %p3686
      $region144: #{tpu_custom_call.1} parent=5 // pred_check_branch
        %3689 = sbr.rel (%p3687) target = $region146
      $region145: #{tpu_custom_call.1} parent=5 // pred_region
        %s3690 = ssub.s32 %s29, 2
        // Predicated region
        $region147: #{tpu_custom_call.1} parent=145 // pred_check
          %p3691 = pneg %p488
        $region148: #{tpu_custom_call.1} parent=145 // pred_check_branch
          %3693 = sbr.rel (%p3691) target = $region150
        $region149: #{tpu_custom_call.1} parent=145 // pred_region
          %s3694 = sand.u32 %s473, 1
          %s3695 = scalar_lea.sflag [#allocation4], %s3694
          %s3696 = sand.u32 %s473, 1
          %s3697 = smul.addr %s3696, 8
          %s3698 = scalar_lea.vmem [#allocation3], %s3697
          %3699 = dma.done %s3695, 128
        $region150: #{tpu_custom_call.1} parent=145 // pred_fallthru
          _
      $region146: #{tpu_custom_call.1} parent=5 // pred_fallthru
        _
    $region6: #{tpu_custom_call.1} parent=1 // loop_footer
      %s33 = sadd.s32 1, %s29
    $region7: #{tpu_custom_call.1} parent=1 // loop_footer_branch
      %28 = sbr.rel target = $region3
    $region8: #{tpu_custom_call.1} parent=1 // loop_exit
      _
    %3700 = vsyncpa [#allocation4], 1
    %s3701 = scalar_lea.sflag [#allocation4], 1
    %3702 = vsyncpa %s3701, 1

// kernel: tpu_custom_call.1
$region0: #{tpu_custom_call.1}
  #allocation0 [shape = 'u32[]', space=smem, size = 0x4, offset = 0x4, fixed_abs, tag = 'smem constant byte address 0x4 - core index']
  #allocation1 [shape = 'u32[144,128]{1,0:T(1,128)}', space=vmem, size = 0x12000, scoped, tag = 'internal scratch']
  %s0 = inlined_call_operand.vmem [shape: f32[16,32], index: 0, kind: input, shape index: {}]
  %s1 = inlined_call_operand.vmem [shape: f32[32,16,8], index: 1, kind: input, shape index: {}]
  %s2 = inlined_call_operand.vmem [shape: f32[8,32], index: 2, kind: input, shape index: {}]
  %s3 = inlined_call_operand.vmem [shape: f32[1,32], index: 3, kind: input, shape index: {}]
  %s4 = inlined_call_operand.vmem [shape: f32[1,32], index: 4, kind: input, shape index: {}]
  %s5 = inlined_call_operand.vmem [shape: f32[1,32], index: 5, kind: input, shape index: {}]
  %s6 = inlined_call_operand.vmem [shape: f32[32,32], index: 6, kind: input, shape index: {}]
  %s7 = inlined_call_operand.vmem [shape: f32[1,32], index: 7, kind: input, shape index: {}]
  %s8 = inlined_call_operand.vmem [shape: f32[32,32], index: 8, kind: input, shape index: {}]
  %s9 = inlined_call_operand.vmem [shape: f32[1,32], index: 9, kind: input, shape index: {}]
  %s10 = inlined_call_operand.vmem [shape: f32[32,32], index: 10, kind: input, shape index: {}]
  %s11 = inlined_call_operand.vmem [shape: f32[1,32], index: 11, kind: input, shape index: {}]
  %s12 = inlined_call_operand.vmem [shape: f32[32,32], index: 12, kind: input, shape index: {}]
  %s13 = inlined_call_operand.vmem [shape: f32[1,32], index: 13, kind: input, shape index: {}]
  %s14 = inlined_call_operand.vmem [shape: f32[1,32], index: 14, kind: input, shape index: {}]
  %s15 = inlined_call_operand.vmem [shape: f32[1,32], index: 15, kind: input, shape index: {}]
  %s16 = inlined_call_operand.vmem [shape: f32[32,64], index: 16, kind: input, shape index: {}]
  %s17 = inlined_call_operand.vmem [shape: f32[1,64], index: 17, kind: input, shape index: {}]
  %s18 = inlined_call_operand.vmem [shape: f32[64,32], index: 18, kind: input, shape index: {}]
  %s19 = inlined_call_operand.vmem [shape: f32[1,32], index: 19, kind: input, shape index: {}]
  %s20 = inlined_call_operand.hbm [shape: f32[16,32], index: 20, kind: output, shape index: {}]
  %s21 = sld [smem:[#allocation0]]
  $region151: #{tpu_custom_call.1} parent=0
    _
  %s23 = ssub.s32 1, %s21
  %s24 = scalar_select 0, %s23, %s21
  $region1: #{tpu_custom_call.1} parent=0
    #allocation2 [shape = 'u8[262144]{0}', space=vmem, size = 0x40000, scoped, tag = 'input window, operand 1']
    #allocation3 [shape = 'u8[8192]{0}', space=vmem, size = 0x2000, scoped, tag = 'output window, operand 0']
    #allocation4 [shape = 's32[2]{0}', space=sflag, size = 0x8, scoped, tag = 'scoped memory for tpu_custom_call.1']
    %25 = vsyncpa [#allocation4], 0
    %s26 = scalar_lea.sflag [#allocation4], 1
    %27 = vsyncpa %s26, 0
    loop: start=0, step=1, limit=4
    $region2: #{tpu_custom_call.1} parent=1 // loop_pre_header
      _
    $region3: #{tpu_custom_call.1} parent=1 // loop_header
      %s29 = sphi 0, %s33
      %p30 = scmp.ge.s32.totalorder %s29, 4
      %s39 = sphi 0, %s41
      %s42 = sphi 0, %s39
      %s43 = sphi 0, %s42
      %s59 = sphi 0, %s43
      %s65 = sphi 0, %s67
      %s68 = sphi 0, %s65
      %s69 = sphi 0, %s68
      %s85 = sphi 0, %s69
      %s89 = sphi 0, %s89
      %s91 = sphi 0, %s89
      %s92 = sphi 0, %s91
      %s106 = sphi 0, %s92
      %s110 = sphi 0, %s110
      %s112 = sphi 0, %s110
      %s113 = sphi 0, %s112
      %s127 = sphi 0, %s113
      %s131 = sphi 0, %s131
      %s133 = sphi 0, %s131
      %s134 = sphi 0, %s133
      %s148 = sphi 0, %s134
      %s152 = sphi 0, %s152
      %s154 = sphi 0, %s152
      %s155 = sphi 0, %s154
      %s169 = sphi 0, %s155
      %s173 = sphi 0, %s173
      %s175 = sphi 0, %s173
      %s176 = sphi 0, %s175
      %s190 = sphi 0, %s176
      %s194 = sphi 0, %s194
      %s196 = sphi 0, %s194
      %s197 = sphi 0, %s196
      %s211 = sphi 0, %s197
      %s215 = sphi 0, %s215
      %s217 = sphi 0, %s215
      %s218 = sphi 0, %s217
      %s232 = sphi 0, %s218
      %s236 = sphi 0, %s236
      %s238 = sphi 0, %s236
      %s239 = sphi 0, %s238
      %s253 = sphi 0, %s239
      %s257 = sphi 0, %s257
      %s259 = sphi 0, %s257
      %s260 = sphi 0, %s259
      %s274 = sphi 0, %s260
      %s278 = sphi 0, %s278
      %s280 = sphi 0, %s278
      %s281 = sphi 0, %s280
      %s295 = sphi 0, %s281
      %s299 = sphi 0, %s299
      %s301 = sphi 0, %s299
      %s302 = sphi 0, %s301
      %s316 = sphi 0, %s302
      %s320 = sphi 0, %s320
      %s322 = sphi 0, %s320
      %s323 = sphi 0, %s322
      %s337 = sphi 0, %s323
      %s341 = sphi 0, %s341
      %s343 = sphi 0, %s341
      %s344 = sphi 0, %s343
      %s358 = sphi 0, %s344
      %s362 = sphi 0, %s362
      %s364 = sphi 0, %s362
      %s365 = sphi 0, %s364
      %s379 = sphi 0, %s365
      %s383 = sphi 0, %s383
      %s385 = sphi 0, %s383
      %s386 = sphi 0, %s385
      %s400 = sphi 0, %s386
      %s404 = sphi 0, %s404
      %s406 = sphi 0, %s404
      %s407 = sphi 0, %s406
      %s421 = sphi 0, %s407
      %s425 = sphi 0, %s425
      %s427 = sphi 0, %s425
      %s428 = sphi 0, %s427
      %s442 = sphi 0, %s428
      %s446 = sphi 0, %s446
      %s448 = sphi 0, %s446
      %s449 = sphi 0, %s448
      %s463 = sphi 0, %s449
      %s469 = sphi 0, %s471
      %s472 = sphi 0, %s469
      %s473 = sphi 0, %s472
      %s489 = sphi 0, %s473
    $region4: #{tpu_custom_call.1} parent=1 // loop_header_branch
      %32 = sbr.rel (%p30) target = $region8
    $region5: #{tpu_custom_call.1} parent=1 // loop_body
      %s34 = ssub.s32 %s29, 1
      %s35 = ssub.s32 %s29, 2
      %s36 = sadd.s32 %s29, 1
      %s37 = ssub.s32 %s29, %s36
      %p38 = scmp.eq.s32.totalorder %s37, 0
      %s40 = sadd.s32 %s39, 1
      %s41 = scalar_select %p38, %s39, %s40
      %p44 = pneg %p38
      %p45 = scmp.eq.s32.totalorder %s29, 1
      %p46 = por %p44, %p45
      %p47 = scmp.ne.s32.totalorder %s39, %s42
      %p48 = scmp.eq.s32.totalorder %s29, 0
      %p49 = por %p47, %p48
      %p50 = scmp.ne.s32.totalorder %s39, %s42
      %p51 = scmp.eq.s32.totalorder %s34, 1
      %p52 = por %p50, %p51
      %p53 = scmp.ne.s32.totalorder %s42, %s43
      %p54 = scmp.eq.s32.totalorder %s34, 0
      %p55 = por %p53, %p54
      %p56 = scmp.ne.s32.totalorder %s42, %s43
      %p57 = scmp.eq.s32.totalorder %s35, 1
      %p58 = por %p56, %p57
      %p60 = scmp.ne.s32.totalorder %s43, %s59
      %p61 = scmp.eq.s32.totalorder %s35, 0
      %p62 = por %p60, %p61
      %s63 = ssub.s32 %s29, %s36
      %p64 = scmp.eq.s32.totalorder %s63, 0
      %s66 = sadd.s32 %s65, 1
      %s67 = scalar_select %p64, %s65, %s66
      %p70 = pneg %p64
      %p71 = scmp.eq.s32.totalorder %s29, 1
      %p72 = por %p70, %p71
      %p73 = scmp.ne.s32.totalorder %s65, %s68
      %p74 = scmp.eq.s32.totalorder %s29, 0
      %p75 = por %p73, %p74
      %p76 = scmp.ne.s32.totalorder %s65, %s68
      %p77 = scmp.eq.s32.totalorder %s34, 1
      %p78 = por %p76, %p77
      %p79 = scmp.ne.s32.totalorder %s68, %s69
      %p80 = scmp.eq.s32.totalorder %s34, 0
      %p81 = por %p79, %p80
      %p82 = scmp.ne.s32.totalorder %s68, %s69
      %p83 = scmp.eq.s32.totalorder %s35, 1
      %p84 = por %p82, %p83
      %p86 = scmp.ne.s32.totalorder %s69, %s85
      %p87 = scmp.eq.s32.totalorder %s35, 0
      %p88 = por %p86, %p87
      %s90 = sadd.s32 %s89, 1
      %p93 = scmp.eq.s32.totalorder %s29, 1
      %p94 = scmp.ne.s32.totalorder %s89, %s91
      %p95 = scmp.eq.s32.totalorder %s29, 0
      %p96 = por %p94, %p95
      %p97 = scmp.ne.s32.totalorder %s89, %s91
      %p98 = scmp.eq.s32.totalorder %s34, 1
      %p99 = por %p97, %p98
      %p100 = scmp.ne.s32.totalorder %s91, %s92
      %p101 = scmp.eq.s32.totalorder %s34, 0
      %p102 = por %p100, %p101
      %p103 = scmp.ne.s32.totalorder %s91, %s92
      %p104 = scmp.eq.s32.totalorder %s35, 1
      %p105 = por %p103, %p104
      %p107 = scmp.ne.s32.totalorder %s92, %s106
      %p108 = scmp.eq.s32.totalorder %s35, 0
      %p109 = por %p107, %p108
      %s111 = sadd.s32 %s110, 1
      %p114 = scmp.eq.s32.totalorder %s29, 1
      %p115 = scmp.ne.s32.totalorder %s110, %s112
      %p116 = scmp.eq.s32.totalorder %s29, 0
      %p117 = por %p115, %p116
      %p118 = scmp.ne.s32.totalorder %s110, %s112
      %p119 = scmp.eq.s32.totalorder %s34, 1
      %p120 = por %p118, %p119
      %p121 = scmp.ne.s32.totalorder %s112, %s113
      %p122 = scmp.eq.s32.totalorder %s34, 0
      %p123 = por %p121, %p122
      %p124 = scmp.ne.s32.totalorder %s112, %s113
      %p125 = scmp.eq.s32.totalorder %s35, 1
      %p126 = por %p124, %p125
      %p128 = scmp.ne.s32.totalorder %s113, %s127
      %p129 = scmp.eq.s32.totalorder %s35, 0
      %p130 = por %p128, %p129
      %s132 = sadd.s32 %s131, 1
      %p135 = scmp.eq.s32.totalorder %s29, 1
      %p136 = scmp.ne.s32.totalorder %s131, %s133
      %p137 = scmp.eq.s32.totalorder %s29, 0
      %p138 = por %p136, %p137
      %p139 = scmp.ne.s32.totalorder %s131, %s133
      %p140 = scmp.eq.s32.totalorder %s34, 1
      %p141 = por %p139, %p140
      %p142 = scmp.ne.s32.totalorder %s133, %s134
      %p143 = scmp.eq.s32.totalorder %s34, 0
      %p144 = por %p142, %p143
      %p145 = scmp.ne.s32.totalorder %s133, %s134
      %p146 = scmp.eq.s32.totalorder %s35, 1
      %p147 = por %p145, %p146
      %p149 = scmp.ne.s32.totalorder %s134, %s148
      %p150 = scmp.eq.s32.totalorder %s35, 0
      %p151 = por %p149, %p150
      %s153 = sadd.s32 %s152, 1
      %p156 = scmp.eq.s32.totalorder %s29, 1
      %p157 = scmp.ne.s32.totalorder %s152, %s154
      %p158 = scmp.eq.s32.totalorder %s29, 0
      %p159 = por %p157, %p158
      %p160 = scmp.ne.s32.totalorder %s152, %s154
      %p161 = scmp.eq.s32.totalorder %s34, 1
      %p162 = por %p160, %p161
      %p163 = scmp.ne.s32.totalorder %s154, %s155
      %p164 = scmp.eq.s32.totalorder %s34, 0
      %p165 = por %p163, %p164
      %p166 = scmp.ne.s32.totalorder %s154, %s155
      %p167 = scmp.eq.s32.totalorder %s35, 1
      %p168 = por %p166, %p167
      %p170 = scmp.ne.s32.totalorder %s155, %s169
      %p171 = scmp.eq.s32.totalorder %s35, 0
      %p172 = por %p170, %p171
      %s174 = sadd.s32 %s173, 1
      %p177 = scmp.eq.s32.totalorder %s29, 1
      %p178 = scmp.ne.s32.totalorder %s173, %s175
      %p179 = scmp.eq.s32.totalorder %s29, 0
      %p180 = por %p178, %p179
      %p181 = scmp.ne.s32.totalorder %s173, %s175
      %p182 = scmp.eq.s32.totalorder %s34, 1
      %p183 = por %p181, %p182
      %p184 = scmp.ne.s32.totalorder %s175, %s176
      %p185 = scmp.eq.s32.totalorder %s34, 0
      %p186 = por %p184, %p185
      %p187 = scmp.ne.s32.totalorder %s175, %s176
      %p188 = scmp.eq.s32.totalorder %s35, 1
      %p189 = por %p187, %p188
      %p191 = scmp.ne.s32.totalorder %s176, %s190
      %p192 = scmp.eq.s32.totalorder %s35, 0
      %p193 = por %p191, %p192
      %s195 = sadd.s32 %s194, 1
      %p198 = scmp.eq.s32.totalorder %s29, 1
      %p199 = scmp.ne.s32.totalorder %s194, %s196
      %p200 = scmp.eq.s32.totalorder %s29, 0
      %p201 = por %p199, %p200
      %p202 = scmp.ne.s32.totalorder %s194, %s196
      %p203 = scmp.eq.s32.totalorder %s34, 1
      %p204 = por %p202, %p203
      %p205 = scmp.ne.s32.totalorder %s196, %s197
      %p206 = scmp.eq.s32.totalorder %s34, 0
      %p207 = por %p205, %p206
      %p208 = scmp.ne.s32.totalorder %s196, %s197
      %p209 = scmp.eq.s32.totalorder %s35, 1
      %p210 = por %p208, %p209
      %p212 = scmp.ne.s32.totalorder %s197, %s211
      %p213 = scmp.eq.s32.totalorder %s35, 0
      %p214 = por %p212, %p213
      %s216 = sadd.s32 %s215, 1
      %p219 = scmp.eq.s32.totalorder %s29, 1
      %p220 = scmp.ne.s32.totalorder %s215, %s217
      %p221 = scmp.eq.s32.totalorder %s29, 0
      %p222 = por %p220, %p221
      %p223 = scmp.ne.s32.totalorder %s215, %s217
      %p224 = scmp.eq.s32.totalorder %s34, 1
      %p225 = por %p223, %p224
      %p226 = scmp.ne.s32.totalorder %s217, %s218
      %p227 = scmp.eq.s32.totalorder %s34, 0
      %p228 = por %p226, %p227
      %p229 = scmp.ne.s32.totalorder %s217, %s218
      %p230 = scmp.eq.s32.totalorder %s35, 1
      %p231 = por %p229, %p230
      %p233 = scmp.ne.s32.totalorder %s218, %s232
      %p234 = scmp.eq.s32.totalorder %s35, 0
      %p235 = por %p233, %p234
      %s237 = sadd.s32 %s236, 1
      %p240 = scmp.eq.s32.totalorder %s29, 1
      %p241 = scmp.ne.s32.totalorder %s236, %s238
      %p242 = scmp.eq.s32.totalorder %s29, 0
      %p243 = por %p241, %p242
      %p244 = scmp.ne.s32.totalorder %s236, %s238
      %p245 = scmp.eq.s32.totalorder %s34, 1
      %p246 = por %p244, %p245
      %p247 = scmp.ne.s32.totalorder %s238, %s239
      %p248 = scmp.eq.s32.totalorder %s34, 0
      %p249 = por %p247, %p248
      %p250 = scmp.ne.s32.totalorder %s238, %s239
      %p251 = scmp.eq.s32.totalorder %s35, 1
      %p252 = por %p250, %p251
      %p254 = scmp.ne.s32.totalorder %s239, %s253
      %p255 = scmp.eq.s32.totalorder %s35, 0
      %p256 = por %p254, %p255
      %s258 = sadd.s32 %s257, 1
      %p261 = scmp.eq.s32.totalorder %s29, 1
      %p262 = scmp.ne.s32.totalorder %s257, %s259
      %p263 = scmp.eq.s32.totalorder %s29, 0
      %p264 = por %p262, %p263
      %p265 = scmp.ne.s32.totalorder %s257, %s259
      %p266 = scmp.eq.s32.totalorder %s34, 1
      %p267 = por %p265, %p266
      %p268 = scmp.ne.s32.totalorder %s259, %s260
      %p269 = scmp.eq.s32.totalorder %s34, 0
      %p270 = por %p268, %p269
      %p271 = scmp.ne.s32.totalorder %s259, %s260
      %p272 = scmp.eq.s32.totalorder %s35, 1
      %p273 = por %p271, %p272
      %p275 = scmp.ne.s32.totalorder %s260, %s274
      %p276 = scmp.eq.s32.totalorder %s35, 0
      %p277 = por %p275, %p276
      %s279 = sadd.s32 %s278, 1
      %p282 = scmp.eq.s32.totalorder %s29, 1
      %p283 = scmp.ne.s32.totalorder %s278, %s280
      %p284 = scmp.eq.s32.totalorder %s29, 0
      %p285 = por %p283, %p284
      %p286 = scmp.ne.s32.totalorder %s278, %s280
      %p287 = scmp.eq.s32.totalorder %s34, 1
      %p288 = por %p286, %p287
      %p289 = scmp.ne.s32.totalorder %s280, %s281
      %p290 = scmp.eq.s32.totalorder %s34, 0
      %p291 = por %p289, %p290
      %p292 = scmp.ne.s32.totalorder %s280, %s281
      %p293 = scmp.eq.s32.totalorder %s35, 1
      %p294 = por %p292, %p293
      %p296 = scmp.ne.s32.totalorder %s281, %s295
      %p297 = scmp.eq.s32.totalorder %s35, 0
      %p298 = por %p296, %p297
      %s300 = sadd.s32 %s299, 1
      %p303 = scmp.eq.s32.totalorder %s29, 1
      %p304 = scmp.ne.s32.totalorder %s299, %s301
      %p305 = scmp.eq.s32.totalorder %s29, 0
      %p306 = por %p304, %p305
      %p307 = scmp.ne.s32.totalorder %s299, %s301
      %p308 = scmp.eq.s32.totalorder %s34, 1
      %p309 = por %p307, %p308
      %p310 = scmp.ne.s32.totalorder %s301, %s302
      %p311 = scmp.eq.s32.totalorder %s34, 0
      %p312 = por %p310, %p311
      %p313 = scmp.ne.s32.totalorder %s301, %s302
      %p314 = scmp.eq.s32.totalorder %s35, 1
      %p315 = por %p313, %p314
      %p317 = scmp.ne.s32.totalorder %s302, %s316
      %p318 = scmp.eq.s32.totalorder %s35, 0
      %p319 = por %p317, %p318
      %s321 = sadd.s32 %s320, 1
      %p324 = scmp.eq.s32.totalorder %s29, 1
      %p325 = scmp.ne.s32.totalorder %s320, %s322
      %p326 = scmp.eq.s32.totalorder %s29, 0
      %p327 = por %p325, %p326
      %p328 = scmp.ne.s32.totalorder %s320, %s322
      %p329 = scmp.eq.s32.totalorder %s34, 1
      %p330 = por %p328, %p329
      %p331 = scmp.ne.s32.totalorder %s322, %s323
      %p332 = scmp.eq.s32.totalorder %s34, 0
      %p333 = por %p331, %p332
      %p334 = scmp.ne.s32.totalorder %s322, %s323
      %p335 = scmp.eq.s32.totalorder %s35, 1
      %p336 = por %p334, %p335
      %p338 = scmp.ne.s32.totalorder %s323, %s337
      %p339 = scmp.eq.s32.totalorder %s35, 0
      %p340 = por %p338, %p339
      %s342 = sadd.s32 %s341, 1
      %p345 = scmp.eq.s32.totalorder %s29, 1
      %p346 = scmp.ne.s32.totalorder %s341, %s343
      %p347 = scmp.eq.s32.totalorder %s29, 0
      %p348 = por %p346, %p347
      %p349 = scmp.ne.s32.totalorder %s341, %s343
      %p350 = scmp.eq.s32.totalorder %s34, 1
      %p351 = por %p349, %p350
      %p352 = scmp.ne.s32.totalorder %s343, %s344
      %p353 = scmp.eq.s32.totalorder %s34, 0
      %p354 = por %p352, %p353
      %p355 = scmp.ne.s32.totalorder %s343, %s344
      %p356 = scmp.eq.s32.totalorder %s35, 1
      %p357 = por %p355, %p356
      %p359 = scmp.ne.s32.totalorder %s344, %s358
      %p360 = scmp.eq.s32.totalorder %s35, 0
      %p361 = por %p359, %p360
      %s363 = sadd.s32 %s362, 1
      %p366 = scmp.eq.s32.totalorder %s29, 1
      %p367 = scmp.ne.s32.totalorder %s362, %s364
      %p368 = scmp.eq.s32.totalorder %s29, 0
      %p369 = por %p367, %p368
      %p370 = scmp.ne.s32.totalorder %s362, %s364
      %p371 = scmp.eq.s32.totalorder %s34, 1
      %p372 = por %p370, %p371
      %p373 = scmp.ne.s32.totalorder %s364, %s365
      %p374 = scmp.eq.s32.totalorder %s34, 0
      %p375 = por %p373, %p374
      %p376 = scmp.ne.s32.totalorder %s364, %s365
      %p377 = scmp.eq.s32.totalorder %s35, 1
      %p378 = por %p376, %p377
      %p380 = scmp.ne.s32.totalorder %s365, %s379
      %p381 = scmp.eq.s32.totalorder %s35, 0
      %p382 = por %p380, %p381
      %s384 = sadd.s32 %s383, 1
      %p387 = scmp.eq.s32.totalorder %s29, 1
      %p388 = scmp.ne.s32.totalorder %s383, %s385
      %p389 = scmp.eq.s32.totalorder %s29, 0
      %p390 = por %p388, %p389
      %p391 = scmp.ne.s32.totalorder %s383, %s385
      %p392 = scmp.eq.s32.totalorder %s34, 1
      %p393 = por %p391, %p392
      %p394 = scmp.ne.s32.totalorder %s385, %s386
      %p395 = scmp.eq.s32.totalorder %s34, 0
      %p396 = por %p394, %p395
      %p397 = scmp.ne.s32.totalorder %s385, %s386
      %p398 = scmp.eq.s32.totalorder %s35, 1
      %p399 = por %p397, %p398
      %p401 = scmp.ne.s32.totalorder %s386, %s400
      %p402 = scmp.eq.s32.totalorder %s35, 0
      %p403 = por %p401, %p402
      %s405 = sadd.s32 %s404, 1
      %p408 = scmp.eq.s32.totalorder %s29, 1
      %p409 = scmp.ne.s32.totalorder %s404, %s406
      %p410 = scmp.eq.s32.totalorder %s29, 0
      %p411 = por %p409, %p410
      %p412 = scmp.ne.s32.totalorder %s404, %s406
      %p413 = scmp.eq.s32.totalorder %s34, 1
      %p414 = por %p412, %p413
      %p415 = scmp.ne.s32.totalorder %s406, %s407
      %p416 = scmp.eq.s32.totalorder %s34, 0
      %p417 = por %p415, %p416
      %p418 = scmp.ne.s32.totalorder %s406, %s407
      %p419 = scmp.eq.s32.totalorder %s35, 1
      %p420 = por %p418, %p419
      %p422 = scmp.ne.s32.totalorder %s407, %s421
      %p423 = scmp.eq.s32.totalorder %s35, 0
      %p424 = por %p422, %p423
      %s426 = sadd.s32 %s425, 1
      %p429 = scmp.eq.s32.totalorder %s29, 1
      %p430 = scmp.ne.s32.totalorder %s425, %s427
      %p431 = scmp.eq.s32.totalorder %s29, 0
      %p432 = por %p430, %p431
      %p433 = scmp.ne.s32.totalorder %s425, %s427
      %p434 = scmp.eq.s32.totalorder %s34, 1
      %p435 = por %p433, %p434
      %p436 = scmp.ne.s32.totalorder %s427, %s428
      %p437 = scmp.eq.s32.totalorder %s34, 0
      %p438 = por %p436, %p437
      %p439 = scmp.ne.s32.totalorder %s427, %s428
      %p440 = scmp.eq.s32.totalorder %s35, 1
      %p441 = por %p439, %p440
      %p443 = scmp.ne.s32.totalorder %s428, %s442
      %p444 = scmp.eq.s32.totalorder %s35, 0
      %p445 = por %p443, %p444
      %s447 = sadd.s32 %s446, 1
      %p450 = scmp.eq.s32.totalorder %s29, 1
      %p451 = scmp.ne.s32.totalorder %s446, %s448
      %p452 = scmp.eq.s32.totalorder %s29, 0
      %p453 = por %p451, %p452
      %p454 = scmp.ne.s32.totalorder %s446, %s448
      %p455 = scmp.eq.s32.totalorder %s34, 1
      %p456 = por %p454, %p455
      %p457 = scmp.ne.s32.totalorder %s448, %s449
      %p458 = scmp.eq.s32.totalorder %s34, 0
      %p459 = por %p457, %p458
      %p460 = scmp.ne.s32.totalorder %s448, %s449
      %p461 = scmp.eq.s32.totalorder %s35, 1
      %p462 = por %p460, %p461
      %p464 = scmp.ne.s32.totalorder %s449, %s463
      %p465 = scmp.eq.s32.totalorder %s35, 0
      %p466 = por %p464, %p465
      %s467 = ssub.s32 %s29, %s36
      %p468 = scmp.eq.s32.totalorder %s467, 0
      %s470 = sadd.s32 %s469, 1
      %s471 = scalar_select %p468, %s469, %s470
      %p474 = pneg %p468
      %p475 = scmp.eq.s32.totalorder %s29, 1
      %p476 = por %p474, %p475
      %p477 = scmp.ne.s32.totalorder %s469, %s472
      %p478 = scmp.eq.s32.totalorder %s29, 0
      %p479 = por %p477, %p478
      %p480 = scmp.ne.s32.totalorder %s469, %s472
      %p481 = scmp.eq.s32.totalorder %s34, 1
      %p482 = por %p480, %p481
      %p483 = scmp.ne.s32.totalorder %s472, %s473
      %p484 = scmp.eq.s32.totalorder %s34, 0
      %p485 = por %p483, %p484
      %p486 = scmp.ne.s32.totalorder %s472, %s473
      %p487 = scmp.eq.s32.totalorder %s35, 1
      %p488 = por %p486, %p487
      %p490 = scmp.ne.s32.totalorder %s473, %s489
      %p491 = scmp.eq.s32.totalorder %s35, 0
      %p492 = por %p490, %p491
      %p493 = scmp.le.s32.totalorder 1, %s29
      %p494 = scmp.lt.s32.totalorder %s29, 3
      %p495 = pnand %p493, %p494
      %p496 = pneg %p495
      // Predicated region
      $region9: #{tpu_custom_call.1} parent=5 // pred_check
        _
      $region10: #{tpu_custom_call.1} parent=5 // pred_check_branch
        %498 = sbr.rel (%p495) target = $region12
      $region11: #{tpu_custom_call.1} parent=5 // pred_region
        %s499 = ssub.s32 %s29, 1
        // Predicated region
        $region13: #{tpu_custom_call.1} parent=11 // pred_check
          %p500 = pneg %p102
        $region14: #{tpu_custom_call.1} parent=11 // pred_check_branch
          %502 = sbr.rel (%p500) target = $region16
        $region15: #{tpu_custom_call.1} parent=11 // pred_region
          _
        $region16: #{tpu_custom_call.1} parent=11 // pred_fallthru
          _
        // Predicated region
        $region17: #{tpu_custom_call.1} parent=11 // pred_check
          %p503 = pneg %p123
        $region18: #{tpu_custom_call.1} parent=11 // pred_check_branch
          %505 = sbr.rel (%p503) target = $region20
        $region19: #{tpu_custom_call.1} parent=11 // pred_region
          _
        $region20: #{tpu_custom_call.1} parent=11 // pred_fallthru
          _
        // Predicated region
        $region21: #{tpu_custom_call.1} parent=11 // pred_check
          %p506 = pneg %p144
        $region22: #{tpu_custom_call.1} parent=11 // pred_check_branch
          %508 = sbr.rel (%p506) target = $region24
        $region23: #{tpu_custom_call.1} parent=11 // pred_region
          _
        $region24: #{tpu_custom_call.1} parent=11 // pred_fallthru
          _
        // Predicated region
        $region25: #{tpu_custom_call.1} parent=11 // pred_check
          %p509 = pneg %p165
        $region26: #{tpu_custom_call.1} parent=11 // pred_check_branch
          %511 = sbr.rel (%p509) target = $region28
        $region27: #{tpu_custom_call.1} parent=11 // pred_region
          _
        $region28: #{tpu_custom_call.1} parent=11 // pred_fallthru
          _
        // Predicated region
        $region29: #{tpu_custom_call.1} parent=11 // pred_check
          %p512 = pneg %p186
        $region30: #{tpu_custom_call.1} parent=11 // pred_check_branch
          %514 = sbr.rel (%p512) target = $region32
        $region31: #{tpu_custom_call.1} parent=11 // pred_region
          _
        $region32: #{tpu_custom_call.1} parent=11 // pred_fallthru
          _
        // Predicated region
        $region33: #{tpu_custom_call.1} parent=11 // pred_check
          %p515 = pneg %p207
        $region34: #{tpu_custom_call.1} parent=11 // pred_check_branch
          %517 = sbr.rel (%p515) target = $region36
        $region35: #{tpu_custom_call.1} parent=11 // pred_region
          _
        $region36: #{tpu_custom_call.1} parent=11 // pred_fallthru
          _
        // Predicated region
        $region37: #{tpu_custom_call.1} parent=11 // pred_check
          %p518 = pneg %p228
        $region38: #{tpu_custom_call.1} parent=11 // pred_check_branch
          %520 = sbr.rel (%p518) target = $region40
        $region39: #{tpu_custom_call.1} parent=11 // pred_region
          _
        $region40: #{tpu_custom_call.1} parent=11 // pred_fallthru
          _
        // Predicated region
        $region41: #{tpu_custom_call.1} parent=11 // pred_check
          %p521 = pneg %p249
        $region42: #{tpu_custom_call.1} parent=11 // pred_check_branch
          %523 = sbr.rel (%p521) target = $region44
        $region43: #{tpu_custom_call.1} parent=11 // pred_region
          _
        $region44: #{tpu_custom_call.1} parent=11 // pred_fallthru
          _
        // Predicated region
        $region45: #{tpu_custom_call.1} parent=11 // pred_check
          %p524 = pneg %p270
        $region46: #{tpu_custom_call.1} parent=11 // pred_check_branch
          %526 = sbr.rel (%p524) target = $region48
        $region47: #{tpu_custom_call.1} parent=11 // pred_region
          _
        $region48: #{tpu_custom_call.1} parent=11 // pred_fallthru
          _
        // Predicated region
        $region49: #{tpu_custom_call.1} parent=11 // pred_check
          %p527 = pneg %p291
        $region50: #{tpu_custom_call.1} parent=11 // pred_check_branch
          %529 = sbr.rel (%p527) target = $region52
        $region51: #{tpu_custom_call.1} parent=11 // pred_region
          _
        $region52: #{tpu_custom_call.1} parent=11 // pred_fallthru
          _
        // Predicated region
        $region53: #{tpu_custom_call.1} parent=11 // pred_check
          %p530 = pneg %p312
        $region54: #{tpu_custom_call.1} parent=11 // pred_check_branch
          %532 = sbr.rel (%p530) target = $region56
        $region55: #{tpu_custom_call.1} parent=11 // pred_region
          _
        $region56: #{tpu_custom_call.1} parent=11 // pred_fallthru
          _
        // Predicated region
        $region57: #{tpu_custom_call.1} parent=11 // pred_check
          %p533 = pneg %p333
        $region58: #{tpu_custom_call.1} parent=11 // pred_check_branch
          %535 = sbr.rel (%p533) target = $region60
        $region59: #{tpu_custom_call.1} parent=11 // pred_region
          _
        $region60: #{tpu_custom_call.1} parent=11 // pred_fallthru
          _
        // Predicated region
        $region61: #{tpu_custom_call.1} parent=11 // pred_check
          %p536 = pneg %p354
        $region62: #{tpu_custom_call.1} parent=11 // pred_check_branch
          %538 = sbr.rel (%p536) target = $region64
        $region63: #{tpu_custom_call.1} parent=11 // pred_region
          _
        $region64: #{tpu_custom_call.1} parent=11 // pred_fallthru
          _
        // Predicated region
        $region65: #{tpu_custom_call.1} parent=11 // pred_check
          %p539 = pneg %p375
        $region66: #{tpu_custom_call.1} parent=11 // pred_check_branch
          %541 = sbr.rel (%p539) target = $region68
        $region67: #{tpu_custom_call.1} parent=11 // pred_region
          _
        $region68: #{tpu_custom_call.1} parent=11 // pred_fallthru
          _
        // Predicated region
        $region69: #{tpu_custom_call.1} parent=11 // pred_check
          %p542 = pneg %p396
        $region70: #{tpu_custom_call.1} parent=11 // pred_check_branch
          %544 = sbr.rel (%p542) target = $region72
        $region71: #{tpu_custom_call.1} parent=11 // pred_region
          _
        $region72: #{tpu_custom_call.1} parent=11 // pred_fallthru
          _
        // Predicated region
        $region73: #{tpu_custom_call.1} parent=11 // pred_check
          %p545 = pneg %p417
        $region74: #{tpu_custom_call.1} parent=11 // pred_check_branch
          %547 = sbr.rel (%p545) target = $region76
        $region75: #{tpu_custom_call.1} parent=11 // pred_region
          _
        $region76: #{tpu_custom_call.1} parent=11 // pred_fallthru
          _
        // Predicated region
        $region77: #{tpu_custom_call.1} parent=11 // pred_check
          %p548 = pneg %p438
        $region78: #{tpu_custom_call.1} parent=11 // pred_check_branch
          %550 = sbr.rel (%p548) target = $region80
        $region79: #{tpu_custom_call.1} parent=11 // pred_region
          _
        $region80: #{tpu_custom_call.1} parent=11 // pred_fallthru
          _
        // Predicated region
        $region81: #{tpu_custom_call.1} parent=11 // pred_check
          %p551 = pneg %p459
        $region82: #{tpu_custom_call.1} parent=11 // pred_check_branch
          %553 = sbr.rel (%p551) target = $region84
        $region83: #{tpu_custom_call.1} parent=11 // pred_region
          _
        $region84: #{tpu_custom_call.1} parent=11 // pred_fallthru
          _
      $region12: #{tpu_custom_call.1} parent=5 // pred_fallthru
        _
      %p554 = scmp.lt.s32.totalorder %s29, 2
      // Predicated region
      $region85: #{tpu_custom_call.1} parent=5 // pred_check
        %p555 = pneg %p554
      $region86: #{tpu_custom_call.1} parent=5 // pred_check_branch
        %557 = sbr.rel (%p555) target = $region88
      $region87: #{tpu_custom_call.1} parent=5 // pred_region
        // Predicated region
        $region89: #{tpu_custom_call.1} parent=87 // pred_check
          %p558 = pneg %p49
        $region90: #{tpu_custom_call.1} parent=87 // pred_check_branch
          %560 = sbr.rel (%p558) target = $region92
        $region91: #{tpu_custom_call.1} parent=87 // pred_region
          %p561 = scmp.lt.s32.totalorder %s29, 1
          %s562 = scalar_select %p561, %s29, 1
          %s563 = smul.addr %s562, 8
          %s564 = scalar_lea.vmem %s0, %s563
        $region92: #{tpu_custom_call.1} parent=87 // pred_fallthru
          _
        // Predicated region
        $region93: #{tpu_custom_call.1} parent=87 // pred_check
          %p565 = pneg %p75
        $region94: #{tpu_custom_call.1} parent=87 // pred_check_branch
          %567 = sbr.rel (%p565) target = $region96
        $region95: #{tpu_custom_call.1} parent=87 // pred_region
          %s568 = sand.u32 %s65, 1
          %s569 = sand.u32 %s65, 1
          %s570 = smul.addr %s569, 256
          %s571 = scalar_lea.vmem [#allocation2], %s570
          %s572 = smul.addr %s29, 8
          %s573 = scalar_lea.vmem %s1, %s572
          // Predicated region
          $region97: #{tpu_custom_call.1} parent=95 // pred_check
            _
          $region98: #{tpu_custom_call.1} parent=95 // pred_check_branch
            %575 = sbr.rel (0) target = $region100
          $region99: #{tpu_custom_call.1} parent=95 // pred_region
            // Predicated region
            $region101: #{tpu_custom_call.1} parent=99 // pred_check
              _
            $region102: #{tpu_custom_call.1} parent=99 // pred_check_branch
              %577 = sbr.rel (0) target = $region104
            $region103: #{tpu_custom_call.1} parent=99 // pred_region
              // Predicated region
              $region116: #{tpu_custom_call.1} parent=103 // pred_check
                _
              $region117: #{tpu_custom_call.1} parent=103 // pred_check_branch
                %654 = sbr.rel (0) target = $region119
              $region118: #{tpu_custom_call.1} parent=103 // pred_region
                loop: start=0, step=1, limit=1
                $region120: #{tpu_custom_call.1} parent=118 // loop_pre_header
                  _
                $region121: #{tpu_custom_call.1} parent=118 // loop_header
                  %s656 = sphi 0, %s660
                  %p657 = scmp.ge.s32.totalorder %s656, 1
                  %s661 = sphi %s573, %s573
                  %s662 = sphi %s571, %s571
                $region122: #{tpu_custom_call.1} parent=118 // loop_header_branch
                  %659 = sbr.rel (%p657) target = $region126
                $region123: #{tpu_custom_call.1} parent=118 // loop_body
                  %v663 = vld [vmem:[%s661] sm:$0xff]
                  %664 = vst [vmem:[%s662] sm:$0xff] %v663
                  %v665 = vld [vmem:[%s661 + $0x10] sm:$0xff]
                  %666 = vst [vmem:[%s662 + $0x8] sm:$0xff] %v665
                  %v667 = vld [vmem:[%s661 + $0x20] sm:$0xff]
                  %668 = vst [vmem:[%s662 + $0x10] sm:$0xff] %v667
                  %v669 = vld [vmem:[%s661 + $0x30] sm:$0xff]
                  %670 = vst [vmem:[%s662 + $0x18] sm:$0xff] %v669
                  %v671 = vld [vmem:[%s661 + $0x40] sm:$0xff]
                  %672 = vst [vmem:[%s662 + $0x20] sm:$0xff] %v671
                  %v673 = vld [vmem:[%s661 + $0x50] sm:$0xff]
                  %674 = vst [vmem:[%s662 + $0x28] sm:$0xff] %v673
                  %v675 = vld [vmem:[%s661 + $0x60] sm:$0xff]
                  %676 = vst [vmem:[%s662 + $0x30] sm:$0xff] %v675
                  %v677 = vld [vmem:[%s661 + $0x70] sm:$0xff]
                  %678 = vst [vmem:[%s662 + $0x38] sm:$0xff] %v677
                  %v679 = vld [vmem:[%s661 + $0x80] sm:$0xff]
                  %680 = vst [vmem:[%s662 + $0x40] sm:$0xff] %v679
                  %v681 = vld [vmem:[%s661 + $0x90] sm:$0xff]
                  %682 = vst [vmem:[%s662 + $0x48] sm:$0xff] %v681
                  %v683 = vld [vmem:[%s661 + $0xa0] sm:$0xff]
                  %684 = vst [vmem:[%s662 + $0x50] sm:$0xff] %v683
                  %v685 = vld [vmem:[%s661 + $0xb0] sm:$0xff]
                  %686 = vst [vmem:[%s662 + $0x58] sm:$0xff] %v685
                  %v687 = vld [vmem:[%s661 + $0xc0] sm:$0xff]
                  %688 = vst [vmem:[%s662 + $0x60] sm:$0xff] %v687
                  %v689 = vld [vmem:[%s661 + $0xd0] sm:$0xff]
                  %690 = vst [vmem:[%s662 + $0x68] sm:$0xff] %v689
                  %v691 = vld [vmem:[%s661 + $0xe0] sm:$0xff]
                  %692 = vst [vmem:[%s662 + $0x70] sm:$0xff] %v691
                  %v693 = vld [vmem:[%s661 + $0xf0] sm:$0xff]
                  %694 = vst [vmem:[%s662 + $0x78] sm:$0xff] %v693
                  %v695 = vld [vmem:[%s661 + $0x100] sm:$0xff]
                  %696 = vst [vmem:[%s662 + $0x80] sm:$0xff] %v695
                  %v697 = vld [vmem:[%s661 + $0x110] sm:$0xff]
                  %698 = vst [vmem:[%s662 + $0x88] sm:$0xff] %v697
                  %v699 = vld [vmem:[%s661 + $0x120] sm:$0xff]
                  %700 = vst [vmem:[%s662 + $0x90] sm:$0xff] %v699
                  %v701 = vld [vmem:[%s661 + $0x130] sm:$0xff]
                  %702 = vst [vmem:[%s662 + $0x98] sm:$0xff] %v701
                  %v703 = vld [vmem:[%s661 + $0x140] sm:$0xff]
                  %704 = vst [vmem:[%s662 + $0xa0] sm:$0xff] %v703
                  %v705 = vld [vmem:[%s661 + $0x150] sm:$0xff]
                  %706 = vst [vmem:[%s662 + $0xa8] sm:$0xff] %v705
                  %v707 = vld [vmem:[%s661 + $0x160] sm:$0xff]
                  %708 = vst [vmem:[%s662 + $0xb0] sm:$0xff] %v707
                  %v709 = vld [vmem:[%s661 + $0x170] sm:$0xff]
                  %710 = vst [vmem:[%s662 + $0xb8] sm:$0xff] %v709
                  %v711 = vld [vmem:[%s661 + $0x180] sm:$0xff]
                  %712 = vst [vmem:[%s662 + $0xc0] sm:$0xff] %v711
                  %v713 = vld [vmem:[%s661 + $0x190] sm:$0xff]
                  %714 = vst [vmem:[%s662 + $0xc8] sm:$0xff] %v713
                  %v715 = vld [vmem:[%s661 + $0x1a0] sm:$0xff]
                  %716 = vst [vmem:[%s662 + $0xd0] sm:$0xff] %v715
                  %v717 = vld [vmem:[%s661 + $0x1b0] sm:$0xff]
                  %718 = vst [vmem:[%s662 + $0xd8] sm:$0xff] %v717
                  %v719 = vld [vmem:[%s661 + $0x1c0] sm:$0xff]
                  %720 = vst [vmem:[%s662 + $0xe0] sm:$0xff] %v719
                  %v721 = vld [vmem:[%s661 + $0x1d0] sm:$0xff]
                  %722 = vst [vmem:[%s662 + $0xe8] sm:$0xff] %v721
                  %v723 = vld [vmem:[%s661 + $0x1e0] sm:$0xff]
                  %724 = vst [vmem:[%s662 + $0xf0] sm:$0xff] %v723
                  %v725 = vld [vmem:[%s661 + $0x1f0] sm:$0xff]
                  %726 = vst [vmem:[%s662 + $0xf8] sm:$0xff] %v725
                $region124: #{tpu_custom_call.1} parent=118 // loop_footer
                  %s660 = sadd.s32 1, %s656
                $region125: #{tpu_custom_call.1} parent=118 // loop_footer_branch
                  %655 = sbr.rel target = $region121
                $region126: #{tpu_custom_call.1} parent=118 // loop_exit
                  _
              $region119: #{tpu_custom_call.1} parent=103 // pred_fallthru
                _
              // Predicated region
              $region127: #{tpu_custom_call.1} parent=103 // pred_check
                _
              $region128: #{tpu_custom_call.1} parent=103 // pred_check_branch
                %728 = sbr.rel target = $region130
              $region129: #{tpu_custom_call.1} parent=103 // pred_region
                _
              $region130: #{tpu_custom_call.1} parent=103 // pred_fallthru
                _
            $region104: #{tpu_custom_call.1} parent=99 // pred_fallthru
              _
            // Predicated region
            $region105: #{tpu_custom_call.1} parent=99 // pred_check
              _
            $region106: #{tpu_custom_call.1} parent=99 // pred_check_branch
              %579 = sbr.rel target = $region108
            $region107: #{tpu_custom_call.1} parent=99 // pred_region
              loop: start=0, step=1, limit=1
              $region109: #{tpu_custom_call.1} parent=107 // loop_pre_header
                _
              $region110: #{tpu_custom_call.1} parent=107 // loop_header
                %s582 = sphi 0, %s586
                %p583 = scmp.ge.s32.totalorder %s582, 1
                %s587 = sphi %s573, %s573
                %s588 = sphi %s571, %s571
              $region111: #{tpu_custom_call.1} parent=107 // loop_header_branch
                %585 = sbr.rel (%p583) target = $region115
              $region112: #{tpu_custom_call.1} parent=107 // loop_body
                %v589 = vld [vmem:[%s587] sm:$0xff]
                %590 = vst [vmem:[%s588] sm:$0xff] %v589
                %v591 = vld [vmem:[%s587 + $0x10] sm:$0xff]
                %592 = vst [vmem:[%s588 + $0x8] sm:$0xff] %v591
                %v593 = vld [vmem:[%s587 + $0x20] sm:$0xff]
                %594 = vst [vmem:[%s588 + $0x10] sm:$0xff] %v593
                %v595 = vld [vmem:[%s587 + $0x30] sm:$0xff]
                %596 = vst [vmem:[%s588 + $0x18] sm:$0xff] %v595
                %v597 = vld [vmem:[%s587 + $0x40] sm:$0xff]
                %598 = vst [vmem:[%s588 + $0x20] sm:$0xff] %v597
                %v599 = vld [vmem:[%s587 + $0x50] sm:$0xff]
                %600 = vst [vmem:[%s588 + $0x28] sm:$0xff] %v599
                %v601 = vld [vmem:[%s587 + $0x60] sm:$0xff]
                %602 = vst [vmem:[%s588 + $0x30] sm:$0xff] %v601
                %v603 = vld [vmem:[%s587 + $0x70] sm:$0xff]
                %604 = vst [vmem:[%s588 + $0x38] sm:$0xff] %v603
                %v605 = vld [vmem:[%s587 + $0x80] sm:$0xff]
                %606 = vst [vmem:[%s588 + $0x40] sm:$0xff] %v605
                %v607 = vld [vmem:[%s587 + $0x90] sm:$0xff]
                %608 = vst [vmem:[%s588 + $0x48] sm:$0xff] %v607
                %v609 = vld [vmem:[%s587 + $0xa0] sm:$0xff]
                %610 = vst [vmem:[%s588 + $0x50] sm:$0xff] %v609
                %v611 = vld [vmem:[%s587 + $0xb0] sm:$0xff]
                %612 = vst [vmem:[%s588 + $0x58] sm:$0xff] %v611
                %v613 = vld [vmem:[%s587 + $0xc0] sm:$0xff]
                %614 = vst [vmem:[%s588 + $0x60] sm:$0xff] %v613
                %v615 = vld [vmem:[%s587 + $0xd0] sm:$0xff]
                %616 = vst [vmem:[%s588 + $0x68] sm:$0xff] %v615
                %v617 = vld [vmem:[%s587 + $0xe0] sm:$0xff]
                %618 = vst [vmem:[%s588 + $0x70] sm:$0xff] %v617
                %v619 = vld [vmem:[%s587 + $0xf0] sm:$0xff]
                %620 = vst [vmem:[%s588 + $0x78] sm:$0xff] %v619
                %v621 = vld [vmem:[%s587 + $0x100] sm:$0xff]
                %622 = vst [vmem:[%s588 + $0x80] sm:$0xff] %v621
                %v623 = vld [vmem:[%s587 + $0x110] sm:$0xff]
                %624 = vst [vmem:[%s588 + $0x88] sm:$0xff] %v623
                %v625 = vld [vmem:[%s587 + $0x120] sm:$0xff]
                %626 = vst [vmem:[%s588 + $0x90] sm:$0xff] %v625
                %v627 = vld [vmem:[%s587 + $0x130] sm:$0xff]
                %628 = vst [vmem:[%s588 + $0x98] sm:$0xff] %v627
                %v629 = vld [vmem:[%s587 + $0x140] sm:$0xff]
                %630 = vst [vmem:[%s588 + $0xa0] sm:$0xff] %v629
                %v631 = vld [vmem:[%s587 + $0x150] sm:$0xff]
                %632 = vst [vmem:[%s588 + $0xa8] sm:$0xff] %v631
                %v633 = vld [vmem:[%s587 + $0x160] sm:$0xff]
                %634 = vst [vmem:[%s588 + $0xb0] sm:$0xff] %v633
                %v635 = vld [vmem:[%s587 + $0x170] sm:$0xff]
                %636 = vst [vmem:[%s588 + $0xb8] sm:$0xff] %v635
                %v637 = vld [vmem:[%s587 + $0x180] sm:$0xff]
                %638 = vst [vmem:[%s588 + $0xc0] sm:$0xff] %v637
                %v639 = vld [vmem:[%s587 + $0x190] sm:$0xff]
                %640 = vst [vmem:[%s588 + $0xc8] sm:$0xff] %v639
                %v641 = vld [vmem:[%s587 + $0x1a0] sm:$0xff]
                %642 = vst [vmem:[%s588 + $0xd0] sm:$0xff] %v641
                %v643 = vld [vmem:[%s587 + $0x1b0] sm:$0xff]
                %644 = vst [vmem:[%s588 + $0xd8] sm:$0xff] %v643
                %v645 = vld [vmem:[%s587 + $0x1c0] sm:$0xff]
                %646 = vst [vmem:[%s588 + $0xe0] sm:$0xff] %v645
                %v647 = vld [vmem:[%s587 + $0x1d0] sm:$0xff]
                %648 = vst [vmem:[%s588 + $0xe8] sm:$0xff] %v647
                %v649 = vld [vmem:[%s587 + $0x1e0] sm:$0xff]
                %650 = vst [vmem:[%s588 + $0xf0] sm:$0xff] %v649
                %v651 = vld [vmem:[%s587 + $0x1f0] sm:$0xff]
                %652 = vst [vmem:[%s588 + $0xf8] sm:$0xff] %v651
              $region113: #{tpu_custom_call.1} parent=107 // loop_footer
                %s586 = sadd.s32 1, %s582
              $region114: #{tpu_custom_call.1} parent=107 // loop_footer_branch
                %581 = sbr.rel target = $region110
              $region115: #{tpu_custom_call.1} parent=107 // loop_exit
                _
            $region108: #{tpu_custom_call.1} parent=99 // pred_fallthru
              _
          $region100: #{tpu_custom_call.1} parent=95 // pred_fallthru
            _
          %729 = vnop
        $region96: #{tpu_custom_call.1} parent=87 // pred_fallthru
          _
      $region88: #{tpu_custom_call.1} parent=5 // pred_fallthru
        _
      %p730 = scmp.le.s32.totalorder 1, %s29
      %p731 = scmp.lt.s32.totalorder %s29, 3
      %p732 = pnand %p730, %p731
      %p733 = pneg %p732
      // Predicated region
      $region131: #{tpu_custom_call.1} parent=5 // pred_check
        _
      $region132: #{tpu_custom_call.1} parent=5 // pred_check_branch
        %735 = sbr.rel (%p732) target = $region134
      $region133: #{tpu_custom_call.1} parent=5 // pred_region
        %s736 = ssub.s32 %s29, 1
        %s737 = sand.u32 %s68, 1
        %s738 = sand.u32 %s68, 1
        %s739 = smul.addr %s738, 256
        %s740 = scalar_lea.vmem [#allocation2], %s739
        // Predicated region
        $region135: #{tpu_custom_call.1} parent=133 // pred_check
          %p741 = pneg %p81
        $region136: #{tpu_custom_call.1} parent=133 // pred_check_branch
          %743 = sbr.rel (%p741) target = $region138
        $region137: #{tpu_custom_call.1} parent=133 // pred_region
          _
        $region138: #{tpu_custom_call.1} parent=133 // pred_fallthru
          _
        %p744 = scmp.lt.s32.totalorder %s34, 1
        %s745 = scalar_select %p744, %s34, 1
        %s746 = smul.addr %s745, 8
        %s747 = scalar_lea.vmem %s0, %s746
        %p748 = pneg %p55
        %p749 = pneg %p52
        %s750 = sand.u32 %s68, 1
        %s751 = sand.u32 %s68, 1
        %s752 = smul.addr %s751, 256
        %s753 = scalar_lea.vmem [#allocation2], %s752
        %p754 = pneg %p81
        %p755 = pneg %p78
        %p756 = pneg %p102
        %p757 = pneg %p99
        %p758 = pneg %p123
        %p759 = pneg %p120
        %p760 = pneg %p144
        %p761 = pneg %p141
        %p762 = pneg %p165
        %p763 = pneg %p162
        %p764 = pneg %p186
        %p765 = pneg %p183
        %p766 = pneg %p207
        %p767 = pneg %p204
        %p768 = pneg %p228
        %p769 = pneg %p225
        %p770 = pneg %p249
        %p771 = pneg %p246
        %p772 = pneg %p270
        %p773 = pneg %p267
        %p774 = pneg %p291
        %p775 = pneg %p288
        %p776 = pneg %p312
        %p777 = pneg %p309
        %p778 = pneg %p333
        %p779 = pneg %p330
        %p780 = pneg %p354
        %p781 = pneg %p351
        %p782 = pneg %p375
        %p783 = pneg %p372
        %p784 = pneg %p396
        %p785 = pneg %p393
        %p786 = pneg %p417
        %p787 = pneg %p414
        %p788 = pneg %p438
        %p789 = pneg %p435
        %p790 = pneg %p459
        %p791 = pneg %p456
        %p792 = pneg %p485
        %p793 = pneg %p482
        %s794 = sand.u32 %s472, 1
        %s795 = scalar_lea.sflag [#allocation4], %s794
        %s796 = sand.u32 %s472, 1
        %s797 = smul.addr %s796, 8
        %s798 = scalar_lea.vmem [#allocation3], %s797
        %p799 = scmp.lt.s32.totalorder %s34, 1
        %s800 = scalar_select %p799, %s34, 1
        %s801 = smul.addr %s800, 8
        %s802 = scalar_lea.vmem %s0, %s801
        %v803 = vld [vmem:[%s802] sm:$0xff]
        %v804 = vld [vmem:[%s740] sm:$0xff]
        %v805 = vld [vmem:[%s740 + $0x8] sm:$0xff]
        %v806 = vld [vmem:[%s740 + $0x10] sm:$0xff]
        %v807 = vld [vmem:[%s740 + $0x18] sm:$0xff]
        %v808 = vld [vmem:[%s740 + $0x20] sm:$0xff]
        %v809 = vld [vmem:[%s740 + $0x28] sm:$0xff]
        %v810 = vld [vmem:[%s740 + $0x30] sm:$0xff]
        %v811 = vld [vmem:[%s740 + $0x38] sm:$0xff]
        %v812 = vld [vmem:[%s740 + $0x40] sm:$0xff]
        %v813 = vld [vmem:[%s740 + $0x48] sm:$0xff]
        %v814 = vld [vmem:[%s740 + $0x50] sm:$0xff]
        %v815 = vld [vmem:[%s740 + $0x58] sm:$0xff]
        %v816 = vld [vmem:[%s740 + $0x60] sm:$0xff]
        %v817 = vld [vmem:[%s740 + $0x68] sm:$0xff]
        %v818 = vld [vmem:[%s740 + $0x70] sm:$0xff]
        %v819 = vld [vmem:[%s740 + $0x78] sm:$0xff]
        %v820 = vld [vmem:[%s740 + $0x80] sm:$0xff]
        %v821 = vld [vmem:[%s740 + $0x88] sm:$0xff]
        %v822 = vld [vmem:[%s740 + $0x90] sm:$0xff]
        %v823 = vld [vmem:[%s740 + $0x98] sm:$0xff]
        %v824 = vld [vmem:[%s740 + $0xa0] sm:$0xff]
        %v825 = vld [vmem:[%s740 + $0xa8] sm:$0xff]
        %v826 = vld [vmem:[%s740 + $0xb0] sm:$0xff]
        %v827 = vld [vmem:[%s740 + $0xb8] sm:$0xff]
        %v828 = vld [vmem:[%s740 + $0xc0] sm:$0xff]
        %v829 = vld [vmem:[%s740 + $0xc8] sm:$0xff]
        %v830 = vld [vmem:[%s740 + $0xd0] sm:$0xff]
        %v831 = vld [vmem:[%s740 + $0xd8] sm:$0xff]
        %v832 = vld [vmem:[%s740 + $0xe0] sm:$0xff]
        %v833 = vld [vmem:[%s740 + $0xe8] sm:$0xff]
        %v834 = vld [vmem:[%s740 + $0xf0] sm:$0xff]
        %v835 = vld [vmem:[%s740 + $0xf8] sm:$0xff]
        %v836 = vld [vmem:[%s2] sm:$0xff]
        %v837 = vld [vmem:[%s3] sm:$0x1]
        %v839 = vlaneseq
        %v840 = vshrl.u32 %v839, 7
        %v841 = vsub.s32 0, %v840
        %v842 = vrot.slane %v837, %v841
        %vm844 = vcmask 64512
        %v846 = vsel %vm844, %v804, 0
        %v849 = vsel %vm844, %v805, 0
        %v852 = vsel %vm844, %v806, 0
        %v855 = vsel %vm844, %v807, 0
        %v858 = vsel %vm844, %v808, 0
        %v861 = vsel %vm844, %v809, 0
        %v864 = vsel %vm844, %v810, 0
        %v867 = vsel %vm844, %v811, 0
        %v870 = vsel %vm844, %v812, 0
        %v873 = vsel %vm844, %v813, 0
        %v876 = vsel %vm844, %v814, 0
        %v879 = vsel %vm844, %v815, 0
        %v882 = vsel %vm844, %v816, 0
        %v885 = vsel %vm844, %v817, 0
        %v888 = vsel %vm844, %v818, 0
        %v891 = vsel %vm844, %v819, 0
        %v894 = vsel %vm844, %v820, 0
        %v897 = vsel %vm844, %v821, 0
        %v900 = vsel %vm844, %v822, 0
        %v903 = vsel %vm844, %v823, 0
        %v906 = vsel %vm844, %v824, 0
        %v909 = vsel %vm844, %v825, 0
        %v912 = vsel %vm844, %v826, 0
        %v915 = vsel %vm844, %v827, 0
        %v918 = vsel %vm844, %v828, 0
        %v921 = vsel %vm844, %v829, 0
        %v924 = vsel %vm844, %v830, 0
        %v927 = vsel %vm844, %v831, 0
        %v930 = vsel %vm844, %v832, 0
        %v933 = vsel %vm844, %v833, 0
        %v936 = vsel %vm844, %v834, 0
        %v939 = vsel %vm844, %v835, 0
        %941 = vmatprep.subr.mxu0 0.0
        %942 = vmatpush1.msra.mxu0 %v836
        %943 = vmatprep.subr.mxu0 0.0
        %944 = vmatpush1.msra.mxu0 0.0
        %945 = vmatprep.subr.mxu0 0.0
        %946 = vmatpush1.msra.mxu0 0.0
        %947 = vmatprep.subr.mxu0 0.0
        %948 = vmatpush1.msra.mxu0 0.0
        %949 = vmatprep.subr.mxu0 0.0
        %950 = vmatpush1.msra.mxu0 0.0
        %951 = vmatprep.subr.mxu0 0.0
        %952 = vmatpush1.msra.mxu0 0.0
        %953 = vmatprep.subr.mxu0 0.0
        %954 = vmatpush1.msra.mxu0 0.0
        %955 = vmatprep.subr.mxu0 0.0
        %956 = vmatpush1.msra.mxu0 0.0
        %957 = vmatprep.subr.mxu0 0.0
        %958 = vmatpush1.msra.mxu0 0.0
        %959 = vmatprep.subr.mxu0 0.0
        %960 = vmatpush1.msra.mxu0 0.0
        %961 = vmatprep.subr.mxu0 0.0
        %962 = vmatpush1.msra.mxu0 0.0
        %963 = vmatprep.subr.mxu0 0.0
        %964 = vmatpush1.msra.mxu0 0.0
        %965 = vmatprep.subr.mxu0 0.0
        %966 = vmatpush1.msra.mxu0 0.0
        %967 = vmatprep.subr.mxu0 0.0
        %968 = vmatpush1.msra.mxu0 0.0
        %969 = vmatprep.subr.mxu0 0.0
        %970 = vmatpush1.msra.mxu0 0.0
        %971 = vmatprep.subr.mxu0 0.0
        %972 = vmatpush1.msra.mxu0 0.0
        %973 = vmatprep.subr.mxu0 0.0
        %974 = vmatpush1.msra.mxu0 0.0
        %975 = vmatprep.subr.mxu0 0.0
        %976 = vmatpush1.msra.mxu0 0.0
        %977 = vmatprep.subr.mxu0 0.0
        %978 = vmatpush1.msra.mxu0 0.0
        %979 = vmatprep.subr.mxu0 0.0
        %980 = vmatpush1.msra.mxu0 0.0
        %981 = vmatprep.subr.mxu0 0.0
        %982 = vmatpush1.msra.mxu0 0.0
        %983 = vmatprep.subr.mxu0 0.0
        %984 = vmatpush1.msra.mxu0 0.0
        %985 = vmatprep.subr.mxu0 0.0
        %986 = vmatpush1.msra.mxu0 0.0
        %987 = vmatprep.subr.mxu0 0.0
        %988 = vmatpush1.msra.mxu0 0.0
        %989 = vmatprep.subr.mxu0 0.0
        %990 = vmatpush1.msra.mxu0 0.0
        %991 = vmatprep.subr.mxu0 0.0
        %992 = vmatpush1.msra.mxu0 0.0
        %993 = vmatprep.subr.mxu0 0.0
        %994 = vmatpush1.msra.mxu0 0.0
        %995 = vmatprep.subr.mxu0 0.0
        %996 = vmatpush1.msra.mxu0 0.0
        %997 = vmatprep.subr.mxu0 0.0
        %998 = vmatpush1.msra.mxu0 0.0
        %999 = vmatprep.subr.mxu0 0.0
        %1000 = vmatpush1.msra.mxu0 0.0
        %1001 = vmatprep.subr.mxu0 0.0
        %1002 = vmatpush1.msra.mxu0 0.0
        %1003 = vmatprep.subr.mxu0 0.0
        %1004 = vmatpush1.msra.mxu0 0.0
        %1005 = vmatprep.mubr.f32.mxu0 0.0
        %1006 = vmatmul.mubr.f32.gmra.mrb[0].mxu0 %v846
        %v1007 = vpop.f32.mrb[0].mxu0
        %v1008 = vadd.f32 %v842, %v1007
        %v1009 = vpop.f32.mrb[0].mxu0
        %1010 = vmatprep.mubr.f32.mxu0 0.0
        %1011 = vmatmul.mubr.f32.gmra.mrb[0].mxu0 %v849
        %v1012 = vpop.f32.mrb[0].mxu0
        %v1013 = vadd.f32 %v842, %v1012
        %v1014 = vpop.f32.mrb[0].mxu0
        %1015 = vmatprep.mubr.f32.mxu0 0.0
        %1016 = vmatmul.mubr.f32.gmra.mrb[0].mxu0 %v852
        %v1017 = vpop.f32.mrb[0].mxu0
        %v1018 = vadd.f32 %v842, %v1017
        %v1019 = vpop.f32.mrb[0].mxu0
        %1020 = vmatprep.mubr.f32.mxu0 0.0
        %1021 = vmatmul.mubr.f32.gmra.mrb[0].mxu0 %v855
        %v1022 = vpop.f32.mrb[0].mxu0
        %v1023 = vadd.f32 %v842, %v1022
        %v1024 = vpop.f32.mrb[0].mxu0
        %1025 = vmatprep.mubr.f32.mxu0 0.0
        %1026 = vmatmul.mubr.f32.gmra.mrb[0].mxu0 %v858
        %v1027 = vpop.f32.mrb[0].mxu0
        %v1028 = vadd.f32 %v842, %v1027
        %v1029 = vpop.f32.mrb[0].mxu0
        %1030 = vmatprep.mubr.f32.mxu0 0.0
        %1031 = vmatmul.mubr.f32.gmra.mrb[0].mxu0 %v861
        %v1032 = vpop.f32.mrb[0].mxu0
        %v1033 = vadd.f32 %v842, %v1032
        %v1034 = vpop.f32.mrb[0].mxu0
        %1035 = vmatprep.mubr.f32.mxu0 0.0
        %1036 = vmatmul.mubr.f32.gmra.mrb[0].mxu0 %v864
        %v1037 = vpop.f32.mrb[0].mxu0
        %v1038 = vadd.f32 %v842, %v1037
        %v1039 = vpop.f32.mrb[0].mxu0
        %1040 = vmatprep.mubr.f32.mxu0 0.0
        %1041 = vmatmul.mubr.f32.gmra.mrb[0].mxu0 %v867
        %v1042 = vpop.f32.mrb[0].mxu0
        %v1043 = vadd.f32 %v842, %v1042
        %v1044 = vpop.f32.mrb[0].mxu0
        %1045 = vmatprep.mubr.f32.mxu0 0.0
        %1046 = vmatmul.mubr.f32.gmra.mrb[0].mxu0 %v870
        %v1047 = vpop.f32.mrb[0].mxu0
        %v1048 = vadd.f32 %v842, %v1047
        %v1049 = vpop.f32.mrb[0].mxu0
        %1050 = vmatprep.mubr.f32.mxu0 0.0
        %1051 = vmatmul.mubr.f32.gmra.mrb[0].mxu0 %v873
        %v1052 = vpop.f32.mrb[0].mxu0
        %v1053 = vadd.f32 %v842, %v1052
        %v1054 = vpop.f32.mrb[0].mxu0
        %1055 = vmatprep.mubr.f32.mxu0 0.0
        %1056 = vmatmul.mubr.f32.gmra.mrb[0].mxu0 %v876
        %v1057 = vpop.f32.mrb[0].mxu0
        %v1058 = vadd.f32 %v842, %v1057
        %v1059 = vpop.f32.mrb[0].mxu0
        %1060 = vmatprep.mubr.f32.mxu0 0.0
        %1061 = vmatmul.mubr.f32.gmra.mrb[0].mxu0 %v879
        %v1062 = vpop.f32.mrb[0].mxu0
        %v1063 = vadd.f32 %v842, %v1062
        %v1064 = vpop.f32.mrb[0].mxu0
        %1065 = vmatprep.mubr.f32.mxu0 0.0
        %1066 = vmatmul.mubr.f32.gmra.mrb[0].mxu0 %v882
        %v1067 = vpop.f32.mrb[0].mxu0
        %v1068 = vadd.f32 %v842, %v1067
        %v1069 = vpop.f32.mrb[0].mxu0
        %1070 = vmatprep.mubr.f32.mxu0 0.0
        %1071 = vmatmul.mubr.f32.gmra.mrb[0].mxu0 %v885
        %v1072 = vpop.f32.mrb[0].mxu0
        %v1073 = vadd.f32 %v842, %v1072
        %v1074 = vpop.f32.mrb[0].mxu0
        %1075 = vmatprep.mubr.f32.mxu0 0.0
        %1076 = vmatmul.mubr.f32.gmra.mrb[0].mxu0 %v888
        %v1077 = vpop.f32.mrb[0].mxu0
        %v1078 = vadd.f32 %v842, %v1077
        %v1079 = vpop.f32.mrb[0].mxu0
        %1080 = vmatprep.mubr.f32.mxu0 0.0
        %1081 = vmatmul.mubr.f32.gmra.mrb[0].mxu0 %v891
        %v1082 = vpop.f32.mrb[0].mxu0
        %v1083 = vadd.f32 %v842, %v1082
        %v1084 = vpop.f32.mrb[0].mxu0
        %1085 = vmatprep.mubr.f32.mxu0 0.0
        %1086 = vmatmul.mubr.f32.gmra.mrb[0].mxu0 %v894
        %v1087 = vpop.f32.mrb[0].mxu0
        %v1088 = vadd.f32 %v842, %v1087
        %v1089 = vpop.f32.mrb[0].mxu0
        %1090 = vmatprep.mubr.f32.mxu0 0.0
        %1091 = vmatmul.mubr.f32.gmra.mrb[0].mxu0 %v897
        %v1092 = vpop.f32.mrb[0].mxu0
        %v1093 = vadd.f32 %v842, %v1092
        %v1094 = vpop.f32.mrb[0].mxu0
        %1095 = vmatprep.mubr.f32.mxu0 0.0
        %1096 = vmatmul.mubr.f32.gmra.mrb[0].mxu0 %v900
        %v1097 = vpop.f32.mrb[0].mxu0
        %v1098 = vadd.f32 %v842, %v1097
        %v1099 = vpop.f32.mrb[0].mxu0
        %1100 = vmatprep.mubr.f32.mxu0 0.0
        %1101 = vmatmul.mubr.f32.gmra.mrb[0].mxu0 %v903
        %v1102 = vpop.f32.mrb[0].mxu0
        %v1103 = vadd.f32 %v842, %v1102
        %v1104 = vpop.f32.mrb[0].mxu0
        %1105 = vmatprep.mubr.f32.mxu0 0.0
        %1106 = vmatmul.mubr.f32.gmra.mrb[0].mxu0 %v906
        %v1107 = vpop.f32.mrb[0].mxu0
        %v1108 = vadd.f32 %v842, %v1107
        %v1109 = vpop.f32.mrb[0].mxu0
        %1110 = vmatprep.mubr.f32.mxu0 0.0
        %1111 = vmatmul.mubr.f32.gmra.mrb[0].mxu0 %v909
        %v1112 = vpop.f32.mrb[0].mxu0
        %v1113 = vadd.f32 %v842, %v1112
        %v1114 = vpop.f32.mrb[0].mxu0
        %1115 = vmatprep.mubr.f32.mxu0 0.0
        %1116 = vmatmul.mubr.f32.gmra.mrb[0].mxu0 %v912
        %v1117 = vpop.f32.mrb[0].mxu0
        %v1118 = vadd.f32 %v842, %v1117
        %v1119 = vpop.f32.mrb[0].mxu0
        %1120 = vmatprep.mubr.f32.mxu0 0.0
        %1121 = vmatmul.mubr.f32.gmra.mrb[0].mxu0 %v915
        %v1122 = vpop.f32.mrb[0].mxu0
        %v1123 = vadd.f32 %v842, %v1122
        %v1124 = vpop.f32.mrb[0].mxu0
        %1125 = vmatprep.mubr.f32.mxu0 0.0
        %1126 = vmatmul.mubr.f32.gmra.mrb[0].mxu0 %v918
        %v1127 = vpop.f32.mrb[0].mxu0
        %v1128 = vadd.f32 %v842, %v1127
        %v1129 = vpop.f32.mrb[0].mxu0
        %1130 = vmatprep.mubr.f32.mxu0 0.0
        %1131 = vmatmul.mubr.f32.gmra.mrb[0].mxu0 %v921
        %v1132 = vpop.f32.mrb[0].mxu0
        %v1133 = vadd.f32 %v842, %v1132
        %v1134 = vpop.f32.mrb[0].mxu0
        %1135 = vmatprep.mubr.f32.mxu0 0.0
        %1136 = vmatmul.mubr.f32.gmra.mrb[0].mxu0 %v924
        %v1137 = vpop.f32.mrb[0].mxu0
        %v1138 = vadd.f32 %v842, %v1137
        %v1139 = vpop.f32.mrb[0].mxu0
        %1140 = vmatprep.mubr.f32.mxu0 0.0
        %1141 = vmatmul.mubr.f32.gmra.mrb[0].mxu0 %v927
        %v1142 = vpop.f32.mrb[0].mxu0
        %v1143 = vadd.f32 %v842, %v1142
        %v1144 = vpop.f32.mrb[0].mxu0
        %1145 = vmatprep.mubr.f32.mxu0 0.0
        %1146 = vmatmul.mubr.f32.gmra.mrb[0].mxu0 %v930
        %v1147 = vpop.f32.mrb[0].mxu0
        %v1148 = vadd.f32 %v842, %v1147
        %v1149 = vpop.f32.mrb[0].mxu0
        %1150 = vmatprep.mubr.f32.mxu0 0.0
        %1151 = vmatmul.mubr.f32.gmra.mrb[0].mxu0 %v933
        %v1152 = vpop.f32.mrb[0].mxu0
        %v1153 = vadd.f32 %v842, %v1152
        %v1154 = vpop.f32.mrb[0].mxu0
        %1155 = vmatprep.mubr.f32.mxu0 0.0
        %1156 = vmatmul.mubr.f32.gmra.mrb[0].mxu0 %v936
        %v1157 = vpop.f32.mrb[0].mxu0
        %v1158 = vadd.f32 %v842, %v1157
        %v1159 = vpop.f32.mrb[0].mxu0
        %1160 = vmatprep.mubr.f32.mxu0 0.0
        %1161 = vmatmul.mubr.f32.gmra.mrb[0].mxu0 %v939
        %v1162 = vpop.f32.mrb[0].mxu0
        %v1163 = vadd.f32 %v842, %v1162
        %v1164 = vpop.f32.mrb[0].mxu0
        %1165 = vdwg.mxu0
        %v1166 = vadd.f32 %v1008, %v803
        %v1167 = vadd.f32 %v1013, %v803
        %v1168 = vadd.f32 %v1018, %v803
        %v1169 = vadd.f32 %v1023, %v803
        %v1170 = vadd.f32 %v1028, %v803
        %v1171 = vadd.f32 %v1033, %v803
        %v1172 = vadd.f32 %v1038, %v803
        %v1173 = vadd.f32 %v1043, %v803
        %v1174 = vadd.f32 %v1048, %v803
        %v1175 = vadd.f32 %v1053, %v803
        %v1176 = vadd.f32 %v1058, %v803
        %v1177 = vadd.f32 %v1063, %v803
        %v1178 = vadd.f32 %v1068, %v803
        %v1179 = vadd.f32 %v1073, %v803
        %v1180 = vadd.f32 %v1078, %v803
        %v1181 = vadd.f32 %v1083, %v803
        %v1182 = vadd.f32 %v1088, %v803
        %v1183 = vadd.f32 %v1093, %v803
        %v1184 = vadd.f32 %v1098, %v803
        %v1185 = vadd.f32 %v1103, %v803
        %v1186 = vadd.f32 %v1108, %v803
        %v1187 = vadd.f32 %v1113, %v803
        %v1188 = vadd.f32 %v1118, %v803
        %v1189 = vadd.f32 %v1123, %v803
        %v1190 = vadd.f32 %v1128, %v803
        %v1191 = vadd.f32 %v1133, %v803
        %v1192 = vadd.f32 %v1138, %v803
        %v1193 = vadd.f32 %v1143, %v803
        %v1194 = vadd.f32 %v1148, %v803
        %v1195 = vadd.f32 %v1153, %v803
        %v1196 = vadd.f32 %v1158, %v803
        %v1197 = vadd.f32 %v1163, %v803
        %v1198 = vld [vmem:[%s4] sm:$0x1]
        %v1199 = vld [vmem:[%s5] sm:$0x1]
        %vm1200 = vcmask 261120
        %v1201 = vsel %vm1200, %v1166, 0.0
        %1202 = vadd.xlane.f32.xlu0 %v1201
        %v1203 = vpop.xlane.xlu0 %1202
        %v1204 = vsel %vm1200, %v1167, 0.0
        %1205 = vadd.xlane.f32.xlu0 %v1204
        %v1206 = vpop.xlane.xlu0 %1205
        %v1207 = vsel %vm1200, %v1168, 0.0
        %1208 = vadd.xlane.f32.xlu0 %v1207
        %v1209 = vpop.xlane.xlu0 %1208
        %v1210 = vsel %vm1200, %v1169, 0.0
        %1211 = vadd.xlane.f32.xlu0 %v1210
        %v1212 = vpop.xlane.xlu0 %1211
        %v1213 = vsel %vm1200, %v1170, 0.0
        %1214 = vadd.xlane.f32.xlu0 %v1213
        %v1215 = vpop.xlane.xlu0 %1214
        %v1216 = vsel %vm1200, %v1171, 0.0
        %1217 = vadd.xlane.f32.xlu0 %v1216
        %v1218 = vpop.xlane.xlu0 %1217
        %v1219 = vsel %vm1200, %v1172, 0.0
        %1220 = vadd.xlane.f32.xlu0 %v1219
        %v1221 = vpop.xlane.xlu0 %1220
        %v1222 = vsel %vm1200, %v1173, 0.0
        %1223 = vadd.xlane.f32.xlu0 %v1222
        %v1224 = vpop.xlane.xlu0 %1223
        %v1225 = vsel %vm1200, %v1174, 0.0
        %1226 = vadd.xlane.f32.xlu0 %v1225
        %v1227 = vpop.xlane.xlu0 %1226
        %v1228 = vsel %vm1200, %v1175, 0.0
        %1229 = vadd.xlane.f32.xlu0 %v1228
        %v1230 = vpop.xlane.xlu0 %1229
        %v1231 = vsel %vm1200, %v1176, 0.0
        %1232 = vadd.xlane.f32.xlu0 %v1231
        %v1233 = vpop.xlane.xlu0 %1232
        %v1234 = vsel %vm1200, %v1177, 0.0
        %1235 = vadd.xlane.f32.xlu0 %v1234
        %v1236 = vpop.xlane.xlu0 %1235
        %v1237 = vsel %vm1200, %v1178, 0.0
        %1238 = vadd.xlane.f32.xlu0 %v1237
        %v1239 = vpop.xlane.xlu0 %1238
        %v1240 = vsel %vm1200, %v1179, 0.0
        %1241 = vadd.xlane.f32.xlu0 %v1240
        %v1242 = vpop.xlane.xlu0 %1241
        %v1243 = vsel %vm1200, %v1180, 0.0
        %1244 = vadd.xlane.f32.xlu0 %v1243
        %v1245 = vpop.xlane.xlu0 %1244
        %v1246 = vsel %vm1200, %v1181, 0.0
        %1247 = vadd.xlane.f32.xlu0 %v1246
        %v1248 = vpop.xlane.xlu0 %1247
        %v1249 = vsel %vm1200, %v1182, 0.0
        %1250 = vadd.xlane.f32.xlu0 %v1249
        %v1251 = vpop.xlane.xlu0 %1250
        %v1252 = vsel %vm1200, %v1183, 0.0
        %1253 = vadd.xlane.f32.xlu0 %v1252
        %v1254 = vpop.xlane.xlu0 %1253
        %v1255 = vsel %vm1200, %v1184, 0.0
        %1256 = vadd.xlane.f32.xlu0 %v1255
        %v1257 = vpop.xlane.xlu0 %1256
        %v1258 = vsel %vm1200, %v1185, 0.0
        %1259 = vadd.xlane.f32.xlu0 %v1258
        %v1260 = vpop.xlane.xlu0 %1259
        %v1261 = vsel %vm1200, %v1186, 0.0
        %1262 = vadd.xlane.f32.xlu0 %v1261
        %v1263 = vpop.xlane.xlu0 %1262
        %v1264 = vsel %vm1200, %v1187, 0.0
        %1265 = vadd.xlane.f32.xlu0 %v1264
        %v1266 = vpop.xlane.xlu0 %1265
        %v1267 = vsel %vm1200, %v1188, 0.0
        %1268 = vadd.xlane.f32.xlu0 %v1267
        %v1269 = vpop.xlane.xlu0 %1268
        %v1270 = vsel %vm1200, %v1189, 0.0
        %1271 = vadd.xlane.f32.xlu0 %v1270
        %v1272 = vpop.xlane.xlu0 %1271
        %v1273 = vsel %vm1200, %v1190, 0.0
        %1274 = vadd.xlane.f32.xlu0 %v1273
        %v1275 = vpop.xlane.xlu0 %1274
        %v1276 = vsel %vm1200, %v1191, 0.0
        %1277 = vadd.xlane.f32.xlu0 %v1276
        %v1278 = vpop.xlane.xlu0 %1277
        %v1279 = vsel %vm1200, %v1192, 0.0
        %1280 = vadd.xlane.f32.xlu0 %v1279
        %v1281 = vpop.xlane.xlu0 %1280
        %v1282 = vsel %vm1200, %v1193, 0.0
        %1283 = vadd.xlane.f32.xlu0 %v1282
        %v1284 = vpop.xlane.xlu0 %1283
        %v1285 = vsel %vm1200, %v1194, 0.0
        %1286 = vadd.xlane.f32.xlu0 %v1285
        %v1287 = vpop.xlane.xlu0 %1286
        %v1288 = vsel %vm1200, %v1195, 0.0
        %1289 = vadd.xlane.f32.xlu0 %v1288
        %v1290 = vpop.xlane.xlu0 %1289
        %v1291 = vsel %vm1200, %v1196, 0.0
        %1292 = vadd.xlane.f32.xlu0 %v1291
        %v1293 = vpop.xlane.xlu0 %1292
        %v1294 = vsel %vm1200, %v1197, 0.0
        %1295 = vadd.xlane.f32.xlu0 %v1294
        %v1296 = vpop.xlane.xlu0 %1295
        %v1297 = vrcp.pop 32.0
        %v1298 = vmul.f32 %v1203, %v1297
        %v1299 = vmul.f32 %v1206, %v1297
        %v1300 = vmul.f32 %v1209, %v1297
        %v1301 = vmul.f32 %v1212, %v1297
        %v1302 = vmul.f32 %v1215, %v1297
        %v1303 = vmul.f32 %v1218, %v1297
        %v1304 = vmul.f32 %v1221, %v1297
        %v1305 = vmul.f32 %v1224, %v1297
        %v1306 = vmul.f32 %v1227, %v1297
        %v1307 = vmul.f32 %v1230, %v1297
        %v1308 = vmul.f32 %v1233, %v1297
        %v1309 = vmul.f32 %v1236, %v1297
        %v1310 = vmul.f32 %v1239, %v1297
        %v1311 = vmul.f32 %v1242, %v1297
        %v1312 = vmul.f32 %v1245, %v1297
        %v1313 = vmul.f32 %v1248, %v1297
        %v1314 = vmul.f32 %v1251, %v1297
        %v1315 = vmul.f32 %v1254, %v1297
        %v1316 = vmul.f32 %v1257, %v1297
        %v1317 = vmul.f32 %v1260, %v1297
        %v1318 = vmul.f32 %v1263, %v1297
        %v1319 = vmul.f32 %v1266, %v1297
        %v1320 = vmul.f32 %v1269, %v1297
        %v1321 = vmul.f32 %v1272, %v1297
        %v1322 = vmul.f32 %v1275, %v1297
        %v1323 = vmul.f32 %v1278, %v1297
        %v1324 = vmul.f32 %v1281, %v1297
        %v1325 = vmul.f32 %v1284, %v1297
        %v1326 = vmul.f32 %v1287, %v1297
        %v1327 = vmul.f32 %v1290, %v1297
        %v1328 = vmul.f32 %v1293, %v1297
        %v1329 = vmul.f32 %v1296, %v1297
        %v1330 = vsub.f32 %v1166, %v1298
        %v1331 = vsub.f32 %v1167, %v1299
        %v1332 = vsub.f32 %v1168, %v1300
        %v1333 = vsub.f32 %v1169, %v1301
        %v1334 = vsub.f32 %v1170, %v1302
        %v1335 = vsub.f32 %v1171, %v1303
        %v1336 = vsub.f32 %v1172, %v1304
        %v1337 = vsub.f32 %v1173, %v1305
        %v1338 = vsub.f32 %v1174, %v1306
        %v1339 = vsub.f32 %v1175, %v1307
        %v1340 = vsub.f32 %v1176, %v1308
        %v1341 = vsub.f32 %v1177, %v1309
        %v1342 = vsub.f32 %v1178, %v1310
        %v1343 = vsub.f32 %v1179, %v1311
        %v1344 = vsub.f32 %v1180, %v1312
        %v1345 = vsub.f32 %v1181, %v1313
        %v1346 = vsub.f32 %v1182, %v1314
        %v1347 = vsub.f32 %v1183, %v1315
        %v1348 = vsub.f32 %v1184, %v1316
        %v1349 = vsub.f32 %v1185, %v1317
        %v1350 = vsub.f32 %v1186, %v1318
        %v1351 = vsub.f32 %v1187, %v1319
        %v1352 = vsub.f32 %v1188, %v1320
        %v1353 = vsub.f32 %v1189, %v1321
        %v1354 = vsub.f32 %v1190, %v1322
        %v1355 = vsub.f32 %v1191, %v1323
        %v1356 = vsub.f32 %v1192, %v1324
        %v1357 = vsub.f32 %v1193, %v1325
        %v1358 = vsub.f32 %v1194, %v1326
        %v1359 = vsub.f32 %v1195, %v1327
        %v1360 = vsub.f32 %v1196, %v1328
        %v1361 = vsub.f32 %v1197, %v1329
        %v1362 = vmul.f32 %v1330, %v1330
        %v1363 = vmul.f32 %v1331, %v1331
        %v1364 = vmul.f32 %v1332, %v1332
        %v1365 = vmul.f32 %v1333, %v1333
        %v1366 = vmul.f32 %v1334, %v1334
        %v1367 = vmul.f32 %v1335, %v1335
        %v1368 = vmul.f32 %v1336, %v1336
        %v1369 = vmul.f32 %v1337, %v1337
        %v1370 = vmul.f32 %v1338, %v1338
        %v1371 = vmul.f32 %v1339, %v1339
        %v1372 = vmul.f32 %v1340, %v1340
        %v1373 = vmul.f32 %v1341, %v1341
        %v1374 = vmul.f32 %v1342, %v1342
        %v1375 = vmul.f32 %v1343, %v1343
        %v1376 = vmul.f32 %v1344, %v1344
        %v1377 = vmul.f32 %v1345, %v1345
        %v1378 = vmul.f32 %v1346, %v1346
        %v1379 = vmul.f32 %v1347, %v1347
        %v1380 = vmul.f32 %v1348, %v1348
        %v1381 = vmul.f32 %v1349, %v1349
        %v1382 = vmul.f32 %v1350, %v1350
        %v1383 = vmul.f32 %v1351, %v1351
        %v1384 = vmul.f32 %v1352, %v1352
        %v1385 = vmul.f32 %v1353, %v1353
        %v1386 = vmul.f32 %v1354, %v1354
        %v1387 = vmul.f32 %v1355, %v1355
        %v1388 = vmul.f32 %v1356, %v1356
        %v1389 = vmul.f32 %v1357, %v1357
        %v1390 = vmul.f32 %v1358, %v1358
        %v1391 = vmul.f32 %v1359, %v1359
        %v1392 = vmul.f32 %v1360, %v1360
        %v1393 = vmul.f32 %v1361, %v1361
        %v1394 = vsel %vm1200, %v1362, 0.0
        %1395 = vadd.xlane.f32.xlu0 %v1394
        %v1396 = vpop.xlane.xlu0 %1395
        %v1397 = vsel %vm1200, %v1363, 0.0
        %1398 = vadd.xlane.f32.xlu0 %v1397
        %v1399 = vpop.xlane.xlu0 %1398
        %v1400 = vsel %vm1200, %v1364, 0.0
        %1401 = vadd.xlane.f32.xlu0 %v1400
        %v1402 = vpop.xlane.xlu0 %1401
        %v1403 = vsel %vm1200, %v1365, 0.0
        %1404 = vadd.xlane.f32.xlu0 %v1403
        %v1405 = vpop.xlane.xlu0 %1404
        %v1406 = vsel %vm1200, %v1366, 0.0
        %1407 = vadd.xlane.f32.xlu0 %v1406
        %v1408 = vpop.xlane.xlu0 %1407
        %v1409 = vsel %vm1200, %v1367, 0.0
        %1410 = vadd.xlane.f32.xlu0 %v1409
        %v1411 = vpop.xlane.xlu0 %1410
        %v1412 = vsel %vm1200, %v1368, 0.0
        %1413 = vadd.xlane.f32.xlu0 %v1412
        %v1414 = vpop.xlane.xlu0 %1413
        %v1415 = vsel %vm1200, %v1369, 0.0
        %1416 = vadd.xlane.f32.xlu0 %v1415
        %v1417 = vpop.xlane.xlu0 %1416
        %v1418 = vsel %vm1200, %v1370, 0.0
        %1419 = vadd.xlane.f32.xlu0 %v1418
        %v1420 = vpop.xlane.xlu0 %1419
        %v1421 = vsel %vm1200, %v1371, 0.0
        %1422 = vadd.xlane.f32.xlu0 %v1421
        %v1423 = vpop.xlane.xlu0 %1422
        %v1424 = vsel %vm1200, %v1372, 0.0
        %1425 = vadd.xlane.f32.xlu0 %v1424
        %v1426 = vpop.xlane.xlu0 %1425
        %v1427 = vsel %vm1200, %v1373, 0.0
        %1428 = vadd.xlane.f32.xlu0 %v1427
        %v1429 = vpop.xlane.xlu0 %1428
        %v1430 = vsel %vm1200, %v1374, 0.0
        %1431 = vadd.xlane.f32.xlu0 %v1430
        %v1432 = vpop.xlane.xlu0 %1431
        %v1433 = vsel %vm1200, %v1375, 0.0
        %1434 = vadd.xlane.f32.xlu0 %v1433
        %v1435 = vpop.xlane.xlu0 %1434
        %v1436 = vsel %vm1200, %v1376, 0.0
        %1437 = vadd.xlane.f32.xlu0 %v1436
        %v1438 = vpop.xlane.xlu0 %1437
        %v1439 = vsel %vm1200, %v1377, 0.0
        %1440 = vadd.xlane.f32.xlu0 %v1439
        %v1441 = vpop.xlane.xlu0 %1440
        %v1442 = vsel %vm1200, %v1378, 0.0
        %1443 = vadd.xlane.f32.xlu0 %v1442
        %v1444 = vpop.xlane.xlu0 %1443
        %v1445 = vsel %vm1200, %v1379, 0.0
        %1446 = vadd.xlane.f32.xlu0 %v1445
        %v1447 = vpop.xlane.xlu0 %1446
        %v1448 = vsel %vm1200, %v1380, 0.0
        %1449 = vadd.xlane.f32.xlu0 %v1448
        %v1450 = vpop.xlane.xlu0 %1449
        %v1451 = vsel %vm1200, %v1381, 0.0
        %1452 = vadd.xlane.f32.xlu0 %v1451
        %v1453 = vpop.xlane.xlu0 %1452
        %v1454 = vsel %vm1200, %v1382, 0.0
        %1455 = vadd.xlane.f32.xlu0 %v1454
        %v1456 = vpop.xlane.xlu0 %1455
        %v1457 = vsel %vm1200, %v1383, 0.0
        %1458 = vadd.xlane.f32.xlu0 %v1457
        %v1459 = vpop.xlane.xlu0 %1458
        %v1460 = vsel %vm1200, %v1384, 0.0
        %1461 = vadd.xlane.f32.xlu0 %v1460
        %v1462 = vpop.xlane.xlu0 %1461
        %v1463 = vsel %vm1200, %v1385, 0.0
        %1464 = vadd.xlane.f32.xlu0 %v1463
        %v1465 = vpop.xlane.xlu0 %1464
        %v1466 = vsel %vm1200, %v1386, 0.0
        %1467 = vadd.xlane.f32.xlu0 %v1466
        %v1468 = vpop.xlane.xlu0 %1467
        %v1469 = vsel %vm1200, %v1387, 0.0
        %1470 = vadd.xlane.f32.xlu0 %v1469
        %v1471 = vpop.xlane.xlu0 %1470
        %v1472 = vsel %vm1200, %v1388, 0.0
        %1473 = vadd.xlane.f32.xlu0 %v1472
        %v1474 = vpop.xlane.xlu0 %1473
        %v1475 = vsel %vm1200, %v1389, 0.0
        %1476 = vadd.xlane.f32.xlu0 %v1475
        %v1477 = vpop.xlane.xlu0 %1476
        %v1478 = vsel %vm1200, %v1390, 0.0
        %1479 = vadd.xlane.f32.xlu0 %v1478
        %v1480 = vpop.xlane.xlu0 %1479
        %v1481 = vsel %vm1200, %v1391, 0.0
        %1482 = vadd.xlane.f32.xlu0 %v1481
        %v1483 = vpop.xlane.xlu0 %1482
        %v1484 = vsel %vm1200, %v1392, 0.0
        %1485 = vadd.xlane.f32.xlu0 %v1484
        %v1486 = vpop.xlane.xlu0 %1485
        %v1487 = vsel %vm1200, %v1393, 0.0
        %1488 = vadd.xlane.f32.xlu0 %v1487
        %v1489 = vpop.xlane.xlu0 %1488
        %v1490 = vmul.f32 %v1396, %v1297
        %v1491 = vmul.f32 %v1399, %v1297
        %v1492 = vmul.f32 %v1402, %v1297
        %v1493 = vmul.f32 %v1405, %v1297
        %v1494 = vmul.f32 %v1408, %v1297
        %v1495 = vmul.f32 %v1411, %v1297
        %v1496 = vmul.f32 %v1414, %v1297
        %v1497 = vmul.f32 %v1417, %v1297
        %v1498 = vmul.f32 %v1420, %v1297
        %v1499 = vmul.f32 %v1423, %v1297
        %v1500 = vmul.f32 %v1426, %v1297
        %v1501 = vmul.f32 %v1429, %v1297
        %v1502 = vmul.f32 %v1432, %v1297
        %v1503 = vmul.f32 %v1435, %v1297
        %v1504 = vmul.f32 %v1438, %v1297
        %v1505 = vmul.f32 %v1441, %v1297
        %v1506 = vmul.f32 %v1444, %v1297
        %v1507 = vmul.f32 %v1447, %v1297
        %v1508 = vmul.f32 %v1450, %v1297
        %v1509 = vmul.f32 %v1453, %v1297
        %v1510 = vmul.f32 %v1456, %v1297
        %v1511 = vmul.f32 %v1459, %v1297
        %v1512 = vmul.f32 %v1462, %v1297
        %v1513 = vmul.f32 %v1465, %v1297
        %v1514 = vmul.f32 %v1468, %v1297
        %v1515 = vmul.f32 %v1471, %v1297
        %v1516 = vmul.f32 %v1474, %v1297
        %v1517 = vmul.f32 %v1477, %v1297
        %v1518 = vmul.f32 %v1480, %v1297
        %v1519 = vmul.f32 %v1483, %v1297
        %v1520 = vmul.f32 %v1486, %v1297
        %v1521 = vmul.f32 %v1489, %v1297
        %v1522 = vadd.f32 %v1490, 1e-05
        %v1523 = vadd.f32 %v1491, 1e-05
        %v1524 = vadd.f32 %v1492, 1e-05
        %v1525 = vadd.f32 %v1493, 1e-05
        %v1526 = vadd.f32 %v1494, 1e-05
        %v1527 = vadd.f32 %v1495, 1e-05
        %v1528 = vadd.f32 %v1496, 1e-05
        %v1529 = vadd.f32 %v1497, 1e-05
        %v1530 = vadd.f32 %v1498, 1e-05
        %v1531 = vadd.f32 %v1499, 1e-05
        %v1532 = vadd.f32 %v1500, 1e-05
        %v1533 = vadd.f32 %v1501, 1e-05
        %v1534 = vadd.f32 %v1502, 1e-05
        %v1535 = vadd.f32 %v1503, 1e-05
        %v1536 = vadd.f32 %v1504, 1e-05
        %v1537 = vadd.f32 %v1505, 1e-05
        %v1538 = vadd.f32 %v1506, 1e-05
        %v1539 = vadd.f32 %v1507, 1e-05
        %v1540 = vadd.f32 %v1508, 1e-05
        %v1541 = vadd.f32 %v1509, 1e-05
        %v1542 = vadd.f32 %v1510, 1e-05
        %v1543 = vadd.f32 %v1511, 1e-05
        %v1544 = vadd.f32 %v1512, 1e-05
        %v1545 = vadd.f32 %v1513, 1e-05
        %v1546 = vadd.f32 %v1514, 1e-05
        %v1547 = vadd.f32 %v1515, 1e-05
        %v1548 = vadd.f32 %v1516, 1e-05
        %v1549 = vadd.f32 %v1517, 1e-05
        %v1550 = vadd.f32 %v1518, 1e-05
        %v1551 = vadd.f32 %v1519, 1e-05
        %v1552 = vadd.f32 %v1520, 1e-05
        %v1553 = vadd.f32 %v1521, 1e-05
        %v1554 = vrsqrt.pop %v1522
        %v1555 = vrsqrt.pop %v1523
        %v1556 = vrsqrt.pop %v1524
        %v1557 = vrsqrt.pop %v1525
        %v1558 = vrsqrt.pop %v1526
        %v1559 = vrsqrt.pop %v1527
        %v1560 = vrsqrt.pop %v1528
        %v1561 = vrsqrt.pop %v1529
        %v1562 = vrsqrt.pop %v1530
        %v1563 = vrsqrt.pop %v1531
        %v1564 = vrsqrt.pop %v1532
        %v1565 = vrsqrt.pop %v1533
        %v1566 = vrsqrt.pop %v1534
        %v1567 = vrsqrt.pop %v1535
        %v1568 = vrsqrt.pop %v1536
        %v1569 = vrsqrt.pop %v1537
        %v1570 = vrsqrt.pop %v1538
        %v1571 = vrsqrt.pop %v1539
        %v1572 = vrsqrt.pop %v1540
        %v1573 = vrsqrt.pop %v1541
        %v1574 = vrsqrt.pop %v1542
        %v1575 = vrsqrt.pop %v1543
        %v1576 = vrsqrt.pop %v1544
        %v1577 = vrsqrt.pop %v1545
        %v1578 = vrsqrt.pop %v1546
        %v1579 = vrsqrt.pop %v1547
        %v1580 = vrsqrt.pop %v1548
        %v1581 = vrsqrt.pop %v1549
        %v1582 = vrsqrt.pop %v1550
        %v1583 = vrsqrt.pop %v1551
        %v1584 = vrsqrt.pop %v1552
        %v1585 = vrsqrt.pop %v1553
        %v1586 = vmul.f32 %v1330, %v1554
        %v1587 = vmul.f32 %v1331, %v1555
        %v1588 = vmul.f32 %v1332, %v1556
        %v1589 = vmul.f32 %v1333, %v1557
        %v1590 = vmul.f32 %v1334, %v1558
        %v1591 = vmul.f32 %v1335, %v1559
        %v1592 = vmul.f32 %v1336, %v1560
        %v1593 = vmul.f32 %v1337, %v1561
        %v1594 = vmul.f32 %v1338, %v1562
        %v1595 = vmul.f32 %v1339, %v1563
        %v1596 = vmul.f32 %v1340, %v1564
        %v1597 = vmul.f32 %v1341, %v1565
        %v1598 = vmul.f32 %v1342, %v1566
        %v1599 = vmul.f32 %v1343, %v1567
        %v1600 = vmul.f32 %v1344, %v1568
        %v1601 = vmul.f32 %v1345, %v1569
        %v1602 = vmul.f32 %v1346, %v1570
        %v1603 = vmul.f32 %v1347, %v1571
        %v1604 = vmul.f32 %v1348, %v1572
        %v1605 = vmul.f32 %v1349, %v1573
        %v1606 = vmul.f32 %v1350, %v1574
        %v1607 = vmul.f32 %v1351, %v1575
        %v1608 = vmul.f32 %v1352, %v1576
        %v1609 = vmul.f32 %v1353, %v1577
        %v1610 = vmul.f32 %v1354, %v1578
        %v1611 = vmul.f32 %v1355, %v1579
        %v1612 = vmul.f32 %v1356, %v1580
        %v1613 = vmul.f32 %v1357, %v1581
        %v1614 = vmul.f32 %v1358, %v1582
        %v1615 = vmul.f32 %v1359, %v1583
        %v1616 = vmul.f32 %v1360, %v1584
        %v1617 = vmul.f32 %v1361, %v1585
        %v1619 = vlaneseq
        %v1620 = vshrl.u32 %v1619, 7
        %v1621 = vsub.s32 0, %v1620
        %v1622 = vrot.slane %v1198, %v1621
        %v1624 = vmul.f32 %v1586, %v1622
        %v1625 = vmul.f32 %v1587, %v1622
        %v1626 = vmul.f32 %v1588, %v1622
        %v1627 = vmul.f32 %v1589, %v1622
        %v1628 = vmul.f32 %v1590, %v1622
        %v1629 = vmul.f32 %v1591, %v1622
        %v1630 = vmul.f32 %v1592, %v1622
        %v1631 = vmul.f32 %v1593, %v1622
        %v1632 = vmul.f32 %v1594, %v1622
        %v1633 = vmul.f32 %v1595, %v1622
        %v1634 = vmul.f32 %v1596, %v1622
        %v1635 = vmul.f32 %v1597, %v1622
        %v1636 = vmul.f32 %v1598, %v1622
        %v1637 = vmul.f32 %v1599, %v1622
        %v1638 = vmul.f32 %v1600, %v1622
        %v1639 = vmul.f32 %v1601, %v1622
        %v1640 = vmul.f32 %v1602, %v1622
        %v1641 = vmul.f32 %v1603, %v1622
        %v1642 = vmul.f32 %v1604, %v1622
        %v1643 = vmul.f32 %v1605, %v1622
        %v1644 = vmul.f32 %v1606, %v1622
        %v1645 = vmul.f32 %v1607, %v1622
        %v1646 = vmul.f32 %v1608, %v1622
        %v1647 = vmul.f32 %v1609, %v1622
        %v1648 = vmul.f32 %v1610, %v1622
        %v1649 = vmul.f32 %v1611, %v1622
        %v1650 = vmul.f32 %v1612, %v1622
        %v1651 = vmul.f32 %v1613, %v1622
        %v1652 = vmul.f32 %v1614, %v1622
        %v1653 = vmul.f32 %v1615, %v1622
        %v1654 = vmul.f32 %v1616, %v1622
        %v1655 = vmul.f32 %v1617, %v1622
        %v1657 = vlaneseq
        %v1658 = vshrl.u32 %v1657, 7
        %v1659 = vsub.s32 0, %v1658
        %v1660 = vrot.slane %v1199, %v1659
        %v1662 = vadd.f32 %v1624, %v1660
        %v1663 = vadd.f32 %v1625, %v1660
        %v1664 = vadd.f32 %v1626, %v1660
        %v1665 = vadd.f32 %v1627, %v1660
        %v1666 = vadd.f32 %v1628, %v1660
        %v1667 = vadd.f32 %v1629, %v1660
        %v1668 = vadd.f32 %v1630, %v1660
        %v1669 = vadd.f32 %v1631, %v1660
        %v1670 = vadd.f32 %v1632, %v1660
        %v1671 = vadd.f32 %v1633, %v1660
        %v1672 = vadd.f32 %v1634, %v1660
        %v1673 = vadd.f32 %v1635, %v1660
        %v1674 = vadd.f32 %v1636, %v1660
        %v1675 = vadd.f32 %v1637, %v1660
        %v1676 = vadd.f32 %v1638, %v1660
        %v1677 = vadd.f32 %v1639, %v1660
        %v1678 = vadd.f32 %v1640, %v1660
        %v1679 = vadd.f32 %v1641, %v1660
        %v1680 = vadd.f32 %v1642, %v1660
        %v1681 = vadd.f32 %v1643, %v1660
        %v1682 = vadd.f32 %v1644, %v1660
        %v1683 = vadd.f32 %v1645, %v1660
        %v1684 = vadd.f32 %v1646, %v1660
        %v1685 = vadd.f32 %v1647, %v1660
        %v1686 = vadd.f32 %v1648, %v1660
        %v1687 = vadd.f32 %v1649, %v1660
        %v1688 = vadd.f32 %v1650, %v1660
        %v1689 = vadd.f32 %v1651, %v1660
        %v1690 = vadd.f32 %v1652, %v1660
        %v1691 = vadd.f32 %v1653, %v1660
        %v1692 = vadd.f32 %v1654, %v1660
        %v1693 = vadd.f32 %v1655, %v1660
        %v1694 = vld [vmem:[%s8] sm:$0xff]
        %v1695 = vld [vmem:[%s8 + $0x8] sm:$0xff]
        %v1696 = vld [vmem:[%s8 + $0x10] sm:$0xff]
        %v1697 = vld [vmem:[%s8 + $0x18] sm:$0xff]
        %v1698 = vld [vmem:[%s9] sm:$0x1]
        %v1700 = vlaneseq
        %v1701 = vshrl.u32 %v1700, 7
        %v1702 = vsub.s32 0, %v1701
        %v1703 = vrot.slane %v1698, %v1702
        %v1706 = vsel %vm1200, %v1662, 0
        %v1709 = vsel %vm1200, %v1663, 0
        %v1712 = vsel %vm1200, %v1664, 0
        %v1715 = vsel %vm1200, %v1665, 0
        %v1718 = vsel %vm1200, %v1666, 0
        %v1721 = vsel %vm1200, %v1667, 0
        %v1724 = vsel %vm1200, %v1668, 0
        %v1727 = vsel %vm1200, %v1669, 0
        %v1730 = vsel %vm1200, %v1670, 0
        %v1733 = vsel %vm1200, %v1671, 0
        %v1736 = vsel %vm1200, %v1672, 0
        %v1739 = vsel %vm1200, %v1673, 0
        %v1742 = vsel %vm1200, %v1674, 0
        %v1745 = vsel %vm1200, %v1675, 0
        %v1748 = vsel %vm1200, %v1676, 0
        %v1751 = vsel %vm1200, %v1677, 0
        %v1754 = vsel %vm1200, %v1678, 0
        %v1757 = vsel %vm1200, %v1679, 0
        %v1760 = vsel %vm1200, %v1680, 0
        %v1763 = vsel %vm1200, %v1681, 0
        %v1766 = vsel %vm1200, %v1682, 0
        %v1769 = vsel %vm1200, %v1683, 0
        %v1772 = vsel %vm1200, %v1684, 0
        %v1775 = vsel %vm1200, %v1685, 0
        %v1778 = vsel %vm1200, %v1686, 0
        %v1781 = vsel %vm1200, %v1687, 0
        %v1784 = vsel %vm1200, %v1688, 0
        %v1787 = vsel %vm1200, %v1689, 0
        %v1790 = vsel %vm1200, %v1690, 0
        %v1793 = vsel %vm1200, %v1691, 0
        %v1796 = vsel %vm1200, %v1692, 0
        %v1799 = vsel %vm1200, %v1693, 0
        %1801 = vmatprep.subr.mxu0 0.0
        %1802 = vmatpush1.msra.mxu0 %v1694
        %1803 = vmatprep.subr.mxu0 0.0
        %1804 = vmatpush1.msra.mxu0 %v1695
        %1805 = vmatprep.subr.mxu0 0.0
        %1806 = vmatpush1.msra.mxu0 %v1696
        %1807 = vmatprep.subr.mxu0 0.0
        %1808 = vmatpush1.msra.mxu0 %v1697
        %1809 = vmatprep.subr.mxu0 0.0
        %1810 = vmatpush1.msra.mxu0 0.0
        %1811 = vmatprep.subr.mxu0 0.0
        %1812 = vmatpush1.msra.mxu0 0.0
        %1813 = vmatprep.subr.mxu0 0.0
        %1814 = vmatpush1.msra.mxu0 0.0
        %1815 = vmatprep.subr.mxu0 0.0
        %1816 = vmatpush1.msra.mxu0 0.0
        %1817 = vmatprep.subr.mxu0 0.0
        %1818 = vmatpush1.msra.mxu0 0.0
        %1819 = vmatprep.subr.mxu0 0.0
        %1820 = vmatpush1.msra.mxu0 0.0
        %1821 = vmatprep.subr.mxu0 0.0
        %1822 = vmatpush1.msra.mxu0 0.0
        %1823 = vmatprep.subr.mxu0 0.0
        %1824 = vmatpush1.msra.mxu0 0.0
        %1825 = vmatprep.subr.mxu0 0.0
        %1826 = vmatpush1.msra.mxu0 0.0
        %1827 = vmatprep.subr.mxu0 0.0
        %1828 = vmatpush1.msra.mxu0 0.0
        %1829 = vmatprep.subr.mxu0 0.0
        %1830 = vmatpush1.msra.mxu0 0.0
        %1831 = vmatprep.subr.mxu0 0.0
        %1832 = vmatpush1.msra.mxu0 0.0
        %1833 = vmatprep.subr.mxu0 0.0
        %1834 = vmatpush1.msra.mxu0 0.0
        %1835 = vmatprep.subr.mxu0 0.0
        %1836 = vmatpush1.msra.mxu0 0.0
        %1837 = vmatprep.subr.mxu0 0.0
        %1838 = vmatpush1.msra.mxu0 0.0
        %1839 = vmatprep.subr.mxu0 0.0
        %1840 = vmatpush1.msra.mxu0 0.0
        %1841 = vmatprep.subr.mxu0 0.0
        %1842 = vmatpush1.msra.mxu0 0.0
        %1843 = vmatprep.subr.mxu0 0.0
        %1844 = vmatpush1.msra.mxu0 0.0
        %1845 = vmatprep.subr.mxu0 0.0
        %1846 = vmatpush1.msra.mxu0 0.0
        %1847 = vmatprep.subr.mxu0 0.0
        %1848 = vmatpush1.msra.mxu0 0.0
        %1849 = vmatprep.subr.mxu0 0.0
        %1850 = vmatpush1.msra.mxu0 0.0
        %1851 = vmatprep.subr.mxu0 0.0
        %1852 = vmatpush1.msra.mxu0 0.0
        %1853 = vmatprep.subr.mxu0 0.0
        %1854 = vmatpush1.msra.mxu0 0.0
        %1855 = vmatprep.subr.mxu0 0.0
        %1856 = vmatpush1.msra.mxu0 0.0
        %1857 = vmatprep.subr.mxu0 0.0
        %1858 = vmatpush1.msra.mxu0 0.0
        %1859 = vmatprep.subr.mxu0 0.0
        %1860 = vmatpush1.msra.mxu0 0.0
        %1861 = vmatprep.subr.mxu0 0.0
        %1862 = vmatpush1.msra.mxu0 0.0
        %1863 = vmatprep.subr.mxu0 0.0
        %1864 = vmatpush1.msra.mxu0 0.0
        %1865 = vmatprep.mubr.f32.mxu0 0.0
        %1866 = vmatmul.mubr.f32.gmra.mrb[0].mxu0 %v1706
        %v1867 = vpop.f32.mrb[0].mxu0
        %v1868 = vadd.f32 %v1703, %v1867
        %v1869 = vpop.f32.mrb[0].mxu0
        %1870 = vmatprep.mubr.f32.mxu0 0.0
        %1871 = vmatmul.mubr.f32.gmra.mrb[0].mxu0 %v1709
        %v1872 = vpop.f32.mrb[0].mxu0
        %v1873 = vadd.f32 %v1703, %v1872
        %v1874 = vpop.f32.mrb[0].mxu0
        %1875 = vmatprep.mubr.f32.mxu0 0.0
        %1876 = vmatmul.mubr.f32.gmra.mrb[0].mxu0 %v1712
        %v1877 = vpop.f32.mrb[0].mxu0
        %v1878 = vadd.f32 %v1703, %v1877
        %v1879 = vpop.f32.mrb[0].mxu0
        %1880 = vmatprep.mubr.f32.mxu0 0.0
        %1881 = vmatmul.mubr.f32.gmra.mrb[0].mxu0 %v1715
        %v1882 = vpop.f32.mrb[0].mxu0
        %v1883 = vadd.f32 %v1703, %v1882
        %v1884 = vpop.f32.mrb[0].mxu0
        %1885 = vmatprep.mubr.f32.mxu0 0.0
        %1886 = vmatmul.mubr.f32.gmra.mrb[0].mxu0 %v1718
        %v1887 = vpop.f32.mrb[0].mxu0
        %v1888 = vadd.f32 %v1703, %v1887
        %v1889 = vpop.f32.mrb[0].mxu0
        %1890 = vmatprep.mubr.f32.mxu0 0.0
        %1891 = vmatmul.mubr.f32.gmra.mrb[0].mxu0 %v1721
        %v1892 = vpop.f32.mrb[0].mxu0
        %v1893 = vadd.f32 %v1703, %v1892
        %v1894 = vpop.f32.mrb[0].mxu0
        %1895 = vmatprep.mubr.f32.mxu0 0.0
        %1896 = vmatmul.mubr.f32.gmra.mrb[0].mxu0 %v1724
        %v1897 = vpop.f32.mrb[0].mxu0
        %v1898 = vadd.f32 %v1703, %v1897
        %v1899 = vpop.f32.mrb[0].mxu0
        %1900 = vmatprep.mubr.f32.mxu0 0.0
        %1901 = vmatmul.mubr.f32.gmra.mrb[0].mxu0 %v1727
        %v1902 = vpop.f32.mrb[0].mxu0
        %v1903 = vadd.f32 %v1703, %v1902
        %v1904 = vpop.f32.mrb[0].mxu0
        %1905 = vmatprep.mubr.f32.mxu0 0.0
        %1906 = vmatmul.mubr.f32.gmra.mrb[0].mxu0 %v1730
        %v1907 = vpop.f32.mrb[0].mxu0
        %v1908 = vadd.f32 %v1703, %v1907
        %v1909 = vpop.f32.mrb[0].mxu0
        %1910 = vmatprep.mubr.f32.mxu0 0.0
        %1911 = vmatmul.mubr.f32.gmra.mrb[0].mxu0 %v1733
        %v1912 = vpop.f32.mrb[0].mxu0
        %v1913 = vadd.f32 %v1703, %v1912
        %v1914 = vpop.f32.mrb[0].mxu0
        %1915 = vmatprep.mubr.f32.mxu0 0.0
        %1916 = vmatmul.mubr.f32.gmra.mrb[0].mxu0 %v1736
        %v1917 = vpop.f32.mrb[0].mxu0
        %v1918 = vadd.f32 %v1703, %v1917
        %v1919 = vpop.f32.mrb[0].mxu0
        %1920 = vmatprep.mubr.f32.mxu0 0.0
        %1921 = vmatmul.mubr.f32.gmra.mrb[0].mxu0 %v1739
        %v1922 = vpop.f32.mrb[0].mxu0
        %v1923 = vadd.f32 %v1703, %v1922
        %v1924 = vpop.f32.mrb[0].mxu0
        %1925 = vmatprep.mubr.f32.mxu0 0.0
        %1926 = vmatmul.mubr.f32.gmra.mrb[0].mxu0 %v1742
        %v1927 = vpop.f32.mrb[0].mxu0
        %v1928 = vadd.f32 %v1703, %v1927
        %v1929 = vpop.f32.mrb[0].mxu0
        %1930 = vmatprep.mubr.f32.mxu0 0.0
        %1931 = vmatmul.mubr.f32.gmra.mrb[0].mxu0 %v1745
        %v1932 = vpop.f32.mrb[0].mxu0
        %v1933 = vadd.f32 %v1703, %v1932
        %v1934 = vpop.f32.mrb[0].mxu0
        %1935 = vmatprep.mubr.f32.mxu0 0.0
        %1936 = vmatmul.mubr.f32.gmra.mrb[0].mxu0 %v1748
        %v1937 = vpop.f32.mrb[0].mxu0
        %v1938 = vadd.f32 %v1703, %v1937
        %v1939 = vpop.f32.mrb[0].mxu0
        %1940 = vmatprep.mubr.f32.mxu0 0.0
        %1941 = vmatmul.mubr.f32.gmra.mrb[0].mxu0 %v1751
        %v1942 = vpop.f32.mrb[0].mxu0
        %v1943 = vadd.f32 %v1703, %v1942
        %v1944 = vpop.f32.mrb[0].mxu0
        %1945 = vmatprep.mubr.f32.mxu0 0.0
        %1946 = vmatmul.mubr.f32.gmra.mrb[0].mxu0 %v1754
        %v1947 = vpop.f32.mrb[0].mxu0
        %v1948 = vadd.f32 %v1703, %v1947
        %v1949 = vpop.f32.mrb[0].mxu0
        %1950 = vmatprep.mubr.f32.mxu0 0.0
        %1951 = vmatmul.mubr.f32.gmra.mrb[0].mxu0 %v1757
        %v1952 = vpop.f32.mrb[0].mxu0
        %v1953 = vadd.f32 %v1703, %v1952
        %v1954 = vpop.f32.mrb[0].mxu0
        %1955 = vmatprep.mubr.f32.mxu0 0.0
        %1956 = vmatmul.mubr.f32.gmra.mrb[0].mxu0 %v1760
        %v1957 = vpop.f32.mrb[0].mxu0
        %v1958 = vadd.f32 %v1703, %v1957
        %v1959 = vpop.f32.mrb[0].mxu0
        %1960 = vmatprep.mubr.f32.mxu0 0.0
        %1961 = vmatmul.mubr.f32.gmra.mrb[0].mxu0 %v1763
        %v1962 = vpop.f32.mrb[0].mxu0
        %v1963 = vadd.f32 %v1703, %v1962
        %v1964 = vpop.f32.mrb[0].mxu0
        %1965 = vmatprep.mubr.f32.mxu0 0.0
        %1966 = vmatmul.mubr.f32.gmra.mrb[0].mxu0 %v1766
        %v1967 = vpop.f32.mrb[0].mxu0
        %v1968 = vadd.f32 %v1703, %v1967
        %v1969 = vpop.f32.mrb[0].mxu0
        %1970 = vmatprep.mubr.f32.mxu0 0.0
        %1971 = vmatmul.mubr.f32.gmra.mrb[0].mxu0 %v1769
        %v1972 = vpop.f32.mrb[0].mxu0
        %v1973 = vadd.f32 %v1703, %v1972
        %v1974 = vpop.f32.mrb[0].mxu0
        %1975 = vmatprep.mubr.f32.mxu0 0.0
        %1976 = vmatmul.mubr.f32.gmra.mrb[0].mxu0 %v1772
        %v1977 = vpop.f32.mrb[0].mxu0
        %v1978 = vadd.f32 %v1703, %v1977
        %v1979 = vpop.f32.mrb[0].mxu0
        %1980 = vmatprep.mubr.f32.mxu0 0.0
        %1981 = vmatmul.mubr.f32.gmra.mrb[0].mxu0 %v1775
        %v1982 = vpop.f32.mrb[0].mxu0
        %v1983 = vadd.f32 %v1703, %v1982
        %v1984 = vpop.f32.mrb[0].mxu0
        %1985 = vmatprep.mubr.f32.mxu0 0.0
        %1986 = vmatmul.mubr.f32.gmra.mrb[0].mxu0 %v1778
        %v1987 = vpop.f32.mrb[0].mxu0
        %v1988 = vadd.f32 %v1703, %v1987
        %v1989 = vpop.f32.mrb[0].mxu0
        %1990 = vmatprep.mubr.f32.mxu0 0.0
        %1991 = vmatmul.mubr.f32.gmra.mrb[0].mxu0 %v1781
        %v1992 = vpop.f32.mrb[0].mxu0
        %v1993 = vadd.f32 %v1703, %v1992
        %v1994 = vpop.f32.mrb[0].mxu0
        %1995 = vmatprep.mubr.f32.mxu0 0.0
        %1996 = vmatmul.mubr.f32.gmra.mrb[0].mxu0 %v1784
        %v1997 = vpop.f32.mrb[0].mxu0
        %v1998 = vadd.f32 %v1703, %v1997
        %v1999 = vpop.f32.mrb[0].mxu0
        %2000 = vmatprep.mubr.f32.mxu0 0.0
        %2001 = vmatmul.mubr.f32.gmra.mrb[0].mxu0 %v1787
        %v2002 = vpop.f32.mrb[0].mxu0
        %v2003 = vadd.f32 %v1703, %v2002
        %v2004 = vpop.f32.mrb[0].mxu0
        %2005 = vmatprep.mubr.f32.mxu0 0.0
        %2006 = vmatmul.mubr.f32.gmra.mrb[0].mxu0 %v1790
        %v2007 = vpop.f32.mrb[0].mxu0
        %v2008 = vadd.f32 %v1703, %v2007
        %v2009 = vpop.f32.mrb[0].mxu0
        %2010 = vmatprep.mubr.f32.mxu0 0.0
        %2011 = vmatmul.mubr.f32.gmra.mrb[0].mxu0 %v1793
        %v2012 = vpop.f32.mrb[0].mxu0
        %v2013 = vadd.f32 %v1703, %v2012
        %v2014 = vpop.f32.mrb[0].mxu0
        %2015 = vmatprep.mubr.f32.mxu0 0.0
        %2016 = vmatmul.mubr.f32.gmra.mrb[0].mxu0 %v1796
        %v2017 = vpop.f32.mrb[0].mxu0
        %v2018 = vadd.f32 %v1703, %v2017
        %v2019 = vpop.f32.mrb[0].mxu0
        %2020 = vmatprep.mubr.f32.mxu0 0.0
        %2021 = vmatmul.mubr.f32.gmra.mrb[0].mxu0 %v1799
        %v2022 = vpop.f32.mrb[0].mxu0
        %v2023 = vadd.f32 %v1703, %v2022
        %v2024 = vpop.f32.mrb[0].mxu0
        %2025 = vdwg.mxu0
        %v2026 = vld [vmem:[%s10] sm:$0xff]
        %v2027 = vld [vmem:[%s10 + $0x8] sm:$0xff]
        %v2028 = vld [vmem:[%s10 + $0x10] sm:$0xff]
        %v2029 = vld [vmem:[%s10 + $0x18] sm:$0xff]
        %v2030 = vld [vmem:[%s11] sm:$0x1]
        %v2032 = vlaneseq
        %v2033 = vshrl.u32 %v2032, 7
        %v2034 = vsub.s32 0, %v2033
        %v2035 = vrot.slane %v2030, %v2034
        %2037 = vmatprep.subr.mxu0 0.0
        %2038 = vmatpush1.msra.mxu0 %v2026
        %2039 = vmatprep.subr.mxu0 0.0
        %2040 = vmatpush1.msra.mxu0 %v2027
        %2041 = vmatprep.subr.mxu0 0.0
        %2042 = vmatpush1.msra.mxu0 %v2028
        %2043 = vmatprep.subr.mxu0 0.0
        %2044 = vmatpush1.msra.mxu0 %v2029
        %2045 = vmatprep.subr.mxu0 0.0
        %2046 = vmatpush1.msra.mxu0 0.0
        %2047 = vmatprep.subr.mxu0 0.0
        %2048 = vmatpush1.msra.mxu0 0.0
        %2049 = vmatprep.subr.mxu0 0.0
        %2050 = vmatpush1.msra.mxu0 0.0
        %2051 = vmatprep.subr.mxu0 0.0
        %2052 = vmatpush1.msra.mxu0 0.0
        %2053 = vmatprep.subr.mxu0 0.0
        %2054 = vmatpush1.msra.mxu0 0.0
        %2055 = vmatprep.subr.mxu0 0.0
        %2056 = vmatpush1.msra.mxu0 0.0
        %2057 = vmatprep.subr.mxu0 0.0
        %2058 = vmatpush1.msra.mxu0 0.0
        %2059 = vmatprep.subr.mxu0 0.0
        %2060 = vmatpush1.msra.mxu0 0.0
        %2061 = vmatprep.subr.mxu0 0.0
        %2062 = vmatpush1.msra.mxu0 0.0
        %2063 = vmatprep.subr.mxu0 0.0
        %2064 = vmatpush1.msra.mxu0 0.0
        %2065 = vmatprep.subr.mxu0 0.0
        %2066 = vmatpush1.msra.mxu0 0.0
        %2067 = vmatprep.subr.mxu0 0.0
        %2068 = vmatpush1.msra.mxu0 0.0
        %2069 = vmatprep.subr.mxu0 0.0
        %2070 = vmatpush1.msra.mxu0 0.0
        %2071 = vmatprep.subr.mxu0 0.0
        %2072 = vmatpush1.msra.mxu0 0.0
        %2073 = vmatprep.subr.mxu0 0.0
        %2074 = vmatpush1.msra.mxu0 0.0
        %2075 = vmatprep.subr.mxu0 0.0
        %2076 = vmatpush1.msra.mxu0 0.0
        %2077 = vmatprep.subr.mxu0 0.0
        %2078 = vmatpush1.msra.mxu0 0.0
        %2079 = vmatprep.subr.mxu0 0.0
        %2080 = vmatpush1.msra.mxu0 0.0
        %2081 = vmatprep.subr.mxu0 0.0
        %2082 = vmatpush1.msra.mxu0 0.0
        %2083 = vmatprep.subr.mxu0 0.0
        %2084 = vmatpush1.msra.mxu0 0.0
        %2085 = vmatprep.subr.mxu0 0.0
        %2086 = vmatpush1.msra.mxu0 0.0
        %2087 = vmatprep.subr.mxu0 0.0
        %2088 = vmatpush1.msra.mxu0 0.0
        %2089 = vmatprep.subr.mxu0 0.0
        %2090 = vmatpush1.msra.mxu0 0.0
        %2091 = vmatprep.subr.mxu0 0.0
        %2092 = vmatpush1.msra.mxu0 0.0
        %2093 = vmatprep.subr.mxu0 0.0
        %2094 = vmatpush1.msra.mxu0 0.0
        %2095 = vmatprep.subr.mxu0 0.0
        %2096 = vmatpush1.msra.mxu0 0.0
        %2097 = vmatprep.subr.mxu0 0.0
        %2098 = vmatpush1.msra.mxu0 0.0
        %2099 = vmatprep.subr.mxu0 0.0
        %2100 = vmatpush1.msra.mxu0 0.0
        %2101 = vmatprep.mubr.f32.mxu0 0.0
        %2102 = vmatmul.mubr.f32.gmra.mrb[0].mxu0 %v1706
        %v2103 = vpop.f32.mrb[0].mxu0
        %v2104 = vadd.f32 %v2035, %v2103
        %v2105 = vpop.f32.mrb[0].mxu0
        %2106 = vmatprep.mubr.f32.mxu0 0.0
        %2107 = vmatmul.mubr.f32.gmra.mrb[0].mxu0 %v1709
        %v2108 = vpop.f32.mrb[0].mxu0
        %v2109 = vadd.f32 %v2035, %v2108
        %v2110 = vpop.f32.mrb[0].mxu0
        %2111 = vmatprep.mubr.f32.mxu0 0.0
        %2112 = vmatmul.mubr.f32.gmra.mrb[0].mxu0 %v1712
        %v2113 = vpop.f32.mrb[0].mxu0
        %v2114 = vadd.f32 %v2035, %v2113
        %v2115 = vpop.f32.mrb[0].mxu0
        %2116 = vmatprep.mubr.f32.mxu0 0.0
        %2117 = vmatmul.mubr.f32.gmra.mrb[0].mxu0 %v1715
        %v2118 = vpop.f32.mrb[0].mxu0
        %v2119 = vadd.f32 %v2035, %v2118
        %v2120 = vpop.f32.mrb[0].mxu0
        %2121 = vmatprep.mubr.f32.mxu0 0.0
        %2122 = vmatmul.mubr.f32.gmra.mrb[0].mxu0 %v1718
        %v2123 = vpop.f32.mrb[0].mxu0
        %v2124 = vadd.f32 %v2035, %v2123
        %v2125 = vpop.f32.mrb[0].mxu0
        %2126 = vmatprep.mubr.f32.mxu0 0.0
        %2127 = vmatmul.mubr.f32.gmra.mrb[0].mxu0 %v1721
        %v2128 = vpop.f32.mrb[0].mxu0
        %v2129 = vadd.f32 %v2035, %v2128
        %v2130 = vpop.f32.mrb[0].mxu0
        %2131 = vmatprep.mubr.f32.mxu0 0.0
        %2132 = vmatmul.mubr.f32.gmra.mrb[0].mxu0 %v1724
        %v2133 = vpop.f32.mrb[0].mxu0
        %v2134 = vadd.f32 %v2035, %v2133
        %v2135 = vpop.f32.mrb[0].mxu0
        %2136 = vmatprep.mubr.f32.mxu0 0.0
        %2137 = vmatmul.mubr.f32.gmra.mrb[0].mxu0 %v1727
        %v2138 = vpop.f32.mrb[0].mxu0
        %v2139 = vadd.f32 %v2035, %v2138
        %v2140 = vpop.f32.mrb[0].mxu0
        %2141 = vmatprep.mubr.f32.mxu0 0.0
        %2142 = vmatmul.mubr.f32.gmra.mrb[0].mxu0 %v1730
        %v2143 = vpop.f32.mrb[0].mxu0
        %v2144 = vadd.f32 %v2035, %v2143
        %v2145 = vpop.f32.mrb[0].mxu0
        %2146 = vmatprep.mubr.f32.mxu0 0.0
        %2147 = vmatmul.mubr.f32.gmra.mrb[0].mxu0 %v1733
        %v2148 = vpop.f32.mrb[0].mxu0
        %v2149 = vadd.f32 %v2035, %v2148
        %v2150 = vpop.f32.mrb[0].mxu0
        %2151 = vmatprep.mubr.f32.mxu0 0.0
        %2152 = vmatmul.mubr.f32.gmra.mrb[0].mxu0 %v1736
        %v2153 = vpop.f32.mrb[0].mxu0
        %v2154 = vadd.f32 %v2035, %v2153
        %v2155 = vpop.f32.mrb[0].mxu0
        %2156 = vmatprep.mubr.f32.mxu0 0.0
        %2157 = vmatmul.mubr.f32.gmra.mrb[0].mxu0 %v1739
        %v2158 = vpop.f32.mrb[0].mxu0
        %v2159 = vadd.f32 %v2035, %v2158
        %v2160 = vpop.f32.mrb[0].mxu0
        %2161 = vmatprep.mubr.f32.mxu0 0.0
        %2162 = vmatmul.mubr.f32.gmra.mrb[0].mxu0 %v1742
        %v2163 = vpop.f32.mrb[0].mxu0
        %v2164 = vadd.f32 %v2035, %v2163
        %v2165 = vpop.f32.mrb[0].mxu0
        %2166 = vmatprep.mubr.f32.mxu0 0.0
        %2167 = vmatmul.mubr.f32.gmra.mrb[0].mxu0 %v1745
        %v2168 = vpop.f32.mrb[0].mxu0
        %v2169 = vadd.f32 %v2035, %v2168
        %v2170 = vpop.f32.mrb[0].mxu0
        %2171 = vmatprep.mubr.f32.mxu0 0.0
        %2172 = vmatmul.mubr.f32.gmra.mrb[0].mxu0 %v1748
        %v2173 = vpop.f32.mrb[0].mxu0
        %v2174 = vadd.f32 %v2035, %v2173
        %v2175 = vpop.f32.mrb[0].mxu0
        %2176 = vmatprep.mubr.f32.mxu0 0.0
        %2177 = vmatmul.mubr.f32.gmra.mrb[0].mxu0 %v1751
        %v2178 = vpop.f32.mrb[0].mxu0
        %v2179 = vadd.f32 %v2035, %v2178
        %v2180 = vpop.f32.mrb[0].mxu0
        %2181 = vmatprep.mubr.f32.mxu0 0.0
        %2182 = vmatmul.mubr.f32.gmra.mrb[0].mxu0 %v1754
        %v2183 = vpop.f32.mrb[0].mxu0
        %v2184 = vadd.f32 %v2035, %v2183
        %v2185 = vpop.f32.mrb[0].mxu0
        %2186 = vmatprep.mubr.f32.mxu0 0.0
        %2187 = vmatmul.mubr.f32.gmra.mrb[0].mxu0 %v1757
        %v2188 = vpop.f32.mrb[0].mxu0
        %v2189 = vadd.f32 %v2035, %v2188
        %v2190 = vpop.f32.mrb[0].mxu0
        %2191 = vmatprep.mubr.f32.mxu0 0.0
        %2192 = vmatmul.mubr.f32.gmra.mrb[0].mxu0 %v1760
        %v2193 = vpop.f32.mrb[0].mxu0
        %v2194 = vadd.f32 %v2035, %v2193
        %v2195 = vpop.f32.mrb[0].mxu0
        %2196 = vmatprep.mubr.f32.mxu0 0.0
        %2197 = vmatmul.mubr.f32.gmra.mrb[0].mxu0 %v1763
        %v2198 = vpop.f32.mrb[0].mxu0
        %v2199 = vadd.f32 %v2035, %v2198
        %v2200 = vpop.f32.mrb[0].mxu0
        %2201 = vmatprep.mubr.f32.mxu0 0.0
        %2202 = vmatmul.mubr.f32.gmra.mrb[0].mxu0 %v1766
        %v2203 = vpop.f32.mrb[0].mxu0
        %v2204 = vadd.f32 %v2035, %v2203
        %v2205 = vpop.f32.mrb[0].mxu0
        %2206 = vmatprep.mubr.f32.mxu0 0.0
        %2207 = vmatmul.mubr.f32.gmra.mrb[0].mxu0 %v1769
        %v2208 = vpop.f32.mrb[0].mxu0
        %v2209 = vadd.f32 %v2035, %v2208
        %v2210 = vpop.f32.mrb[0].mxu0
        %2211 = vmatprep.mubr.f32.mxu0 0.0
        %2212 = vmatmul.mubr.f32.gmra.mrb[0].mxu0 %v1772
        %v2213 = vpop.f32.mrb[0].mxu0
        %v2214 = vadd.f32 %v2035, %v2213
        %v2215 = vpop.f32.mrb[0].mxu0
        %2216 = vmatprep.mubr.f32.mxu0 0.0
        %2217 = vmatmul.mubr.f32.gmra.mrb[0].mxu0 %v1775
        %v2218 = vpop.f32.mrb[0].mxu0
        %v2219 = vadd.f32 %v2035, %v2218
        %v2220 = vpop.f32.mrb[0].mxu0
        %2221 = vmatprep.mubr.f32.mxu0 0.0
        %2222 = vmatmul.mubr.f32.gmra.mrb[0].mxu0 %v1778
        %v2223 = vpop.f32.mrb[0].mxu0
        %v2224 = vadd.f32 %v2035, %v2223
        %v2225 = vpop.f32.mrb[0].mxu0
        %2226 = vmatprep.mubr.f32.mxu0 0.0
        %2227 = vmatmul.mubr.f32.gmra.mrb[0].mxu0 %v1781
        %v2228 = vpop.f32.mrb[0].mxu0
        %v2229 = vadd.f32 %v2035, %v2228
        %v2230 = vpop.f32.mrb[0].mxu0
        %2231 = vmatprep.mubr.f32.mxu0 0.0
        %2232 = vmatmul.mubr.f32.gmra.mrb[0].mxu0 %v1784
        %v2233 = vpop.f32.mrb[0].mxu0
        %v2234 = vadd.f32 %v2035, %v2233
        %v2235 = vpop.f32.mrb[0].mxu0
        %2236 = vmatprep.mubr.f32.mxu0 0.0
        %2237 = vmatmul.mubr.f32.gmra.mrb[0].mxu0 %v1787
        %v2238 = vpop.f32.mrb[0].mxu0
        %v2239 = vadd.f32 %v2035, %v2238
        %v2240 = vpop.f32.mrb[0].mxu0
        %2241 = vmatprep.mubr.f32.mxu0 0.0
        %2242 = vmatmul.mubr.f32.gmra.mrb[0].mxu0 %v1790
        %v2243 = vpop.f32.mrb[0].mxu0
        %v2244 = vadd.f32 %v2035, %v2243
        %v2245 = vpop.f32.mrb[0].mxu0
        %2246 = vmatprep.mubr.f32.mxu0 0.0
        %2247 = vmatmul.mubr.f32.gmra.mrb[0].mxu0 %v1793
        %v2248 = vpop.f32.mrb[0].mxu0
        %v2249 = vadd.f32 %v2035, %v2248
        %v2250 = vpop.f32.mrb[0].mxu0
        %2251 = vmatprep.mubr.f32.mxu0 0.0
        %2252 = vmatmul.mubr.f32.gmra.mrb[0].mxu0 %v1796
        %v2253 = vpop.f32.mrb[0].mxu0
        %v2254 = vadd.f32 %v2035, %v2253
        %v2255 = vpop.f32.mrb[0].mxu0
        %2256 = vmatprep.mubr.f32.mxu0 0.0
        %2257 = vmatmul.mubr.f32.gmra.mrb[0].mxu0 %v1799
        %v2258 = vpop.f32.mrb[0].mxu0
        %v2259 = vadd.f32 %v2035, %v2258
        %v2260 = vpop.f32.mrb[0].mxu0
        %2261 = vdwg.mxu0
        %v2262 = vld [vmem:[%s6] sm:$0xff]
        %v2263 = vld [vmem:[%s6 + $0x8] sm:$0xff]
        %v2264 = vld [vmem:[%s6 + $0x10] sm:$0xff]
        %v2265 = vld [vmem:[%s6 + $0x18] sm:$0xff]
        %v2266 = vld [vmem:[%s7] sm:$0x1]
        %v2268 = vlaneseq
        %v2269 = vshrl.u32 %v2268, 7
        %v2270 = vsub.s32 0, %v2269
        %v2271 = vrot.slane %v2266, %v2270
        %2273 = vmatprep.subr.mxu0 0.0
        %2274 = vmatpush1.msra.mxu0 %v2262
        %2275 = vmatprep.subr.mxu0 0.0
        %2276 = vmatpush1.msra.mxu0 %v2263
        %2277 = vmatprep.subr.mxu0 0.0
        %2278 = vmatpush1.msra.mxu0 %v2264
        %2279 = vmatprep.subr.mxu0 0.0
        %2280 = vmatpush1.msra.mxu0 %v2265
        %2281 = vmatprep.subr.mxu0 0.0
        %2282 = vmatpush1.msra.mxu0 0.0
        %2283 = vmatprep.subr.mxu0 0.0
        %2284 = vmatpush1.msra.mxu0 0.0
        %2285 = vmatprep.subr.mxu0 0.0
        %2286 = vmatpush1.msra.mxu0 0.0
        %2287 = vmatprep.subr.mxu0 0.0
        %2288 = vmatpush1.msra.mxu0 0.0
        %2289 = vmatprep.subr.mxu0 0.0
        %2290 = vmatpush1.msra.mxu0 0.0
        %2291 = vmatprep.subr.mxu0 0.0
        %2292 = vmatpush1.msra.mxu0 0.0
        %2293 = vmatprep.subr.mxu0 0.0
        %2294 = vmatpush1.msra.mxu0 0.0
        %2295 = vmatprep.subr.mxu0 0.0
        %2296 = vmatpush1.msra.mxu0 0.0
        %2297 = vmatprep.subr.mxu0 0.0
        %2298 = vmatpush1.msra.mxu0 0.0
        %2299 = vmatprep.subr.mxu0 0.0
        %2300 = vmatpush1.msra.mxu0 0.0
        %2301 = vmatprep.subr.mxu0 0.0
        %2302 = vmatpush1.msra.mxu0 0.0
        %2303 = vmatprep.subr.mxu0 0.0
        %2304 = vmatpush1.msra.mxu0 0.0
        %2305 = vmatprep.subr.mxu0 0.0
        %2306 = vmatpush1.msra.mxu0 0.0
        %2307 = vmatprep.subr.mxu0 0.0
        %2308 = vmatpush1.msra.mxu0 0.0
        %2309 = vmatprep.subr.mxu0 0.0
        %2310 = vmatpush1.msra.mxu0 0.0
        %2311 = vmatprep.subr.mxu0 0.0
        %2312 = vmatpush1.msra.mxu0 0.0
        %2313 = vmatprep.subr.mxu0 0.0
        %2314 = vmatpush1.msra.mxu0 0.0
        %2315 = vmatprep.subr.mxu0 0.0
        %2316 = vmatpush1.msra.mxu0 0.0
        %2317 = vmatprep.subr.mxu0 0.0
        %2318 = vmatpush1.msra.mxu0 0.0
        %2319 = vmatprep.subr.mxu0 0.0
        %2320 = vmatpush1.msra.mxu0 0.0
        %2321 = vmatprep.subr.mxu0 0.0
        %2322 = vmatpush1.msra.mxu0 0.0
        %2323 = vmatprep.subr.mxu0 0.0
        %2324 = vmatpush1.msra.mxu0 0.0
        %2325 = vmatprep.subr.mxu0 0.0
        %2326 = vmatpush1.msra.mxu0 0.0
        %2327 = vmatprep.subr.mxu0 0.0
        %2328 = vmatpush1.msra.mxu0 0.0
        %2329 = vmatprep.subr.mxu0 0.0
        %2330 = vmatpush1.msra.mxu0 0.0
        %2331 = vmatprep.subr.mxu0 0.0
        %2332 = vmatpush1.msra.mxu0 0.0
        %2333 = vmatprep.subr.mxu0 0.0
        %2334 = vmatpush1.msra.mxu0 0.0
        %2335 = vmatprep.subr.mxu0 0.0
        %2336 = vmatpush1.msra.mxu0 0.0
        %2337 = vmatprep.mubr.f32.mxu0 0.0
        %2338 = vmatmul.mubr.f32.gmra.mrb[0].mxu0 %v1706
        %v2339 = vpop.f32.mrb[0].mxu0
        %v2340 = vadd.f32 %v2271, %v2339
        %v2341 = vpop.f32.mrb[0].mxu0
        %2342 = vdwg.mxu0
        %v2343 = vmul.f32 %v2340, %v1868
        %v2344 = vmul.f32 %v2340, %v1873
        %v2345 = vmul.f32 %v2340, %v1878
        %v2346 = vmul.f32 %v2340, %v1883
        %v2347 = vmul.f32 %v2340, %v1888
        %v2348 = vmul.f32 %v2340, %v1893
        %v2349 = vmul.f32 %v2340, %v1898
        %v2350 = vmul.f32 %v2340, %v1903
        %v2351 = vmul.f32 %v2340, %v1908
        %v2352 = vmul.f32 %v2340, %v1913
        %v2353 = vmul.f32 %v2340, %v1918
        %v2354 = vmul.f32 %v2340, %v1923
        %v2355 = vmul.f32 %v2340, %v1928
        %v2356 = vmul.f32 %v2340, %v1933
        %v2357 = vmul.f32 %v2340, %v1938
        %v2358 = vmul.f32 %v2340, %v1943
        %v2359 = vmul.f32 %v2340, %v1948
        %v2360 = vmul.f32 %v2340, %v1953
        %v2361 = vmul.f32 %v2340, %v1958
        %v2362 = vmul.f32 %v2340, %v1963
        %v2363 = vmul.f32 %v2340, %v1968
        %v2364 = vmul.f32 %v2340, %v1973
        %v2365 = vmul.f32 %v2340, %v1978
        %v2366 = vmul.f32 %v2340, %v1983
        %v2367 = vmul.f32 %v2340, %v1988
        %v2368 = vmul.f32 %v2340, %v1993
        %v2369 = vmul.f32 %v2340, %v1998
        %v2370 = vmul.f32 %v2340, %v2003
        %v2371 = vmul.f32 %v2340, %v2008
        %v2372 = vmul.f32 %v2340, %v2013
        %v2373 = vmul.f32 %v2340, %v2018
        %v2374 = vmul.f32 %v2340, %v2023
        %v2375 = vsel %vm1200, %v2343, 0.0
        %2376 = vadd.xlane.f32.xlu0 %v2375
        %v2377 = vpop.xlane.xlu0 %2376
        %v2378 = vsel %vm1200, %v2344, 0.0
        %2379 = vadd.xlane.f32.xlu0 %v2378
        %v2380 = vpop.xlane.xlu0 %2379
        %v2381 = vsel %vm1200, %v2345, 0.0
        %2382 = vadd.xlane.f32.xlu0 %v2381
        %v2383 = vpop.xlane.xlu0 %2382
        %v2384 = vsel %vm1200, %v2346, 0.0
        %2385 = vadd.xlane.f32.xlu0 %v2384
        %v2386 = vpop.xlane.xlu0 %2385
        %v2387 = vsel %vm1200, %v2347, 0.0
        %2388 = vadd.xlane.f32.xlu0 %v2387
        %v2389 = vpop.xlane.xlu0 %2388
        %v2390 = vsel %vm1200, %v2348, 0.0
        %2391 = vadd.xlane.f32.xlu0 %v2390
        %v2392 = vpop.xlane.xlu0 %2391
        %v2393 = vsel %vm1200, %v2349, 0.0
        %2394 = vadd.xlane.f32.xlu0 %v2393
        %v2395 = vpop.xlane.xlu0 %2394
        %v2396 = vsel %vm1200, %v2350, 0.0
        %2397 = vadd.xlane.f32.xlu0 %v2396
        %v2398 = vpop.xlane.xlu0 %2397
        %v2399 = vsel %vm1200, %v2351, 0.0
        %2400 = vadd.xlane.f32.xlu0 %v2399
        %v2401 = vpop.xlane.xlu0 %2400
        %v2402 = vsel %vm1200, %v2352, 0.0
        %2403 = vadd.xlane.f32.xlu0 %v2402
        %v2404 = vpop.xlane.xlu0 %2403
        %v2405 = vsel %vm1200, %v2353, 0.0
        %2406 = vadd.xlane.f32.xlu0 %v2405
        %v2407 = vpop.xlane.xlu0 %2406
        %v2408 = vsel %vm1200, %v2354, 0.0
        %2409 = vadd.xlane.f32.xlu0 %v2408
        %v2410 = vpop.xlane.xlu0 %2409
        %v2411 = vsel %vm1200, %v2355, 0.0
        %2412 = vadd.xlane.f32.xlu0 %v2411
        %v2413 = vpop.xlane.xlu0 %2412
        %v2414 = vsel %vm1200, %v2356, 0.0
        %2415 = vadd.xlane.f32.xlu0 %v2414
        %v2416 = vpop.xlane.xlu0 %2415
        %v2417 = vsel %vm1200, %v2357, 0.0
        %2418 = vadd.xlane.f32.xlu0 %v2417
        %v2419 = vpop.xlane.xlu0 %2418
        %v2420 = vsel %vm1200, %v2358, 0.0
        %2421 = vadd.xlane.f32.xlu0 %v2420
        %v2422 = vpop.xlane.xlu0 %2421
        %v2423 = vsel %vm1200, %v2359, 0.0
        %2424 = vadd.xlane.f32.xlu0 %v2423
        %v2425 = vpop.xlane.xlu0 %2424
        %v2426 = vsel %vm1200, %v2360, 0.0
        %2427 = vadd.xlane.f32.xlu0 %v2426
        %v2428 = vpop.xlane.xlu0 %2427
        %v2429 = vsel %vm1200, %v2361, 0.0
        %2430 = vadd.xlane.f32.xlu0 %v2429
        %v2431 = vpop.xlane.xlu0 %2430
        %v2432 = vsel %vm1200, %v2362, 0.0
        %2433 = vadd.xlane.f32.xlu0 %v2432
        %v2434 = vpop.xlane.xlu0 %2433
        %v2435 = vsel %vm1200, %v2363, 0.0
        %2436 = vadd.xlane.f32.xlu0 %v2435
        %v2437 = vpop.xlane.xlu0 %2436
        %v2438 = vsel %vm1200, %v2364, 0.0
        %2439 = vadd.xlane.f32.xlu0 %v2438
        %v2440 = vpop.xlane.xlu0 %2439
        %v2441 = vsel %vm1200, %v2365, 0.0
        %2442 = vadd.xlane.f32.xlu0 %v2441
        %v2443 = vpop.xlane.xlu0 %2442
        %v2444 = vsel %vm1200, %v2366, 0.0
        %2445 = vadd.xlane.f32.xlu0 %v2444
        %v2446 = vpop.xlane.xlu0 %2445
        %v2447 = vsel %vm1200, %v2367, 0.0
        %2448 = vadd.xlane.f32.xlu0 %v2447
        %v2449 = vpop.xlane.xlu0 %2448
        %v2450 = vsel %vm1200, %v2368, 0.0
        %2451 = vadd.xlane.f32.xlu0 %v2450
        %v2452 = vpop.xlane.xlu0 %2451
        %v2453 = vsel %vm1200, %v2369, 0.0
        %2454 = vadd.xlane.f32.xlu0 %v2453
        %v2455 = vpop.xlane.xlu0 %2454
        %v2456 = vsel %vm1200, %v2370, 0.0
        %2457 = vadd.xlane.f32.xlu0 %v2456
        %v2458 = vpop.xlane.xlu0 %2457
        %v2459 = vsel %vm1200, %v2371, 0.0
        %2460 = vadd.xlane.f32.xlu0 %v2459
        %v2461 = vpop.xlane.xlu0 %2460
        %v2462 = vsel %vm1200, %v2372, 0.0
        %2463 = vadd.xlane.f32.xlu0 %v2462
        %v2464 = vpop.xlane.xlu0 %2463
        %v2465 = vsel %vm1200, %v2373, 0.0
        %2466 = vadd.xlane.f32.xlu0 %v2465
        %v2467 = vpop.xlane.xlu0 %2466
        %v2468 = vsel %vm1200, %v2374, 0.0
        %2469 = vadd.xlane.f32.xlu0 %v2468
        %v2470 = vpop.xlane.xlu0 %2469
        %v2471 = vmul.f32 %v2377, 0.17677669
        %v2472 = vmul.f32 %v2380, 0.17677669
        %v2473 = vmul.f32 %v2383, 0.17677669
        %v2474 = vmul.f32 %v2386, 0.17677669
        %v2475 = vmul.f32 %v2389, 0.17677669
        %v2476 = vmul.f32 %v2392, 0.17677669
        %v2477 = vmul.f32 %v2395, 0.17677669
        %v2478 = vmul.f32 %v2398, 0.17677669
        %v2479 = vmul.f32 %v2401, 0.17677669
        %v2480 = vmul.f32 %v2404, 0.17677669
        %v2481 = vmul.f32 %v2407, 0.17677669
        %v2482 = vmul.f32 %v2410, 0.17677669
        %v2483 = vmul.f32 %v2413, 0.17677669
        %v2484 = vmul.f32 %v2416, 0.17677669
        %v2485 = vmul.f32 %v2419, 0.17677669
        %v2486 = vmul.f32 %v2422, 0.17677669
        %v2487 = vmul.f32 %v2425, 0.17677669
        %v2488 = vmul.f32 %v2428, 0.17677669
        %v2489 = vmul.f32 %v2431, 0.17677669
        %v2490 = vmul.f32 %v2434, 0.17677669
        %v2491 = vmul.f32 %v2437, 0.17677669
        %v2492 = vmul.f32 %v2440, 0.17677669
        %v2493 = vmul.f32 %v2443, 0.17677669
        %v2494 = vmul.f32 %v2446, 0.17677669
        %v2495 = vmul.f32 %v2449, 0.17677669
        %v2496 = vmul.f32 %v2452, 0.17677669
        %v2497 = vmul.f32 %v2455, 0.17677669
        %v2498 = vmul.f32 %v2458, 0.17677669
        %v2499 = vmul.f32 %v2461, 0.17677669
        %v2500 = vmul.f32 %v2464, 0.17677669
        %v2501 = vmul.f32 %v2467, 0.17677669
        %v2502 = vmul.f32 %v2470, 0.17677669
        %v2503 = vlaneseq
        %v2504 = vshrl.u32 %v2503, 7
        %v2505 = vadd.s32 %v2504, 8
        %v2506 = vadd.s32 %v2504, 16
        %v2507 = vadd.s32 %v2504, 24
        %vm2508 = vcmp.lt.s32.totalorder %v2504, 27
        %vm2509 = vcmp.lt.s32.totalorder %v2505, 27
        %vm2510 = vcmp.lt.s32.totalorder %v2506, 27
        %vm2511 = vcmp.lt.s32.totalorder %v2507, 27
        %v2544 = vlaneseq
        %v2545 = vand.u32 %v2544, 127
        %v2546 = vlaneseq
        %v2547 = vshrl.u32 %v2546, 7
        %v2548 = vsub.s32 %v2545, %v2547
        %v2549 = vrot.slane %v2471, %v2548
        %v2550 = vlaneseq
        %v2551 = vshrl.u32 %v2550, 7
        %v2552 = vsub.s32 %v2545, %v2551
        %v2553 = vrot.slane %v2472, %v2552
        %v2554 = vlaneseq
        %v2555 = vshrl.u32 %v2554, 7
        %v2556 = vsub.s32 %v2545, %v2555
        %v2557 = vrot.slane %v2473, %v2556
        %v2558 = vlaneseq
        %v2559 = vshrl.u32 %v2558, 7
        %v2560 = vsub.s32 %v2545, %v2559
        %v2561 = vrot.slane %v2474, %v2560
        %v2562 = vlaneseq
        %v2563 = vshrl.u32 %v2562, 7
        %v2564 = vsub.s32 %v2545, %v2563
        %v2565 = vrot.slane %v2475, %v2564
        %v2566 = vlaneseq
        %v2567 = vshrl.u32 %v2566, 7
        %v2568 = vsub.s32 %v2545, %v2567
        %v2569 = vrot.slane %v2476, %v2568
        %v2570 = vlaneseq
        %v2571 = vshrl.u32 %v2570, 7
        %v2572 = vsub.s32 %v2545, %v2571
        %v2573 = vrot.slane %v2477, %v2572
        %v2574 = vlaneseq
        %v2575 = vshrl.u32 %v2574, 7
        %v2576 = vsub.s32 %v2545, %v2575
        %v2577 = vrot.slane %v2478, %v2576
        %v2578 = vlaneseq
        %v2579 = vshrl.u32 %v2578, 7
        %v2580 = vsub.s32 %v2545, %v2579
        %v2581 = vrot.slane %v2479, %v2580
        %v2582 = vlaneseq
        %v2583 = vshrl.u32 %v2582, 7
        %v2584 = vsub.s32 %v2545, %v2583
        %v2585 = vrot.slane %v2480, %v2584
        %v2586 = vlaneseq
        %v2587 = vshrl.u32 %v2586, 7
        %v2588 = vsub.s32 %v2545, %v2587
        %v2589 = vrot.slane %v2481, %v2588
        %v2590 = vlaneseq
        %v2591 = vshrl.u32 %v2590, 7
        %v2592 = vsub.s32 %v2545, %v2591
        %v2593 = vrot.slane %v2482, %v2592
        %v2594 = vlaneseq
        %v2595 = vshrl.u32 %v2594, 7
        %v2596 = vsub.s32 %v2545, %v2595
        %v2597 = vrot.slane %v2483, %v2596
        %v2598 = vlaneseq
        %v2599 = vshrl.u32 %v2598, 7
        %v2600 = vsub.s32 %v2545, %v2599
        %v2601 = vrot.slane %v2484, %v2600
        %v2602 = vlaneseq
        %v2603 = vshrl.u32 %v2602, 7
        %v2604 = vsub.s32 %v2545, %v2603
        %v2605 = vrot.slane %v2485, %v2604
        %v2606 = vlaneseq
        %v2607 = vshrl.u32 %v2606, 7
        %v2608 = vsub.s32 %v2545, %v2607
        %v2609 = vrot.slane %v2486, %v2608
        %v2610 = vlaneseq
        %v2611 = vshrl.u32 %v2610, 7
        %v2612 = vsub.s32 %v2545, %v2611
        %v2613 = vrot.slane %v2487, %v2612
        %v2614 = vlaneseq
        %v2615 = vshrl.u32 %v2614, 7
        %v2616 = vsub.s32 %v2545, %v2615
        %v2617 = vrot.slane %v2488, %v2616
        %v2618 = vlaneseq
        %v2619 = vshrl.u32 %v2618, 7
        %v2620 = vsub.s32 %v2545, %v2619
        %v2621 = vrot.slane %v2489, %v2620
        %v2622 = vlaneseq
        %v2623 = vshrl.u32 %v2622, 7
        %v2624 = vsub.s32 %v2545, %v2623
        %v2625 = vrot.slane %v2490, %v2624
        %v2626 = vlaneseq
        %v2627 = vshrl.u32 %v2626, 7
        %v2628 = vsub.s32 %v2545, %v2627
        %v2629 = vrot.slane %v2491, %v2628
        %v2630 = vlaneseq
        %v2631 = vshrl.u32 %v2630, 7
        %v2632 = vsub.s32 %v2545, %v2631
        %v2633 = vrot.slane %v2492, %v2632
        %v2634 = vlaneseq
        %v2635 = vshrl.u32 %v2634, 7
        %v2636 = vsub.s32 %v2545, %v2635
        %v2637 = vrot.slane %v2493, %v2636
        %v2638 = vlaneseq
        %v2639 = vshrl.u32 %v2638, 7
        %v2640 = vsub.s32 %v2545, %v2639
        %v2641 = vrot.slane %v2494, %v2640
        %v2642 = vlaneseq
        %v2643 = vshrl.u32 %v2642, 7
        %v2644 = vsub.s32 %v2545, %v2643
        %v2645 = vrot.slane %v2495, %v2644
        %v2646 = vlaneseq
        %v2647 = vshrl.u32 %v2646, 7
        %v2648 = vsub.s32 %v2545, %v2647
        %v2649 = vrot.slane %v2496, %v2648
        %v2650 = vlaneseq
        %v2651 = vshrl.u32 %v2650, 7
        %v2652 = vsub.s32 %v2545, %v2651
        %v2653 = vrot.slane %v2497, %v2652
        %v2654 = vlaneseq
        %v2655 = vshrl.u32 %v2654, 7
        %v2656 = vsub.s32 %v2545, %v2655
        %v2657 = vrot.slane %v2498, %v2656
        %v2658 = vlaneseq
        %v2659 = vshrl.u32 %v2658, 7
        %v2660 = vsub.s32 %v2545, %v2659
        %v2661 = vrot.slane %v2499, %v2660
        %v2662 = vlaneseq
        %v2663 = vshrl.u32 %v2662, 7
        %v2664 = vsub.s32 %v2545, %v2663
        %v2665 = vrot.slane %v2500, %v2664
        %v2666 = vlaneseq
        %v2667 = vshrl.u32 %v2666, 7
        %v2668 = vsub.s32 %v2545, %v2667
        %v2669 = vrot.slane %v2501, %v2668
        %v2670 = vlaneseq
        %v2671 = vshrl.u32 %v2670, 7
        %v2672 = vsub.s32 %v2545, %v2671
        %v2673 = vrot.slane %v2502, %v2672
        %vm2674 = vcmask 1041409
        %v2675 = vsel %vm2674, %v2553, %v2549
        %vm2676 = vcmask 1042434
        %v2677 = vsel %vm2676, %v2557, %v2675
        %vm2678 = vcmask 1043459
        %v2679 = vsel %vm2678, %v2561, %v2677
        %vm2680 = vcmask 1044484
        %v2681 = vsel %vm2680, %v2565, %v2679
        %vm2682 = vcmask 1045509
        %v2683 = vsel %vm2682, %v2569, %v2681
        %vm2684 = vcmask 1046534
        %v2685 = vsel %vm2684, %v2573, %v2683
        %vm2686 = vcmask 1047559
        %v2687 = vsel %vm2686, %v2577, %v2685
        %v2688 = vsel %vm2674, %v2585, %v2581
        %v2689 = vsel %vm2676, %v2589, %v2688
        %v2690 = vsel %vm2678, %v2593, %v2689
        %v2691 = vsel %vm2680, %v2597, %v2690
        %v2692 = vsel %vm2682, %v2601, %v2691
        %v2693 = vsel %vm2684, %v2605, %v2692
        %v2694 = vsel %vm2686, %v2609, %v2693
        %v2695 = vsel %vm2674, %v2617, %v2613
        %v2696 = vsel %vm2676, %v2621, %v2695
        %v2697 = vsel %vm2678, %v2625, %v2696
        %v2698 = vsel %vm2680, %v2629, %v2697
        %v2699 = vsel %vm2682, %v2633, %v2698
        %v2700 = vsel %vm2684, %v2637, %v2699
        %v2701 = vsel %vm2686, %v2641, %v2700
        %v2702 = vsel %vm2674, %v2649, %v2645
        %v2703 = vsel %vm2676, %v2653, %v2702
        %v2704 = vsel %vm2678, %v2657, %v2703
        %v2705 = vsel %vm2680, %v2661, %v2704
        %v2706 = vsel %vm2682, %v2665, %v2705
        %v2707 = vsel %vm2684, %v2669, %v2706
        %v2708 = vsel %vm2686, %v2673, %v2707
        %v2713 = vsel %vm2508, %v2687, -inf
        %v2714 = vsel %vm2509, %v2694, -inf
        %v2715 = vsel %vm2510, %v2701, -inf
        %v2716 = vsel %vm2511, %v2708, -inf
        %v2717 = vsel %vm844, %v2713, -inf
        %v2718 = vsel %vm844, %v2714, -inf
        %v2719 = vsel %vm844, %v2715, -inf
        %v2720 = vsel %vm844, %v2716, -inf
        %v2721 = vmax.f32 %v2717, %v2718
        %v2722 = vmax.f32 %v2719, %v2720
        %v2723 = vmax.f32 %v2721, %v2722
        %v2724 = vrot.slane %v2723, 4
        %v2725 = vmax.f32 %v2723, %v2724
        %v2726 = vrot.slane %v2725, 2
        %v2727 = vmax.f32 %v2725, %v2726
        %v2728 = vrot.slane %v2727, 1
        %v2729 = vmax.f32 %v2727, %v2728
        %v2730 = vsub.f32 %v2713, %v2729
        %v2731 = vsub.f32 %v2714, %v2729
        %v2732 = vsub.f32 %v2715, %v2729
        %v2733 = vsub.f32 %v2716, %v2729
        %v2734 = vmul.f32 %v2730, 1.442695
        %v2735 = vpow.pop %v2734
        %v2736 = vmul.f32 %v2731, 1.442695
        %v2737 = vpow.pop %v2736
        %v2738 = vmul.f32 %v2732, 1.442695
        %v2739 = vpow.pop %v2738
        %v2740 = vmul.f32 %v2733, 1.442695
        %v2741 = vpow.pop %v2740
        %v2742 = vsel %vm844, %v2735, 0.0
        %v2743 = vsel %vm844, %v2737, 0.0
        %v2744 = vadd.f32 %v2742, %v2743
        %v2745 = vsel %vm844, %v2739, 0.0
        %v2746 = vadd.f32 %v2744, %v2745
        %v2747 = vsel %vm844, %v2741, 0.0
        %v2748 = vadd.f32 %v2746, %v2747
        %v2749 = vrot.slane %v2748, 4
        %v2750 = vadd.f32 %v2748, %v2749
        %v2751 = vrot.slane %v2750, 2
        %v2752 = vadd.f32 %v2750, %v2751
        %v2753 = vrot.slane %v2752, 1
        %v2754 = vadd.f32 %v2752, %v2753
        %v2755 = vrcp.pop %v2754
        %v2756 = vmul.f32 %v2735, %v2755
        %v2757 = vmul.f32 %v2737, %v2755
        %v2758 = vmul.f32 %v2739, %v2755
        %v2759 = vmul.f32 %v2741, %v2755
        %v2764 = vcombine.high %v2756, %v2756
        %v2766 = vunpack.c.l.s4 1966171168
        %v2767 = vunpack.c.0.s8 %v2766
        %v2768 = vlaneseq
        %v2769 = vshrl.u32 %v2768, 7
        %v2770 = vsub.s32 %v2767, %v2769
        %v2771 = vrot.slane %v2756, %v2770
        %v2773 = vunpack.c.l.s4 1966171168
        %v2774 = vunpack.c.0.s8 %v2773
        %v2775 = vlaneseq
        %v2776 = vshrl.u32 %v2775, 7
        %v2777 = vsub.s32 %v2774, %v2776
        %v2778 = vrot.slane %v2764, %v2777
        %v2779 = vcombine.high %v2771, %v2771
        %v2780 = vcombine.high %v2778, %v2778
        %v2782 = vunpack.c.l.s4 1966171168
        %v2783 = vunpack.c.0.s8 %v2782
        %v2784 = vlaneseq
        %v2785 = vshrl.u32 %v2784, 7
        %v2786 = vsub.s32 %v2783, %v2785
        %v2787 = vrot.slane %v2771, %v2786
        %v2789 = vunpack.c.l.s4 1966171168
        %v2790 = vunpack.c.0.s8 %v2789
        %v2791 = vlaneseq
        %v2792 = vshrl.u32 %v2791, 7
        %v2793 = vsub.s32 %v2790, %v2792
        %v2794 = vrot.slane %v2778, %v2793
        %v2796 = vunpack.c.l.s4 1966171168
        %v2797 = vunpack.c.0.s8 %v2796
        %v2798 = vlaneseq
        %v2799 = vshrl.u32 %v2798, 7
        %v2800 = vsub.s32 %v2797, %v2799
        %v2801 = vrot.slane %v2779, %v2800
        %v2803 = vunpack.c.l.s4 1966171168
        %v2804 = vunpack.c.0.s8 %v2803
        %v2805 = vlaneseq
        %v2806 = vshrl.u32 %v2805, 7
        %v2807 = vsub.s32 %v2804, %v2806
        %v2808 = vrot.slane %v2780, %v2807
        %v2809 = vcombine.high %v2787, %v2787
        %v2810 = vcombine.high %v2794, %v2794
        %v2811 = vcombine.high %v2801, %v2801
        %v2812 = vcombine.high %v2808, %v2808
        %v2813 = vcombine.high %v2757, %v2757
        %v2815 = vunpack.c.l.s4 1966171168
        %v2816 = vunpack.c.0.s8 %v2815
        %v2817 = vlaneseq
        %v2818 = vshrl.u32 %v2817, 7
        %v2819 = vsub.s32 %v2816, %v2818
        %v2820 = vrot.slane %v2757, %v2819
        %v2822 = vunpack.c.l.s4 1966171168
        %v2823 = vunpack.c.0.s8 %v2822
        %v2824 = vlaneseq
        %v2825 = vshrl.u32 %v2824, 7
        %v2826 = vsub.s32 %v2823, %v2825
        %v2827 = vrot.slane %v2813, %v2826
        %v2828 = vcombine.high %v2820, %v2820
        %v2829 = vcombine.high %v2827, %v2827
        %v2831 = vunpack.c.l.s4 1966171168
        %v2832 = vunpack.c.0.s8 %v2831
        %v2833 = vlaneseq
        %v2834 = vshrl.u32 %v2833, 7
        %v2835 = vsub.s32 %v2832, %v2834
        %v2836 = vrot.slane %v2820, %v2835
        %v2838 = vunpack.c.l.s4 1966171168
        %v2839 = vunpack.c.0.s8 %v2838
        %v2840 = vlaneseq
        %v2841 = vshrl.u32 %v2840, 7
        %v2842 = vsub.s32 %v2839, %v2841
        %v2843 = vrot.slane %v2827, %v2842
        %v2845 = vunpack.c.l.s4 1966171168
        %v2846 = vunpack.c.0.s8 %v2845
        %v2847 = vlaneseq
        %v2848 = vshrl.u32 %v2847, 7
        %v2849 = vsub.s32 %v2846, %v2848
        %v2850 = vrot.slane %v2828, %v2849
        %v2852 = vunpack.c.l.s4 1966171168
        %v2853 = vunpack.c.0.s8 %v2852
        %v2854 = vlaneseq
        %v2855 = vshrl.u32 %v2854, 7
        %v2856 = vsub.s32 %v2853, %v2855
        %v2857 = vrot.slane %v2829, %v2856
        %v2858 = vcombine.high %v2836, %v2836
        %v2859 = vcombine.high %v2843, %v2843
        %v2860 = vcombine.high %v2850, %v2850
        %v2861 = vcombine.high %v2857, %v2857
        %v2862 = vcombine.high %v2758, %v2758
        %v2864 = vunpack.c.l.s4 1966171168
        %v2865 = vunpack.c.0.s8 %v2864
        %v2866 = vlaneseq
        %v2867 = vshrl.u32 %v2866, 7
        %v2868 = vsub.s32 %v2865, %v2867
        %v2869 = vrot.slane %v2758, %v2868
        %v2871 = vunpack.c.l.s4 1966171168
        %v2872 = vunpack.c.0.s8 %v2871
        %v2873 = vlaneseq
        %v2874 = vshrl.u32 %v2873, 7
        %v2875 = vsub.s32 %v2872, %v2874
        %v2876 = vrot.slane %v2862, %v2875
        %v2877 = vcombine.high %v2869, %v2869
        %v2878 = vcombine.high %v2876, %v2876
        %v2880 = vunpack.c.l.s4 1966171168
        %v2881 = vunpack.c.0.s8 %v2880
        %v2882 = vlaneseq
        %v2883 = vshrl.u32 %v2882, 7
        %v2884 = vsub.s32 %v2881, %v2883
        %v2885 = vrot.slane %v2869, %v2884
        %v2887 = vunpack.c.l.s4 1966171168
        %v2888 = vunpack.c.0.s8 %v2887
        %v2889 = vlaneseq
        %v2890 = vshrl.u32 %v2889, 7
        %v2891 = vsub.s32 %v2888, %v2890
        %v2892 = vrot.slane %v2876, %v2891
        %v2894 = vunpack.c.l.s4 1966171168
        %v2895 = vunpack.c.0.s8 %v2894
        %v2896 = vlaneseq
        %v2897 = vshrl.u32 %v2896, 7
        %v2898 = vsub.s32 %v2895, %v2897
        %v2899 = vrot.slane %v2877, %v2898
        %v2901 = vunpack.c.l.s4 1966171168
        %v2902 = vunpack.c.0.s8 %v2901
        %v2903 = vlaneseq
        %v2904 = vshrl.u32 %v2903, 7
        %v2905 = vsub.s32 %v2902, %v2904
        %v2906 = vrot.slane %v2878, %v2905
        %v2907 = vcombine.high %v2885, %v2885
        %v2908 = vcombine.high %v2892, %v2892
        %v2909 = vcombine.high %v2899, %v2899
        %v2910 = vcombine.high %v2906, %v2906
        %v2911 = vcombine.high %v2759, %v2759
        %v2913 = vunpack.c.l.s4 1966171168
        %v2914 = vunpack.c.0.s8 %v2913
        %v2915 = vlaneseq
        %v2916 = vshrl.u32 %v2915, 7
        %v2917 = vsub.s32 %v2914, %v2916
        %v2918 = vrot.slane %v2759, %v2917
        %v2920 = vunpack.c.l.s4 1966171168
        %v2921 = vunpack.c.0.s8 %v2920
        %v2922 = vlaneseq
        %v2923 = vshrl.u32 %v2922, 7
        %v2924 = vsub.s32 %v2921, %v2923
        %v2925 = vrot.slane %v2911, %v2924
        %v2926 = vcombine.high %v2918, %v2918
        %v2927 = vcombine.high %v2925, %v2925
        %v2929 = vunpack.c.l.s4 1966171168
        %v2930 = vunpack.c.0.s8 %v2929
        %v2931 = vlaneseq
        %v2932 = vshrl.u32 %v2931, 7
        %v2933 = vsub.s32 %v2930, %v2932
        %v2934 = vrot.slane %v2918, %v2933
        %v2936 = vunpack.c.l.s4 1966171168
        %v2937 = vunpack.c.0.s8 %v2936
        %v2938 = vlaneseq
        %v2939 = vshrl.u32 %v2938, 7
        %v2940 = vsub.s32 %v2937, %v2939
        %v2941 = vrot.slane %v2925, %v2940
        %v2943 = vunpack.c.l.s4 1966171168
        %v2944 = vunpack.c.0.s8 %v2943
        %v2945 = vlaneseq
        %v2946 = vshrl.u32 %v2945, 7
        %v2947 = vsub.s32 %v2944, %v2946
        %v2948 = vrot.slane %v2926, %v2947
        %v2950 = vunpack.c.l.s4 1966171168
        %v2951 = vunpack.c.0.s8 %v2950
        %v2952 = vlaneseq
        %v2953 = vshrl.u32 %v2952, 7
        %v2954 = vsub.s32 %v2951, %v2953
        %v2955 = vrot.slane %v2927, %v2954
        %v2956 = vcombine.high %v2934, %v2934
        %v2957 = vcombine.high %v2941, %v2941
        %v2958 = vcombine.high %v2948, %v2948
        %v2959 = vcombine.high %v2955, %v2955
        %v2960 = vlaneseq
        %v2961 = vshrl.u32 %v2960, 7
        %v2962 = vsub.s32 0, %v2961
        %v2963 = vrot.slane %v2787, %v2962
        %v2964 = vlaneseq
        %v2965 = vshrl.u32 %v2964, 7
        %v2966 = vsub.s32 0, %v2965
        %v2967 = vrot.slane %v2801, %v2966
        %v2968 = vlaneseq
        %v2969 = vshrl.u32 %v2968, 7
        %v2970 = vsub.s32 0, %v2969
        %v2971 = vrot.slane %v2809, %v2970
        %v2972 = vlaneseq
        %v2973 = vshrl.u32 %v2972, 7
        %v2974 = vsub.s32 0, %v2973
        %v2975 = vrot.slane %v2811, %v2974
        %v2976 = vlaneseq
        %v2977 = vshrl.u32 %v2976, 7
        %v2978 = vsub.s32 0, %v2977
        %v2979 = vrot.slane %v2794, %v2978
        %v2980 = vlaneseq
        %v2981 = vshrl.u32 %v2980, 7
        %v2982 = vsub.s32 0, %v2981
        %v2983 = vrot.slane %v2808, %v2982
        %v2984 = vlaneseq
        %v2985 = vshrl.u32 %v2984, 7
        %v2986 = vsub.s32 0, %v2985
        %v2987 = vrot.slane %v2810, %v2986
        %v2988 = vlaneseq
        %v2989 = vshrl.u32 %v2988, 7
        %v2990 = vsub.s32 0, %v2989
        %v2991 = vrot.slane %v2812, %v2990
        %v2992 = vlaneseq
        %v2993 = vshrl.u32 %v2992, 7
        %v2994 = vsub.s32 0, %v2993
        %v2995 = vrot.slane %v2836, %v2994
        %v2996 = vlaneseq
        %v2997 = vshrl.u32 %v2996, 7
        %v2998 = vsub.s32 0, %v2997
        %v2999 = vrot.slane %v2850, %v2998
        %v3000 = vlaneseq
        %v3001 = vshrl.u32 %v3000, 7
        %v3002 = vsub.s32 0, %v3001
        %v3003 = vrot.slane %v2858, %v3002
        %v3004 = vlaneseq
        %v3005 = vshrl.u32 %v3004, 7
        %v3006 = vsub.s32 0, %v3005
        %v3007 = vrot.slane %v2860, %v3006
        %v3008 = vlaneseq
        %v3009 = vshrl.u32 %v3008, 7
        %v3010 = vsub.s32 0, %v3009
        %v3011 = vrot.slane %v2843, %v3010
        %v3012 = vlaneseq
        %v3013 = vshrl.u32 %v3012, 7
        %v3014 = vsub.s32 0, %v3013
        %v3015 = vrot.slane %v2857, %v3014
        %v3016 = vlaneseq
        %v3017 = vshrl.u32 %v3016, 7
        %v3018 = vsub.s32 0, %v3017
        %v3019 = vrot.slane %v2859, %v3018
        %v3020 = vlaneseq
        %v3021 = vshrl.u32 %v3020, 7
        %v3022 = vsub.s32 0, %v3021
        %v3023 = vrot.slane %v2861, %v3022
        %v3024 = vlaneseq
        %v3025 = vshrl.u32 %v3024, 7
        %v3026 = vsub.s32 0, %v3025
        %v3027 = vrot.slane %v2885, %v3026
        %v3028 = vlaneseq
        %v3029 = vshrl.u32 %v3028, 7
        %v3030 = vsub.s32 0, %v3029
        %v3031 = vrot.slane %v2899, %v3030
        %v3032 = vlaneseq
        %v3033 = vshrl.u32 %v3032, 7
        %v3034 = vsub.s32 0, %v3033
        %v3035 = vrot.slane %v2907, %v3034
        %v3036 = vlaneseq
        %v3037 = vshrl.u32 %v3036, 7
        %v3038 = vsub.s32 0, %v3037
        %v3039 = vrot.slane %v2909, %v3038
        %v3040 = vlaneseq
        %v3041 = vshrl.u32 %v3040, 7
        %v3042 = vsub.s32 0, %v3041
        %v3043 = vrot.slane %v2892, %v3042
        %v3044 = vlaneseq
        %v3045 = vshrl.u32 %v3044, 7
        %v3046 = vsub.s32 0, %v3045
        %v3047 = vrot.slane %v2906, %v3046
        %v3048 = vlaneseq
        %v3049 = vshrl.u32 %v3048, 7
        %v3050 = vsub.s32 0, %v3049
        %v3051 = vrot.slane %v2908, %v3050
        %v3052 = vlaneseq
        %v3053 = vshrl.u32 %v3052, 7
        %v3054 = vsub.s32 0, %v3053
        %v3055 = vrot.slane %v2910, %v3054
        %v3056 = vlaneseq
        %v3057 = vshrl.u32 %v3056, 7
        %v3058 = vsub.s32 0, %v3057
        %v3059 = vrot.slane %v2934, %v3058
        %v3060 = vlaneseq
        %v3061 = vshrl.u32 %v3060, 7
        %v3062 = vsub.s32 0, %v3061
        %v3063 = vrot.slane %v2948, %v3062
        %v3064 = vlaneseq
        %v3065 = vshrl.u32 %v3064, 7
        %v3066 = vsub.s32 0, %v3065
        %v3067 = vrot.slane %v2956, %v3066
        %v3068 = vlaneseq
        %v3069 = vshrl.u32 %v3068, 7
        %v3070 = vsub.s32 0, %v3069
        %v3071 = vrot.slane %v2958, %v3070
        %v3072 = vlaneseq
        %v3073 = vshrl.u32 %v3072, 7
        %v3074 = vsub.s32 0, %v3073
        %v3075 = vrot.slane %v2941, %v3074
        %v3076 = vlaneseq
        %v3077 = vshrl.u32 %v3076, 7
        %v3078 = vsub.s32 0, %v3077
        %v3079 = vrot.slane %v2955, %v3078
        %v3080 = vlaneseq
        %v3081 = vshrl.u32 %v3080, 7
        %v3082 = vsub.s32 0, %v3081
        %v3083 = vrot.slane %v2957, %v3082
        %v3084 = vlaneseq
        %v3085 = vshrl.u32 %v3084, 7
        %v3086 = vsub.s32 0, %v3085
        %v3087 = vrot.slane %v2959, %v3086
        %v3120 = vadd.s32 %v2504, 32
        %v3121 = vadd.s32 %v2504, 40
        %v3122 = vadd.s32 %v2504, 48
        %v3123 = vadd.s32 %v2504, 56
        %v3124 = vadd.s32 %v2504, 64
        %v3125 = vadd.s32 %v2504, 72
        %v3126 = vadd.s32 %v2504, 80
        %v3127 = vadd.s32 %v2504, 88
        %v3128 = vadd.s32 %v2504, 96
        %v3129 = vadd.s32 %v2504, 104
        %v3130 = vadd.s32 %v2504, 112
        %v3131 = vadd.s32 %v2504, 120
        %v3132 = vadd.s32 %v2504, 128
        %v3133 = vadd.s32 %v2504, 136
        %v3134 = vadd.s32 %v2504, 144
        %v3135 = vadd.s32 %v2504, 152
        %v3136 = vadd.s32 %v2504, 160
        %v3137 = vadd.s32 %v2504, 168
        %v3138 = vadd.s32 %v2504, 176
        %v3139 = vadd.s32 %v2504, 184
        %v3140 = vadd.s32 %v2504, 192
        %v3141 = vadd.s32 %v2504, 200
        %v3142 = vadd.s32 %v2504, 208
        %v3143 = vadd.s32 %v2504, 216
        %v3144 = vadd.s32 %v2504, 224
        %v3145 = vadd.s32 %v2504, 232
        %v3146 = vadd.s32 %v2504, 240
        %v3147 = vadd.s32 %v2504, 248
        %v3148 = vand.u32 %v2504, 7
        %v3149 = vand.u32 %v2505, 7
        %v3150 = vand.u32 %v2506, 7
        %v3151 = vand.u32 %v2507, 7
        %v3152 = vand.u32 %v3120, 7
        %v3153 = vand.u32 %v3121, 7
        %v3154 = vand.u32 %v3122, 7
        %v3155 = vand.u32 %v3123, 7
        %v3156 = vand.u32 %v3124, 7
        %v3157 = vand.u32 %v3125, 7
        %v3158 = vand.u32 %v3126, 7
        %v3159 = vand.u32 %v3127, 7
        %v3160 = vand.u32 %v3128, 7
        %v3161 = vand.u32 %v3129, 7
        %v3162 = vand.u32 %v3130, 7
        %v3163 = vand.u32 %v3131, 7
        %v3164 = vand.u32 %v3132, 7
        %v3165 = vand.u32 %v3133, 7
        %v3166 = vand.u32 %v3134, 7
        %v3167 = vand.u32 %v3135, 7
        %v3168 = vand.u32 %v3136, 7
        %v3169 = vand.u32 %v3137, 7
        %v3170 = vand.u32 %v3138, 7
        %v3171 = vand.u32 %v3139, 7
        %v3172 = vand.u32 %v3140, 7
        %v3173 = vand.u32 %v3141, 7
        %v3174 = vand.u32 %v3142, 7
        %v3175 = vand.u32 %v3143, 7
        %v3176 = vand.u32 %v3144, 7
        %v3177 = vand.u32 %v3145, 7
        %v3178 = vand.u32 %v3146, 7
        %v3179 = vand.u32 %v3147, 7
        %vm3180 = vcmp.eq.s32.totalorder %v3148, %v2545
        %vm3181 = vcmp.eq.s32.totalorder %v3149, %v2545
        %vm3182 = vcmp.eq.s32.totalorder %v3150, %v2545
        %vm3183 = vcmp.eq.s32.totalorder %v3151, %v2545
        %vm3184 = vcmp.eq.s32.totalorder %v3152, %v2545
        %vm3185 = vcmp.eq.s32.totalorder %v3153, %v2545
        %vm3186 = vcmp.eq.s32.totalorder %v3154, %v2545
        %vm3187 = vcmp.eq.s32.totalorder %v3155, %v2545
        %vm3188 = vcmp.eq.s32.totalorder %v3156, %v2545
        %vm3189 = vcmp.eq.s32.totalorder %v3157, %v2545
        %vm3190 = vcmp.eq.s32.totalorder %v3158, %v2545
        %vm3191 = vcmp.eq.s32.totalorder %v3159, %v2545
        %vm3192 = vcmp.eq.s32.totalorder %v3160, %v2545
        %vm3193 = vcmp.eq.s32.totalorder %v3161, %v2545
        %vm3194 = vcmp.eq.s32.totalorder %v3162, %v2545
        %vm3195 = vcmp.eq.s32.totalorder %v3163, %v2545
        %vm3196 = vcmp.eq.s32.totalorder %v3164, %v2545
        %vm3197 = vcmp.eq.s32.totalorder %v3165, %v2545
        %vm3198 = vcmp.eq.s32.totalorder %v3166, %v2545
        %vm3199 = vcmp.eq.s32.totalorder %v3167, %v2545
        %vm3200 = vcmp.eq.s32.totalorder %v3168, %v2545
        %vm3201 = vcmp.eq.s32.totalorder %v3169, %v2545
        %vm3202 = vcmp.eq.s32.totalorder %v3170, %v2545
        %vm3203 = vcmp.eq.s32.totalorder %v3171, %v2545
        %vm3204 = vcmp.eq.s32.totalorder %v3172, %v2545
        %vm3205 = vcmp.eq.s32.totalorder %v3173, %v2545
        %vm3206 = vcmp.eq.s32.totalorder %v3174, %v2545
        %vm3207 = vcmp.eq.s32.totalorder %v3175, %v2545
        %vm3208 = vcmp.eq.s32.totalorder %v3176, %v2545
        %vm3209 = vcmp.eq.s32.totalorder %v3177, %v2545
        %vm3210 = vcmp.eq.s32.totalorder %v3178, %v2545
        %vm3211 = vcmp.eq.s32.totalorder %v3179, %v2545
        %v3212 = vsel %vm3180, %v2963, 0.0
        %v3213 = vsel %vm3181, %v2967, 0.0
        %v3214 = vsel %vm3182, %v2971, 0.0
        %v3215 = vsel %vm3183, %v2975, 0.0
        %v3216 = vsel %vm3184, %v2979, 0.0
        %v3217 = vsel %vm3185, %v2983, 0.0
        %v3218 = vsel %vm3186, %v2987, 0.0
        %v3219 = vsel %vm3187, %v2991, 0.0
        %v3220 = vsel %vm3188, %v2995, 0.0
        %v3221 = vsel %vm3189, %v2999, 0.0
        %v3222 = vsel %vm3190, %v3003, 0.0
        %v3223 = vsel %vm3191, %v3007, 0.0
        %v3224 = vsel %vm3192, %v3011, 0.0
        %v3225 = vsel %vm3193, %v3015, 0.0
        %v3226 = vsel %vm3194, %v3019, 0.0
        %v3227 = vsel %vm3195, %v3023, 0.0
        %v3228 = vsel %vm3196, %v3027, 0.0
        %v3229 = vsel %vm3197, %v3031, 0.0
        %v3230 = vsel %vm3198, %v3035, 0.0
        %v3231 = vsel %vm3199, %v3039, 0.0
        %v3232 = vsel %vm3200, %v3043, 0.0
        %v3233 = vsel %vm3201, %v3047, 0.0
        %v3234 = vsel %vm3202, %v3051, 0.0
        %v3235 = vsel %vm3203, %v3055, 0.0
        %v3236 = vsel %vm3204, %v3059, 0.0
        %v3237 = vsel %vm3205, %v3063, 0.0
        %v3238 = vsel %vm3206, %v3067, 0.0
        %v3239 = vsel %vm3207, %v3071, 0.0
        %v3240 = vsel %vm3208, %v3075, 0.0
        %v3241 = vsel %vm3209, %v3079, 0.0
        %v3242 = vsel %vm3210, %v3083, 0.0
        %v3243 = vsel %vm3211, %v3087, 0.0
        %3244 = vxpose.xlu0.b32.start [1/16] %v3212, 128
        %3245 = vxpose.xlu0.b32.cont [2/16] %v3213, 128
        %3246 = vxpose.xlu0.b32.cont [3/16] %v3214, 128
        %3247 = vxpose.xlu0.b32.cont [4/16] %v3215, 128
        %3248 = vxpose.xlu0.b32.cont [5/16] %v3216, 128
        %3249 = vxpose.xlu0.b32.cont [6/16] %v3217, 128
        %3250 = vxpose.xlu0.b32.cont [7/16] %v3218, 128
        %3251 = vxpose.xlu0.b32.cont [8/16] %v3219, 128
        %3252 = vxpose.xlu0.b32.cont [9/16] %v3220, 128
        %3253 = vxpose.xlu0.b32.cont [10/16] %v3221, 128
        %3254 = vxpose.xlu0.b32.cont [11/16] %v3222, 128
        %3255 = vxpose.xlu0.b32.cont [12/16] %v3223, 128
        %3256 = vxpose.xlu0.b32.cont [13/16] %v3224, 128
        %3257 = vxpose.xlu0.b32.cont [14/16] %v3225, 128
        %3258 = vxpose.xlu0.b32.cont [15/16] %v3226, 128
        %3259 = vxpose.xlu0.b32.end [16/16] %v3227, 128
        %v3260 = vpop.trf.xlu0
        %v3261 = vpop.trf.xlu0
        %v3262 = vpop.trf.xlu0
        %v3263 = vpop.trf.xlu0
        %v3264 = vpop.trf.xlu0
        %v3265 = vpop.trf.xlu0
        %v3266 = vpop.trf.xlu0
        %v3267 = vpop.trf.xlu0
        %v3268 = vpop.trf.xlu0
        %v3269 = vpop.trf.xlu0
        %v3270 = vpop.trf.xlu0
        %v3271 = vpop.trf.xlu0
        %v3272 = vpop.trf.xlu0
        %v3273 = vpop.trf.xlu0
        %v3274 = vpop.trf.xlu0
        %v3275 = vpop.trf.xlu0
        %3276 = vxpose.xlu0.b32.start [1/16] %v3228, 128
        %3277 = vxpose.xlu0.b32.cont [2/16] %v3229, 128
        %3278 = vxpose.xlu0.b32.cont [3/16] %v3230, 128
        %3279 = vxpose.xlu0.b32.cont [4/16] %v3231, 128
        %3280 = vxpose.xlu0.b32.cont [5/16] %v3232, 128
        %3281 = vxpose.xlu0.b32.cont [6/16] %v3233, 128
        %3282 = vxpose.xlu0.b32.cont [7/16] %v3234, 128
        %3283 = vxpose.xlu0.b32.cont [8/16] %v3235, 128
        %3284 = vxpose.xlu0.b32.cont [9/16] %v3236, 128
        %3285 = vxpose.xlu0.b32.cont [10/16] %v3237, 128
        %3286 = vxpose.xlu0.b32.cont [11/16] %v3238, 128
        %3287 = vxpose.xlu0.b32.cont [12/16] %v3239, 128
        %3288 = vxpose.xlu0.b32.cont [13/16] %v3240, 128
        %3289 = vxpose.xlu0.b32.cont [14/16] %v3241, 128
        %3290 = vxpose.xlu0.b32.cont [15/16] %v3242, 128
        %3291 = vxpose.xlu0.b32.end [16/16] %v3243, 128
        %v3292 = vpop.trf.xlu0
        %v3293 = vpop.trf.xlu0
        %v3294 = vpop.trf.xlu0
        %v3295 = vpop.trf.xlu0
        %v3296 = vpop.trf.xlu0
        %v3297 = vpop.trf.xlu0
        %v3298 = vpop.trf.xlu0
        %v3299 = vpop.trf.xlu0
        %v3300 = vpop.trf.xlu0
        %v3301 = vpop.trf.xlu0
        %v3302 = vpop.trf.xlu0
        %v3303 = vpop.trf.xlu0
        %v3304 = vpop.trf.xlu0
        %v3305 = vpop.trf.xlu0
        %v3306 = vpop.trf.xlu0
        %v3307 = vpop.trf.xlu0
        %3308 = vmatprep.subr.mxu0 0.0
        %3309 = vmatpush1.msra.mxu0 %v2104
        %3310 = vmatprep.subr.mxu0 0.0
        %3311 = vmatpush1.msra.mxu0 %v2109
        %3312 = vmatprep.subr.mxu0 0.0
        %3313 = vmatpush1.msra.mxu0 %v2114
        %3314 = vmatprep.subr.mxu0 0.0
        %3315 = vmatpush1.msra.mxu0 %v2119
        %3316 = vmatprep.subr.mxu0 0.0
        %3317 = vmatpush1.msra.mxu0 %v2124
        %3318 = vmatprep.subr.mxu0 0.0
        %3319 = vmatpush1.msra.mxu0 %v2129
        %3320 = vmatprep.subr.mxu0 0.0
        %3321 = vmatpush1.msra.mxu0 %v2134
        %3322 = vmatprep.subr.mxu0 0.0
        %3323 = vmatpush1.msra.mxu0 %v2139
        %3324 = vmatprep.subr.mxu0 0.0
        %3325 = vmatpush1.msra.mxu0 %v2144
        %3326 = vmatprep.subr.mxu0 0.0
        %3327 = vmatpush1.msra.mxu0 %v2149
        %3328 = vmatprep.subr.mxu0 0.0
        %3329 = vmatpush1.msra.mxu0 %v2154
        %3330 = vmatprep.subr.mxu0 0.0
        %3331 = vmatpush1.msra.mxu0 %v2159
        %3332 = vmatprep.subr.mxu0 0.0
        %3333 = vmatpush1.msra.mxu0 %v2164
        %3334 = vmatprep.subr.mxu0 0.0
        %3335 = vmatpush1.msra.mxu0 %v2169
        %3336 = vmatprep.subr.mxu0 0.0
        %3337 = vmatpush1.msra.mxu0 %v2174
        %3338 = vmatprep.subr.mxu0 0.0
        %3339 = vmatpush1.msra.mxu0 %v2179
        %3340 = vmatprep.subr.mxu0 0.0
        %3341 = vmatpush1.msra.mxu0 %v2184
        %3342 = vmatprep.subr.mxu0 0.0
        %3343 = vmatpush1.msra.mxu0 %v2189
        %3344 = vmatprep.subr.mxu0 0.0
        %3345 = vmatpush1.msra.mxu0 %v2194
        %3346 = vmatprep.subr.mxu0 0.0
        %3347 = vmatpush1.msra.mxu0 %v2199
        %3348 = vmatprep.subr.mxu0 0.0
        %3349 = vmatpush1.msra.mxu0 %v2204
        %3350 = vmatprep.subr.mxu0 0.0
        %3351 = vmatpush1.msra.mxu0 %v2209
        %3352 = vmatprep.subr.mxu0 0.0
        %3353 = vmatpush1.msra.mxu0 %v2214
        %3354 = vmatprep.subr.mxu0 0.0
        %3355 = vmatpush1.msra.mxu0 %v2219
        %3356 = vmatprep.subr.mxu0 0.0
        %3357 = vmatpush1.msra.mxu0 %v2224
        %3358 = vmatprep.subr.mxu0 0.0
        %3359 = vmatpush1.msra.mxu0 %v2229
        %3360 = vmatprep.subr.mxu0 0.0
        %3361 = vmatpush1.msra.mxu0 %v2234
        %3362 = vmatprep.subr.mxu0 0.0
        %3363 = vmatpush1.msra.mxu0 %v2239
        %3364 = vmatprep.subr.mxu0 0.0
        %3365 = vmatpush1.msra.mxu0 %v2244
        %3366 = vmatprep.subr.mxu0 0.0
        %3367 = vmatpush1.msra.mxu0 %v2249
        %3368 = vmatprep.subr.mxu0 0.0
        %3369 = vmatpush1.msra.mxu0 %v2254
        %3370 = vmatprep.subr.mxu0 0.0
        %3371 = vmatpush1.msra.mxu0 %v2259
        %3372 = vmatprep.mubr.f32.mxu0 %v3292
        %3373 = vmatmul.mubr.f32.gmra.mrb[0].mxu0 %v3260
        %v3374 = vpop.f32.mrb[0].mxu0
        %v3375 = vadd.f32 0.0, %v3374
        %v3376 = vpop.f32.mrb[0].mxu0
        %3377 = vdwg.mxu0
        %v3378 = vld [vmem:[%s12] sm:$0xff]
        %v3379 = vld [vmem:[%s12 + $0x8] sm:$0xff]
        %v3380 = vld [vmem:[%s12 + $0x10] sm:$0xff]
        %v3381 = vld [vmem:[%s12 + $0x18] sm:$0xff]
        %v3382 = vld [vmem:[%s13] sm:$0x1]
        %v3384 = vlaneseq
        %v3385 = vshrl.u32 %v3384, 7
        %v3386 = vsub.s32 0, %v3385
        %v3387 = vrot.slane %v3382, %v3386
        %v3390 = vsel %vm1200, %v3375, 0
        %3392 = vmatprep.subr.mxu0 0.0
        %3393 = vmatpush1.msra.mxu0 %v3378
        %3394 = vmatprep.subr.mxu0 0.0
        %3395 = vmatpush1.msra.mxu0 %v3379
        %3396 = vmatprep.subr.mxu0 0.0
        %3397 = vmatpush1.msra.mxu0 %v3380
        %3398 = vmatprep.subr.mxu0 0.0
        %3399 = vmatpush1.msra.mxu0 %v3381
        %3400 = vmatprep.subr.mxu0 0.0
        %3401 = vmatpush1.msra.mxu0 0.0
        %3402 = vmatprep.subr.mxu0 0.0
        %3403 = vmatpush1.msra.mxu0 0.0
        %3404 = vmatprep.subr.mxu0 0.0
        %3405 = vmatpush1.msra.mxu0 0.0
        %3406 = vmatprep.subr.mxu0 0.0
        %3407 = vmatpush1.msra.mxu0 0.0
        %3408 = vmatprep.subr.mxu0 0.0
        %3409 = vmatpush1.msra.mxu0 0.0
        %3410 = vmatprep.subr.mxu0 0.0
        %3411 = vmatpush1.msra.mxu0 0.0
        %3412 = vmatprep.subr.mxu0 0.0
        %3413 = vmatpush1.msra.mxu0 0.0
        %3414 = vmatprep.subr.mxu0 0.0
        %3415 = vmatpush1.msra.mxu0 0.0
        %3416 = vmatprep.subr.mxu0 0.0
        %3417 = vmatpush1.msra.mxu0 0.0
        %3418 = vmatprep.subr.mxu0 0.0
        %3419 = vmatpush1.msra.mxu0 0.0
        %3420 = vmatprep.subr.mxu0 0.0
        %3421 = vmatpush1.msra.mxu0 0.0
        %3422 = vmatprep.subr.mxu0 0.0
        %3423 = vmatpush1.msra.mxu0 0.0
        %3424 = vmatprep.subr.mxu0 0.0
        %3425 = vmatpush1.msra.mxu0 0.0
        %3426 = vmatprep.subr.mxu0 0.0
        %3427 = vmatpush1.msra.mxu0 0.0
        %3428 = vmatprep.subr.mxu0 0.0
        %3429 = vmatpush1.msra.mxu0 0.0
        %3430 = vmatprep.subr.mxu0 0.0
        %3431 = vmatpush1.msra.mxu0 0.0
        %3432 = vmatprep.subr.mxu0 0.0
        %3433 = vmatpush1.msra.mxu0 0.0
        %3434 = vmatprep.subr.mxu0 0.0
        %3435 = vmatpush1.msra.mxu0 0.0
        %3436 = vmatprep.subr.mxu0 0.0
        %3437 = vmatpush1.msra.mxu0 0.0
        %3438 = vmatprep.subr.mxu0 0.0
        %3439 = vmatpush1.msra.mxu0 0.0
        %3440 = vmatprep.subr.mxu0 0.0
        %3441 = vmatpush1.msra.mxu0 0.0
        %3442 = vmatprep.subr.mxu0 0.0
        %3443 = vmatpush1.msra.mxu0 0.0
        %3444 = vmatprep.subr.mxu0 0.0
        %3445 = vmatpush1.msra.mxu0 0.0
        %3446 = vmatprep.subr.mxu0 0.0
        %3447 = vmatpush1.msra.mxu0 0.0
        %3448 = vmatprep.subr.mxu0 0.0
        %3449 = vmatpush1.msra.mxu0 0.0
        %3450 = vmatprep.subr.mxu0 0.0
        %3451 = vmatpush1.msra.mxu0 0.0
        %3452 = vmatprep.subr.mxu0 0.0
        %3453 = vmatpush1.msra.mxu0 0.0
        %3454 = vmatprep.subr.mxu0 0.0
        %3455 = vmatpush1.msra.mxu0 0.0
        %3456 = vmatprep.mubr.f32.mxu0 0.0
        %3457 = vmatmul.mubr.f32.gmra.mrb[0].mxu0 %v3390
        %v3458 = vpop.f32.mrb[0].mxu0
        %v3459 = vadd.f32 %v3387, %v3458
        %v3460 = vpop.f32.mrb[0].mxu0
        %3461 = vdwg.mxu0
        %v3462 = vadd.f32 %v1166, %v3459
        %v3463 = vld [vmem:[%s14] sm:$0x1]
        %v3464 = vld [vmem:[%s15] sm:$0x1]
        %v3465 = vsel %vm1200, %v3462, 0.0
        %3466 = vadd.xlane.f32.xlu0 %v3465
        %v3467 = vpop.xlane.xlu0 %3466
        %v3468 = vmul.f32 %v3467, %v1297
        %v3469 = vsub.f32 %v3462, %v3468
        %v3470 = vmul.f32 %v3469, %v3469
        %v3471 = vsel %vm1200, %v3470, 0.0
        %3472 = vadd.xlane.f32.xlu0 %v3471
        %v3473 = vpop.xlane.xlu0 %3472
        %v3474 = vmul.f32 %v3473, %v1297
        %v3475 = vadd.f32 %v3474, 1e-05
        %v3476 = vrsqrt.pop %v3475
        %v3477 = vmul.f32 %v3469, %v3476
        %v3479 = vlaneseq
        %v3480 = vshrl.u32 %v3479, 7
        %v3481 = vsub.s32 0, %v3480
        %v3482 = vrot.slane %v3463, %v3481
        %v3484 = vmul.f32 %v3477, %v3482
        %v3486 = vlaneseq
        %v3487 = vshrl.u32 %v3486, 7
        %v3488 = vsub.s32 0, %v3487
        %v3489 = vrot.slane %v3464, %v3488
        %v3491 = vadd.f32 %v3484, %v3489
        %v3492 = vld [vmem:[%s16] sm:$0xff]
        %v3493 = vld [vmem:[%s16 + $0x8] sm:$0xff]
        %v3494 = vld [vmem:[%s16 + $0x10] sm:$0xff]
        %v3495 = vld [vmem:[%s16 + $0x18] sm:$0xff]
        %v3496 = vld [vmem:[%s17] sm:$0x1]
        %v3498 = vlaneseq
        %v3499 = vshrl.u32 %v3498, 7
        %v3500 = vsub.s32 0, %v3499
        %v3501 = vrot.slane %v3496, %v3500
        %v3504 = vsel %vm1200, %v3491, 0
        %3506 = vmatprep.subr.mxu0 0.0
        %3507 = vmatpush1.msra.mxu0 %v3492
        %3508 = vmatprep.subr.mxu0 0.0
        %3509 = vmatpush1.msra.mxu0 %v3493
        %3510 = vmatprep.subr.mxu0 0.0
        %3511 = vmatpush1.msra.mxu0 %v3494
        %3512 = vmatprep.subr.mxu0 0.0
        %3513 = vmatpush1.msra.mxu0 %v3495
        %3514 = vmatprep.subr.mxu0 0.0
        %3515 = vmatpush1.msra.mxu0 0.0
        %3516 = vmatprep.subr.mxu0 0.0
        %3517 = vmatpush1.msra.mxu0 0.0
        %3518 = vmatprep.subr.mxu0 0.0
        %3519 = vmatpush1.msra.mxu0 0.0
        %3520 = vmatprep.subr.mxu0 0.0
        %3521 = vmatpush1.msra.mxu0 0.0
        %3522 = vmatprep.subr.mxu0 0.0
        %3523 = vmatpush1.msra.mxu0 0.0
        %3524 = vmatprep.subr.mxu0 0.0
        %3525 = vmatpush1.msra.mxu0 0.0
        %3526 = vmatprep.subr.mxu0 0.0
        %3527 = vmatpush1.msra.mxu0 0.0
        %3528 = vmatprep.subr.mxu0 0.0
        %3529 = vmatpush1.msra.mxu0 0.0
        %3530 = vmatprep.subr.mxu0 0.0
        %3531 = vmatpush1.msra.mxu0 0.0
        %3532 = vmatprep.subr.mxu0 0.0
        %3533 = vmatpush1.msra.mxu0 0.0
        %3534 = vmatprep.subr.mxu0 0.0
        %3535 = vmatpush1.msra.mxu0 0.0
        %3536 = vmatprep.subr.mxu0 0.0
        %3537 = vmatpush1.msra.mxu0 0.0
        %3538 = vmatprep.subr.mxu0 0.0
        %3539 = vmatpush1.msra.mxu0 0.0
        %3540 = vmatprep.subr.mxu0 0.0
        %3541 = vmatpush1.msra.mxu0 0.0
        %3542 = vmatprep.subr.mxu0 0.0
        %3543 = vmatpush1.msra.mxu0 0.0
        %3544 = vmatprep.subr.mxu0 0.0
        %3545 = vmatpush1.msra.mxu0 0.0
        %3546 = vmatprep.subr.mxu0 0.0
        %3547 = vmatpush1.msra.mxu0 0.0
        %3548 = vmatprep.subr.mxu0 0.0
        %3549 = vmatpush1.msra.mxu0 0.0
        %3550 = vmatprep.subr.mxu0 0.0
        %3551 = vmatpush1.msra.mxu0 0.0
        %3552 = vmatprep.subr.mxu0 0.0
        %3553 = vmatpush1.msra.mxu0 0.0
        %3554 = vmatprep.subr.mxu0 0.0
        %3555 = vmatpush1.msra.mxu0 0.0
        %3556 = vmatprep.subr.mxu0 0.0
        %3557 = vmatpush1.msra.mxu0 0.0
        %3558 = vmatprep.subr.mxu0 0.0
        %3559 = vmatpush1.msra.mxu0 0.0
        %3560 = vmatprep.subr.mxu0 0.0
        %3561 = vmatpush1.msra.mxu0 0.0
        %3562 = vmatprep.subr.mxu0 0.0
        %3563 = vmatpush1.msra.mxu0 0.0
        %3564 = vmatprep.subr.mxu0 0.0
        %3565 = vmatpush1.msra.mxu0 0.0
        %3566 = vmatprep.subr.mxu0 0.0
        %3567 = vmatpush1.msra.mxu0 0.0
        %3568 = vmatprep.subr.mxu0 0.0
        %3569 = vmatpush1.msra.mxu0 0.0
        %3570 = vmatprep.mubr.f32.mxu0 0.0
        %3571 = vmatmul.mubr.f32.gmra.mrb[0].mxu0 %v3504
        %v3572 = vpop.f32.mrb[0].mxu0
        %v3573 = vadd.f32 %v3501, %v3572
        %v3574 = vpop.f32.mrb[0].mxu0
        %3575 = vdwg.mxu0
        %v3576 = vmax.f32 %v3573, 0.0
        %v3577 = vld [vmem:[%s18] sm:$0xff]
        %v3578 = vld [vmem:[%s18 + $0x8] sm:$0xff]
        %v3579 = vld [vmem:[%s18 + $0x10] sm:$0xff]
        %v3580 = vld [vmem:[%s18 + $0x18] sm:$0xff]
        %v3581 = vld [vmem:[%s18 + $0x20] sm:$0xff]
        %v3582 = vld [vmem:[%s18 + $0x28] sm:$0xff]
        %v3583 = vld [vmem:[%s18 + $0x30] sm:$0xff]
        %v3584 = vld [vmem:[%s18 + $0x38] sm:$0xff]
        %v3585 = vld [vmem:[%s19] sm:$0x1]
        %v3587 = vlaneseq
        %v3588 = vshrl.u32 %v3587, 7
        %v3589 = vsub.s32 0, %v3588
        %v3590 = vrot.slane %v3585, %v3589
        %vm3592 = vcmask 523264
        %v3594 = vsel %vm3592, %v3576, 0
        %3596 = vmatprep.subr.mxu0 0.0
        %3597 = vmatpush1.msra.mxu0 %v3577
        %3598 = vmatprep.subr.mxu0 0.0
        %3599 = vmatpush1.msra.mxu0 %v3578
        %3600 = vmatprep.subr.mxu0 0.0
        %3601 = vmatpush1.msra.mxu0 %v3579
        %3602 = vmatprep.subr.mxu0 0.0
        %3603 = vmatpush1.msra.mxu0 %v3580
        %3604 = vmatprep.subr.mxu0 0.0
        %3605 = vmatpush1.msra.mxu0 %v3581
        %3606 = vmatprep.subr.mxu0 0.0
        %3607 = vmatpush1.msra.mxu0 %v3582
        %3608 = vmatprep.subr.mxu0 0.0
        %3609 = vmatpush1.msra.mxu0 %v3583
        %3610 = vmatprep.subr.mxu0 0.0
        %3611 = vmatpush1.msra.mxu0 %v3584
        %3612 = vmatprep.subr.mxu0 0.0
        %3613 = vmatpush1.msra.mxu0 0.0
        %3614 = vmatprep.subr.mxu0 0.0
        %3615 = vmatpush1.msra.mxu0 0.0
        %3616 = vmatprep.subr.mxu0 0.0
        %3617 = vmatpush1.msra.mxu0 0.0
        %3618 = vmatprep.subr.mxu0 0.0
        %3619 = vmatpush1.msra.mxu0 0.0
        %3620 = vmatprep.subr.mxu0 0.0
        %3621 = vmatpush1.msra.mxu0 0.0
        %3622 = vmatprep.subr.mxu0 0.0
        %3623 = vmatpush1.msra.mxu0 0.0
        %3624 = vmatprep.subr.mxu0 0.0
        %3625 = vmatpush1.msra.mxu0 0.0
        %3626 = vmatprep.subr.mxu0 0.0
        %3627 = vmatpush1.msra.mxu0 0.0
        %3628 = vmatprep.subr.mxu0 0.0
        %3629 = vmatpush1.msra.mxu0 0.0
        %3630 = vmatprep.subr.mxu0 0.0
        %3631 = vmatpush1.msra.mxu0 0.0
        %3632 = vmatprep.subr.mxu0 0.0
        %3633 = vmatpush1.msra.mxu0 0.0
        %3634 = vmatprep.subr.mxu0 0.0
        %3635 = vmatpush1.msra.mxu0 0.0
        %3636 = vmatprep.subr.mxu0 0.0
        %3637 = vmatpush1.msra.mxu0 0.0
        %3638 = vmatprep.subr.mxu0 0.0
        %3639 = vmatpush1.msra.mxu0 0.0
        %3640 = vmatprep.subr.mxu0 0.0
        %3641 = vmatpush1.msra.mxu0 0.0
        %3642 = vmatprep.subr.mxu0 0.0
        %3643 = vmatpush1.msra.mxu0 0.0
        %3644 = vmatprep.subr.mxu0 0.0
        %3645 = vmatpush1.msra.mxu0 0.0
        %3646 = vmatprep.subr.mxu0 0.0
        %3647 = vmatpush1.msra.mxu0 0.0
        %3648 = vmatprep.subr.mxu0 0.0
        %3649 = vmatpush1.msra.mxu0 0.0
        %3650 = vmatprep.subr.mxu0 0.0
        %3651 = vmatpush1.msra.mxu0 0.0
        %3652 = vmatprep.subr.mxu0 0.0
        %3653 = vmatpush1.msra.mxu0 0.0
        %3654 = vmatprep.subr.mxu0 0.0
        %3655 = vmatpush1.msra.mxu0 0.0
        %3656 = vmatprep.subr.mxu0 0.0
        %3657 = vmatpush1.msra.mxu0 0.0
        %3658 = vmatprep.subr.mxu0 0.0
        %3659 = vmatpush1.msra.mxu0 0.0
        %3660 = vmatprep.mubr.f32.mxu0 0.0
        %3661 = vmatmul.mubr.f32.gmra.mrb[0].mxu0 %v3594
        %v3662 = vpop.f32.mrb[0].mxu0
        %v3663 = vadd.f32 %v3590, %v3662
        %v3664 = vpop.f32.mrb[0].mxu0
        %3665 = vdwg.mxu0
        %v3666 = vadd.f32 %v3462, %v3663
        %3667 = vst.msk [vmem:[%s798] sm:$0xff] %vm1200, %v3666
        %s3668 = sand.u32 %s472, 1
        %s3669 = scalar_lea.sflag [#allocation4], %s3668
        %s3670 = sand.u32 %s472, 1
        %s3671 = smul.addr %s3670, 8
        %s3672 = scalar_lea.vmem [#allocation3], %s3671
        // Predicated region
        $region139: #{tpu_custom_call.1} parent=133 // pred_check
          %p3673 = pneg %p482
        $region140: #{tpu_custom_call.1} parent=133 // pred_check_branch
          %3675 = sbr.rel (%p3673) target = $region142
        $region141: #{tpu_custom_call.1} parent=133 // pred_region
          %s3677 = ssub.s32 128, 128
          %3678 = vsyncadd %s3669, %s3677
          %s3679 = smul.addr %s34, 128
          %s3680 = scalar_lea.hbm %s20, %s3679
          %s3682 = sshll.u32 %s3672, 4
          %s3683 = int_to_ptr.vmem [resolvable:$true] %s3682
          %3685 = dma.vmem_to_hbm [thread:$0]  %s3683, 128, %s3680, %s3669
        $region142: #{tpu_custom_call.1} parent=133 // pred_fallthru
          _
      $region134: #{tpu_custom_call.1} parent=5 // pred_fallthru
        _
      %p3686 = scmp.le.s32.totalorder 2, %s29
      // Predicated region
      $region143: #{tpu_custom_call.1} parent=5 // pred_check
        %p3687 = pneg %p3686
      $region144: #{tpu_custom_call.1} parent=5 // pred_check_branch
        %3689 = sbr.rel (%p3687) target = $region146
      $region145: #{tpu_custom_call.1} parent=5 // pred_region
        %s3690 = ssub.s32 %s29, 2
        // Predicated region
        $region147: #{tpu_custom_call.1} parent=145 // pred_check
          %p3691 = pneg %p488
        $region148: #{tpu_custom_call.1} parent=145 // pred_check_branch
          %3693 = sbr.rel (%p3691) target = $region150
        $region149: #{tpu_custom_call.1} parent=145 // pred_region
          %s3694 = sand.u32 %s473, 1
          %s3695 = scalar_lea.sflag [#allocation4], %s3694
          %s3696 = sand.u32 %s473, 1
          %s3697 = smul.addr %s3696, 8
          %s3698 = scalar_lea.vmem [#allocation3], %s3697
          %3699 = dma.done %s3695, 128
        $region150: #{tpu_custom_call.1} parent=145 // pred_fallthru
          _
      $region146: #{tpu_custom_call.1} parent=5 // pred_fallthru
        _
    $region6: #{tpu_custom_call.1} parent=1 // loop_footer
      %s33 = sadd.s32 1, %s29
    $region7: #{tpu_custom_call.1} parent=1 // loop_footer_branch
      %28 = sbr.rel target = $region3
    $region8: #{tpu_custom_call.1} parent=1 // loop_exit
      _
    %3700 = vsyncpa [#allocation4], 1
    %s3701 = scalar_lea.sflag [#allocation4], 1
    %3702 = vsyncpa %s3701, 1

</llo_original>
